<compile_context>
chip_gen: v6e
topology: v6e:2x2x1
jax: 0.10.0
libtpu: 0.0.40
codegen_flags: <defaults>
</compile_context>

<pallas_src>
import jax
import jax.numpy as jnp
from jax.experimental import pallas as pl
from jax.experimental.pallas import tpu as pltpu

BN_EPS = 1e-5
IN_DIM = 16
H1 = 512
H2 = 2048
OUT_DIM = 2
PAD_OUT = 128          # lane-dense padded width for the final layer / output
NEG_BIG = -1e30        # pad-lane bias -> exp() == 0, softmax unaffected


def _round_up(n, m):
    return ((n + m - 1) // m) * m


def net_kernel(x_ref,
               w1_ref, b1_ref,
               w2_ref, b2_ref,
               w3_ref, b3_ref,
               w4_ref, b4_ref,
               o_ref):
    xb = x_ref[...].astype(jnp.bfloat16)                                # (TB, 16)

    # layer_1 + ReLU   (dropout = identity in eval)
    h = jnp.dot(xb, w1_ref[...], preferred_element_type=jnp.float32)
    h = jnp.maximum(h + b1_ref[...], 0.0)                               # (TB, 512)

    # layer_2 + ReLU   (eval-mode BatchNorm folded into w2/b2)
    h = jnp.dot(h.astype(jnp.bfloat16), w2_ref[...],
                preferred_element_type=jnp.float32)
    h = jnp.maximum(h + b2_ref[...], 0.0)                               # (TB, 2048)

    # layer_3 + ReLU
    h = jnp.dot(h.astype(jnp.bfloat16), w3_ref[...],
                preferred_element_type=jnp.float32)
    h = jnp.maximum(h + b3_ref[...], 0.0)                               # (TB, 512)

    # layer_4 (padded to 128 lanes) + softmax; pad lanes have bias -1e30 so
    # their exp() is exactly 0 and the 2-class softmax is unchanged.
    logits = jnp.dot(h.astype(jnp.bfloat16), w4_ref[...],
                     preferred_element_type=jnp.float32)
    logits = logits + b4_ref[...]                                       # (TB, 128)
    m = jnp.max(logits, axis=-1, keepdims=True)
    e = jnp.exp(logits - m)
    o_ref[...] = e / jnp.sum(e, axis=-1, keepdims=True)


def prepare_kernel_params(p):
    """Fold BN into layer_2, pad layer_4 to 128 lanes, cast weights to bf16."""
    scale = p["gamma"] * jax.lax.rsqrt(p["var"] + BN_EPS)               # (1, 512)
    shift = p["beta"] - p["mean"] * scale                               # (1, 512)
    w2f = (p["w2"] * scale.reshape(-1, 1)).astype(jnp.bfloat16)         # (512, 2048)
    b2f = p["b2"] + shift @ p["w2"]                                     # (1, 2048)
    w4p = (jnp.zeros((H1, PAD_OUT), jnp.float32)
           .at[:, :OUT_DIM].set(p["w4"])).astype(jnp.bfloat16)          # (512, 128)
    b4p = (jnp.full((1, PAD_OUT), NEG_BIG, jnp.float32)
           .at[:, :OUT_DIM].set(p["b4"]))                               # (1, 128)
    return dict(
        w1=p["w1"].astype(jnp.bfloat16), b1=p["b1"],
        w2=w2f, b2=b2f,
        w3=p["w3"].astype(jnp.bfloat16), b3=p["b3"],
        w4=w4p, b4=b4p,
    )


def net_forward(x, params, *, tile_b=256):
    """x: (B, 16) float32. params: raw module params. Returns (B, 2) softmax."""
    kp = prepare_kernel_params(params)

    B = x.shape[0]
    tile_b = min(tile_b, _round_up(B, 8))
    B_pad = _round_up(B, tile_b)
    if B_pad != B:
        x = jnp.pad(x, ((0, B_pad - B), (0, 0)))
    grid = (B_pad // tile_b,)

    x_spec = pl.BlockSpec((tile_b, IN_DIM), lambda i: (i, 0))
    out_spec = pl.BlockSpec((tile_b, PAD_OUT), lambda i: (i, 0))

    def resident(shape):
        # Full-array block, constant block index -> stays VMEM-resident across
        # grid steps (no re-DMA of weights per batch tile).
        return pl.BlockSpec(shape, lambda i: (0, 0))

    in_specs = [
        x_spec,
        resident((IN_DIM, H1)), resident((1, H1)),
        resident((H1, H2)),     resident((1, H2)),
        resident((H2, H1)),     resident((1, H1)),
        resident((H1, PAD_OUT)), resident((1, PAD_OUT)),
    ]

    out = pl.pallas_call(
        net_kernel,
        out_shape=jax.ShapeDtypeStruct((B_pad, PAD_OUT), jnp.float32),
        grid=grid,
        in_specs=in_specs,
        out_specs=out_spec,
        compiler_params=pltpu.CompilerParams(
            dimension_semantics=("parallel",),
            vmem_limit_bytes=32 << 20,
        ),
    )(x,
      kp["w1"], kp["b1"],
      kp["w2"], kp["b2"],
      kp["w3"], kp["b3"],
      kp["w4"], kp["b4"])

    return out[:B, :OUT_DIM]


def init_params(key):
    """Deterministic parameter init (shapes from the module __init__)."""
    ks = jax.random.split(key, 12)

    def linear(kw, kb, fan_in, fan_out):
        # PyTorch default: U(-1/sqrt(fan_in), 1/sqrt(fan_in))
        bound = 1.0 / jnp.sqrt(fan_in)
        w = jax.random.uniform(kw, (fan_in, fan_out), jnp.float32, -bound, bound)
        b = jax.random.uniform(kb, (1, fan_out), jnp.float32, -bound, bound)
        return w, b

    w1, b1 = linear(ks[0], ks[1], IN_DIM, H1)
    w2, b2 = linear(ks[2], ks[3], H1, H2)
    w3, b3 = linear(ks[4], ks[5], H2, H1)
    w4, b4 = linear(ks[6], ks[7], H1, OUT_DIM)
    # Non-trivial BN running stats / affine so the layer_2 fold is exercised.
    gamma = jax.random.uniform(ks[8], (1, H1), jnp.float32, 0.5, 1.5)
    beta = 0.1 * jax.random.normal(ks[9], (1, H1), jnp.float32)
    mean = 0.1 * jax.random.normal(ks[10], (1, H1), jnp.float32)
    var = jax.random.uniform(ks[11], (1, H1), jnp.float32, 0.5, 1.5)
    return dict(w1=w1, b1=b1, w2=w2, b2=b2, w3=w3, b3=b3, w4=w4, b4=b4,
                gamma=gamma, beta=beta, mean=mean, var=var)


def net_forward_mirror(x, kp):
    """Pure-JAX mirror of the kernel numerics (bf16 weights, folded BN)."""
    h = jnp.dot(x.astype(jnp.bfloat16), kp["w1"],
                preferred_element_type=jnp.float32)
    h = jnp.maximum(h + kp["b1"], 0.0)
    h = jnp.dot(h.astype(jnp.bfloat16), kp["w2"],
                preferred_element_type=jnp.float32)
    h = jnp.maximum(h + kp["b2"], 0.0)
    h = jnp.dot(h.astype(jnp.bfloat16), kp["w3"],
                preferred_element_type=jnp.float32)
    h = jnp.maximum(h + kp["b3"], 0.0)
    logits = jnp.dot(h.astype(jnp.bfloat16), kp["w4"],
                     preferred_element_type=jnp.float32) + kp["b4"]
    return jax.nn.softmax(logits[:, :OUT_DIM], axis=-1)


def net_forward_ref(x, p):
    """Pure f32 reference with original PyTorch-style (eval) semantics."""
    h = jnp.maximum(x @ p["w1"] + p["b1"], 0.0)
    h = (h - p["mean"]) * jax.lax.rsqrt(p["var"] + BN_EPS) * p["gamma"] + p["beta"]
    h = jnp.maximum(h @ p["w2"] + p["b2"], 0.0)
    h = jnp.maximum(h @ p["w3"] + p["b3"], 0.0)
    logits = h @ p["w4"] + p["b4"]
    return jax.nn.softmax(logits, axis=-1)


if __name__ == "__main__":
    key = jax.random.PRNGKey(0)
    kx, kparam = jax.random.split(key)
    B = 8
    x = jax.random.normal(kx, (B, IN_DIM), jnp.float32)
    params = init_params(kparam)

    out = jax.block_until_ready(net_forward(x, params))
    assert out.shape == (B, OUT_DIM)

    # Strict check vs a pure-JAX mirror of the kernel numerics (bf16 weights,
    # folded BN, f32 accumulation).
    mirror = net_forward_mirror(x, prepare_kernel_params(params))
    assert jnp.allclose(out, mirror, atol=2e-3, rtol=0.0), "mismatch vs bf16 mirror"

    # Looser check vs the full-f32 PyTorch-semantics reference (bf16 weight
    # rounding is the only semantic delta).
    ref = net_forward_ref(x, params)
    assert jnp.allclose(out, ref, atol=2e-2, rtol=0.0), "mismatch vs f32 reference"
    assert jnp.allclose(jnp.sum(out, axis=-1), 1.0, atol=1e-5), "softmax rows must sum to 1"

    print("KERNEL_OK")
</pallas_src>

<mosaic_0001>
module attributes {stable_mosaic.version = 11 : i64} {
  func.func @net_kernel(%arg0: i32, %arg1: memref<8x16xf32, #tpu.memory_space<vmem>>, %arg2: memref<16x512xbf16, #tpu.memory_space<vmem>>, %arg3: memref<1x512xf32, #tpu.memory_space<vmem>>, %arg4: memref<512x2048xbf16, #tpu.memory_space<vmem>>, %arg5: memref<1x2048xf32, #tpu.memory_space<vmem>>, %arg6: memref<2048x512xbf16, #tpu.memory_space<vmem>>, %arg7: memref<1x512xf32, #tpu.memory_space<vmem>>, %arg8: memref<512x128xbf16, #tpu.memory_space<vmem>>, %arg9: memref<1x128xf32, #tpu.memory_space<vmem>>, %arg10: memref<8x128xf32, #tpu.memory_space<vmem>>) attributes {dimension_semantics = [#tpu.dimension_semantics<parallel>], iteration_bounds = array<i64: 1>, scalar_prefetch = 0 : i64, scratch_operands = 0 : i64, tpu.core_type = #tpu.core_type<tc>, window_params = [{transform_indices = @transform_0, window_bounds = array<i64: 8, 16>}, {pipeline_mode = #tpu.pipeline_mode<synchronous>, transform_indices = @transform_1, window_bounds = array<i64: 16, 512>}, {pipeline_mode = #tpu.pipeline_mode<synchronous>, transform_indices = @transform_2, window_bounds = array<i64: 1, 512>}, {pipeline_mode = #tpu.pipeline_mode<synchronous>, transform_indices = @transform_3, window_bounds = array<i64: 512, 2048>}, {pipeline_mode = #tpu.pipeline_mode<synchronous>, transform_indices = @transform_4, window_bounds = array<i64: 1, 2048>}, {pipeline_mode = #tpu.pipeline_mode<synchronous>, transform_indices = @transform_5, window_bounds = array<i64: 2048, 512>}, {pipeline_mode = #tpu.pipeline_mode<synchronous>, transform_indices = @transform_6, window_bounds = array<i64: 1, 512>}, {pipeline_mode = #tpu.pipeline_mode<synchronous>, transform_indices = @transform_7, window_bounds = array<i64: 512, 128>}, {pipeline_mode = #tpu.pipeline_mode<synchronous>, transform_indices = @transform_8, window_bounds = array<i64: 1, 128>}, {transform_indices = @transform_9, window_bounds = array<i64: 8, 128>}]} {
    %c0 = arith.constant 0 : index
    %c0_0 = arith.constant 0 : index
    %0 = vector.load %arg1[%c0, %c0_0] : memref<8x16xf32, #tpu.memory_space<vmem>>, vector<8x16xf32>
    %1 = arith.truncf %0 : vector<8x16xf32> to vector<8x16xbf16>
    %c0_1 = arith.constant 0 : index
    %c0_2 = arith.constant 0 : index
    %2 = vector.load %arg2[%c0_1, %c0_2] : memref<16x512xbf16, #tpu.memory_space<vmem>>, vector<16x512xbf16>
    %cst = arith.constant dense<0.000000e+00> : vector<8x512xf32>
    %3 = tpu.matmul %1, %2, %cst {dimension_numbers = #tpu.dot_dimension_numbers<[1], [0], [0], [1], [0, 0, 1, 1], [], []>} : vector<8x16xbf16>, vector<16x512xbf16>, vector<8x512xf32> -> vector<8x512xf32>
    %c0_3 = arith.constant 0 : index
    %c0_4 = arith.constant 0 : index
    %4 = vector.load %arg3[%c0_3, %c0_4] : memref<1x512xf32, #tpu.memory_space<vmem>>, vector<1x512xf32>
    %5 = vector.broadcast %4 : vector<1x512xf32> to vector<8x512xf32>
    %6 = arith.addf %3, %5 : vector<8x512xf32>
    %cst_5 = arith.constant 0.000000e+00 : f32
    %7 = vector.broadcast %cst_5 : f32 to vector<8x512xf32>
    %8 = arith.maximumf %6, %7 : vector<8x512xf32>
    %9 = arith.truncf %8 : vector<8x512xf32> to vector<8x512xbf16>
    %c0_6 = arith.constant 0 : index
    %c0_7 = arith.constant 0 : index
    %10 = vector.load %arg4[%c0_6, %c0_7] : memref<512x2048xbf16, #tpu.memory_space<vmem>>, vector<512x2048xbf16>
    %cst_8 = arith.constant dense<0.000000e+00> : vector<8x2048xf32>
    %11 = tpu.matmul %9, %10, %cst_8 {dimension_numbers = #tpu.dot_dimension_numbers<[1], [0], [0], [1], [0, 0, 1, 1], [], []>} : vector<8x512xbf16>, vector<512x2048xbf16>, vector<8x2048xf32> -> vector<8x2048xf32>
    %c0_9 = arith.constant 0 : index
    %c0_10 = arith.constant 0 : index
    %12 = vector.load %arg5[%c0_9, %c0_10] : memref<1x2048xf32, #tpu.memory_space<vmem>>, vector<1x2048xf32>
    %13 = vector.broadcast %12 : vector<1x2048xf32> to vector<8x2048xf32>
    %14 = arith.addf %11, %13 : vector<8x2048xf32>
    %cst_11 = arith.constant 0.000000e+00 : f32
    %15 = vector.broadcast %cst_11 : f32 to vector<8x2048xf32>
    %16 = arith.maximumf %14, %15 : vector<8x2048xf32>
    %17 = arith.truncf %16 : vector<8x2048xf32> to vector<8x2048xbf16>
    %c0_12 = arith.constant 0 : index
    %c0_13 = arith.constant 0 : index
    %18 = vector.load %arg6[%c0_12, %c0_13] : memref<2048x512xbf16, #tpu.memory_space<vmem>>, vector<2048x512xbf16>
    %cst_14 = arith.constant dense<0.000000e+00> : vector<8x512xf32>
    %19 = tpu.matmul %17, %18, %cst_14 {dimension_numbers = #tpu.dot_dimension_numbers<[1], [0], [0], [1], [0, 0, 1, 1], [], []>} : vector<8x2048xbf16>, vector<2048x512xbf16>, vector<8x512xf32> -> vector<8x512xf32>
    %c0_15 = arith.constant 0 : index
    %c0_16 = arith.constant 0 : index
    %20 = vector.load %arg7[%c0_15, %c0_16] : memref<1x512xf32, #tpu.memory_space<vmem>>, vector<1x512xf32>
    %21 = vector.broadcast %20 : vector<1x512xf32> to vector<8x512xf32>
    %22 = arith.addf %19, %21 : vector<8x512xf32>
    %cst_17 = arith.constant 0.000000e+00 : f32
    %23 = vector.broadcast %cst_17 : f32 to vector<8x512xf32>
    %24 = arith.maximumf %22, %23 : vector<8x512xf32>
    %25 = arith.truncf %24 : vector<8x512xf32> to vector<8x512xbf16>
    %c0_18 = arith.constant 0 : index
    %c0_19 = arith.constant 0 : index
    %26 = vector.load %arg8[%c0_18, %c0_19] : memref<512x128xbf16, #tpu.memory_space<vmem>>, vector<512x128xbf16>
    %cst_20 = arith.constant dense<0.000000e+00> : vector<8x128xf32>
    %27 = tpu.matmul %25, %26, %cst_20 {dimension_numbers = #tpu.dot_dimension_numbers<[1], [0], [0], [1], [0, 0, 1, 1], [], []>} : vector<8x512xbf16>, vector<512x128xbf16>, vector<8x128xf32> -> vector<8x128xf32>
    %c0_21 = arith.constant 0 : index
    %c0_22 = arith.constant 0 : index
    %28 = vector.load %arg9[%c0_21, %c0_22] : memref<1x128xf32, #tpu.memory_space<vmem>>, vector<1x128xf32>
    %29 = vector.broadcast %28 : vector<1x128xf32> to vector<8x128xf32>
    %30 = arith.addf %27, %29 : vector<8x128xf32>
    %cst_23 = arith.constant dense<0xFF800000> : vector<8xf32>
    %31 = vector.multi_reduction <maximumf>, %30, %cst_23 [1] : vector<8x128xf32> to vector<8xf32>
    %32 = vector.shape_cast %31 : vector<8xf32> to vector<8x1xf32>
    %33 = vector.broadcast %32 : vector<8x1xf32> to vector<8x128xf32>
    %34 = arith.subf %30, %33 : vector<8x128xf32>
    %35 = math.exp %34 : vector<8x128xf32>
    %cst_24 = arith.constant dense<0.000000e+00> : vector<8xf32>
    %36 = vector.multi_reduction <add>, %35, %cst_24 [1] : vector<8x128xf32> to vector<8xf32>
    %37 = vector.shape_cast %36 : vector<8xf32> to vector<8x1xf32>
    %38 = vector.broadcast %37 : vector<8x1xf32> to vector<8x128xf32>
    %39 = arith.divf %35, %38 : vector<8x128xf32>
    %c0_25 = arith.constant 0 : index
    %c0_26 = arith.constant 0 : index
    %40 = vector.load %arg10[%c0_25, %c0_26] : memref<8x128xf32, #tpu.memory_space<vmem>>, vector<8x128xf32>
    tpu.vector_store %arg10[%c0_25, %c0_26], %39 {strides = array<i32>} : memref<8x128xf32, #tpu.memory_space<vmem>>, vector<8x128xf32>,
    return
  }
  func.func @transform_0(%arg0: i32) -> (i32, i32) {
    %c0_i32 = arith.constant 0 : i32
    %c0_i32_0 = arith.constant 0 : i32
    return %arg0, %c0_i32 : i32, i32
  }
  func.func @transform_1(%arg0: i32) -> (i32, i32) {
    %c0_i32 = arith.constant 0 : i32
    %c0_i32_0 = arith.constant 0 : i32
    %c0_i32_1 = arith.constant 0 : i32
    return %c0_i32, %c0_i32_0 : i32, i32
  }
  func.func @transform_2(%arg0: i32) -> (i32, i32) {
    %c0_i32 = arith.constant 0 : i32
    %c0_i32_0 = arith.constant 0 : i32
    %c0_i32_1 = arith.constant 0 : i32
    return %c0_i32, %c0_i32_0 : i32, i32
  }
  func.func @transform_3(%arg0: i32) -> (i32, i32) {
    %c0_i32 = arith.constant 0 : i32
    %c0_i32_0 = arith.constant 0 : i32
    %c0_i32_1 = arith.constant 0 : i32
    return %c0_i32, %c0_i32_0 : i32, i32
  }
  func.func @transform_4(%arg0: i32) -> (i32, i32) {
    %c0_i32 = arith.constant 0 : i32
    %c0_i32_0 = arith.constant 0 : i32
    %c0_i32_1 = arith.constant 0 : i32
    return %c0_i32, %c0_i32_0 : i32, i32
  }
  func.func @transform_5(%arg0: i32) -> (i32, i32) {
    %c0_i32 = arith.constant 0 : i32
    %c0_i32_0 = arith.constant 0 : i32
    %c0_i32_1 = arith.constant 0 : i32
    return %c0_i32, %c0_i32_0 : i32, i32
  }
  func.func @transform_6(%arg0: i32) -> (i32, i32) {
    %c0_i32 = arith.constant 0 : i32
    %c0_i32_0 = arith.constant 0 : i32
    %c0_i32_1 = arith.constant 0 : i32
    return %c0_i32, %c0_i32_0 : i32, i32
  }
  func.func @transform_7(%arg0: i32) -> (i32, i32) {
    %c0_i32 = arith.constant 0 : i32
    %c0_i32_0 = arith.constant 0 : i32
    %c0_i32_1 = arith.constant 0 : i32
    return %c0_i32, %c0_i32_0 : i32, i32
  }
  func.func @transform_8(%arg0: i32) -> (i32, i32) {
    %c0_i32 = arith.constant 0 : i32
    %c0_i32_0 = arith.constant 0 : i32
    %c0_i32_1 = arith.constant 0 : i32
    return %c0_i32, %c0_i32_0 : i32, i32
  }
  func.func @transform_9(%arg0: i32) -> (i32, i32) {
    %c0_i32 = arith.constant 0 : i32
    %c0_i32_0 = arith.constant 0 : i32
    return %arg0, %c0_i32 : i32, i32
  }
}

</mosaic_0001>

<llo_original>
// kernel: tpu_custom_call.1
$region0: #{tpu_custom_call.1}
  #allocation0 [shape = 'u32[]', space=smem, size = 0x4, offset = 0x4, fixed_abs, tag = 'smem constant byte address 0x4 - core index']
  #allocation1 [shape = 'u32[144,128]{1,0:T(1,128)}', space=vmem, size = 0x12000, scoped, tag = 'internal scratch']
  %s0 = inlined_call_operand.hbm [shape: f32[8,16], index: 0, kind: input, shape index: {}]
  %s1 = inlined_call_operand.hbm [shape: bf16[16,512], index: 1, kind: input, shape index: {}]
  %s2 = inlined_call_operand.hbm [shape: f32[1,512], index: 2, kind: input, shape index: {}]
  %s3 = inlined_call_operand.hbm [shape: bf16[512,2048], index: 3, kind: input, shape index: {}]
  %s4 = inlined_call_operand.hbm [shape: f32[1,2048], index: 4, kind: input, shape index: {}]
  %s5 = inlined_call_operand.hbm [shape: bf16[2048,512], index: 5, kind: input, shape index: {}]
  %s6 = inlined_call_operand.hbm [shape: f32[1,512], index: 6, kind: input, shape index: {}]
  %s7 = inlined_call_operand.hbm [shape: bf16[512,128], index: 7, kind: input, shape index: {}]
  %s8 = inlined_call_operand.hbm [shape: f32[1,128], index: 8, kind: input, shape index: {}]
  %s9 = inlined_call_operand.hbm [shape: f32[8,128], index: 9, kind: output, shape index: {}]
  %s10 = sld [smem:[#allocation0]]
  $region82: #{tpu_custom_call.1} parent=0
    _
  %s12 = ssub.s32 1, %s10
  %s13 = scalar_select 0, %s12, %s10
  $region1: #{tpu_custom_call.1} parent=0
    #allocation2 [shape = 'u8[4096]{0}', space=vmem, size = 0x1000, scoped, tag = 'input window, operand 0, single buffered']
    #allocation3 [shape = 's32[1]{0}', space=sflag, size = 0x4, scoped, tag = 'scoped memory for tpu_custom_call.1']
    #allocation4 [shape = 's32[1]{0}', space=sflag, size = 0x4, scoped, tag = 'scoped memory for tpu_custom_call.1']
    #allocation5 [shape = 'u8[16384]{0}', space=vmem, size = 0x4000, scoped, tag = 'input window, operand 1, single buffered']
    #allocation6 [shape = 's32[1]{0}', space=sflag, size = 0x4, scoped, tag = 'scoped memory for tpu_custom_call.1']
    #allocation7 [shape = 'u8[2048]{0}', space=vmem, size = 0x800, scoped, tag = 'input window, operand 2, single buffered']
    #allocation8 [shape = 'u8[2097152]{0}', space=vmem, size = 0x200000, scoped, tag = 'input window, operand 3, single buffered']
    #allocation9 [shape = 's32[1]{0}', space=sflag, size = 0x4, scoped, tag = 'scoped memory for tpu_custom_call.1']
    #allocation10 [shape = 'u8[8192]{0}', space=vmem, size = 0x2000, scoped, tag = 'input window, operand 4, single buffered']
    #allocation11 [shape = 'u8[2097152]{0}', space=vmem, size = 0x200000, scoped, tag = 'input window, operand 5, single buffered']
    #allocation12 [shape = 's32[1]{0}', space=sflag, size = 0x4, scoped, tag = 'scoped memory for tpu_custom_call.1']
    #allocation13 [shape = 'u8[2048]{0}', space=vmem, size = 0x800, scoped, tag = 'input window, operand 6, single buffered']
    #allocation14 [shape = 'u8[131072]{0}', space=vmem, size = 0x20000, scoped, tag = 'input window, operand 7, single buffered']
    #allocation15 [shape = 's32[1]{0}', space=sflag, size = 0x4, scoped, tag = 'scoped memory for tpu_custom_call.1']
    #allocation16 [shape = 'u8[512]{0}', space=vmem, size = 0x400, scoped, tag = 'input window, operand 8, single buffered']
    #allocation17 [shape = 'u8[4096]{0}', space=vmem, size = 0x1000, scoped, tag = 'output window, operand 0, single buffered']
    %14 = vsyncpa [#allocation3], 0
    %15 = vsyncpa [#allocation6], 0
    %16 = vsyncpa [#allocation9], 0
    %17 = vsyncpa [#allocation12], 0
    %18 = vsyncpa [#allocation15], 0
    %19 = vsyncpa [#allocation4], 0
    // Predicated region
    $region2: #{tpu_custom_call.1} parent=1 // pred_check
      _
    $region3: #{tpu_custom_call.1} parent=1 // pred_check_branch
      %21 = sbr.rel (0) target = $region5
    $region4: #{tpu_custom_call.1} parent=1 // pred_region
      %s23 = ssub.s32 128, 128
      %24 = vsyncadd [#allocation3], %s23
      %s26 = sshll.u32 [#allocation2], 4
      %s27 = int_to_ptr.vmem [resolvable:$true] %s26
      %29 = dma.hbm_to_vmem [thread:$0]  %s0, 128, %s27, [#allocation3]
    $region5: #{tpu_custom_call.1} parent=1 // pred_fallthru
      _
    // Predicated region
    $region6: #{tpu_custom_call.1} parent=1 // pred_check
      _
    $region7: #{tpu_custom_call.1} parent=1 // pred_check_branch
      %31 = sbr.rel (0) target = $region9
    $region8: #{tpu_custom_call.1} parent=1 // pred_region
      %s33 = ssub.s32 512, 512
      %34 = vsyncadd [#allocation6], %s33
      %s35 = sshll.u32 [#allocation5], 4
      %s36 = int_to_ptr.vmem [resolvable:$true] %s35
      %41 = dma.hbm_to_vmem [thread:$0]  %s1, 512, %s36, [#allocation6], 256, 256, 16
    $region9: #{tpu_custom_call.1} parent=1 // pred_fallthru
      _
    // Predicated region
    $region10: #{tpu_custom_call.1} parent=1 // pred_check
      _
    $region11: #{tpu_custom_call.1} parent=1 // pred_check_branch
      %43 = sbr.rel (0) target = $region13
    $region12: #{tpu_custom_call.1} parent=1 // pred_region
      %s45 = ssub.s32 64, 64
      %46 = vsyncadd [#allocation6], %s45
      %s48 = sshll.u32 [#allocation7], 4
      %s49 = int_to_ptr.vmem [resolvable:$true] %s48
      %51 = dma.hbm_to_vmem [thread:$0]  %s2, 64, %s49, [#allocation6]
    $region13: #{tpu_custom_call.1} parent=1 // pred_fallthru
      _
    // Predicated region
    $region14: #{tpu_custom_call.1} parent=1 // pred_check
      _
    $region15: #{tpu_custom_call.1} parent=1 // pred_check_branch
      %53 = sbr.rel (0) target = $region17
    $region16: #{tpu_custom_call.1} parent=1 // pred_region
      %s55 = ssub.s32 65536, 65536
      %56 = vsyncadd [#allocation9], %s55
      %s57 = sshll.u32 [#allocation8], 4
      %s58 = int_to_ptr.vmem [resolvable:$true] %s57
      %63 = dma.hbm_to_vmem [thread:$0]  %s3, 65536, %s58, [#allocation9], 1024, 1024, 64
    $region17: #{tpu_custom_call.1} parent=1 // pred_fallthru
      _
    // Predicated region
    $region18: #{tpu_custom_call.1} parent=1 // pred_check
      _
    $region19: #{tpu_custom_call.1} parent=1 // pred_check_branch
      %65 = sbr.rel (0) target = $region21
    $region20: #{tpu_custom_call.1} parent=1 // pred_region
      %s67 = ssub.s32 256, 256
      %68 = vsyncadd [#allocation9], %s67
      %s70 = sshll.u32 [#allocation10], 4
      %s71 = int_to_ptr.vmem [resolvable:$true] %s70
      %73 = dma.hbm_to_vmem [thread:$0]  %s4, 256, %s71, [#allocation9]
    $region21: #{tpu_custom_call.1} parent=1 // pred_fallthru
      _
    // Predicated region
    $region22: #{tpu_custom_call.1} parent=1 // pred_check
      _
    $region23: #{tpu_custom_call.1} parent=1 // pred_check_branch
      %75 = sbr.rel (0) target = $region25
    $region24: #{tpu_custom_call.1} parent=1 // pred_region
      %s77 = ssub.s32 65536, 65536
      %78 = vsyncadd [#allocation12], %s77
      %s79 = sshll.u32 [#allocation11], 4
      %s80 = int_to_ptr.vmem [resolvable:$true] %s79
      %85 = dma.hbm_to_vmem [thread:$0]  %s5, 65536, %s80, [#allocation12], 256, 256, 16
    $region25: #{tpu_custom_call.1} parent=1 // pred_fallthru
      _
    // Predicated region
    $region26: #{tpu_custom_call.1} parent=1 // pred_check
      _
    $region27: #{tpu_custom_call.1} parent=1 // pred_check_branch
      %87 = sbr.rel (0) target = $region29
    $region28: #{tpu_custom_call.1} parent=1 // pred_region
      %s89 = ssub.s32 64, 64
      %90 = vsyncadd [#allocation12], %s89
      %s92 = sshll.u32 [#allocation13], 4
      %s93 = int_to_ptr.vmem [resolvable:$true] %s92
      %95 = dma.hbm_to_vmem [thread:$0]  %s6, 64, %s93, [#allocation12]
    $region29: #{tpu_custom_call.1} parent=1 // pred_fallthru
      _
    // Predicated region
    $region30: #{tpu_custom_call.1} parent=1 // pred_check
      _
    $region31: #{tpu_custom_call.1} parent=1 // pred_check_branch
      %97 = sbr.rel (0) target = $region33
    $region32: #{tpu_custom_call.1} parent=1 // pred_region
      %s99 = ssub.s32 4096, 4096
      %100 = vsyncadd [#allocation15], %s99
      %s101 = sshll.u32 [#allocation14], 4
      %s102 = int_to_ptr.vmem [resolvable:$true] %s101
      %107 = dma.hbm_to_vmem [thread:$0]  %s7, 4096, %s102, [#allocation15], 64, 64, 4
    $region33: #{tpu_custom_call.1} parent=1 // pred_fallthru
      _
    // Predicated region
    $region34: #{tpu_custom_call.1} parent=1 // pred_check
      _
    $region35: #{tpu_custom_call.1} parent=1 // pred_check_branch
      %109 = sbr.rel (0) target = $region37
    $region36: #{tpu_custom_call.1} parent=1 // pred_region
      %s111 = ssub.s32 16, 16
      %112 = vsyncadd [#allocation15], %s111
      %s114 = sshll.u32 [#allocation16], 4
      %s115 = int_to_ptr.vmem [resolvable:$true] %s114
      %117 = dma.hbm_to_vmem [thread:$0]  %s8, 16, %s115, [#allocation15]
    $region37: #{tpu_custom_call.1} parent=1 // pred_fallthru
      _
    // Predicated region
    $region38: #{tpu_custom_call.1} parent=1 // pred_check
      _
    $region39: #{tpu_custom_call.1} parent=1 // pred_check_branch
      %119 = sbr.rel (0) target = $region41
    $region40: #{tpu_custom_call.1} parent=1 // pred_region
      %120 = dma.done [#allocation3], 128
    $region41: #{tpu_custom_call.1} parent=1 // pred_fallthru
      _
    // Predicated region
    $region42: #{tpu_custom_call.1} parent=1 // pred_check
      _
    $region43: #{tpu_custom_call.1} parent=1 // pred_check_branch
      %122 = sbr.rel (0) target = $region45
    $region44: #{tpu_custom_call.1} parent=1 // pred_region
      %123 = dma.done [#allocation6], 512
    $region45: #{tpu_custom_call.1} parent=1 // pred_fallthru
      _
    // Predicated region
    $region46: #{tpu_custom_call.1} parent=1 // pred_check
      _
    $region47: #{tpu_custom_call.1} parent=1 // pred_check_branch
      %125 = sbr.rel (0) target = $region49
    $region48: #{tpu_custom_call.1} parent=1 // pred_region
      %126 = dma.done [#allocation6], 64
    $region49: #{tpu_custom_call.1} parent=1 // pred_fallthru
      _
    // Predicated region
    $region50: #{tpu_custom_call.1} parent=1 // pred_check
      _
    $region51: #{tpu_custom_call.1} parent=1 // pred_check_branch
      %128 = sbr.rel (0) target = $region53
    $region52: #{tpu_custom_call.1} parent=1 // pred_region
      %129 = dma.done [#allocation9], 65536
    $region53: #{tpu_custom_call.1} parent=1 // pred_fallthru
      _
    // Predicated region
    $region54: #{tpu_custom_call.1} parent=1 // pred_check
      _
    $region55: #{tpu_custom_call.1} parent=1 // pred_check_branch
      %131 = sbr.rel (0) target = $region57
    $region56: #{tpu_custom_call.1} parent=1 // pred_region
      %132 = dma.done [#allocation9], 256
    $region57: #{tpu_custom_call.1} parent=1 // pred_fallthru
      _
    // Predicated region
    $region58: #{tpu_custom_call.1} parent=1 // pred_check
      _
    $region59: #{tpu_custom_call.1} parent=1 // pred_check_branch
      %134 = sbr.rel (0) target = $region61
    $region60: #{tpu_custom_call.1} parent=1 // pred_region
      %135 = dma.done [#allocation12], 65536
    $region61: #{tpu_custom_call.1} parent=1 // pred_fallthru
      _
    // Predicated region
    $region62: #{tpu_custom_call.1} parent=1 // pred_check
      _
    $region63: #{tpu_custom_call.1} parent=1 // pred_check_branch
      %137 = sbr.rel (0) target = $region65
    $region64: #{tpu_custom_call.1} parent=1 // pred_region
      %138 = dma.done [#allocation12], 64
    $region65: #{tpu_custom_call.1} parent=1 // pred_fallthru
      _
    // Predicated region
    $region66: #{tpu_custom_call.1} parent=1 // pred_check
      _
    $region67: #{tpu_custom_call.1} parent=1 // pred_check_branch
      %140 = sbr.rel (0) target = $region69
    $region68: #{tpu_custom_call.1} parent=1 // pred_region
      %141 = dma.done [#allocation15], 4096
    $region69: #{tpu_custom_call.1} parent=1 // pred_fallthru
      _
    // Predicated region
    $region70: #{tpu_custom_call.1} parent=1 // pred_check
      _
    $region71: #{tpu_custom_call.1} parent=1 // pred_check_branch
      %143 = sbr.rel (0) target = $region73
    $region72: #{tpu_custom_call.1} parent=1 // pred_region
      %144 = dma.done [#allocation15], 16
    $region73: #{tpu_custom_call.1} parent=1 // pred_fallthru
      _
    %v146 = vld [vmem:[#allocation2] sm:$0xff]
    %v147 = vpack.c.bf16 %v146, %v146
    %v148 = vld [vmem:[#allocation5] sm:$0xff]
    %v149 = vld [vmem:[#allocation5 + $0x8] sm:$0xff]
    %v150 = vld [vmem:[#allocation5 + $0x10] sm:$0xff]
    %v151 = vld [vmem:[#allocation5 + $0x18] sm:$0xff]
    %v152 = vld [vmem:[#allocation7] sm:$0xf]
    %v154 = vlaneseq
    %v155 = vshrl.u32 %v154, 7
    %v156 = vsub.s32 0, %v155
    %v157 = vrot.slane %v152, %v156
    %v158 = vlaneseq
    %v159 = vshrl.u32 %v158, 7
    %v160 = vsub.s32 1, %v159
    %v161 = vrot.slane %v152, %v160
    %v162 = vlaneseq
    %v163 = vshrl.u32 %v162, 7
    %v164 = vsub.s32 2, %v163
    %v165 = vrot.slane %v152, %v164
    %v166 = vlaneseq
    %v167 = vshrl.u32 %v166, 7
    %v168 = vsub.s32 3, %v167
    %v169 = vrot.slane %v152, %v168
    %v178 = vunpack.c.l.b16 %v148
    %v179 = vunpack.c.h.b16 %v148
    %v180 = vunpack.c.l.b16 %v149
    %v181 = vunpack.c.h.b16 %v149
    %v182 = vunpack.c.l.b16 %v150
    %v183 = vunpack.c.h.b16 %v150
    %v184 = vunpack.c.l.b16 %v151
    %v185 = vunpack.c.h.b16 %v151
    %v186 = vpack.c.b16 %v182, %v178
    %v187 = vpack.c.b16 %v183, %v179
    %v188 = vpack.c.b16 %v184, %v180
    %v189 = vpack.c.b16 %v185, %v181
    %vm194 = vcmask 130048
    %v196 = vsel %vm194, %v147, 0
    %198 = vmatprep.subr.bf16.mxu0 0
    %199 = vmatpush1.bf16.msra.mxu0 0
    %200 = vmatprep.subr.bf16.mxu0 0
    %201 = vmatpush1.bf16.msra.mxu0 0
    %202 = vmatprep.subr.bf16.mxu0 0
    %203 = vmatpush1.bf16.msra.mxu0 0
    %204 = vmatprep.subr.bf16.mxu0 0
    %205 = vmatpush1.bf16.msra.mxu0 0
    %206 = vmatprep.subr.bf16.mxu0 0
    %207 = vmatpush1.bf16.msra.mxu0 0
    %208 = vmatprep.subr.bf16.mxu0 0
    %209 = vmatpush1.bf16.msra.mxu0 0
    %210 = vmatprep.subr.bf16.mxu0 0
    %211 = vmatpush1.bf16.msra.mxu0 0
    %212 = vmatprep.subr.bf16.mxu0 %v187
    %213 = vmatpush1.bf16.msra.mxu0 %v186
    %214 = vmatprep.subr.bf16.mxu0 0
    %215 = vmatpush2.bf16.msra.mxu0 0
    %216 = vmatprep.subr.bf16.mxu0 0
    %217 = vmatpush2.bf16.msra.mxu0 0
    %218 = vmatprep.subr.bf16.mxu0 0
    %219 = vmatpush2.bf16.msra.mxu0 0
    %220 = vmatprep.subr.bf16.mxu0 0
    %221 = vmatpush2.bf16.msra.mxu0 0
    %222 = vmatprep.subr.bf16.mxu0 0
    %223 = vmatpush2.bf16.msra.mxu0 0
    %224 = vmatprep.subr.bf16.mxu0 0
    %225 = vmatpush2.bf16.msra.mxu0 0
    %226 = vmatprep.subr.bf16.mxu0 0
    %227 = vmatpush2.bf16.msra.mxu0 0
    %228 = vmatprep.subr.bf16.mxu0 0
    %229 = vmatpush2.bf16.msra.mxu0 0
    %230 = vmatprep.mubr.bf16.mxu0 0
    %231 = vmatmul.mubr.bf16.gmra.mxu0 %v196
    %v232 = vpop.f32.mrf.mxu0
    %v233 = vadd.f32 %v157, %v232
    %v234 = vpop.f32.mrf.mxu0
    %v235 = vadd.f32 %v161, %v234
    %v236 = vpop.f32.mrf.mxu0
    %v237 = vpop.f32.mrf.mxu0
    %238 = vdwg.mxu0
    %239 = vmatprep.subr.bf16.mxu0 0
    %240 = vmatpush1.bf16.msra.mxu0 0
    %241 = vmatprep.subr.bf16.mxu0 0
    %242 = vmatpush1.bf16.msra.mxu0 0
    %243 = vmatprep.subr.bf16.mxu0 0
    %244 = vmatpush1.bf16.msra.mxu0 0
    %245 = vmatprep.subr.bf16.mxu0 0
    %246 = vmatpush1.bf16.msra.mxu0 0
    %247 = vmatprep.subr.bf16.mxu0 0
    %248 = vmatpush1.bf16.msra.mxu0 0
    %249 = vmatprep.subr.bf16.mxu0 0
    %250 = vmatpush1.bf16.msra.mxu0 0
    %251 = vmatprep.subr.bf16.mxu0 0
    %252 = vmatpush1.bf16.msra.mxu0 0
    %253 = vmatprep.subr.bf16.mxu0 %v189
    %254 = vmatpush1.bf16.msra.mxu0 %v188
    %255 = vmatprep.subr.bf16.mxu0 0
    %256 = vmatpush2.bf16.msra.mxu0 0
    %257 = vmatprep.subr.bf16.mxu0 0
    %258 = vmatpush2.bf16.msra.mxu0 0
    %259 = vmatprep.subr.bf16.mxu0 0
    %260 = vmatpush2.bf16.msra.mxu0 0
    %261 = vmatprep.subr.bf16.mxu0 0
    %262 = vmatpush2.bf16.msra.mxu0 0
    %263 = vmatprep.subr.bf16.mxu0 0
    %264 = vmatpush2.bf16.msra.mxu0 0
    %265 = vmatprep.subr.bf16.mxu0 0
    %266 = vmatpush2.bf16.msra.mxu0 0
    %267 = vmatprep.subr.bf16.mxu0 0
    %268 = vmatpush2.bf16.msra.mxu0 0
    %269 = vmatprep.subr.bf16.mxu0 0
    %270 = vmatpush2.bf16.msra.mxu0 0
    %271 = vmatprep.mubr.bf16.mxu0 0
    %272 = vmatmul.mubr.bf16.gmra.mxu0 %v196
    %v273 = vpop.f32.mrf.mxu0
    %v274 = vadd.f32 %v165, %v273
    %v275 = vpop.f32.mrf.mxu0
    %v276 = vadd.f32 %v169, %v275
    %v277 = vpop.f32.mrf.mxu0
    %v278 = vpop.f32.mrf.mxu0
    %279 = vdwg.mxu0
    %v280 = vmax.f32 %v233, 0.0
    %v281 = vmax.f32 %v235, 0.0
    %v282 = vmax.f32 %v274, 0.0
    %v283 = vmax.f32 %v276, 0.0
    %v284 = vpack.c.bf16 %v280, %v280
    %v285 = vpack.c.bf16 %v281, %v281
    %v286 = vpack.c.bf16 %v282, %v282
    %v287 = vpack.c.bf16 %v283, %v283
    %v288 = vld [vmem:[#allocation8] sm:$0xff]
    %v289 = vld [vmem:[#allocation8 + $0x8] sm:$0xff]
    %v290 = vld [vmem:[#allocation8 + $0x10] sm:$0xff]
    %v291 = vld [vmem:[#allocation8 + $0x18] sm:$0xff]
    %v292 = vld [vmem:[#allocation8 + $0x20] sm:$0xff]
    %v293 = vld [vmem:[#allocation8 + $0x28] sm:$0xff]
    %v294 = vld [vmem:[#allocation8 + $0x30] sm:$0xff]
    %v295 = vld [vmem:[#allocation8 + $0x38] sm:$0xff]
    %v296 = vld [vmem:[#allocation8 + $0x40] sm:$0xff]
    %v297 = vld [vmem:[#allocation8 + $0x48] sm:$0xff]
    %v298 = vld [vmem:[#allocation8 + $0x50] sm:$0xff]
    %v299 = vld [vmem:[#allocation8 + $0x58] sm:$0xff]
    %v300 = vld [vmem:[#allocation8 + $0x60] sm:$0xff]
    %v301 = vld [vmem:[#allocation8 + $0x68] sm:$0xff]
    %v302 = vld [vmem:[#allocation8 + $0x70] sm:$0xff]
    %v303 = vld [vmem:[#allocation8 + $0x78] sm:$0xff]
    %v304 = vld [vmem:[#allocation8 + $0x80] sm:$0xff]
    %v305 = vld [vmem:[#allocation8 + $0x88] sm:$0xff]
    %v306 = vld [vmem:[#allocation8 + $0x90] sm:$0xff]
    %v307 = vld [vmem:[#allocation8 + $0x98] sm:$0xff]
    %v308 = vld [vmem:[#allocation8 + $0xa0] sm:$0xff]
    %v309 = vld [vmem:[#allocation8 + $0xa8] sm:$0xff]
    %v310 = vld [vmem:[#allocation8 + $0xb0] sm:$0xff]
    %v311 = vld [vmem:[#allocation8 + $0xb8] sm:$0xff]
    %v312 = vld [vmem:[#allocation8 + $0xc0] sm:$0xff]
    %v313 = vld [vmem:[#allocation8 + $0xc8] sm:$0xff]
    %v314 = vld [vmem:[#allocation8 + $0xd0] sm:$0xff]
    %v315 = vld [vmem:[#allocation8 + $0xd8] sm:$0xff]
    %v316 = vld [vmem:[#allocation8 + $0xe0] sm:$0xff]
    %v317 = vld [vmem:[#allocation8 + $0xe8] sm:$0xff]
    %v318 = vld [vmem:[#allocation8 + $0xf0] sm:$0xff]
    %v319 = vld [vmem:[#allocation8 + $0xf8] sm:$0xff]
    %v320 = vld [vmem:[#allocation8 + $0x100] sm:$0xff]
    %v321 = vld [vmem:[#allocation8 + $0x108] sm:$0xff]
    %v322 = vld [vmem:[#allocation8 + $0x110] sm:$0xff]
    %v323 = vld [vmem:[#allocation8 + $0x118] sm:$0xff]
    %v324 = vld [vmem:[#allocation8 + $0x120] sm:$0xff]
    %v325 = vld [vmem:[#allocation8 + $0x128] sm:$0xff]
    %v326 = vld [vmem:[#allocation8 + $0x130] sm:$0xff]
    %v327 = vld [vmem:[#allocation8 + $0x138] sm:$0xff]
    %v328 = vld [vmem:[#allocation8 + $0x140] sm:$0xff]
    %v329 = vld [vmem:[#allocation8 + $0x148] sm:$0xff]
    %v330 = vld [vmem:[#allocation8 + $0x150] sm:$0xff]
    %v331 = vld [vmem:[#allocation8 + $0x158] sm:$0xff]
    %v332 = vld [vmem:[#allocation8 + $0x160] sm:$0xff]
    %v333 = vld [vmem:[#allocation8 + $0x168] sm:$0xff]
    %v334 = vld [vmem:[#allocation8 + $0x170] sm:$0xff]
    %v335 = vld [vmem:[#allocation8 + $0x178] sm:$0xff]
    %v336 = vld [vmem:[#allocation8 + $0x180] sm:$0xff]
    %v337 = vld [vmem:[#allocation8 + $0x188] sm:$0xff]
    %v338 = vld [vmem:[#allocation8 + $0x190] sm:$0xff]
    %v339 = vld [vmem:[#allocation8 + $0x198] sm:$0xff]
    %v340 = vld [vmem:[#allocation8 + $0x1a0] sm:$0xff]
    %v341 = vld [vmem:[#allocation8 + $0x1a8] sm:$0xff]
    %v342 = vld [vmem:[#allocation8 + $0x1b0] sm:$0xff]
    %v343 = vld [vmem:[#allocation8 + $0x1b8] sm:$0xff]
    %v344 = vld [vmem:[#allocation8 + $0x1c0] sm:$0xff]
    %v345 = vld [vmem:[#allocation8 + $0x1c8] sm:$0xff]
    %v346 = vld [vmem:[#allocation8 + $0x1d0] sm:$0xff]
    %v347 = vld [vmem:[#allocation8 + $0x1d8] sm:$0xff]
    %v348 = vld [vmem:[#allocation8 + $0x1e0] sm:$0xff]
    %v349 = vld [vmem:[#allocation8 + $0x1e8] sm:$0xff]
    %v350 = vld [vmem:[#allocation8 + $0x1f0] sm:$0xff]
    %v351 = vld [vmem:[#allocation8 + $0x1f8] sm:$0xff]
    %v352 = vld [vmem:[#allocation8 + $0x200] sm:$0xff]
    %v353 = vld [vmem:[#allocation8 + $0x208] sm:$0xff]
    %v354 = vld [vmem:[#allocation8 + $0x210] sm:$0xff]
    %v355 = vld [vmem:[#allocation8 + $0x218] sm:$0xff]
    %v356 = vld [vmem:[#allocation8 + $0x220] sm:$0xff]
    %v357 = vld [vmem:[#allocation8 + $0x228] sm:$0xff]
    %v358 = vld [vmem:[#allocation8 + $0x230] sm:$0xff]
    %v359 = vld [vmem:[#allocation8 + $0x238] sm:$0xff]
    %v360 = vld [vmem:[#allocation8 + $0x240] sm:$0xff]
    %v361 = vld [vmem:[#allocation8 + $0x248] sm:$0xff]
    %v362 = vld [vmem:[#allocation8 + $0x250] sm:$0xff]
    %v363 = vld [vmem:[#allocation8 + $0x258] sm:$0xff]
    %v364 = vld [vmem:[#allocation8 + $0x260] sm:$0xff]
    %v365 = vld [vmem:[#allocation8 + $0x268] sm:$0xff]
    %v366 = vld [vmem:[#allocation8 + $0x270] sm:$0xff]
    %v367 = vld [vmem:[#allocation8 + $0x278] sm:$0xff]
    %v368 = vld [vmem:[#allocation8 + $0x280] sm:$0xff]
    %v369 = vld [vmem:[#allocation8 + $0x288] sm:$0xff]
    %v370 = vld [vmem:[#allocation8 + $0x290] sm:$0xff]
    %v371 = vld [vmem:[#allocation8 + $0x298] sm:$0xff]
    %v372 = vld [vmem:[#allocation8 + $0x2a0] sm:$0xff]
    %v373 = vld [vmem:[#allocation8 + $0x2a8] sm:$0xff]
    %v374 = vld [vmem:[#allocation8 + $0x2b0] sm:$0xff]
    %v375 = vld [vmem:[#allocation8 + $0x2b8] sm:$0xff]
    %v376 = vld [vmem:[#allocation8 + $0x2c0] sm:$0xff]
    %v377 = vld [vmem:[#allocation8 + $0x2c8] sm:$0xff]
    %v378 = vld [vmem:[#allocation8 + $0x2d0] sm:$0xff]
    %v379 = vld [vmem:[#allocation8 + $0x2d8] sm:$0xff]
    %v380 = vld [vmem:[#allocation8 + $0x2e0] sm:$0xff]
    %v381 = vld [vmem:[#allocation8 + $0x2e8] sm:$0xff]
    %v382 = vld [vmem:[#allocation8 + $0x2f0] sm:$0xff]
    %v383 = vld [vmem:[#allocation8 + $0x2f8] sm:$0xff]
    %v384 = vld [vmem:[#allocation8 + $0x300] sm:$0xff]
    %v385 = vld [vmem:[#allocation8 + $0x308] sm:$0xff]
    %v386 = vld [vmem:[#allocation8 + $0x310] sm:$0xff]
    %v387 = vld [vmem:[#allocation8 + $0x318] sm:$0xff]
    %v388 = vld [vmem:[#allocation8 + $0x320] sm:$0xff]
    %v389 = vld [vmem:[#allocation8 + $0x328] sm:$0xff]
    %v390 = vld [vmem:[#allocation8 + $0x330] sm:$0xff]
    %v391 = vld [vmem:[#allocation8 + $0x338] sm:$0xff]
    %v392 = vld [vmem:[#allocation8 + $0x340] sm:$0xff]
    %v393 = vld [vmem:[#allocation8 + $0x348] sm:$0xff]
    %v394 = vld [vmem:[#allocation8 + $0x350] sm:$0xff]
    %v395 = vld [vmem:[#allocation8 + $0x358] sm:$0xff]
    %v396 = vld [vmem:[#allocation8 + $0x360] sm:$0xff]
    %v397 = vld [vmem:[#allocation8 + $0x368] sm:$0xff]
    %v398 = vld [vmem:[#allocation8 + $0x370] sm:$0xff]
    %v399 = vld [vmem:[#allocation8 + $0x378] sm:$0xff]
    %v400 = vld [vmem:[#allocation8 + $0x380] sm:$0xff]
    %v401 = vld [vmem:[#allocation8 + $0x388] sm:$0xff]
    %v402 = vld [vmem:[#allocation8 + $0x390] sm:$0xff]
    %v403 = vld [vmem:[#allocation8 + $0x398] sm:$0xff]
    %v404 = vld [vmem:[#allocation8 + $0x3a0] sm:$0xff]
    %v405 = vld [vmem:[#allocation8 + $0x3a8] sm:$0xff]
    %v406 = vld [vmem:[#allocation8 + $0x3b0] sm:$0xff]
    %v407 = vld [vmem:[#allocation8 + $0x3b8] sm:$0xff]
    %v408 = vld [vmem:[#allocation8 + $0x3c0] sm:$0xff]
    %v409 = vld [vmem:[#allocation8 + $0x3c8] sm:$0xff]
    %v410 = vld [vmem:[#allocation8 + $0x3d0] sm:$0xff]
    %v411 = vld [vmem:[#allocation8 + $0x3d8] sm:$0xff]
    %v412 = vld [vmem:[#allocation8 + $0x3e0] sm:$0xff]
    %v413 = vld [vmem:[#allocation8 + $0x3e8] sm:$0xff]
    %v414 = vld [vmem:[#allocation8 + $0x3f0] sm:$0xff]
    %v415 = vld [vmem:[#allocation8 + $0x3f8] sm:$0xff]
    %v416 = vld [vmem:[#allocation8 + $0x400] sm:$0xff]
    %v417 = vld [vmem:[#allocation8 + $0x408] sm:$0xff]
    %v418 = vld [vmem:[#allocation8 + $0x410] sm:$0xff]
    %v419 = vld [vmem:[#allocation8 + $0x418] sm:$0xff]
    %v420 = vld [vmem:[#allocation8 + $0x420] sm:$0xff]
    %v421 = vld [vmem:[#allocation8 + $0x428] sm:$0xff]
    %v422 = vld [vmem:[#allocation8 + $0x430] sm:$0xff]
    %v423 = vld [vmem:[#allocation8 + $0x438] sm:$0xff]
    %v424 = vld [vmem:[#allocation8 + $0x440] sm:$0xff]
    %v425 = vld [vmem:[#allocation8 + $0x448] sm:$0xff]
    %v426 = vld [vmem:[#allocation8 + $0x450] sm:$0xff]
    %v427 = vld [vmem:[#allocation8 + $0x458] sm:$0xff]
    %v428 = vld [vmem:[#allocation8 + $0x460] sm:$0xff]
    %v429 = vld [vmem:[#allocation8 + $0x468] sm:$0xff]
    %v430 = vld [vmem:[#allocation8 + $0x470] sm:$0xff]
    %v431 = vld [vmem:[#allocation8 + $0x478] sm:$0xff]
    %v432 = vld [vmem:[#allocation8 + $0x480] sm:$0xff]
    %v433 = vld [vmem:[#allocation8 + $0x488] sm:$0xff]
    %v434 = vld [vmem:[#allocation8 + $0x490] sm:$0xff]
    %v435 = vld [vmem:[#allocation8 + $0x498] sm:$0xff]
    %v436 = vld [vmem:[#allocation8 + $0x4a0] sm:$0xff]
    %v437 = vld [vmem:[#allocation8 + $0x4a8] sm:$0xff]
    %v438 = vld [vmem:[#allocation8 + $0x4b0] sm:$0xff]
    %v439 = vld [vmem:[#allocation8 + $0x4b8] sm:$0xff]
    %v440 = vld [vmem:[#allocation8 + $0x4c0] sm:$0xff]
    %v441 = vld [vmem:[#allocation8 + $0x4c8] sm:$0xff]
    %v442 = vld [vmem:[#allocation8 + $0x4d0] sm:$0xff]
    %v443 = vld [vmem:[#allocation8 + $0x4d8] sm:$0xff]
    %v444 = vld [vmem:[#allocation8 + $0x4e0] sm:$0xff]
    %v445 = vld [vmem:[#allocation8 + $0x4e8] sm:$0xff]
    %v446 = vld [vmem:[#allocation8 + $0x4f0] sm:$0xff]
    %v447 = vld [vmem:[#allocation8 + $0x4f8] sm:$0xff]
    %v448 = vld [vmem:[#allocation8 + $0x500] sm:$0xff]
    %v449 = vld [vmem:[#allocation8 + $0x508] sm:$0xff]
    %v450 = vld [vmem:[#allocation8 + $0x510] sm:$0xff]
    %v451 = vld [vmem:[#allocation8 + $0x518] sm:$0xff]
    %v452 = vld [vmem:[#allocation8 + $0x520] sm:$0xff]
    %v453 = vld [vmem:[#allocation8 + $0x528] sm:$0xff]
    %v454 = vld [vmem:[#allocation8 + $0x530] sm:$0xff]
    %v455 = vld [vmem:[#allocation8 + $0x538] sm:$0xff]
    %v456 = vld [vmem:[#allocation8 + $0x540] sm:$0xff]
    %v457 = vld [vmem:[#allocation8 + $0x548] sm:$0xff]
    %v458 = vld [vmem:[#allocation8 + $0x550] sm:$0xff]
    %v459 = vld [vmem:[#allocation8 + $0x558] sm:$0xff]
    %v460 = vld [vmem:[#allocation8 + $0x560] sm:$0xff]
    %v461 = vld [vmem:[#allocation8 + $0x568] sm:$0xff]
    %v462 = vld [vmem:[#allocation8 + $0x570] sm:$0xff]
    %v463 = vld [vmem:[#allocation8 + $0x578] sm:$0xff]
    %v464 = vld [vmem:[#allocation8 + $0x580] sm:$0xff]
    %v465 = vld [vmem:[#allocation8 + $0x588] sm:$0xff]
    %v466 = vld [vmem:[#allocation8 + $0x590] sm:$0xff]
    %v467 = vld [vmem:[#allocation8 + $0x598] sm:$0xff]
    %v468 = vld [vmem:[#allocation8 + $0x5a0] sm:$0xff]
    %v469 = vld [vmem:[#allocation8 + $0x5a8] sm:$0xff]
    %v470 = vld [vmem:[#allocation8 + $0x5b0] sm:$0xff]
    %v471 = vld [vmem:[#allocation8 + $0x5b8] sm:$0xff]
    %v472 = vld [vmem:[#allocation8 + $0x5c0] sm:$0xff]
    %v473 = vld [vmem:[#allocation8 + $0x5c8] sm:$0xff]
    %v474 = vld [vmem:[#allocation8 + $0x5d0] sm:$0xff]
    %v475 = vld [vmem:[#allocation8 + $0x5d8] sm:$0xff]
    %v476 = vld [vmem:[#allocation8 + $0x5e0] sm:$0xff]
    %v477 = vld [vmem:[#allocation8 + $0x5e8] sm:$0xff]
    %v478 = vld [vmem:[#allocation8 + $0x5f0] sm:$0xff]
    %v479 = vld [vmem:[#allocation8 + $0x5f8] sm:$0xff]
    %v480 = vld [vmem:[#allocation8 + $0x600] sm:$0xff]
    %v481 = vld [vmem:[#allocation8 + $0x608] sm:$0xff]
    %v482 = vld [vmem:[#allocation8 + $0x610] sm:$0xff]
    %v483 = vld [vmem:[#allocation8 + $0x618] sm:$0xff]
    %v484 = vld [vmem:[#allocation8 + $0x620] sm:$0xff]
    %v485 = vld [vmem:[#allocation8 + $0x628] sm:$0xff]
    %v486 = vld [vmem:[#allocation8 + $0x630] sm:$0xff]
    %v487 = vld [vmem:[#allocation8 + $0x638] sm:$0xff]
    %v488 = vld [vmem:[#allocation8 + $0x640] sm:$0xff]
    %v489 = vld [vmem:[#allocation8 + $0x648] sm:$0xff]
    %v490 = vld [vmem:[#allocation8 + $0x650] sm:$0xff]
    %v491 = vld [vmem:[#allocation8 + $0x658] sm:$0xff]
    %v492 = vld [vmem:[#allocation8 + $0x660] sm:$0xff]
    %v493 = vld [vmem:[#allocation8 + $0x668] sm:$0xff]
    %v494 = vld [vmem:[#allocation8 + $0x670] sm:$0xff]
    %v495 = vld [vmem:[#allocation8 + $0x678] sm:$0xff]
    %v496 = vld [vmem:[#allocation8 + $0x680] sm:$0xff]
    %v497 = vld [vmem:[#allocation8 + $0x688] sm:$0xff]
    %v498 = vld [vmem:[#allocation8 + $0x690] sm:$0xff]
    %v499 = vld [vmem:[#allocation8 + $0x698] sm:$0xff]
    %v500 = vld [vmem:[#allocation8 + $0x6a0] sm:$0xff]
    %v501 = vld [vmem:[#allocation8 + $0x6a8] sm:$0xff]
    %v502 = vld [vmem:[#allocation8 + $0x6b0] sm:$0xff]
    %v503 = vld [vmem:[#allocation8 + $0x6b8] sm:$0xff]
    %v504 = vld [vmem:[#allocation8 + $0x6c0] sm:$0xff]
    %v505 = vld [vmem:[#allocation8 + $0x6c8] sm:$0xff]
    %v506 = vld [vmem:[#allocation8 + $0x6d0] sm:$0xff]
    %v507 = vld [vmem:[#allocation8 + $0x6d8] sm:$0xff]
    %v508 = vld [vmem:[#allocation8 + $0x6e0] sm:$0xff]
    %v509 = vld [vmem:[#allocation8 + $0x6e8] sm:$0xff]
    %v510 = vld [vmem:[#allocation8 + $0x6f0] sm:$0xff]
    %v511 = vld [vmem:[#allocation8 + $0x6f8] sm:$0xff]
    %v512 = vld [vmem:[#allocation8 + $0x700] sm:$0xff]
    %v513 = vld [vmem:[#allocation8 + $0x708] sm:$0xff]
    %v514 = vld [vmem:[#allocation8 + $0x710] sm:$0xff]
    %v515 = vld [vmem:[#allocation8 + $0x718] sm:$0xff]
    %v516 = vld [vmem:[#allocation8 + $0x720] sm:$0xff]
    %v517 = vld [vmem:[#allocation8 + $0x728] sm:$0xff]
    %v518 = vld [vmem:[#allocation8 + $0x730] sm:$0xff]
    %v519 = vld [vmem:[#allocation8 + $0x738] sm:$0xff]
    %v520 = vld [vmem:[#allocation8 + $0x740] sm:$0xff]
    %v521 = vld [vmem:[#allocation8 + $0x748] sm:$0xff]
    %v522 = vld [vmem:[#allocation8 + $0x750] sm:$0xff]
    %v523 = vld [vmem:[#allocation8 + $0x758] sm:$0xff]
    %v524 = vld [vmem:[#allocation8 + $0x760] sm:$0xff]
    %v525 = vld [vmem:[#allocation8 + $0x768] sm:$0xff]
    %v526 = vld [vmem:[#allocation8 + $0x770] sm:$0xff]
    %v527 = vld [vmem:[#allocation8 + $0x778] sm:$0xff]
    %v528 = vld [vmem:[#allocation8 + $0x780] sm:$0xff]
    %v529 = vld [vmem:[#allocation8 + $0x788] sm:$0xff]
    %v530 = vld [vmem:[#allocation8 + $0x790] sm:$0xff]
    %v531 = vld [vmem:[#allocation8 + $0x798] sm:$0xff]
    %v532 = vld [vmem:[#allocation8 + $0x7a0] sm:$0xff]
    %v533 = vld [vmem:[#allocation8 + $0x7a8] sm:$0xff]
    %v534 = vld [vmem:[#allocation8 + $0x7b0] sm:$0xff]
    %v535 = vld [vmem:[#allocation8 + $0x7b8] sm:$0xff]
    %v536 = vld [vmem:[#allocation8 + $0x7c0] sm:$0xff]
    %v537 = vld [vmem:[#allocation8 + $0x7c8] sm:$0xff]
    %v538 = vld [vmem:[#allocation8 + $0x7d0] sm:$0xff]
    %v539 = vld [vmem:[#allocation8 + $0x7d8] sm:$0xff]
    %v540 = vld [vmem:[#allocation8 + $0x7e0] sm:$0xff]
    %v541 = vld [vmem:[#allocation8 + $0x7e8] sm:$0xff]
    %v542 = vld [vmem:[#allocation8 + $0x7f0] sm:$0xff]
    %v543 = vld [vmem:[#allocation8 + $0x7f8] sm:$0xff]
    %v544 = vld [vmem:[#allocation8 + $0x800] sm:$0xff]
    %v545 = vld [vmem:[#allocation8 + $0x808] sm:$0xff]
    %v546 = vld [vmem:[#allocation8 + $0x810] sm:$0xff]
    %v547 = vld [vmem:[#allocation8 + $0x818] sm:$0xff]
    %v548 = vld [vmem:[#allocation8 + $0x820] sm:$0xff]
    %v549 = vld [vmem:[#allocation8 + $0x828] sm:$0xff]
    %v550 = vld [vmem:[#allocation8 + $0x830] sm:$0xff]
    %v551 = vld [vmem:[#allocation8 + $0x838] sm:$0xff]
    %v552 = vld [vmem:[#allocation8 + $0x840] sm:$0xff]
    %v553 = vld [vmem:[#allocation8 + $0x848] sm:$0xff]
    %v554 = vld [vmem:[#allocation8 + $0x850] sm:$0xff]
    %v555 = vld [vmem:[#allocation8 + $0x858] sm:$0xff]
    %v556 = vld [vmem:[#allocation8 + $0x860] sm:$0xff]
    %v557 = vld [vmem:[#allocation8 + $0x868] sm:$0xff]
    %v558 = vld [vmem:[#allocation8 + $0x870] sm:$0xff]
    %v559 = vld [vmem:[#allocation8 + $0x878] sm:$0xff]
    %v560 = vld [vmem:[#allocation8 + $0x880] sm:$0xff]
    %v561 = vld [vmem:[#allocation8 + $0x888] sm:$0xff]
    %v562 = vld [vmem:[#allocation8 + $0x890] sm:$0xff]
    %v563 = vld [vmem:[#allocation8 + $0x898] sm:$0xff]
    %v564 = vld [vmem:[#allocation8 + $0x8a0] sm:$0xff]
    %v565 = vld [vmem:[#allocation8 + $0x8a8] sm:$0xff]
    %v566 = vld [vmem:[#allocation8 + $0x8b0] sm:$0xff]
    %v567 = vld [vmem:[#allocation8 + $0x8b8] sm:$0xff]
    %v568 = vld [vmem:[#allocation8 + $0x8c0] sm:$0xff]
    %v569 = vld [vmem:[#allocation8 + $0x8c8] sm:$0xff]
    %v570 = vld [vmem:[#allocation8 + $0x8d0] sm:$0xff]
    %v571 = vld [vmem:[#allocation8 + $0x8d8] sm:$0xff]
    %v572 = vld [vmem:[#allocation8 + $0x8e0] sm:$0xff]
    %v573 = vld [vmem:[#allocation8 + $0x8e8] sm:$0xff]
    %v574 = vld [vmem:[#allocation8 + $0x8f0] sm:$0xff]
    %v575 = vld [vmem:[#allocation8 + $0x8f8] sm:$0xff]
    %v576 = vld [vmem:[#allocation8 + $0x900] sm:$0xff]
    %v577 = vld [vmem:[#allocation8 + $0x908] sm:$0xff]
    %v578 = vld [vmem:[#allocation8 + $0x910] sm:$0xff]
    %v579 = vld [vmem:[#allocation8 + $0x918] sm:$0xff]
    %v580 = vld [vmem:[#allocation8 + $0x920] sm:$0xff]
    %v581 = vld [vmem:[#allocation8 + $0x928] sm:$0xff]
    %v582 = vld [vmem:[#allocation8 + $0x930] sm:$0xff]
    %v583 = vld [vmem:[#allocation8 + $0x938] sm:$0xff]
    %v584 = vld [vmem:[#allocation8 + $0x940] sm:$0xff]
    %v585 = vld [vmem:[#allocation8 + $0x948] sm:$0xff]
    %v586 = vld [vmem:[#allocation8 + $0x950] sm:$0xff]
    %v587 = vld [vmem:[#allocation8 + $0x958] sm:$0xff]
    %v588 = vld [vmem:[#allocation8 + $0x960] sm:$0xff]
    %v589 = vld [vmem:[#allocation8 + $0x968] sm:$0xff]
    %v590 = vld [vmem:[#allocation8 + $0x970] sm:$0xff]
    %v591 = vld [vmem:[#allocation8 + $0x978] sm:$0xff]
    %v592 = vld [vmem:[#allocation8 + $0x980] sm:$0xff]
    %v593 = vld [vmem:[#allocation8 + $0x988] sm:$0xff]
    %v594 = vld [vmem:[#allocation8 + $0x990] sm:$0xff]
    %v595 = vld [vmem:[#allocation8 + $0x998] sm:$0xff]
    %v596 = vld [vmem:[#allocation8 + $0x9a0] sm:$0xff]
    %v597 = vld [vmem:[#allocation8 + $0x9a8] sm:$0xff]
    %v598 = vld [vmem:[#allocation8 + $0x9b0] sm:$0xff]
    %v599 = vld [vmem:[#allocation8 + $0x9b8] sm:$0xff]
    %v600 = vld [vmem:[#allocation8 + $0x9c0] sm:$0xff]
    %v601 = vld [vmem:[#allocation8 + $0x9c8] sm:$0xff]
    %v602 = vld [vmem:[#allocation8 + $0x9d0] sm:$0xff]
    %v603 = vld [vmem:[#allocation8 + $0x9d8] sm:$0xff]
    %v604 = vld [vmem:[#allocation8 + $0x9e0] sm:$0xff]
    %v605 = vld [vmem:[#allocation8 + $0x9e8] sm:$0xff]
    %v606 = vld [vmem:[#allocation8 + $0x9f0] sm:$0xff]
    %v607 = vld [vmem:[#allocation8 + $0x9f8] sm:$0xff]
    %v608 = vld [vmem:[#allocation8 + $0xa00] sm:$0xff]
    %v609 = vld [vmem:[#allocation8 + $0xa08] sm:$0xff]
    %v610 = vld [vmem:[#allocation8 + $0xa10] sm:$0xff]
    %v611 = vld [vmem:[#allocation8 + $0xa18] sm:$0xff]
    %v612 = vld [vmem:[#allocation8 + $0xa20] sm:$0xff]
    %v613 = vld [vmem:[#allocation8 + $0xa28] sm:$0xff]
    %v614 = vld [vmem:[#allocation8 + $0xa30] sm:$0xff]
    %v615 = vld [vmem:[#allocation8 + $0xa38] sm:$0xff]
    %v616 = vld [vmem:[#allocation8 + $0xa40] sm:$0xff]
    %v617 = vld [vmem:[#allocation8 + $0xa48] sm:$0xff]
    %v618 = vld [vmem:[#allocation8 + $0xa50] sm:$0xff]
    %v619 = vld [vmem:[#allocation8 + $0xa58] sm:$0xff]
    %v620 = vld [vmem:[#allocation8 + $0xa60] sm:$0xff]
    %v621 = vld [vmem:[#allocation8 + $0xa68] sm:$0xff]
    %v622 = vld [vmem:[#allocation8 + $0xa70] sm:$0xff]
    %v623 = vld [vmem:[#allocation8 + $0xa78] sm:$0xff]
    %v624 = vld [vmem:[#allocation8 + $0xa80] sm:$0xff]
    %v625 = vld [vmem:[#allocation8 + $0xa88] sm:$0xff]
    %v626 = vld [vmem:[#allocation8 + $0xa90] sm:$0xff]
    %v627 = vld [vmem:[#allocation8 + $0xa98] sm:$0xff]
    %v628 = vld [vmem:[#allocation8 + $0xaa0] sm:$0xff]
    %v629 = vld [vmem:[#allocation8 + $0xaa8] sm:$0xff]
    %v630 = vld [vmem:[#allocation8 + $0xab0] sm:$0xff]
    %v631 = vld [vmem:[#allocation8 + $0xab8] sm:$0xff]
    %v632 = vld [vmem:[#allocation8 + $0xac0] sm:$0xff]
    %v633 = vld [vmem:[#allocation8 + $0xac8] sm:$0xff]
    %v634 = vld [vmem:[#allocation8 + $0xad0] sm:$0xff]
    %v635 = vld [vmem:[#allocation8 + $0xad8] sm:$0xff]
    %v636 = vld [vmem:[#allocation8 + $0xae0] sm:$0xff]
    %v637 = vld [vmem:[#allocation8 + $0xae8] sm:$0xff]
    %v638 = vld [vmem:[#allocation8 + $0xaf0] sm:$0xff]
    %v639 = vld [vmem:[#allocation8 + $0xaf8] sm:$0xff]
    %v640 = vld [vmem:[#allocation8 + $0xb00] sm:$0xff]
    %v641 = vld [vmem:[#allocation8 + $0xb08] sm:$0xff]
    %v642 = vld [vmem:[#allocation8 + $0xb10] sm:$0xff]
    %v643 = vld [vmem:[#allocation8 + $0xb18] sm:$0xff]
    %v644 = vld [vmem:[#allocation8 + $0xb20] sm:$0xff]
    %v645 = vld [vmem:[#allocation8 + $0xb28] sm:$0xff]
    %v646 = vld [vmem:[#allocation8 + $0xb30] sm:$0xff]
    %v647 = vld [vmem:[#allocation8 + $0xb38] sm:$0xff]
    %v648 = vld [vmem:[#allocation8 + $0xb40] sm:$0xff]
    %v649 = vld [vmem:[#allocation8 + $0xb48] sm:$0xff]
    %v650 = vld [vmem:[#allocation8 + $0xb50] sm:$0xff]
    %v651 = vld [vmem:[#allocation8 + $0xb58] sm:$0xff]
    %v652 = vld [vmem:[#allocation8 + $0xb60] sm:$0xff]
    %v653 = vld [vmem:[#allocation8 + $0xb68] sm:$0xff]
    %v654 = vld [vmem:[#allocation8 + $0xb70] sm:$0xff]
    %v655 = vld [vmem:[#allocation8 + $0xb78] sm:$0xff]
    %v656 = vld [vmem:[#allocation8 + $0xb80] sm:$0xff]
    %v657 = vld [vmem:[#allocation8 + $0xb88] sm:$0xff]
    %v658 = vld [vmem:[#allocation8 + $0xb90] sm:$0xff]
    %v659 = vld [vmem:[#allocation8 + $0xb98] sm:$0xff]
    %v660 = vld [vmem:[#allocation8 + $0xba0] sm:$0xff]
    %v661 = vld [vmem:[#allocation8 + $0xba8] sm:$0xff]
    %v662 = vld [vmem:[#allocation8 + $0xbb0] sm:$0xff]
    %v663 = vld [vmem:[#allocation8 + $0xbb8] sm:$0xff]
    %v664 = vld [vmem:[#allocation8 + $0xbc0] sm:$0xff]
    %v665 = vld [vmem:[#allocation8 + $0xbc8] sm:$0xff]
    %v666 = vld [vmem:[#allocation8 + $0xbd0] sm:$0xff]
    %v667 = vld [vmem:[#allocation8 + $0xbd8] sm:$0xff]
    %v668 = vld [vmem:[#allocation8 + $0xbe0] sm:$0xff]
    %v669 = vld [vmem:[#allocation8 + $0xbe8] sm:$0xff]
    %v670 = vld [vmem:[#allocation8 + $0xbf0] sm:$0xff]
    %v671 = vld [vmem:[#allocation8 + $0xbf8] sm:$0xff]
    %v672 = vld [vmem:[#allocation8 + $0xc00] sm:$0xff]
    %v673 = vld [vmem:[#allocation8 + $0xc08] sm:$0xff]
    %v674 = vld [vmem:[#allocation8 + $0xc10] sm:$0xff]
    %v675 = vld [vmem:[#allocation8 + $0xc18] sm:$0xff]
    %v676 = vld [vmem:[#allocation8 + $0xc20] sm:$0xff]
    %v677 = vld [vmem:[#allocation8 + $0xc28] sm:$0xff]
    %v678 = vld [vmem:[#allocation8 + $0xc30] sm:$0xff]
    %v679 = vld [vmem:[#allocation8 + $0xc38] sm:$0xff]
    %v680 = vld [vmem:[#allocation8 + $0xc40] sm:$0xff]
    %v681 = vld [vmem:[#allocation8 + $0xc48] sm:$0xff]
    %v682 = vld [vmem:[#allocation8 + $0xc50] sm:$0xff]
    %v683 = vld [vmem:[#allocation8 + $0xc58] sm:$0xff]
    %v684 = vld [vmem:[#allocation8 + $0xc60] sm:$0xff]
    %v685 = vld [vmem:[#allocation8 + $0xc68] sm:$0xff]
    %v686 = vld [vmem:[#allocation8 + $0xc70] sm:$0xff]
    %v687 = vld [vmem:[#allocation8 + $0xc78] sm:$0xff]
    %v688 = vld [vmem:[#allocation8 + $0xc80] sm:$0xff]
    %v689 = vld [vmem:[#allocation8 + $0xc88] sm:$0xff]
    %v690 = vld [vmem:[#allocation8 + $0xc90] sm:$0xff]
    %v691 = vld [vmem:[#allocation8 + $0xc98] sm:$0xff]
    %v692 = vld [vmem:[#allocation8 + $0xca0] sm:$0xff]
    %v693 = vld [vmem:[#allocation8 + $0xca8] sm:$0xff]
    %v694 = vld [vmem:[#allocation8 + $0xcb0] sm:$0xff]
    %v695 = vld [vmem:[#allocation8 + $0xcb8] sm:$0xff]
    %v696 = vld [vmem:[#allocation8 + $0xcc0] sm:$0xff]
    %v697 = vld [vmem:[#allocation8 + $0xcc8] sm:$0xff]
    %v698 = vld [vmem:[#allocation8 + $0xcd0] sm:$0xff]
    %v699 = vld [vmem:[#allocation8 + $0xcd8] sm:$0xff]
    %v700 = vld [vmem:[#allocation8 + $0xce0] sm:$0xff]
    %v701 = vld [vmem:[#allocation8 + $0xce8] sm:$0xff]
    %v702 = vld [vmem:[#allocation8 + $0xcf0] sm:$0xff]
    %v703 = vld [vmem:[#allocation8 + $0xcf8] sm:$0xff]
    %v704 = vld [vmem:[#allocation8 + $0xd00] sm:$0xff]
    %v705 = vld [vmem:[#allocation8 + $0xd08] sm:$0xff]
    %v706 = vld [vmem:[#allocation8 + $0xd10] sm:$0xff]
    %v707 = vld [vmem:[#allocation8 + $0xd18] sm:$0xff]
    %v708 = vld [vmem:[#allocation8 + $0xd20] sm:$0xff]
    %v709 = vld [vmem:[#allocation8 + $0xd28] sm:$0xff]
    %v710 = vld [vmem:[#allocation8 + $0xd30] sm:$0xff]
    %v711 = vld [vmem:[#allocation8 + $0xd38] sm:$0xff]
    %v712 = vld [vmem:[#allocation8 + $0xd40] sm:$0xff]
    %v713 = vld [vmem:[#allocation8 + $0xd48] sm:$0xff]
    %v714 = vld [vmem:[#allocation8 + $0xd50] sm:$0xff]
    %v715 = vld [vmem:[#allocation8 + $0xd58] sm:$0xff]
    %v716 = vld [vmem:[#allocation8 + $0xd60] sm:$0xff]
    %v717 = vld [vmem:[#allocation8 + $0xd68] sm:$0xff]
    %v718 = vld [vmem:[#allocation8 + $0xd70] sm:$0xff]
    %v719 = vld [vmem:[#allocation8 + $0xd78] sm:$0xff]
    %v720 = vld [vmem:[#allocation8 + $0xd80] sm:$0xff]
    %v721 = vld [vmem:[#allocation8 + $0xd88] sm:$0xff]
    %v722 = vld [vmem:[#allocation8 + $0xd90] sm:$0xff]
    %v723 = vld [vmem:[#allocation8 + $0xd98] sm:$0xff]
    %v724 = vld [vmem:[#allocation8 + $0xda0] sm:$0xff]
    %v725 = vld [vmem:[#allocation8 + $0xda8] sm:$0xff]
    %v726 = vld [vmem:[#allocation8 + $0xdb0] sm:$0xff]
    %v727 = vld [vmem:[#allocation8 + $0xdb8] sm:$0xff]
    %v728 = vld [vmem:[#allocation8 + $0xdc0] sm:$0xff]
    %v729 = vld [vmem:[#allocation8 + $0xdc8] sm:$0xff]
    %v730 = vld [vmem:[#allocation8 + $0xdd0] sm:$0xff]
    %v731 = vld [vmem:[#allocation8 + $0xdd8] sm:$0xff]
    %v732 = vld [vmem:[#allocation8 + $0xde0] sm:$0xff]
    %v733 = vld [vmem:[#allocation8 + $0xde8] sm:$0xff]
    %v734 = vld [vmem:[#allocation8 + $0xdf0] sm:$0xff]
    %v735 = vld [vmem:[#allocation8 + $0xdf8] sm:$0xff]
    %v736 = vld [vmem:[#allocation8 + $0xe00] sm:$0xff]
    %v737 = vld [vmem:[#allocation8 + $0xe08] sm:$0xff]
    %v738 = vld [vmem:[#allocation8 + $0xe10] sm:$0xff]
    %v739 = vld [vmem:[#allocation8 + $0xe18] sm:$0xff]
    %v740 = vld [vmem:[#allocation8 + $0xe20] sm:$0xff]
    %v741 = vld [vmem:[#allocation8 + $0xe28] sm:$0xff]
    %v742 = vld [vmem:[#allocation8 + $0xe30] sm:$0xff]
    %v743 = vld [vmem:[#allocation8 + $0xe38] sm:$0xff]
    %v744 = vld [vmem:[#allocation8 + $0xe40] sm:$0xff]
    %v745 = vld [vmem:[#allocation8 + $0xe48] sm:$0xff]
    %v746 = vld [vmem:[#allocation8 + $0xe50] sm:$0xff]
    %v747 = vld [vmem:[#allocation8 + $0xe58] sm:$0xff]
    %v748 = vld [vmem:[#allocation8 + $0xe60] sm:$0xff]
    %v749 = vld [vmem:[#allocation8 + $0xe68] sm:$0xff]
    %v750 = vld [vmem:[#allocation8 + $0xe70] sm:$0xff]
    %v751 = vld [vmem:[#allocation8 + $0xe78] sm:$0xff]
    %v752 = vld [vmem:[#allocation8 + $0xe80] sm:$0xff]
    %v753 = vld [vmem:[#allocation8 + $0xe88] sm:$0xff]
    %v754 = vld [vmem:[#allocation8 + $0xe90] sm:$0xff]
    %v755 = vld [vmem:[#allocation8 + $0xe98] sm:$0xff]
    %v756 = vld [vmem:[#allocation8 + $0xea0] sm:$0xff]
    %v757 = vld [vmem:[#allocation8 + $0xea8] sm:$0xff]
    %v758 = vld [vmem:[#allocation8 + $0xeb0] sm:$0xff]
    %v759 = vld [vmem:[#allocation8 + $0xeb8] sm:$0xff]
    %v760 = vld [vmem:[#allocation8 + $0xec0] sm:$0xff]
    %v761 = vld [vmem:[#allocation8 + $0xec8] sm:$0xff]
    %v762 = vld [vmem:[#allocation8 + $0xed0] sm:$0xff]
    %v763 = vld [vmem:[#allocation8 + $0xed8] sm:$0xff]
    %v764 = vld [vmem:[#allocation8 + $0xee0] sm:$0xff]
    %v765 = vld [vmem:[#allocation8 + $0xee8] sm:$0xff]
    %v766 = vld [vmem:[#allocation8 + $0xef0] sm:$0xff]
    %v767 = vld [vmem:[#allocation8 + $0xef8] sm:$0xff]
    %v768 = vld [vmem:[#allocation8 + $0xf00] sm:$0xff]
    %v769 = vld [vmem:[#allocation8 + $0xf08] sm:$0xff]
    %v770 = vld [vmem:[#allocation8 + $0xf10] sm:$0xff]
    %v771 = vld [vmem:[#allocation8 + $0xf18] sm:$0xff]
    %v772 = vld [vmem:[#allocation8 + $0xf20] sm:$0xff]
    %v773 = vld [vmem:[#allocation8 + $0xf28] sm:$0xff]
    %v774 = vld [vmem:[#allocation8 + $0xf30] sm:$0xff]
    %v775 = vld [vmem:[#allocation8 + $0xf38] sm:$0xff]
    %v776 = vld [vmem:[#allocation8 + $0xf40] sm:$0xff]
    %v777 = vld [vmem:[#allocation8 + $0xf48] sm:$0xff]
    %v778 = vld [vmem:[#allocation8 + $0xf50] sm:$0xff]
    %v779 = vld [vmem:[#allocation8 + $0xf58] sm:$0xff]
    %v780 = vld [vmem:[#allocation8 + $0xf60] sm:$0xff]
    %v781 = vld [vmem:[#allocation8 + $0xf68] sm:$0xff]
    %v782 = vld [vmem:[#allocation8 + $0xf70] sm:$0xff]
    %v783 = vld [vmem:[#allocation8 + $0xf78] sm:$0xff]
    %v784 = vld [vmem:[#allocation8 + $0xf80] sm:$0xff]
    %v785 = vld [vmem:[#allocation8 + $0xf88] sm:$0xff]
    %v786 = vld [vmem:[#allocation8 + $0xf90] sm:$0xff]
    %v787 = vld [vmem:[#allocation8 + $0xf98] sm:$0xff]
    %v788 = vld [vmem:[#allocation8 + $0xfa0] sm:$0xff]
    %v789 = vld [vmem:[#allocation8 + $0xfa8] sm:$0xff]
    %v790 = vld [vmem:[#allocation8 + $0xfb0] sm:$0xff]
    %v791 = vld [vmem:[#allocation8 + $0xfb8] sm:$0xff]
    %v792 = vld [vmem:[#allocation8 + $0xfc0] sm:$0xff]
    %v793 = vld [vmem:[#allocation8 + $0xfc8] sm:$0xff]
    %v794 = vld [vmem:[#allocation8 + $0xfd0] sm:$0xff]
    %v795 = vld [vmem:[#allocation8 + $0xfd8] sm:$0xff]
    %v796 = vld [vmem:[#allocation8 + $0xfe0] sm:$0xff]
    %v797 = vld [vmem:[#allocation8 + $0xfe8] sm:$0xff]
    %v798 = vld [vmem:[#allocation8 + $0xff0] sm:$0xff]
    %v799 = vld [vmem:[#allocation8 + $0xff8] sm:$0xff]
    %v800 = vld [vmem:[#allocation10] sm:$0xff]
    %v801 = vld [vmem:[#allocation10 + $0x8] sm:$0xff]
    %v804 = vlaneseq
    %v805 = vshrl.u32 %v804, 7
    %v806 = vsub.s32 0, %v805
    %v807 = vrot.slane %v800, %v806
    %v808 = vlaneseq
    %v809 = vshrl.u32 %v808, 7
    %v810 = vsub.s32 1, %v809
    %v811 = vrot.slane %v800, %v810
    %v812 = vlaneseq
    %v813 = vshrl.u32 %v812, 7
    %v814 = vsub.s32 2, %v813
    %v815 = vrot.slane %v800, %v814
    %v816 = vlaneseq
    %v817 = vshrl.u32 %v816, 7
    %v818 = vsub.s32 3, %v817
    %v819 = vrot.slane %v800, %v818
    %v820 = vlaneseq
    %v821 = vshrl.u32 %v820, 7
    %v822 = vsub.s32 4, %v821
    %v823 = vrot.slane %v800, %v822
    %v824 = vlaneseq
    %v825 = vshrl.u32 %v824, 7
    %v826 = vsub.s32 5, %v825
    %v827 = vrot.slane %v800, %v826
    %v828 = vlaneseq
    %v829 = vshrl.u32 %v828, 7
    %v830 = vsub.s32 6, %v829
    %v831 = vrot.slane %v800, %v830
    %v832 = vlaneseq
    %v833 = vshrl.u32 %v832, 7
    %v834 = vsub.s32 7, %v833
    %v835 = vrot.slane %v800, %v834
    %v836 = vlaneseq
    %v837 = vshrl.u32 %v836, 7
    %v838 = vsub.s32 0, %v837
    %v839 = vrot.slane %v801, %v838
    %v840 = vlaneseq
    %v841 = vshrl.u32 %v840, 7
    %v842 = vsub.s32 1, %v841
    %v843 = vrot.slane %v801, %v842
    %v844 = vlaneseq
    %v845 = vshrl.u32 %v844, 7
    %v846 = vsub.s32 2, %v845
    %v847 = vrot.slane %v801, %v846
    %v848 = vlaneseq
    %v849 = vshrl.u32 %v848, 7
    %v850 = vsub.s32 3, %v849
    %v851 = vrot.slane %v801, %v850
    %v852 = vlaneseq
    %v853 = vshrl.u32 %v852, 7
    %v854 = vsub.s32 4, %v853
    %v855 = vrot.slane %v801, %v854
    %v856 = vlaneseq
    %v857 = vshrl.u32 %v856, 7
    %v858 = vsub.s32 5, %v857
    %v859 = vrot.slane %v801, %v858
    %v860 = vlaneseq
    %v861 = vshrl.u32 %v860, 7
    %v862 = vsub.s32 6, %v861
    %v863 = vrot.slane %v801, %v862
    %v864 = vlaneseq
    %v865 = vshrl.u32 %v864, 7
    %v866 = vsub.s32 7, %v865
    %v867 = vrot.slane %v801, %v866
    %v1396 = vunpack.c.l.b16 %v288
    %v1397 = vunpack.c.h.b16 %v288
    %v1398 = vunpack.c.l.b16 %v289
    %v1399 = vunpack.c.h.b16 %v289
    %v1400 = vunpack.c.l.b16 %v290
    %v1401 = vunpack.c.h.b16 %v290
    %v1402 = vunpack.c.l.b16 %v291
    %v1403 = vunpack.c.h.b16 %v291
    %v1404 = vunpack.c.l.b16 %v292
    %v1405 = vunpack.c.h.b16 %v292
    %v1406 = vunpack.c.l.b16 %v293
    %v1407 = vunpack.c.h.b16 %v293
    %v1408 = vunpack.c.l.b16 %v294
    %v1409 = vunpack.c.h.b16 %v294
    %v1410 = vunpack.c.l.b16 %v295
    %v1411 = vunpack.c.h.b16 %v295
    %v1412 = vunpack.c.l.b16 %v296
    %v1413 = vunpack.c.h.b16 %v296
    %v1414 = vunpack.c.l.b16 %v297
    %v1415 = vunpack.c.h.b16 %v297
    %v1416 = vunpack.c.l.b16 %v298
    %v1417 = vunpack.c.h.b16 %v298
    %v1418 = vunpack.c.l.b16 %v299
    %v1419 = vunpack.c.h.b16 %v299
    %v1420 = vunpack.c.l.b16 %v300
    %v1421 = vunpack.c.h.b16 %v300
    %v1422 = vunpack.c.l.b16 %v301
    %v1423 = vunpack.c.h.b16 %v301
    %v1424 = vunpack.c.l.b16 %v302
    %v1425 = vunpack.c.h.b16 %v302
    %v1426 = vunpack.c.l.b16 %v303
    %v1427 = vunpack.c.h.b16 %v303
    %v1428 = vunpack.c.l.b16 %v304
    %v1429 = vunpack.c.h.b16 %v304
    %v1430 = vunpack.c.l.b16 %v305
    %v1431 = vunpack.c.h.b16 %v305
    %v1432 = vunpack.c.l.b16 %v306
    %v1433 = vunpack.c.h.b16 %v306
    %v1434 = vunpack.c.l.b16 %v307
    %v1435 = vunpack.c.h.b16 %v307
    %v1436 = vunpack.c.l.b16 %v308
    %v1437 = vunpack.c.h.b16 %v308
    %v1438 = vunpack.c.l.b16 %v309
    %v1439 = vunpack.c.h.b16 %v309
    %v1440 = vunpack.c.l.b16 %v310
    %v1441 = vunpack.c.h.b16 %v310
    %v1442 = vunpack.c.l.b16 %v311
    %v1443 = vunpack.c.h.b16 %v311
    %v1444 = vunpack.c.l.b16 %v312
    %v1445 = vunpack.c.h.b16 %v312
    %v1446 = vunpack.c.l.b16 %v313
    %v1447 = vunpack.c.h.b16 %v313
    %v1448 = vunpack.c.l.b16 %v314
    %v1449 = vunpack.c.h.b16 %v314
    %v1450 = vunpack.c.l.b16 %v315
    %v1451 = vunpack.c.h.b16 %v315
    %v1452 = vunpack.c.l.b16 %v316
    %v1453 = vunpack.c.h.b16 %v316
    %v1454 = vunpack.c.l.b16 %v317
    %v1455 = vunpack.c.h.b16 %v317
    %v1456 = vunpack.c.l.b16 %v318
    %v1457 = vunpack.c.h.b16 %v318
    %v1458 = vunpack.c.l.b16 %v319
    %v1459 = vunpack.c.h.b16 %v319
    %v1460 = vunpack.c.l.b16 %v320
    %v1461 = vunpack.c.h.b16 %v320
    %v1462 = vunpack.c.l.b16 %v321
    %v1463 = vunpack.c.h.b16 %v321
    %v1464 = vunpack.c.l.b16 %v322
    %v1465 = vunpack.c.h.b16 %v322
    %v1466 = vunpack.c.l.b16 %v323
    %v1467 = vunpack.c.h.b16 %v323
    %v1468 = vunpack.c.l.b16 %v324
    %v1469 = vunpack.c.h.b16 %v324
    %v1470 = vunpack.c.l.b16 %v325
    %v1471 = vunpack.c.h.b16 %v325
    %v1472 = vunpack.c.l.b16 %v326
    %v1473 = vunpack.c.h.b16 %v326
    %v1474 = vunpack.c.l.b16 %v327
    %v1475 = vunpack.c.h.b16 %v327
    %v1476 = vunpack.c.l.b16 %v328
    %v1477 = vunpack.c.h.b16 %v328
    %v1478 = vunpack.c.l.b16 %v329
    %v1479 = vunpack.c.h.b16 %v329
    %v1480 = vunpack.c.l.b16 %v330
    %v1481 = vunpack.c.h.b16 %v330
    %v1482 = vunpack.c.l.b16 %v331
    %v1483 = vunpack.c.h.b16 %v331
    %v1484 = vunpack.c.l.b16 %v332
    %v1485 = vunpack.c.h.b16 %v332
    %v1486 = vunpack.c.l.b16 %v333
    %v1487 = vunpack.c.h.b16 %v333
    %v1488 = vunpack.c.l.b16 %v334
    %v1489 = vunpack.c.h.b16 %v334
    %v1490 = vunpack.c.l.b16 %v335
    %v1491 = vunpack.c.h.b16 %v335
    %v1492 = vunpack.c.l.b16 %v336
    %v1493 = vunpack.c.h.b16 %v336
    %v1494 = vunpack.c.l.b16 %v337
    %v1495 = vunpack.c.h.b16 %v337
    %v1496 = vunpack.c.l.b16 %v338
    %v1497 = vunpack.c.h.b16 %v338
    %v1498 = vunpack.c.l.b16 %v339
    %v1499 = vunpack.c.h.b16 %v339
    %v1500 = vunpack.c.l.b16 %v340
    %v1501 = vunpack.c.h.b16 %v340
    %v1502 = vunpack.c.l.b16 %v341
    %v1503 = vunpack.c.h.b16 %v341
    %v1504 = vunpack.c.l.b16 %v342
    %v1505 = vunpack.c.h.b16 %v342
    %v1506 = vunpack.c.l.b16 %v343
    %v1507 = vunpack.c.h.b16 %v343
    %v1508 = vunpack.c.l.b16 %v344
    %v1509 = vunpack.c.h.b16 %v344
    %v1510 = vunpack.c.l.b16 %v345
    %v1511 = vunpack.c.h.b16 %v345
    %v1512 = vunpack.c.l.b16 %v346
    %v1513 = vunpack.c.h.b16 %v346
    %v1514 = vunpack.c.l.b16 %v347
    %v1515 = vunpack.c.h.b16 %v347
    %v1516 = vunpack.c.l.b16 %v348
    %v1517 = vunpack.c.h.b16 %v348
    %v1518 = vunpack.c.l.b16 %v349
    %v1519 = vunpack.c.h.b16 %v349
    %v1520 = vunpack.c.l.b16 %v350
    %v1521 = vunpack.c.h.b16 %v350
    %v1522 = vunpack.c.l.b16 %v351
    %v1523 = vunpack.c.h.b16 %v351
    %v1524 = vunpack.c.l.b16 %v352
    %v1525 = vunpack.c.h.b16 %v352
    %v1526 = vunpack.c.l.b16 %v353
    %v1527 = vunpack.c.h.b16 %v353
    %v1528 = vunpack.c.l.b16 %v354
    %v1529 = vunpack.c.h.b16 %v354
    %v1530 = vunpack.c.l.b16 %v355
    %v1531 = vunpack.c.h.b16 %v355
    %v1532 = vunpack.c.l.b16 %v356
    %v1533 = vunpack.c.h.b16 %v356
    %v1534 = vunpack.c.l.b16 %v357
    %v1535 = vunpack.c.h.b16 %v357
    %v1536 = vunpack.c.l.b16 %v358
    %v1537 = vunpack.c.h.b16 %v358
    %v1538 = vunpack.c.l.b16 %v359
    %v1539 = vunpack.c.h.b16 %v359
    %v1540 = vunpack.c.l.b16 %v360
    %v1541 = vunpack.c.h.b16 %v360
    %v1542 = vunpack.c.l.b16 %v361
    %v1543 = vunpack.c.h.b16 %v361
    %v1544 = vunpack.c.l.b16 %v362
    %v1545 = vunpack.c.h.b16 %v362
    %v1546 = vunpack.c.l.b16 %v363
    %v1547 = vunpack.c.h.b16 %v363
    %v1548 = vunpack.c.l.b16 %v364
    %v1549 = vunpack.c.h.b16 %v364
    %v1550 = vunpack.c.l.b16 %v365
    %v1551 = vunpack.c.h.b16 %v365
    %v1552 = vunpack.c.l.b16 %v366
    %v1553 = vunpack.c.h.b16 %v366
    %v1554 = vunpack.c.l.b16 %v367
    %v1555 = vunpack.c.h.b16 %v367
    %v1556 = vunpack.c.l.b16 %v368
    %v1557 = vunpack.c.h.b16 %v368
    %v1558 = vunpack.c.l.b16 %v369
    %v1559 = vunpack.c.h.b16 %v369
    %v1560 = vunpack.c.l.b16 %v370
    %v1561 = vunpack.c.h.b16 %v370
    %v1562 = vunpack.c.l.b16 %v371
    %v1563 = vunpack.c.h.b16 %v371
    %v1564 = vunpack.c.l.b16 %v372
    %v1565 = vunpack.c.h.b16 %v372
    %v1566 = vunpack.c.l.b16 %v373
    %v1567 = vunpack.c.h.b16 %v373
    %v1568 = vunpack.c.l.b16 %v374
    %v1569 = vunpack.c.h.b16 %v374
    %v1570 = vunpack.c.l.b16 %v375
    %v1571 = vunpack.c.h.b16 %v375
    %v1572 = vunpack.c.l.b16 %v376
    %v1573 = vunpack.c.h.b16 %v376
    %v1574 = vunpack.c.l.b16 %v377
    %v1575 = vunpack.c.h.b16 %v377
    %v1576 = vunpack.c.l.b16 %v378
    %v1577 = vunpack.c.h.b16 %v378
    %v1578 = vunpack.c.l.b16 %v379
    %v1579 = vunpack.c.h.b16 %v379
    %v1580 = vunpack.c.l.b16 %v380
    %v1581 = vunpack.c.h.b16 %v380
    %v1582 = vunpack.c.l.b16 %v381
    %v1583 = vunpack.c.h.b16 %v381
    %v1584 = vunpack.c.l.b16 %v382
    %v1585 = vunpack.c.h.b16 %v382
    %v1586 = vunpack.c.l.b16 %v383
    %v1587 = vunpack.c.h.b16 %v383
    %v1588 = vunpack.c.l.b16 %v384
    %v1589 = vunpack.c.h.b16 %v384
    %v1590 = vunpack.c.l.b16 %v385
    %v1591 = vunpack.c.h.b16 %v385
    %v1592 = vunpack.c.l.b16 %v386
    %v1593 = vunpack.c.h.b16 %v386
    %v1594 = vunpack.c.l.b16 %v387
    %v1595 = vunpack.c.h.b16 %v387
    %v1596 = vunpack.c.l.b16 %v388
    %v1597 = vunpack.c.h.b16 %v388
    %v1598 = vunpack.c.l.b16 %v389
    %v1599 = vunpack.c.h.b16 %v389
    %v1600 = vunpack.c.l.b16 %v390
    %v1601 = vunpack.c.h.b16 %v390
    %v1602 = vunpack.c.l.b16 %v391
    %v1603 = vunpack.c.h.b16 %v391
    %v1604 = vunpack.c.l.b16 %v392
    %v1605 = vunpack.c.h.b16 %v392
    %v1606 = vunpack.c.l.b16 %v393
    %v1607 = vunpack.c.h.b16 %v393
    %v1608 = vunpack.c.l.b16 %v394
    %v1609 = vunpack.c.h.b16 %v394
    %v1610 = vunpack.c.l.b16 %v395
    %v1611 = vunpack.c.h.b16 %v395
    %v1612 = vunpack.c.l.b16 %v396
    %v1613 = vunpack.c.h.b16 %v396
    %v1614 = vunpack.c.l.b16 %v397
    %v1615 = vunpack.c.h.b16 %v397
    %v1616 = vunpack.c.l.b16 %v398
    %v1617 = vunpack.c.h.b16 %v398
    %v1618 = vunpack.c.l.b16 %v399
    %v1619 = vunpack.c.h.b16 %v399
    %v1620 = vunpack.c.l.b16 %v400
    %v1621 = vunpack.c.h.b16 %v400
    %v1622 = vunpack.c.l.b16 %v401
    %v1623 = vunpack.c.h.b16 %v401
    %v1624 = vunpack.c.l.b16 %v402
    %v1625 = vunpack.c.h.b16 %v402
    %v1626 = vunpack.c.l.b16 %v403
    %v1627 = vunpack.c.h.b16 %v403
    %v1628 = vunpack.c.l.b16 %v404
    %v1629 = vunpack.c.h.b16 %v404
    %v1630 = vunpack.c.l.b16 %v405
    %v1631 = vunpack.c.h.b16 %v405
    %v1632 = vunpack.c.l.b16 %v406
    %v1633 = vunpack.c.h.b16 %v406
    %v1634 = vunpack.c.l.b16 %v407
    %v1635 = vunpack.c.h.b16 %v407
    %v1636 = vunpack.c.l.b16 %v408
    %v1637 = vunpack.c.h.b16 %v408
    %v1638 = vunpack.c.l.b16 %v409
    %v1639 = vunpack.c.h.b16 %v409
    %v1640 = vunpack.c.l.b16 %v410
    %v1641 = vunpack.c.h.b16 %v410
    %v1642 = vunpack.c.l.b16 %v411
    %v1643 = vunpack.c.h.b16 %v411
    %v1644 = vunpack.c.l.b16 %v412
    %v1645 = vunpack.c.h.b16 %v412
    %v1646 = vunpack.c.l.b16 %v413
    %v1647 = vunpack.c.h.b16 %v413
    %v1648 = vunpack.c.l.b16 %v414
    %v1649 = vunpack.c.h.b16 %v414
    %v1650 = vunpack.c.l.b16 %v415
    %v1651 = vunpack.c.h.b16 %v415
    %v1652 = vunpack.c.l.b16 %v416
    %v1653 = vunpack.c.h.b16 %v416
    %v1654 = vunpack.c.l.b16 %v417
    %v1655 = vunpack.c.h.b16 %v417
    %v1656 = vunpack.c.l.b16 %v418
    %v1657 = vunpack.c.h.b16 %v418
    %v1658 = vunpack.c.l.b16 %v419
    %v1659 = vunpack.c.h.b16 %v419
    %v1660 = vunpack.c.l.b16 %v420
    %v1661 = vunpack.c.h.b16 %v420
    %v1662 = vunpack.c.l.b16 %v421
    %v1663 = vunpack.c.h.b16 %v421
    %v1664 = vunpack.c.l.b16 %v422
    %v1665 = vunpack.c.h.b16 %v422
    %v1666 = vunpack.c.l.b16 %v423
    %v1667 = vunpack.c.h.b16 %v423
    %v1668 = vunpack.c.l.b16 %v424
    %v1669 = vunpack.c.h.b16 %v424
    %v1670 = vunpack.c.l.b16 %v425
    %v1671 = vunpack.c.h.b16 %v425
    %v1672 = vunpack.c.l.b16 %v426
    %v1673 = vunpack.c.h.b16 %v426
    %v1674 = vunpack.c.l.b16 %v427
    %v1675 = vunpack.c.h.b16 %v427
    %v1676 = vunpack.c.l.b16 %v428
    %v1677 = vunpack.c.h.b16 %v428
    %v1678 = vunpack.c.l.b16 %v429
    %v1679 = vunpack.c.h.b16 %v429
    %v1680 = vunpack.c.l.b16 %v430
    %v1681 = vunpack.c.h.b16 %v430
    %v1682 = vunpack.c.l.b16 %v431
    %v1683 = vunpack.c.h.b16 %v431
    %v1684 = vunpack.c.l.b16 %v432
    %v1685 = vunpack.c.h.b16 %v432
    %v1686 = vunpack.c.l.b16 %v433
    %v1687 = vunpack.c.h.b16 %v433
    %v1688 = vunpack.c.l.b16 %v434
    %v1689 = vunpack.c.h.b16 %v434
    %v1690 = vunpack.c.l.b16 %v435
    %v1691 = vunpack.c.h.b16 %v435
    %v1692 = vunpack.c.l.b16 %v436
    %v1693 = vunpack.c.h.b16 %v436
    %v1694 = vunpack.c.l.b16 %v437
    %v1695 = vunpack.c.h.b16 %v437
    %v1696 = vunpack.c.l.b16 %v438
    %v1697 = vunpack.c.h.b16 %v438
    %v1698 = vunpack.c.l.b16 %v439
    %v1699 = vunpack.c.h.b16 %v439
    %v1700 = vunpack.c.l.b16 %v440
    %v1701 = vunpack.c.h.b16 %v440
    %v1702 = vunpack.c.l.b16 %v441
    %v1703 = vunpack.c.h.b16 %v441
    %v1704 = vunpack.c.l.b16 %v442
    %v1705 = vunpack.c.h.b16 %v442
    %v1706 = vunpack.c.l.b16 %v443
    %v1707 = vunpack.c.h.b16 %v443
    %v1708 = vunpack.c.l.b16 %v444
    %v1709 = vunpack.c.h.b16 %v444
    %v1710 = vunpack.c.l.b16 %v445
    %v1711 = vunpack.c.h.b16 %v445
    %v1712 = vunpack.c.l.b16 %v446
    %v1713 = vunpack.c.h.b16 %v446
    %v1714 = vunpack.c.l.b16 %v447
    %v1715 = vunpack.c.h.b16 %v447
    %v1716 = vunpack.c.l.b16 %v448
    %v1717 = vunpack.c.h.b16 %v448
    %v1718 = vunpack.c.l.b16 %v449
    %v1719 = vunpack.c.h.b16 %v449
    %v1720 = vunpack.c.l.b16 %v450
    %v1721 = vunpack.c.h.b16 %v450
    %v1722 = vunpack.c.l.b16 %v451
    %v1723 = vunpack.c.h.b16 %v451
    %v1724 = vunpack.c.l.b16 %v452
    %v1725 = vunpack.c.h.b16 %v452
    %v1726 = vunpack.c.l.b16 %v453
    %v1727 = vunpack.c.h.b16 %v453
    %v1728 = vunpack.c.l.b16 %v454
    %v1729 = vunpack.c.h.b16 %v454
    %v1730 = vunpack.c.l.b16 %v455
    %v1731 = vunpack.c.h.b16 %v455
    %v1732 = vunpack.c.l.b16 %v456
    %v1733 = vunpack.c.h.b16 %v456
    %v1734 = vunpack.c.l.b16 %v457
    %v1735 = vunpack.c.h.b16 %v457
    %v1736 = vunpack.c.l.b16 %v458
    %v1737 = vunpack.c.h.b16 %v458
    %v1738 = vunpack.c.l.b16 %v459
    %v1739 = vunpack.c.h.b16 %v459
    %v1740 = vunpack.c.l.b16 %v460
    %v1741 = vunpack.c.h.b16 %v460
    %v1742 = vunpack.c.l.b16 %v461
    %v1743 = vunpack.c.h.b16 %v461
    %v1744 = vunpack.c.l.b16 %v462
    %v1745 = vunpack.c.h.b16 %v462
    %v1746 = vunpack.c.l.b16 %v463
    %v1747 = vunpack.c.h.b16 %v463
    %v1748 = vunpack.c.l.b16 %v464
    %v1749 = vunpack.c.h.b16 %v464
    %v1750 = vunpack.c.l.b16 %v465
    %v1751 = vunpack.c.h.b16 %v465
    %v1752 = vunpack.c.l.b16 %v466
    %v1753 = vunpack.c.h.b16 %v466
    %v1754 = vunpack.c.l.b16 %v467
    %v1755 = vunpack.c.h.b16 %v467
    %v1756 = vunpack.c.l.b16 %v468
    %v1757 = vunpack.c.h.b16 %v468
    %v1758 = vunpack.c.l.b16 %v469
    %v1759 = vunpack.c.h.b16 %v469
    %v1760 = vunpack.c.l.b16 %v470
    %v1761 = vunpack.c.h.b16 %v470
    %v1762 = vunpack.c.l.b16 %v471
    %v1763 = vunpack.c.h.b16 %v471
    %v1764 = vunpack.c.l.b16 %v472
    %v1765 = vunpack.c.h.b16 %v472
    %v1766 = vunpack.c.l.b16 %v473
    %v1767 = vunpack.c.h.b16 %v473
    %v1768 = vunpack.c.l.b16 %v474
    %v1769 = vunpack.c.h.b16 %v474
    %v1770 = vunpack.c.l.b16 %v475
    %v1771 = vunpack.c.h.b16 %v475
    %v1772 = vunpack.c.l.b16 %v476
    %v1773 = vunpack.c.h.b16 %v476
    %v1774 = vunpack.c.l.b16 %v477
    %v1775 = vunpack.c.h.b16 %v477
    %v1776 = vunpack.c.l.b16 %v478
    %v1777 = vunpack.c.h.b16 %v478
    %v1778 = vunpack.c.l.b16 %v479
    %v1779 = vunpack.c.h.b16 %v479
    %v1780 = vunpack.c.l.b16 %v480
    %v1781 = vunpack.c.h.b16 %v480
    %v1782 = vunpack.c.l.b16 %v481
    %v1783 = vunpack.c.h.b16 %v481
    %v1784 = vunpack.c.l.b16 %v482
    %v1785 = vunpack.c.h.b16 %v482
    %v1786 = vunpack.c.l.b16 %v483
    %v1787 = vunpack.c.h.b16 %v483
    %v1788 = vunpack.c.l.b16 %v484
    %v1789 = vunpack.c.h.b16 %v484
    %v1790 = vunpack.c.l.b16 %v485
    %v1791 = vunpack.c.h.b16 %v485
    %v1792 = vunpack.c.l.b16 %v486
    %v1793 = vunpack.c.h.b16 %v486
    %v1794 = vunpack.c.l.b16 %v487
    %v1795 = vunpack.c.h.b16 %v487
    %v1796 = vunpack.c.l.b16 %v488
    %v1797 = vunpack.c.h.b16 %v488
    %v1798 = vunpack.c.l.b16 %v489
    %v1799 = vunpack.c.h.b16 %v489
    %v1800 = vunpack.c.l.b16 %v490
    %v1801 = vunpack.c.h.b16 %v490
    %v1802 = vunpack.c.l.b16 %v491
    %v1803 = vunpack.c.h.b16 %v491
    %v1804 = vunpack.c.l.b16 %v492
    %v1805 = vunpack.c.h.b16 %v492
    %v1806 = vunpack.c.l.b16 %v493
    %v1807 = vunpack.c.h.b16 %v493
    %v1808 = vunpack.c.l.b16 %v494
    %v1809 = vunpack.c.h.b16 %v494
    %v1810 = vunpack.c.l.b16 %v495
    %v1811 = vunpack.c.h.b16 %v495
    %v1812 = vunpack.c.l.b16 %v496
    %v1813 = vunpack.c.h.b16 %v496
    %v1814 = vunpack.c.l.b16 %v497
    %v1815 = vunpack.c.h.b16 %v497
    %v1816 = vunpack.c.l.b16 %v498
    %v1817 = vunpack.c.h.b16 %v498
    %v1818 = vunpack.c.l.b16 %v499
    %v1819 = vunpack.c.h.b16 %v499
    %v1820 = vunpack.c.l.b16 %v500
    %v1821 = vunpack.c.h.b16 %v500
    %v1822 = vunpack.c.l.b16 %v501
    %v1823 = vunpack.c.h.b16 %v501
    %v1824 = vunpack.c.l.b16 %v502
    %v1825 = vunpack.c.h.b16 %v502
    %v1826 = vunpack.c.l.b16 %v503
    %v1827 = vunpack.c.h.b16 %v503
    %v1828 = vunpack.c.l.b16 %v504
    %v1829 = vunpack.c.h.b16 %v504
    %v1830 = vunpack.c.l.b16 %v505
    %v1831 = vunpack.c.h.b16 %v505
    %v1832 = vunpack.c.l.b16 %v506
    %v1833 = vunpack.c.h.b16 %v506
    %v1834 = vunpack.c.l.b16 %v507
    %v1835 = vunpack.c.h.b16 %v507
    %v1836 = vunpack.c.l.b16 %v508
    %v1837 = vunpack.c.h.b16 %v508
    %v1838 = vunpack.c.l.b16 %v509
    %v1839 = vunpack.c.h.b16 %v509
    %v1840 = vunpack.c.l.b16 %v510
    %v1841 = vunpack.c.h.b16 %v510
    %v1842 = vunpack.c.l.b16 %v511
    %v1843 = vunpack.c.h.b16 %v511
    %v1844 = vunpack.c.l.b16 %v512
    %v1845 = vunpack.c.h.b16 %v512
    %v1846 = vunpack.c.l.b16 %v513
    %v1847 = vunpack.c.h.b16 %v513
    %v1848 = vunpack.c.l.b16 %v514
    %v1849 = vunpack.c.h.b16 %v514
    %v1850 = vunpack.c.l.b16 %v515
    %v1851 = vunpack.c.h.b16 %v515
    %v1852 = vunpack.c.l.b16 %v516
    %v1853 = vunpack.c.h.b16 %v516
    %v1854 = vunpack.c.l.b16 %v517
    %v1855 = vunpack.c.h.b16 %v517
    %v1856 = vunpack.c.l.b16 %v518
    %v1857 = vunpack.c.h.b16 %v518
    %v1858 = vunpack.c.l.b16 %v519
    %v1859 = vunpack.c.h.b16 %v519
    %v1860 = vunpack.c.l.b16 %v520
    %v1861 = vunpack.c.h.b16 %v520
    %v1862 = vunpack.c.l.b16 %v521
    %v1863 = vunpack.c.h.b16 %v521
    %v1864 = vunpack.c.l.b16 %v522
    %v1865 = vunpack.c.h.b16 %v522
    %v1866 = vunpack.c.l.b16 %v523
    %v1867 = vunpack.c.h.b16 %v523
    %v1868 = vunpack.c.l.b16 %v524
    %v1869 = vunpack.c.h.b16 %v524
    %v1870 = vunpack.c.l.b16 %v525
    %v1871 = vunpack.c.h.b16 %v525
    %v1872 = vunpack.c.l.b16 %v526
    %v1873 = vunpack.c.h.b16 %v526
    %v1874 = vunpack.c.l.b16 %v527
    %v1875 = vunpack.c.h.b16 %v527
    %v1876 = vunpack.c.l.b16 %v528
    %v1877 = vunpack.c.h.b16 %v528
    %v1878 = vunpack.c.l.b16 %v529
    %v1879 = vunpack.c.h.b16 %v529
    %v1880 = vunpack.c.l.b16 %v530
    %v1881 = vunpack.c.h.b16 %v530
    %v1882 = vunpack.c.l.b16 %v531
    %v1883 = vunpack.c.h.b16 %v531
    %v1884 = vunpack.c.l.b16 %v532
    %v1885 = vunpack.c.h.b16 %v532
    %v1886 = vunpack.c.l.b16 %v533
    %v1887 = vunpack.c.h.b16 %v533
    %v1888 = vunpack.c.l.b16 %v534
    %v1889 = vunpack.c.h.b16 %v534
    %v1890 = vunpack.c.l.b16 %v535
    %v1891 = vunpack.c.h.b16 %v535
    %v1892 = vunpack.c.l.b16 %v536
    %v1893 = vunpack.c.h.b16 %v536
    %v1894 = vunpack.c.l.b16 %v537
    %v1895 = vunpack.c.h.b16 %v537
    %v1896 = vunpack.c.l.b16 %v538
    %v1897 = vunpack.c.h.b16 %v538
    %v1898 = vunpack.c.l.b16 %v539
    %v1899 = vunpack.c.h.b16 %v539
    %v1900 = vunpack.c.l.b16 %v540
    %v1901 = vunpack.c.h.b16 %v540
    %v1902 = vunpack.c.l.b16 %v541
    %v1903 = vunpack.c.h.b16 %v541
    %v1904 = vunpack.c.l.b16 %v542
    %v1905 = vunpack.c.h.b16 %v542
    %v1906 = vunpack.c.l.b16 %v543
    %v1907 = vunpack.c.h.b16 %v543
    %v1908 = vunpack.c.l.b16 %v544
    %v1909 = vunpack.c.h.b16 %v544
    %v1910 = vunpack.c.l.b16 %v545
    %v1911 = vunpack.c.h.b16 %v545
    %v1912 = vunpack.c.l.b16 %v546
    %v1913 = vunpack.c.h.b16 %v546
    %v1914 = vunpack.c.l.b16 %v547
    %v1915 = vunpack.c.h.b16 %v547
    %v1916 = vunpack.c.l.b16 %v548
    %v1917 = vunpack.c.h.b16 %v548
    %v1918 = vunpack.c.l.b16 %v549
    %v1919 = vunpack.c.h.b16 %v549
    %v1920 = vunpack.c.l.b16 %v550
    %v1921 = vunpack.c.h.b16 %v550
    %v1922 = vunpack.c.l.b16 %v551
    %v1923 = vunpack.c.h.b16 %v551
    %v1924 = vunpack.c.l.b16 %v552
    %v1925 = vunpack.c.h.b16 %v552
    %v1926 = vunpack.c.l.b16 %v553
    %v1927 = vunpack.c.h.b16 %v553
    %v1928 = vunpack.c.l.b16 %v554
    %v1929 = vunpack.c.h.b16 %v554
    %v1930 = vunpack.c.l.b16 %v555
    %v1931 = vunpack.c.h.b16 %v555
    %v1932 = vunpack.c.l.b16 %v556
    %v1933 = vunpack.c.h.b16 %v556
    %v1934 = vunpack.c.l.b16 %v557
    %v1935 = vunpack.c.h.b16 %v557
    %v1936 = vunpack.c.l.b16 %v558
    %v1937 = vunpack.c.h.b16 %v558
    %v1938 = vunpack.c.l.b16 %v559
    %v1939 = vunpack.c.h.b16 %v559
    %v1940 = vunpack.c.l.b16 %v560
    %v1941 = vunpack.c.h.b16 %v560
    %v1942 = vunpack.c.l.b16 %v561
    %v1943 = vunpack.c.h.b16 %v561
    %v1944 = vunpack.c.l.b16 %v562
    %v1945 = vunpack.c.h.b16 %v562
    %v1946 = vunpack.c.l.b16 %v563
    %v1947 = vunpack.c.h.b16 %v563
    %v1948 = vunpack.c.l.b16 %v564
    %v1949 = vunpack.c.h.b16 %v564
    %v1950 = vunpack.c.l.b16 %v565
    %v1951 = vunpack.c.h.b16 %v565
    %v1952 = vunpack.c.l.b16 %v566
    %v1953 = vunpack.c.h.b16 %v566
    %v1954 = vunpack.c.l.b16 %v567
    %v1955 = vunpack.c.h.b16 %v567
    %v1956 = vunpack.c.l.b16 %v568
    %v1957 = vunpack.c.h.b16 %v568
    %v1958 = vunpack.c.l.b16 %v569
    %v1959 = vunpack.c.h.b16 %v569
    %v1960 = vunpack.c.l.b16 %v570
    %v1961 = vunpack.c.h.b16 %v570
    %v1962 = vunpack.c.l.b16 %v571
    %v1963 = vunpack.c.h.b16 %v571
    %v1964 = vunpack.c.l.b16 %v572
    %v1965 = vunpack.c.h.b16 %v572
    %v1966 = vunpack.c.l.b16 %v573
    %v1967 = vunpack.c.h.b16 %v573
    %v1968 = vunpack.c.l.b16 %v574
    %v1969 = vunpack.c.h.b16 %v574
    %v1970 = vunpack.c.l.b16 %v575
    %v1971 = vunpack.c.h.b16 %v575
    %v1972 = vunpack.c.l.b16 %v576
    %v1973 = vunpack.c.h.b16 %v576
    %v1974 = vunpack.c.l.b16 %v577
    %v1975 = vunpack.c.h.b16 %v577
    %v1976 = vunpack.c.l.b16 %v578
    %v1977 = vunpack.c.h.b16 %v578
    %v1978 = vunpack.c.l.b16 %v579
    %v1979 = vunpack.c.h.b16 %v579
    %v1980 = vunpack.c.l.b16 %v580
    %v1981 = vunpack.c.h.b16 %v580
    %v1982 = vunpack.c.l.b16 %v581
    %v1983 = vunpack.c.h.b16 %v581
    %v1984 = vunpack.c.l.b16 %v582
    %v1985 = vunpack.c.h.b16 %v582
    %v1986 = vunpack.c.l.b16 %v583
    %v1987 = vunpack.c.h.b16 %v583
    %v1988 = vunpack.c.l.b16 %v584
    %v1989 = vunpack.c.h.b16 %v584
    %v1990 = vunpack.c.l.b16 %v585
    %v1991 = vunpack.c.h.b16 %v585
    %v1992 = vunpack.c.l.b16 %v586
    %v1993 = vunpack.c.h.b16 %v586
    %v1994 = vunpack.c.l.b16 %v587
    %v1995 = vunpack.c.h.b16 %v587
    %v1996 = vunpack.c.l.b16 %v588
    %v1997 = vunpack.c.h.b16 %v588
    %v1998 = vunpack.c.l.b16 %v589
    %v1999 = vunpack.c.h.b16 %v589
    %v2000 = vunpack.c.l.b16 %v590
    %v2001 = vunpack.c.h.b16 %v590
    %v2002 = vunpack.c.l.b16 %v591
    %v2003 = vunpack.c.h.b16 %v591
    %v2004 = vunpack.c.l.b16 %v592
    %v2005 = vunpack.c.h.b16 %v592
    %v2006 = vunpack.c.l.b16 %v593
    %v2007 = vunpack.c.h.b16 %v593
    %v2008 = vunpack.c.l.b16 %v594
    %v2009 = vunpack.c.h.b16 %v594
    %v2010 = vunpack.c.l.b16 %v595
    %v2011 = vunpack.c.h.b16 %v595
    %v2012 = vunpack.c.l.b16 %v596
    %v2013 = vunpack.c.h.b16 %v596
    %v2014 = vunpack.c.l.b16 %v597
    %v2015 = vunpack.c.h.b16 %v597
    %v2016 = vunpack.c.l.b16 %v598
    %v2017 = vunpack.c.h.b16 %v598
    %v2018 = vunpack.c.l.b16 %v599
    %v2019 = vunpack.c.h.b16 %v599
    %v2020 = vunpack.c.l.b16 %v600
    %v2021 = vunpack.c.h.b16 %v600
    %v2022 = vunpack.c.l.b16 %v601
    %v2023 = vunpack.c.h.b16 %v601
    %v2024 = vunpack.c.l.b16 %v602
    %v2025 = vunpack.c.h.b16 %v602
    %v2026 = vunpack.c.l.b16 %v603
    %v2027 = vunpack.c.h.b16 %v603
    %v2028 = vunpack.c.l.b16 %v604
    %v2029 = vunpack.c.h.b16 %v604
    %v2030 = vunpack.c.l.b16 %v605
    %v2031 = vunpack.c.h.b16 %v605
    %v2032 = vunpack.c.l.b16 %v606
    %v2033 = vunpack.c.h.b16 %v606
    %v2034 = vunpack.c.l.b16 %v607
    %v2035 = vunpack.c.h.b16 %v607
    %v2036 = vunpack.c.l.b16 %v608
    %v2037 = vunpack.c.h.b16 %v608
    %v2038 = vunpack.c.l.b16 %v609
    %v2039 = vunpack.c.h.b16 %v609
    %v2040 = vunpack.c.l.b16 %v610
    %v2041 = vunpack.c.h.b16 %v610
    %v2042 = vunpack.c.l.b16 %v611
    %v2043 = vunpack.c.h.b16 %v611
    %v2044 = vunpack.c.l.b16 %v612
    %v2045 = vunpack.c.h.b16 %v612
    %v2046 = vunpack.c.l.b16 %v613
    %v2047 = vunpack.c.h.b16 %v613
    %v2048 = vunpack.c.l.b16 %v614
    %v2049 = vunpack.c.h.b16 %v614
    %v2050 = vunpack.c.l.b16 %v615
    %v2051 = vunpack.c.h.b16 %v615
    %v2052 = vunpack.c.l.b16 %v616
    %v2053 = vunpack.c.h.b16 %v616
    %v2054 = vunpack.c.l.b16 %v617
    %v2055 = vunpack.c.h.b16 %v617
    %v2056 = vunpack.c.l.b16 %v618
    %v2057 = vunpack.c.h.b16 %v618
    %v2058 = vunpack.c.l.b16 %v619
    %v2059 = vunpack.c.h.b16 %v619
    %v2060 = vunpack.c.l.b16 %v620
    %v2061 = vunpack.c.h.b16 %v620
    %v2062 = vunpack.c.l.b16 %v621
    %v2063 = vunpack.c.h.b16 %v621
    %v2064 = vunpack.c.l.b16 %v622
    %v2065 = vunpack.c.h.b16 %v622
    %v2066 = vunpack.c.l.b16 %v623
    %v2067 = vunpack.c.h.b16 %v623
    %v2068 = vunpack.c.l.b16 %v624
    %v2069 = vunpack.c.h.b16 %v624
    %v2070 = vunpack.c.l.b16 %v625
    %v2071 = vunpack.c.h.b16 %v625
    %v2072 = vunpack.c.l.b16 %v626
    %v2073 = vunpack.c.h.b16 %v626
    %v2074 = vunpack.c.l.b16 %v627
    %v2075 = vunpack.c.h.b16 %v627
    %v2076 = vunpack.c.l.b16 %v628
    %v2077 = vunpack.c.h.b16 %v628
    %v2078 = vunpack.c.l.b16 %v629
    %v2079 = vunpack.c.h.b16 %v629
    %v2080 = vunpack.c.l.b16 %v630
    %v2081 = vunpack.c.h.b16 %v630
    %v2082 = vunpack.c.l.b16 %v631
    %v2083 = vunpack.c.h.b16 %v631
    %v2084 = vunpack.c.l.b16 %v632
    %v2085 = vunpack.c.h.b16 %v632
    %v2086 = vunpack.c.l.b16 %v633
    %v2087 = vunpack.c.h.b16 %v633
    %v2088 = vunpack.c.l.b16 %v634
    %v2089 = vunpack.c.h.b16 %v634
    %v2090 = vunpack.c.l.b16 %v635
    %v2091 = vunpack.c.h.b16 %v635
    %v2092 = vunpack.c.l.b16 %v636
    %v2093 = vunpack.c.h.b16 %v636
    %v2094 = vunpack.c.l.b16 %v637
    %v2095 = vunpack.c.h.b16 %v637
    %v2096 = vunpack.c.l.b16 %v638
    %v2097 = vunpack.c.h.b16 %v638
    %v2098 = vunpack.c.l.b16 %v639
    %v2099 = vunpack.c.h.b16 %v639
    %v2100 = vunpack.c.l.b16 %v640
    %v2101 = vunpack.c.h.b16 %v640
    %v2102 = vunpack.c.l.b16 %v641
    %v2103 = vunpack.c.h.b16 %v641
    %v2104 = vunpack.c.l.b16 %v642
    %v2105 = vunpack.c.h.b16 %v642
    %v2106 = vunpack.c.l.b16 %v643
    %v2107 = vunpack.c.h.b16 %v643
    %v2108 = vunpack.c.l.b16 %v644
    %v2109 = vunpack.c.h.b16 %v644
    %v2110 = vunpack.c.l.b16 %v645
    %v2111 = vunpack.c.h.b16 %v645
    %v2112 = vunpack.c.l.b16 %v646
    %v2113 = vunpack.c.h.b16 %v646
    %v2114 = vunpack.c.l.b16 %v647
    %v2115 = vunpack.c.h.b16 %v647
    %v2116 = vunpack.c.l.b16 %v648
    %v2117 = vunpack.c.h.b16 %v648
    %v2118 = vunpack.c.l.b16 %v649
    %v2119 = vunpack.c.h.b16 %v649
    %v2120 = vunpack.c.l.b16 %v650
    %v2121 = vunpack.c.h.b16 %v650
    %v2122 = vunpack.c.l.b16 %v651
    %v2123 = vunpack.c.h.b16 %v651
    %v2124 = vunpack.c.l.b16 %v652
    %v2125 = vunpack.c.h.b16 %v652
    %v2126 = vunpack.c.l.b16 %v653
    %v2127 = vunpack.c.h.b16 %v653
    %v2128 = vunpack.c.l.b16 %v654
    %v2129 = vunpack.c.h.b16 %v654
    %v2130 = vunpack.c.l.b16 %v655
    %v2131 = vunpack.c.h.b16 %v655
    %v2132 = vunpack.c.l.b16 %v656
    %v2133 = vunpack.c.h.b16 %v656
    %v2134 = vunpack.c.l.b16 %v657
    %v2135 = vunpack.c.h.b16 %v657
    %v2136 = vunpack.c.l.b16 %v658
    %v2137 = vunpack.c.h.b16 %v658
    %v2138 = vunpack.c.l.b16 %v659
    %v2139 = vunpack.c.h.b16 %v659
    %v2140 = vunpack.c.l.b16 %v660
    %v2141 = vunpack.c.h.b16 %v660
    %v2142 = vunpack.c.l.b16 %v661
    %v2143 = vunpack.c.h.b16 %v661
    %v2144 = vunpack.c.l.b16 %v662
    %v2145 = vunpack.c.h.b16 %v662
    %v2146 = vunpack.c.l.b16 %v663
    %v2147 = vunpack.c.h.b16 %v663
    %v2148 = vunpack.c.l.b16 %v664
    %v2149 = vunpack.c.h.b16 %v664
    %v2150 = vunpack.c.l.b16 %v665
    %v2151 = vunpack.c.h.b16 %v665
    %v2152 = vunpack.c.l.b16 %v666
    %v2153 = vunpack.c.h.b16 %v666
    %v2154 = vunpack.c.l.b16 %v667
    %v2155 = vunpack.c.h.b16 %v667
    %v2156 = vunpack.c.l.b16 %v668
    %v2157 = vunpack.c.h.b16 %v668
    %v2158 = vunpack.c.l.b16 %v669
    %v2159 = vunpack.c.h.b16 %v669
    %v2160 = vunpack.c.l.b16 %v670
    %v2161 = vunpack.c.h.b16 %v670
    %v2162 = vunpack.c.l.b16 %v671
    %v2163 = vunpack.c.h.b16 %v671
    %v2164 = vunpack.c.l.b16 %v672
    %v2165 = vunpack.c.h.b16 %v672
    %v2166 = vunpack.c.l.b16 %v673
    %v2167 = vunpack.c.h.b16 %v673
    %v2168 = vunpack.c.l.b16 %v674
    %v2169 = vunpack.c.h.b16 %v674
    %v2170 = vunpack.c.l.b16 %v675
    %v2171 = vunpack.c.h.b16 %v675
    %v2172 = vunpack.c.l.b16 %v676
    %v2173 = vunpack.c.h.b16 %v676
    %v2174 = vunpack.c.l.b16 %v677
    %v2175 = vunpack.c.h.b16 %v677
    %v2176 = vunpack.c.l.b16 %v678
    %v2177 = vunpack.c.h.b16 %v678
    %v2178 = vunpack.c.l.b16 %v679
    %v2179 = vunpack.c.h.b16 %v679
    %v2180 = vunpack.c.l.b16 %v680
    %v2181 = vunpack.c.h.b16 %v680
    %v2182 = vunpack.c.l.b16 %v681
    %v2183 = vunpack.c.h.b16 %v681
    %v2184 = vunpack.c.l.b16 %v682
    %v2185 = vunpack.c.h.b16 %v682
    %v2186 = vunpack.c.l.b16 %v683
    %v2187 = vunpack.c.h.b16 %v683
    %v2188 = vunpack.c.l.b16 %v684
    %v2189 = vunpack.c.h.b16 %v684
    %v2190 = vunpack.c.l.b16 %v685
    %v2191 = vunpack.c.h.b16 %v685
    %v2192 = vunpack.c.l.b16 %v686
    %v2193 = vunpack.c.h.b16 %v686
    %v2194 = vunpack.c.l.b16 %v687
    %v2195 = vunpack.c.h.b16 %v687
    %v2196 = vunpack.c.l.b16 %v688
    %v2197 = vunpack.c.h.b16 %v688
    %v2198 = vunpack.c.l.b16 %v689
    %v2199 = vunpack.c.h.b16 %v689
    %v2200 = vunpack.c.l.b16 %v690
    %v2201 = vunpack.c.h.b16 %v690
    %v2202 = vunpack.c.l.b16 %v691
    %v2203 = vunpack.c.h.b16 %v691
    %v2204 = vunpack.c.l.b16 %v692
    %v2205 = vunpack.c.h.b16 %v692
    %v2206 = vunpack.c.l.b16 %v693
    %v2207 = vunpack.c.h.b16 %v693
    %v2208 = vunpack.c.l.b16 %v694
    %v2209 = vunpack.c.h.b16 %v694
    %v2210 = vunpack.c.l.b16 %v695
    %v2211 = vunpack.c.h.b16 %v695
    %v2212 = vunpack.c.l.b16 %v696
    %v2213 = vunpack.c.h.b16 %v696
    %v2214 = vunpack.c.l.b16 %v697
    %v2215 = vunpack.c.h.b16 %v697
    %v2216 = vunpack.c.l.b16 %v698
    %v2217 = vunpack.c.h.b16 %v698
    %v2218 = vunpack.c.l.b16 %v699
    %v2219 = vunpack.c.h.b16 %v699
    %v2220 = vunpack.c.l.b16 %v700
    %v2221 = vunpack.c.h.b16 %v700
    %v2222 = vunpack.c.l.b16 %v701
    %v2223 = vunpack.c.h.b16 %v701
    %v2224 = vunpack.c.l.b16 %v702
    %v2225 = vunpack.c.h.b16 %v702
    %v2226 = vunpack.c.l.b16 %v703
    %v2227 = vunpack.c.h.b16 %v703
    %v2228 = vunpack.c.l.b16 %v704
    %v2229 = vunpack.c.h.b16 %v704
    %v2230 = vunpack.c.l.b16 %v705
    %v2231 = vunpack.c.h.b16 %v705
    %v2232 = vunpack.c.l.b16 %v706
    %v2233 = vunpack.c.h.b16 %v706
    %v2234 = vunpack.c.l.b16 %v707
    %v2235 = vunpack.c.h.b16 %v707
    %v2236 = vunpack.c.l.b16 %v708
    %v2237 = vunpack.c.h.b16 %v708
    %v2238 = vunpack.c.l.b16 %v709
    %v2239 = vunpack.c.h.b16 %v709
    %v2240 = vunpack.c.l.b16 %v710
    %v2241 = vunpack.c.h.b16 %v710
    %v2242 = vunpack.c.l.b16 %v711
    %v2243 = vunpack.c.h.b16 %v711
    %v2244 = vunpack.c.l.b16 %v712
    %v2245 = vunpack.c.h.b16 %v712
    %v2246 = vunpack.c.l.b16 %v713
    %v2247 = vunpack.c.h.b16 %v713
    %v2248 = vunpack.c.l.b16 %v714
    %v2249 = vunpack.c.h.b16 %v714
    %v2250 = vunpack.c.l.b16 %v715
    %v2251 = vunpack.c.h.b16 %v715
    %v2252 = vunpack.c.l.b16 %v716
    %v2253 = vunpack.c.h.b16 %v716
    %v2254 = vunpack.c.l.b16 %v717
    %v2255 = vunpack.c.h.b16 %v717
    %v2256 = vunpack.c.l.b16 %v718
    %v2257 = vunpack.c.h.b16 %v718
    %v2258 = vunpack.c.l.b16 %v719
    %v2259 = vunpack.c.h.b16 %v719
    %v2260 = vunpack.c.l.b16 %v720
    %v2261 = vunpack.c.h.b16 %v720
    %v2262 = vunpack.c.l.b16 %v721
    %v2263 = vunpack.c.h.b16 %v721
    %v2264 = vunpack.c.l.b16 %v722
    %v2265 = vunpack.c.h.b16 %v722
    %v2266 = vunpack.c.l.b16 %v723
    %v2267 = vunpack.c.h.b16 %v723
    %v2268 = vunpack.c.l.b16 %v724
    %v2269 = vunpack.c.h.b16 %v724
    %v2270 = vunpack.c.l.b16 %v725
    %v2271 = vunpack.c.h.b16 %v725
    %v2272 = vunpack.c.l.b16 %v726
    %v2273 = vunpack.c.h.b16 %v726
    %v2274 = vunpack.c.l.b16 %v727
    %v2275 = vunpack.c.h.b16 %v727
    %v2276 = vunpack.c.l.b16 %v728
    %v2277 = vunpack.c.h.b16 %v728
    %v2278 = vunpack.c.l.b16 %v729
    %v2279 = vunpack.c.h.b16 %v729
    %v2280 = vunpack.c.l.b16 %v730
    %v2281 = vunpack.c.h.b16 %v730
    %v2282 = vunpack.c.l.b16 %v731
    %v2283 = vunpack.c.h.b16 %v731
    %v2284 = vunpack.c.l.b16 %v732
    %v2285 = vunpack.c.h.b16 %v732
    %v2286 = vunpack.c.l.b16 %v733
    %v2287 = vunpack.c.h.b16 %v733
    %v2288 = vunpack.c.l.b16 %v734
    %v2289 = vunpack.c.h.b16 %v734
    %v2290 = vunpack.c.l.b16 %v735
    %v2291 = vunpack.c.h.b16 %v735
    %v2292 = vunpack.c.l.b16 %v736
    %v2293 = vunpack.c.h.b16 %v736
    %v2294 = vunpack.c.l.b16 %v737
    %v2295 = vunpack.c.h.b16 %v737
    %v2296 = vunpack.c.l.b16 %v738
    %v2297 = vunpack.c.h.b16 %v738
    %v2298 = vunpack.c.l.b16 %v739
    %v2299 = vunpack.c.h.b16 %v739
    %v2300 = vunpack.c.l.b16 %v740
    %v2301 = vunpack.c.h.b16 %v740
    %v2302 = vunpack.c.l.b16 %v741
    %v2303 = vunpack.c.h.b16 %v741
    %v2304 = vunpack.c.l.b16 %v742
    %v2305 = vunpack.c.h.b16 %v742
    %v2306 = vunpack.c.l.b16 %v743
    %v2307 = vunpack.c.h.b16 %v743
    %v2308 = vunpack.c.l.b16 %v744
    %v2309 = vunpack.c.h.b16 %v744
    %v2310 = vunpack.c.l.b16 %v745
    %v2311 = vunpack.c.h.b16 %v745
    %v2312 = vunpack.c.l.b16 %v746
    %v2313 = vunpack.c.h.b16 %v746
    %v2314 = vunpack.c.l.b16 %v747
    %v2315 = vunpack.c.h.b16 %v747
    %v2316 = vunpack.c.l.b16 %v748
    %v2317 = vunpack.c.h.b16 %v748
    %v2318 = vunpack.c.l.b16 %v749
    %v2319 = vunpack.c.h.b16 %v749
    %v2320 = vunpack.c.l.b16 %v750
    %v2321 = vunpack.c.h.b16 %v750
    %v2322 = vunpack.c.l.b16 %v751
    %v2323 = vunpack.c.h.b16 %v751
    %v2324 = vunpack.c.l.b16 %v752
    %v2325 = vunpack.c.h.b16 %v752
    %v2326 = vunpack.c.l.b16 %v753
    %v2327 = vunpack.c.h.b16 %v753
    %v2328 = vunpack.c.l.b16 %v754
    %v2329 = vunpack.c.h.b16 %v754
    %v2330 = vunpack.c.l.b16 %v755
    %v2331 = vunpack.c.h.b16 %v755
    %v2332 = vunpack.c.l.b16 %v756
    %v2333 = vunpack.c.h.b16 %v756
    %v2334 = vunpack.c.l.b16 %v757
    %v2335 = vunpack.c.h.b16 %v757
    %v2336 = vunpack.c.l.b16 %v758
    %v2337 = vunpack.c.h.b16 %v758
    %v2338 = vunpack.c.l.b16 %v759
    %v2339 = vunpack.c.h.b16 %v759
    %v2340 = vunpack.c.l.b16 %v760
    %v2341 = vunpack.c.h.b16 %v760
    %v2342 = vunpack.c.l.b16 %v761
    %v2343 = vunpack.c.h.b16 %v761
    %v2344 = vunpack.c.l.b16 %v762
    %v2345 = vunpack.c.h.b16 %v762
    %v2346 = vunpack.c.l.b16 %v763
    %v2347 = vunpack.c.h.b16 %v763
    %v2348 = vunpack.c.l.b16 %v764
    %v2349 = vunpack.c.h.b16 %v764
    %v2350 = vunpack.c.l.b16 %v765
    %v2351 = vunpack.c.h.b16 %v765
    %v2352 = vunpack.c.l.b16 %v766
    %v2353 = vunpack.c.h.b16 %v766
    %v2354 = vunpack.c.l.b16 %v767
    %v2355 = vunpack.c.h.b16 %v767
    %v2356 = vunpack.c.l.b16 %v768
    %v2357 = vunpack.c.h.b16 %v768
    %v2358 = vunpack.c.l.b16 %v769
    %v2359 = vunpack.c.h.b16 %v769
    %v2360 = vunpack.c.l.b16 %v770
    %v2361 = vunpack.c.h.b16 %v770
    %v2362 = vunpack.c.l.b16 %v771
    %v2363 = vunpack.c.h.b16 %v771
    %v2364 = vunpack.c.l.b16 %v772
    %v2365 = vunpack.c.h.b16 %v772
    %v2366 = vunpack.c.l.b16 %v773
    %v2367 = vunpack.c.h.b16 %v773
    %v2368 = vunpack.c.l.b16 %v774
    %v2369 = vunpack.c.h.b16 %v774
    %v2370 = vunpack.c.l.b16 %v775
    %v2371 = vunpack.c.h.b16 %v775
    %v2372 = vunpack.c.l.b16 %v776
    %v2373 = vunpack.c.h.b16 %v776
    %v2374 = vunpack.c.l.b16 %v777
    %v2375 = vunpack.c.h.b16 %v777
    %v2376 = vunpack.c.l.b16 %v778
    %v2377 = vunpack.c.h.b16 %v778
    %v2378 = vunpack.c.l.b16 %v779
    %v2379 = vunpack.c.h.b16 %v779
    %v2380 = vunpack.c.l.b16 %v780
    %v2381 = vunpack.c.h.b16 %v780
    %v2382 = vunpack.c.l.b16 %v781
    %v2383 = vunpack.c.h.b16 %v781
    %v2384 = vunpack.c.l.b16 %v782
    %v2385 = vunpack.c.h.b16 %v782
    %v2386 = vunpack.c.l.b16 %v783
    %v2387 = vunpack.c.h.b16 %v783
    %v2388 = vunpack.c.l.b16 %v784
    %v2389 = vunpack.c.h.b16 %v784
    %v2390 = vunpack.c.l.b16 %v785
    %v2391 = vunpack.c.h.b16 %v785
    %v2392 = vunpack.c.l.b16 %v786
    %v2393 = vunpack.c.h.b16 %v786
    %v2394 = vunpack.c.l.b16 %v787
    %v2395 = vunpack.c.h.b16 %v787
    %v2396 = vunpack.c.l.b16 %v788
    %v2397 = vunpack.c.h.b16 %v788
    %v2398 = vunpack.c.l.b16 %v789
    %v2399 = vunpack.c.h.b16 %v789
    %v2400 = vunpack.c.l.b16 %v790
    %v2401 = vunpack.c.h.b16 %v790
    %v2402 = vunpack.c.l.b16 %v791
    %v2403 = vunpack.c.h.b16 %v791
    %v2404 = vunpack.c.l.b16 %v792
    %v2405 = vunpack.c.h.b16 %v792
    %v2406 = vunpack.c.l.b16 %v793
    %v2407 = vunpack.c.h.b16 %v793
    %v2408 = vunpack.c.l.b16 %v794
    %v2409 = vunpack.c.h.b16 %v794
    %v2410 = vunpack.c.l.b16 %v795
    %v2411 = vunpack.c.h.b16 %v795
    %v2412 = vunpack.c.l.b16 %v796
    %v2413 = vunpack.c.h.b16 %v796
    %v2414 = vunpack.c.l.b16 %v797
    %v2415 = vunpack.c.h.b16 %v797
    %v2416 = vunpack.c.l.b16 %v798
    %v2417 = vunpack.c.h.b16 %v798
    %v2418 = vunpack.c.l.b16 %v799
    %v2419 = vunpack.c.h.b16 %v799
    %v2420 = vpack.c.b16 %v1412, %v1396
    %v2421 = vpack.c.b16 %v1413, %v1397
    %v2422 = vpack.c.b16 %v1414, %v1398
    %v2423 = vpack.c.b16 %v1415, %v1399
    %v2424 = vpack.c.b16 %v1416, %v1400
    %v2425 = vpack.c.b16 %v1417, %v1401
    %v2426 = vpack.c.b16 %v1418, %v1402
    %v2427 = vpack.c.b16 %v1419, %v1403
    %v2428 = vpack.c.b16 %v1420, %v1404
    %v2429 = vpack.c.b16 %v1421, %v1405
    %v2430 = vpack.c.b16 %v1422, %v1406
    %v2431 = vpack.c.b16 %v1423, %v1407
    %v2432 = vpack.c.b16 %v1424, %v1408
    %v2433 = vpack.c.b16 %v1425, %v1409
    %v2434 = vpack.c.b16 %v1426, %v1410
    %v2435 = vpack.c.b16 %v1427, %v1411
    %v2436 = vpack.c.b16 %v1444, %v1428
    %v2437 = vpack.c.b16 %v1445, %v1429
    %v2438 = vpack.c.b16 %v1446, %v1430
    %v2439 = vpack.c.b16 %v1447, %v1431
    %v2440 = vpack.c.b16 %v1448, %v1432
    %v2441 = vpack.c.b16 %v1449, %v1433
    %v2442 = vpack.c.b16 %v1450, %v1434
    %v2443 = vpack.c.b16 %v1451, %v1435
    %v2444 = vpack.c.b16 %v1452, %v1436
    %v2445 = vpack.c.b16 %v1453, %v1437
    %v2446 = vpack.c.b16 %v1454, %v1438
    %v2447 = vpack.c.b16 %v1455, %v1439
    %v2448 = vpack.c.b16 %v1456, %v1440
    %v2449 = vpack.c.b16 %v1457, %v1441
    %v2450 = vpack.c.b16 %v1458, %v1442
    %v2451 = vpack.c.b16 %v1459, %v1443
    %v2452 = vpack.c.b16 %v1476, %v1460
    %v2453 = vpack.c.b16 %v1477, %v1461
    %v2454 = vpack.c.b16 %v1478, %v1462
    %v2455 = vpack.c.b16 %v1479, %v1463
    %v2456 = vpack.c.b16 %v1480, %v1464
    %v2457 = vpack.c.b16 %v1481, %v1465
    %v2458 = vpack.c.b16 %v1482, %v1466
    %v2459 = vpack.c.b16 %v1483, %v1467
    %v2460 = vpack.c.b16 %v1484, %v1468
    %v2461 = vpack.c.b16 %v1485, %v1469
    %v2462 = vpack.c.b16 %v1486, %v1470
    %v2463 = vpack.c.b16 %v1487, %v1471
    %v2464 = vpack.c.b16 %v1488, %v1472
    %v2465 = vpack.c.b16 %v1489, %v1473
    %v2466 = vpack.c.b16 %v1490, %v1474
    %v2467 = vpack.c.b16 %v1491, %v1475
    %v2468 = vpack.c.b16 %v1508, %v1492
    %v2469 = vpack.c.b16 %v1509, %v1493
    %v2470 = vpack.c.b16 %v1510, %v1494
    %v2471 = vpack.c.b16 %v1511, %v1495
    %v2472 = vpack.c.b16 %v1512, %v1496
    %v2473 = vpack.c.b16 %v1513, %v1497
    %v2474 = vpack.c.b16 %v1514, %v1498
    %v2475 = vpack.c.b16 %v1515, %v1499
    %v2476 = vpack.c.b16 %v1516, %v1500
    %v2477 = vpack.c.b16 %v1517, %v1501
    %v2478 = vpack.c.b16 %v1518, %v1502
    %v2479 = vpack.c.b16 %v1519, %v1503
    %v2480 = vpack.c.b16 %v1520, %v1504
    %v2481 = vpack.c.b16 %v1521, %v1505
    %v2482 = vpack.c.b16 %v1522, %v1506
    %v2483 = vpack.c.b16 %v1523, %v1507
    %v2484 = vpack.c.b16 %v1540, %v1524
    %v2485 = vpack.c.b16 %v1541, %v1525
    %v2486 = vpack.c.b16 %v1542, %v1526
    %v2487 = vpack.c.b16 %v1543, %v1527
    %v2488 = vpack.c.b16 %v1544, %v1528
    %v2489 = vpack.c.b16 %v1545, %v1529
    %v2490 = vpack.c.b16 %v1546, %v1530
    %v2491 = vpack.c.b16 %v1547, %v1531
    %v2492 = vpack.c.b16 %v1548, %v1532
    %v2493 = vpack.c.b16 %v1549, %v1533
    %v2494 = vpack.c.b16 %v1550, %v1534
    %v2495 = vpack.c.b16 %v1551, %v1535
    %v2496 = vpack.c.b16 %v1552, %v1536
    %v2497 = vpack.c.b16 %v1553, %v1537
    %v2498 = vpack.c.b16 %v1554, %v1538
    %v2499 = vpack.c.b16 %v1555, %v1539
    %v2500 = vpack.c.b16 %v1572, %v1556
    %v2501 = vpack.c.b16 %v1573, %v1557
    %v2502 = vpack.c.b16 %v1574, %v1558
    %v2503 = vpack.c.b16 %v1575, %v1559
    %v2504 = vpack.c.b16 %v1576, %v1560
    %v2505 = vpack.c.b16 %v1577, %v1561
    %v2506 = vpack.c.b16 %v1578, %v1562
    %v2507 = vpack.c.b16 %v1579, %v1563
    %v2508 = vpack.c.b16 %v1580, %v1564
    %v2509 = vpack.c.b16 %v1581, %v1565
    %v2510 = vpack.c.b16 %v1582, %v1566
    %v2511 = vpack.c.b16 %v1583, %v1567
    %v2512 = vpack.c.b16 %v1584, %v1568
    %v2513 = vpack.c.b16 %v1585, %v1569
    %v2514 = vpack.c.b16 %v1586, %v1570
    %v2515 = vpack.c.b16 %v1587, %v1571
    %v2516 = vpack.c.b16 %v1604, %v1588
    %v2517 = vpack.c.b16 %v1605, %v1589
    %v2518 = vpack.c.b16 %v1606, %v1590
    %v2519 = vpack.c.b16 %v1607, %v1591
    %v2520 = vpack.c.b16 %v1608, %v1592
    %v2521 = vpack.c.b16 %v1609, %v1593
    %v2522 = vpack.c.b16 %v1610, %v1594
    %v2523 = vpack.c.b16 %v1611, %v1595
    %v2524 = vpack.c.b16 %v1612, %v1596
    %v2525 = vpack.c.b16 %v1613, %v1597
    %v2526 = vpack.c.b16 %v1614, %v1598
    %v2527 = vpack.c.b16 %v1615, %v1599
    %v2528 = vpack.c.b16 %v1616, %v1600
    %v2529 = vpack.c.b16 %v1617, %v1601
    %v2530 = vpack.c.b16 %v1618, %v1602
    %v2531 = vpack.c.b16 %v1619, %v1603
    %v2532 = vpack.c.b16 %v1636, %v1620
    %v2533 = vpack.c.b16 %v1637, %v1621
    %v2534 = vpack.c.b16 %v1638, %v1622
    %v2535 = vpack.c.b16 %v1639, %v1623
    %v2536 = vpack.c.b16 %v1640, %v1624
    %v2537 = vpack.c.b16 %v1641, %v1625
    %v2538 = vpack.c.b16 %v1642, %v1626
    %v2539 = vpack.c.b16 %v1643, %v1627
    %v2540 = vpack.c.b16 %v1644, %v1628
    %v2541 = vpack.c.b16 %v1645, %v1629
    %v2542 = vpack.c.b16 %v1646, %v1630
    %v2543 = vpack.c.b16 %v1647, %v1631
    %v2544 = vpack.c.b16 %v1648, %v1632
    %v2545 = vpack.c.b16 %v1649, %v1633
    %v2546 = vpack.c.b16 %v1650, %v1634
    %v2547 = vpack.c.b16 %v1651, %v1635
    %v2548 = vpack.c.b16 %v1668, %v1652
    %v2549 = vpack.c.b16 %v1669, %v1653
    %v2550 = vpack.c.b16 %v1670, %v1654
    %v2551 = vpack.c.b16 %v1671, %v1655
    %v2552 = vpack.c.b16 %v1672, %v1656
    %v2553 = vpack.c.b16 %v1673, %v1657
    %v2554 = vpack.c.b16 %v1674, %v1658
    %v2555 = vpack.c.b16 %v1675, %v1659
    %v2556 = vpack.c.b16 %v1676, %v1660
    %v2557 = vpack.c.b16 %v1677, %v1661
    %v2558 = vpack.c.b16 %v1678, %v1662
    %v2559 = vpack.c.b16 %v1679, %v1663
    %v2560 = vpack.c.b16 %v1680, %v1664
    %v2561 = vpack.c.b16 %v1681, %v1665
    %v2562 = vpack.c.b16 %v1682, %v1666
    %v2563 = vpack.c.b16 %v1683, %v1667
    %v2564 = vpack.c.b16 %v1700, %v1684
    %v2565 = vpack.c.b16 %v1701, %v1685
    %v2566 = vpack.c.b16 %v1702, %v1686
    %v2567 = vpack.c.b16 %v1703, %v1687
    %v2568 = vpack.c.b16 %v1704, %v1688
    %v2569 = vpack.c.b16 %v1705, %v1689
    %v2570 = vpack.c.b16 %v1706, %v1690
    %v2571 = vpack.c.b16 %v1707, %v1691
    %v2572 = vpack.c.b16 %v1708, %v1692
    %v2573 = vpack.c.b16 %v1709, %v1693
    %v2574 = vpack.c.b16 %v1710, %v1694
    %v2575 = vpack.c.b16 %v1711, %v1695
    %v2576 = vpack.c.b16 %v1712, %v1696
    %v2577 = vpack.c.b16 %v1713, %v1697
    %v2578 = vpack.c.b16 %v1714, %v1698
    %v2579 = vpack.c.b16 %v1715, %v1699
    %v2580 = vpack.c.b16 %v1732, %v1716
    %v2581 = vpack.c.b16 %v1733, %v1717
    %v2582 = vpack.c.b16 %v1734, %v1718
    %v2583 = vpack.c.b16 %v1735, %v1719
    %v2584 = vpack.c.b16 %v1736, %v1720
    %v2585 = vpack.c.b16 %v1737, %v1721
    %v2586 = vpack.c.b16 %v1738, %v1722
    %v2587 = vpack.c.b16 %v1739, %v1723
    %v2588 = vpack.c.b16 %v1740, %v1724
    %v2589 = vpack.c.b16 %v1741, %v1725
    %v2590 = vpack.c.b16 %v1742, %v1726
    %v2591 = vpack.c.b16 %v1743, %v1727
    %v2592 = vpack.c.b16 %v1744, %v1728
    %v2593 = vpack.c.b16 %v1745, %v1729
    %v2594 = vpack.c.b16 %v1746, %v1730
    %v2595 = vpack.c.b16 %v1747, %v1731
    %v2596 = vpack.c.b16 %v1764, %v1748
    %v2597 = vpack.c.b16 %v1765, %v1749
    %v2598 = vpack.c.b16 %v1766, %v1750
    %v2599 = vpack.c.b16 %v1767, %v1751
    %v2600 = vpack.c.b16 %v1768, %v1752
    %v2601 = vpack.c.b16 %v1769, %v1753
    %v2602 = vpack.c.b16 %v1770, %v1754
    %v2603 = vpack.c.b16 %v1771, %v1755
    %v2604 = vpack.c.b16 %v1772, %v1756
    %v2605 = vpack.c.b16 %v1773, %v1757
    %v2606 = vpack.c.b16 %v1774, %v1758
    %v2607 = vpack.c.b16 %v1775, %v1759
    %v2608 = vpack.c.b16 %v1776, %v1760
    %v2609 = vpack.c.b16 %v1777, %v1761
    %v2610 = vpack.c.b16 %v1778, %v1762
    %v2611 = vpack.c.b16 %v1779, %v1763
    %v2612 = vpack.c.b16 %v1796, %v1780
    %v2613 = vpack.c.b16 %v1797, %v1781
    %v2614 = vpack.c.b16 %v1798, %v1782
    %v2615 = vpack.c.b16 %v1799, %v1783
    %v2616 = vpack.c.b16 %v1800, %v1784
    %v2617 = vpack.c.b16 %v1801, %v1785
    %v2618 = vpack.c.b16 %v1802, %v1786
    %v2619 = vpack.c.b16 %v1803, %v1787
    %v2620 = vpack.c.b16 %v1804, %v1788
    %v2621 = vpack.c.b16 %v1805, %v1789
    %v2622 = vpack.c.b16 %v1806, %v1790
    %v2623 = vpack.c.b16 %v1807, %v1791
    %v2624 = vpack.c.b16 %v1808, %v1792
    %v2625 = vpack.c.b16 %v1809, %v1793
    %v2626 = vpack.c.b16 %v1810, %v1794
    %v2627 = vpack.c.b16 %v1811, %v1795
    %v2628 = vpack.c.b16 %v1828, %v1812
    %v2629 = vpack.c.b16 %v1829, %v1813
    %v2630 = vpack.c.b16 %v1830, %v1814
    %v2631 = vpack.c.b16 %v1831, %v1815
    %v2632 = vpack.c.b16 %v1832, %v1816
    %v2633 = vpack.c.b16 %v1833, %v1817
    %v2634 = vpack.c.b16 %v1834, %v1818
    %v2635 = vpack.c.b16 %v1835, %v1819
    %v2636 = vpack.c.b16 %v1836, %v1820
    %v2637 = vpack.c.b16 %v1837, %v1821
    %v2638 = vpack.c.b16 %v1838, %v1822
    %v2639 = vpack.c.b16 %v1839, %v1823
    %v2640 = vpack.c.b16 %v1840, %v1824
    %v2641 = vpack.c.b16 %v1841, %v1825
    %v2642 = vpack.c.b16 %v1842, %v1826
    %v2643 = vpack.c.b16 %v1843, %v1827
    %v2644 = vpack.c.b16 %v1860, %v1844
    %v2645 = vpack.c.b16 %v1861, %v1845
    %v2646 = vpack.c.b16 %v1862, %v1846
    %v2647 = vpack.c.b16 %v1863, %v1847
    %v2648 = vpack.c.b16 %v1864, %v1848
    %v2649 = vpack.c.b16 %v1865, %v1849
    %v2650 = vpack.c.b16 %v1866, %v1850
    %v2651 = vpack.c.b16 %v1867, %v1851
    %v2652 = vpack.c.b16 %v1868, %v1852
    %v2653 = vpack.c.b16 %v1869, %v1853
    %v2654 = vpack.c.b16 %v1870, %v1854
    %v2655 = vpack.c.b16 %v1871, %v1855
    %v2656 = vpack.c.b16 %v1872, %v1856
    %v2657 = vpack.c.b16 %v1873, %v1857
    %v2658 = vpack.c.b16 %v1874, %v1858
    %v2659 = vpack.c.b16 %v1875, %v1859
    %v2660 = vpack.c.b16 %v1892, %v1876
    %v2661 = vpack.c.b16 %v1893, %v1877
    %v2662 = vpack.c.b16 %v1894, %v1878
    %v2663 = vpack.c.b16 %v1895, %v1879
    %v2664 = vpack.c.b16 %v1896, %v1880
    %v2665 = vpack.c.b16 %v1897, %v1881
    %v2666 = vpack.c.b16 %v1898, %v1882
    %v2667 = vpack.c.b16 %v1899, %v1883
    %v2668 = vpack.c.b16 %v1900, %v1884
    %v2669 = vpack.c.b16 %v1901, %v1885
    %v2670 = vpack.c.b16 %v1902, %v1886
    %v2671 = vpack.c.b16 %v1903, %v1887
    %v2672 = vpack.c.b16 %v1904, %v1888
    %v2673 = vpack.c.b16 %v1905, %v1889
    %v2674 = vpack.c.b16 %v1906, %v1890
    %v2675 = vpack.c.b16 %v1907, %v1891
    %v2676 = vpack.c.b16 %v1924, %v1908
    %v2677 = vpack.c.b16 %v1925, %v1909
    %v2678 = vpack.c.b16 %v1926, %v1910
    %v2679 = vpack.c.b16 %v1927, %v1911
    %v2680 = vpack.c.b16 %v1928, %v1912
    %v2681 = vpack.c.b16 %v1929, %v1913
    %v2682 = vpack.c.b16 %v1930, %v1914
    %v2683 = vpack.c.b16 %v1931, %v1915
    %v2684 = vpack.c.b16 %v1932, %v1916
    %v2685 = vpack.c.b16 %v1933, %v1917
    %v2686 = vpack.c.b16 %v1934, %v1918
    %v2687 = vpack.c.b16 %v1935, %v1919
    %v2688 = vpack.c.b16 %v1936, %v1920
    %v2689 = vpack.c.b16 %v1937, %v1921
    %v2690 = vpack.c.b16 %v1938, %v1922
    %v2691 = vpack.c.b16 %v1939, %v1923
    %v2692 = vpack.c.b16 %v1956, %v1940
    %v2693 = vpack.c.b16 %v1957, %v1941
    %v2694 = vpack.c.b16 %v1958, %v1942
    %v2695 = vpack.c.b16 %v1959, %v1943
    %v2696 = vpack.c.b16 %v1960, %v1944
    %v2697 = vpack.c.b16 %v1961, %v1945
    %v2698 = vpack.c.b16 %v1962, %v1946
    %v2699 = vpack.c.b16 %v1963, %v1947
    %v2700 = vpack.c.b16 %v1964, %v1948
    %v2701 = vpack.c.b16 %v1965, %v1949
    %v2702 = vpack.c.b16 %v1966, %v1950
    %v2703 = vpack.c.b16 %v1967, %v1951
    %v2704 = vpack.c.b16 %v1968, %v1952
    %v2705 = vpack.c.b16 %v1969, %v1953
    %v2706 = vpack.c.b16 %v1970, %v1954
    %v2707 = vpack.c.b16 %v1971, %v1955
    %v2708 = vpack.c.b16 %v1988, %v1972
    %v2709 = vpack.c.b16 %v1989, %v1973
    %v2710 = vpack.c.b16 %v1990, %v1974
    %v2711 = vpack.c.b16 %v1991, %v1975
    %v2712 = vpack.c.b16 %v1992, %v1976
    %v2713 = vpack.c.b16 %v1993, %v1977
    %v2714 = vpack.c.b16 %v1994, %v1978
    %v2715 = vpack.c.b16 %v1995, %v1979
    %v2716 = vpack.c.b16 %v1996, %v1980
    %v2717 = vpack.c.b16 %v1997, %v1981
    %v2718 = vpack.c.b16 %v1998, %v1982
    %v2719 = vpack.c.b16 %v1999, %v1983
    %v2720 = vpack.c.b16 %v2000, %v1984
    %v2721 = vpack.c.b16 %v2001, %v1985
    %v2722 = vpack.c.b16 %v2002, %v1986
    %v2723 = vpack.c.b16 %v2003, %v1987
    %v2724 = vpack.c.b16 %v2020, %v2004
    %v2725 = vpack.c.b16 %v2021, %v2005
    %v2726 = vpack.c.b16 %v2022, %v2006
    %v2727 = vpack.c.b16 %v2023, %v2007
    %v2728 = vpack.c.b16 %v2024, %v2008
    %v2729 = vpack.c.b16 %v2025, %v2009
    %v2730 = vpack.c.b16 %v2026, %v2010
    %v2731 = vpack.c.b16 %v2027, %v2011
    %v2732 = vpack.c.b16 %v2028, %v2012
    %v2733 = vpack.c.b16 %v2029, %v2013
    %v2734 = vpack.c.b16 %v2030, %v2014
    %v2735 = vpack.c.b16 %v2031, %v2015
    %v2736 = vpack.c.b16 %v2032, %v2016
    %v2737 = vpack.c.b16 %v2033, %v2017
    %v2738 = vpack.c.b16 %v2034, %v2018
    %v2739 = vpack.c.b16 %v2035, %v2019
    %v2740 = vpack.c.b16 %v2052, %v2036
    %v2741 = vpack.c.b16 %v2053, %v2037
    %v2742 = vpack.c.b16 %v2054, %v2038
    %v2743 = vpack.c.b16 %v2055, %v2039
    %v2744 = vpack.c.b16 %v2056, %v2040
    %v2745 = vpack.c.b16 %v2057, %v2041
    %v2746 = vpack.c.b16 %v2058, %v2042
    %v2747 = vpack.c.b16 %v2059, %v2043
    %v2748 = vpack.c.b16 %v2060, %v2044
    %v2749 = vpack.c.b16 %v2061, %v2045
    %v2750 = vpack.c.b16 %v2062, %v2046
    %v2751 = vpack.c.b16 %v2063, %v2047
    %v2752 = vpack.c.b16 %v2064, %v2048
    %v2753 = vpack.c.b16 %v2065, %v2049
    %v2754 = vpack.c.b16 %v2066, %v2050
    %v2755 = vpack.c.b16 %v2067, %v2051
    %v2756 = vpack.c.b16 %v2084, %v2068
    %v2757 = vpack.c.b16 %v2085, %v2069
    %v2758 = vpack.c.b16 %v2086, %v2070
    %v2759 = vpack.c.b16 %v2087, %v2071
    %v2760 = vpack.c.b16 %v2088, %v2072
    %v2761 = vpack.c.b16 %v2089, %v2073
    %v2762 = vpack.c.b16 %v2090, %v2074
    %v2763 = vpack.c.b16 %v2091, %v2075
    %v2764 = vpack.c.b16 %v2092, %v2076
    %v2765 = vpack.c.b16 %v2093, %v2077
    %v2766 = vpack.c.b16 %v2094, %v2078
    %v2767 = vpack.c.b16 %v2095, %v2079
    %v2768 = vpack.c.b16 %v2096, %v2080
    %v2769 = vpack.c.b16 %v2097, %v2081
    %v2770 = vpack.c.b16 %v2098, %v2082
    %v2771 = vpack.c.b16 %v2099, %v2083
    %v2772 = vpack.c.b16 %v2116, %v2100
    %v2773 = vpack.c.b16 %v2117, %v2101
    %v2774 = vpack.c.b16 %v2118, %v2102
    %v2775 = vpack.c.b16 %v2119, %v2103
    %v2776 = vpack.c.b16 %v2120, %v2104
    %v2777 = vpack.c.b16 %v2121, %v2105
    %v2778 = vpack.c.b16 %v2122, %v2106
    %v2779 = vpack.c.b16 %v2123, %v2107
    %v2780 = vpack.c.b16 %v2124, %v2108
    %v2781 = vpack.c.b16 %v2125, %v2109
    %v2782 = vpack.c.b16 %v2126, %v2110
    %v2783 = vpack.c.b16 %v2127, %v2111
    %v2784 = vpack.c.b16 %v2128, %v2112
    %v2785 = vpack.c.b16 %v2129, %v2113
    %v2786 = vpack.c.b16 %v2130, %v2114
    %v2787 = vpack.c.b16 %v2131, %v2115
    %v2788 = vpack.c.b16 %v2148, %v2132
    %v2789 = vpack.c.b16 %v2149, %v2133
    %v2790 = vpack.c.b16 %v2150, %v2134
    %v2791 = vpack.c.b16 %v2151, %v2135
    %v2792 = vpack.c.b16 %v2152, %v2136
    %v2793 = vpack.c.b16 %v2153, %v2137
    %v2794 = vpack.c.b16 %v2154, %v2138
    %v2795 = vpack.c.b16 %v2155, %v2139
    %v2796 = vpack.c.b16 %v2156, %v2140
    %v2797 = vpack.c.b16 %v2157, %v2141
    %v2798 = vpack.c.b16 %v2158, %v2142
    %v2799 = vpack.c.b16 %v2159, %v2143
    %v2800 = vpack.c.b16 %v2160, %v2144
    %v2801 = vpack.c.b16 %v2161, %v2145
    %v2802 = vpack.c.b16 %v2162, %v2146
    %v2803 = vpack.c.b16 %v2163, %v2147
    %v2804 = vpack.c.b16 %v2180, %v2164
    %v2805 = vpack.c.b16 %v2181, %v2165
    %v2806 = vpack.c.b16 %v2182, %v2166
    %v2807 = vpack.c.b16 %v2183, %v2167
    %v2808 = vpack.c.b16 %v2184, %v2168
    %v2809 = vpack.c.b16 %v2185, %v2169
    %v2810 = vpack.c.b16 %v2186, %v2170
    %v2811 = vpack.c.b16 %v2187, %v2171
    %v2812 = vpack.c.b16 %v2188, %v2172
    %v2813 = vpack.c.b16 %v2189, %v2173
    %v2814 = vpack.c.b16 %v2190, %v2174
    %v2815 = vpack.c.b16 %v2191, %v2175
    %v2816 = vpack.c.b16 %v2192, %v2176
    %v2817 = vpack.c.b16 %v2193, %v2177
    %v2818 = vpack.c.b16 %v2194, %v2178
    %v2819 = vpack.c.b16 %v2195, %v2179
    %v2820 = vpack.c.b16 %v2212, %v2196
    %v2821 = vpack.c.b16 %v2213, %v2197
    %v2822 = vpack.c.b16 %v2214, %v2198
    %v2823 = vpack.c.b16 %v2215, %v2199
    %v2824 = vpack.c.b16 %v2216, %v2200
    %v2825 = vpack.c.b16 %v2217, %v2201
    %v2826 = vpack.c.b16 %v2218, %v2202
    %v2827 = vpack.c.b16 %v2219, %v2203
    %v2828 = vpack.c.b16 %v2220, %v2204
    %v2829 = vpack.c.b16 %v2221, %v2205
    %v2830 = vpack.c.b16 %v2222, %v2206
    %v2831 = vpack.c.b16 %v2223, %v2207
    %v2832 = vpack.c.b16 %v2224, %v2208
    %v2833 = vpack.c.b16 %v2225, %v2209
    %v2834 = vpack.c.b16 %v2226, %v2210
    %v2835 = vpack.c.b16 %v2227, %v2211
    %v2836 = vpack.c.b16 %v2244, %v2228
    %v2837 = vpack.c.b16 %v2245, %v2229
    %v2838 = vpack.c.b16 %v2246, %v2230
    %v2839 = vpack.c.b16 %v2247, %v2231
    %v2840 = vpack.c.b16 %v2248, %v2232
    %v2841 = vpack.c.b16 %v2249, %v2233
    %v2842 = vpack.c.b16 %v2250, %v2234
    %v2843 = vpack.c.b16 %v2251, %v2235
    %v2844 = vpack.c.b16 %v2252, %v2236
    %v2845 = vpack.c.b16 %v2253, %v2237
    %v2846 = vpack.c.b16 %v2254, %v2238
    %v2847 = vpack.c.b16 %v2255, %v2239
    %v2848 = vpack.c.b16 %v2256, %v2240
    %v2849 = vpack.c.b16 %v2257, %v2241
    %v2850 = vpack.c.b16 %v2258, %v2242
    %v2851 = vpack.c.b16 %v2259, %v2243
    %v2852 = vpack.c.b16 %v2276, %v2260
    %v2853 = vpack.c.b16 %v2277, %v2261
    %v2854 = vpack.c.b16 %v2278, %v2262
    %v2855 = vpack.c.b16 %v2279, %v2263
    %v2856 = vpack.c.b16 %v2280, %v2264
    %v2857 = vpack.c.b16 %v2281, %v2265
    %v2858 = vpack.c.b16 %v2282, %v2266
    %v2859 = vpack.c.b16 %v2283, %v2267
    %v2860 = vpack.c.b16 %v2284, %v2268
    %v2861 = vpack.c.b16 %v2285, %v2269
    %v2862 = vpack.c.b16 %v2286, %v2270
    %v2863 = vpack.c.b16 %v2287, %v2271
    %v2864 = vpack.c.b16 %v2288, %v2272
    %v2865 = vpack.c.b16 %v2289, %v2273
    %v2866 = vpack.c.b16 %v2290, %v2274
    %v2867 = vpack.c.b16 %v2291, %v2275
    %v2868 = vpack.c.b16 %v2308, %v2292
    %v2869 = vpack.c.b16 %v2309, %v2293
    %v2870 = vpack.c.b16 %v2310, %v2294
    %v2871 = vpack.c.b16 %v2311, %v2295
    %v2872 = vpack.c.b16 %v2312, %v2296
    %v2873 = vpack.c.b16 %v2313, %v2297
    %v2874 = vpack.c.b16 %v2314, %v2298
    %v2875 = vpack.c.b16 %v2315, %v2299
    %v2876 = vpack.c.b16 %v2316, %v2300
    %v2877 = vpack.c.b16 %v2317, %v2301
    %v2878 = vpack.c.b16 %v2318, %v2302
    %v2879 = vpack.c.b16 %v2319, %v2303
    %v2880 = vpack.c.b16 %v2320, %v2304
    %v2881 = vpack.c.b16 %v2321, %v2305
    %v2882 = vpack.c.b16 %v2322, %v2306
    %v2883 = vpack.c.b16 %v2323, %v2307
    %v2884 = vpack.c.b16 %v2340, %v2324
    %v2885 = vpack.c.b16 %v2341, %v2325
    %v2886 = vpack.c.b16 %v2342, %v2326
    %v2887 = vpack.c.b16 %v2343, %v2327
    %v2888 = vpack.c.b16 %v2344, %v2328
    %v2889 = vpack.c.b16 %v2345, %v2329
    %v2890 = vpack.c.b16 %v2346, %v2330
    %v2891 = vpack.c.b16 %v2347, %v2331
    %v2892 = vpack.c.b16 %v2348, %v2332
    %v2893 = vpack.c.b16 %v2349, %v2333
    %v2894 = vpack.c.b16 %v2350, %v2334
    %v2895 = vpack.c.b16 %v2351, %v2335
    %v2896 = vpack.c.b16 %v2352, %v2336
    %v2897 = vpack.c.b16 %v2353, %v2337
    %v2898 = vpack.c.b16 %v2354, %v2338
    %v2899 = vpack.c.b16 %v2355, %v2339
    %v2900 = vpack.c.b16 %v2372, %v2356
    %v2901 = vpack.c.b16 %v2373, %v2357
    %v2902 = vpack.c.b16 %v2374, %v2358
    %v2903 = vpack.c.b16 %v2375, %v2359
    %v2904 = vpack.c.b16 %v2376, %v2360
    %v2905 = vpack.c.b16 %v2377, %v2361
    %v2906 = vpack.c.b16 %v2378, %v2362
    %v2907 = vpack.c.b16 %v2379, %v2363
    %v2908 = vpack.c.b16 %v2380, %v2364
    %v2909 = vpack.c.b16 %v2381, %v2365
    %v2910 = vpack.c.b16 %v2382, %v2366
    %v2911 = vpack.c.b16 %v2383, %v2367
    %v2912 = vpack.c.b16 %v2384, %v2368
    %v2913 = vpack.c.b16 %v2385, %v2369
    %v2914 = vpack.c.b16 %v2386, %v2370
    %v2915 = vpack.c.b16 %v2387, %v2371
    %v2916 = vpack.c.b16 %v2404, %v2388
    %v2917 = vpack.c.b16 %v2405, %v2389
    %v2918 = vpack.c.b16 %v2406, %v2390
    %v2919 = vpack.c.b16 %v2407, %v2391
    %v2920 = vpack.c.b16 %v2408, %v2392
    %v2921 = vpack.c.b16 %v2409, %v2393
    %v2922 = vpack.c.b16 %v2410, %v2394
    %v2923 = vpack.c.b16 %v2411, %v2395
    %v2924 = vpack.c.b16 %v2412, %v2396
    %v2925 = vpack.c.b16 %v2413, %v2397
    %v2926 = vpack.c.b16 %v2414, %v2398
    %v2927 = vpack.c.b16 %v2415, %v2399
    %v2928 = vpack.c.b16 %v2416, %v2400
    %v2929 = vpack.c.b16 %v2417, %v2401
    %v2930 = vpack.c.b16 %v2418, %v2402
    %v2931 = vpack.c.b16 %v2419, %v2403
    %3444 = vmatprep.subr.bf16.mxu0 %v2533
    %3445 = vmatpush1.bf16.msra.mxu0 %v2532
    %3446 = vmatprep.subr.bf16.mxu0 %v2517
    %3447 = vmatpush1.bf16.msra.mxu0 %v2516
    %3448 = vmatprep.subr.bf16.mxu0 %v2501
    %3449 = vmatpush1.bf16.msra.mxu0 %v2500
    %3450 = vmatprep.subr.bf16.mxu0 %v2485
    %3451 = vmatpush1.bf16.msra.mxu0 %v2484
    %3452 = vmatprep.subr.bf16.mxu0 %v2469
    %3453 = vmatpush1.bf16.msra.mxu0 %v2468
    %3454 = vmatprep.subr.bf16.mxu0 %v2453
    %3455 = vmatpush1.bf16.msra.mxu0 %v2452
    %3456 = vmatprep.subr.bf16.mxu0 %v2437
    %3457 = vmatpush1.bf16.msra.mxu0 %v2436
    %3458 = vmatprep.subr.bf16.mxu0 %v2421
    %3459 = vmatpush1.bf16.msra.mxu0 %v2420
    %3460 = vmatprep.subr.bf16.mxu0 %v2661
    %3461 = vmatpush2.bf16.msra.mxu0 %v2660
    %3462 = vmatprep.subr.bf16.mxu0 %v2645
    %3463 = vmatpush2.bf16.msra.mxu0 %v2644
    %3464 = vmatprep.subr.bf16.mxu0 %v2629
    %3465 = vmatpush2.bf16.msra.mxu0 %v2628
    %3466 = vmatprep.subr.bf16.mxu0 %v2613
    %3467 = vmatpush2.bf16.msra.mxu0 %v2612
    %3468 = vmatprep.subr.bf16.mxu0 %v2597
    %3469 = vmatpush2.bf16.msra.mxu0 %v2596
    %3470 = vmatprep.subr.bf16.mxu0 %v2581
    %3471 = vmatpush2.bf16.msra.mxu0 %v2580
    %3472 = vmatprep.subr.bf16.mxu0 %v2565
    %3473 = vmatpush2.bf16.msra.mxu0 %v2564
    %3474 = vmatprep.subr.bf16.mxu0 %v2549
    %3475 = vmatpush2.bf16.msra.mxu0 %v2548
    %3476 = vmatprep.mubr.bf16.mxu0 %v285
    %3477 = vmatmul.mubr.bf16.gmra.mxu0 %v284
    %v3478 = vpop.f32.mrf.mxu0
    %v3479 = vadd.f32 %v807, %v3478
    %v3480 = vpop.f32.mrf.mxu0
    %v3481 = vadd.f32 %v811, %v3480
    %v3482 = vpop.f32.mrf.mxu0
    %v3483 = vpop.f32.mrf.mxu0
    %3484 = vdwg.mxu0
    %3485 = vmatprep.subr.bf16.mxu0 %v2789
    %3486 = vmatpush1.bf16.msra.mxu0 %v2788
    %3487 = vmatprep.subr.bf16.mxu0 %v2773
    %3488 = vmatpush1.bf16.msra.mxu0 %v2772
    %3489 = vmatprep.subr.bf16.mxu0 %v2757
    %3490 = vmatpush1.bf16.msra.mxu0 %v2756
    %3491 = vmatprep.subr.bf16.mxu0 %v2741
    %3492 = vmatpush1.bf16.msra.mxu0 %v2740
    %3493 = vmatprep.subr.bf16.mxu0 %v2725
    %3494 = vmatpush1.bf16.msra.mxu0 %v2724
    %3495 = vmatprep.subr.bf16.mxu0 %v2709
    %3496 = vmatpush1.bf16.msra.mxu0 %v2708
    %3497 = vmatprep.subr.bf16.mxu0 %v2693
    %3498 = vmatpush1.bf16.msra.mxu0 %v2692
    %3499 = vmatprep.subr.bf16.mxu0 %v2677
    %3500 = vmatpush1.bf16.msra.mxu0 %v2676
    %3501 = vmatprep.subr.bf16.mxu0 %v2917
    %3502 = vmatpush2.bf16.msra.mxu0 %v2916
    %3503 = vmatprep.subr.bf16.mxu0 %v2901
    %3504 = vmatpush2.bf16.msra.mxu0 %v2900
    %3505 = vmatprep.subr.bf16.mxu0 %v2885
    %3506 = vmatpush2.bf16.msra.mxu0 %v2884
    %3507 = vmatprep.subr.bf16.mxu0 %v2869
    %3508 = vmatpush2.bf16.msra.mxu0 %v2868
    %3509 = vmatprep.subr.bf16.mxu0 %v2853
    %3510 = vmatpush2.bf16.msra.mxu0 %v2852
    %3511 = vmatprep.subr.bf16.mxu0 %v2837
    %3512 = vmatpush2.bf16.msra.mxu0 %v2836
    %3513 = vmatprep.subr.bf16.mxu0 %v2821
    %3514 = vmatpush2.bf16.msra.mxu0 %v2820
    %3515 = vmatprep.subr.bf16.mxu0 %v2805
    %3516 = vmatpush2.bf16.msra.mxu0 %v2804
    %3517 = vmatprep.mubr.bf16.mxu0 %v287
    %3518 = vmatmul.mubr.bf16.gmra.mxu0 %v286
    %v3519 = vpop.f32.mrf.mxu0
    %v3520 = vadd.f32 %v3479, %v3519
    %v3521 = vpop.f32.mrf.mxu0
    %v3522 = vadd.f32 %v3481, %v3521
    %v3523 = vpop.f32.mrf.mxu0
    %v3524 = vpop.f32.mrf.mxu0
    %3525 = vdwg.mxu0
    %3526 = vmatprep.subr.bf16.mxu0 %v2535
    %3527 = vmatpush1.bf16.msra.mxu0 %v2534
    %3528 = vmatprep.subr.bf16.mxu0 %v2519
    %3529 = vmatpush1.bf16.msra.mxu0 %v2518
    %3530 = vmatprep.subr.bf16.mxu0 %v2503
    %3531 = vmatpush1.bf16.msra.mxu0 %v2502
    %3532 = vmatprep.subr.bf16.mxu0 %v2487
    %3533 = vmatpush1.bf16.msra.mxu0 %v2486
    %3534 = vmatprep.subr.bf16.mxu0 %v2471
    %3535 = vmatpush1.bf16.msra.mxu0 %v2470
    %3536 = vmatprep.subr.bf16.mxu0 %v2455
    %3537 = vmatpush1.bf16.msra.mxu0 %v2454
    %3538 = vmatprep.subr.bf16.mxu0 %v2439
    %3539 = vmatpush1.bf16.msra.mxu0 %v2438
    %3540 = vmatprep.subr.bf16.mxu0 %v2423
    %3541 = vmatpush1.bf16.msra.mxu0 %v2422
    %3542 = vmatprep.subr.bf16.mxu0 %v2663
    %3543 = vmatpush2.bf16.msra.mxu0 %v2662
    %3544 = vmatprep.subr.bf16.mxu0 %v2647
    %3545 = vmatpush2.bf16.msra.mxu0 %v2646
    %3546 = vmatprep.subr.bf16.mxu0 %v2631
    %3547 = vmatpush2.bf16.msra.mxu0 %v2630
    %3548 = vmatprep.subr.bf16.mxu0 %v2615
    %3549 = vmatpush2.bf16.msra.mxu0 %v2614
    %3550 = vmatprep.subr.bf16.mxu0 %v2599
    %3551 = vmatpush2.bf16.msra.mxu0 %v2598
    %3552 = vmatprep.subr.bf16.mxu0 %v2583
    %3553 = vmatpush2.bf16.msra.mxu0 %v2582
    %3554 = vmatprep.subr.bf16.mxu0 %v2567
    %3555 = vmatpush2.bf16.msra.mxu0 %v2566
    %3556 = vmatprep.subr.bf16.mxu0 %v2551
    %3557 = vmatpush2.bf16.msra.mxu0 %v2550
    %3558 = vmatprep.mubr.bf16.mxu0 %v285
    %3559 = vmatmul.mubr.bf16.gmra.mxu0 %v284
    %v3560 = vpop.f32.mrf.mxu0
    %v3561 = vadd.f32 %v815, %v3560
    %v3562 = vpop.f32.mrf.mxu0
    %v3563 = vadd.f32 %v819, %v3562
    %v3564 = vpop.f32.mrf.mxu0
    %v3565 = vpop.f32.mrf.mxu0
    %3566 = vdwg.mxu0
    %3567 = vmatprep.subr.bf16.mxu0 %v2791
    %3568 = vmatpush1.bf16.msra.mxu0 %v2790
    %3569 = vmatprep.subr.bf16.mxu0 %v2775
    %3570 = vmatpush1.bf16.msra.mxu0 %v2774
    %3571 = vmatprep.subr.bf16.mxu0 %v2759
    %3572 = vmatpush1.bf16.msra.mxu0 %v2758
    %3573 = vmatprep.subr.bf16.mxu0 %v2743
    %3574 = vmatpush1.bf16.msra.mxu0 %v2742
    %3575 = vmatprep.subr.bf16.mxu0 %v2727
    %3576 = vmatpush1.bf16.msra.mxu0 %v2726
    %3577 = vmatprep.subr.bf16.mxu0 %v2711
    %3578 = vmatpush1.bf16.msra.mxu0 %v2710
    %3579 = vmatprep.subr.bf16.mxu0 %v2695
    %3580 = vmatpush1.bf16.msra.mxu0 %v2694
    %3581 = vmatprep.subr.bf16.mxu0 %v2679
    %3582 = vmatpush1.bf16.msra.mxu0 %v2678
    %3583 = vmatprep.subr.bf16.mxu0 %v2919
    %3584 = vmatpush2.bf16.msra.mxu0 %v2918
    %3585 = vmatprep.subr.bf16.mxu0 %v2903
    %3586 = vmatpush2.bf16.msra.mxu0 %v2902
    %3587 = vmatprep.subr.bf16.mxu0 %v2887
    %3588 = vmatpush2.bf16.msra.mxu0 %v2886
    %3589 = vmatprep.subr.bf16.mxu0 %v2871
    %3590 = vmatpush2.bf16.msra.mxu0 %v2870
    %3591 = vmatprep.subr.bf16.mxu0 %v2855
    %3592 = vmatpush2.bf16.msra.mxu0 %v2854
    %3593 = vmatprep.subr.bf16.mxu0 %v2839
    %3594 = vmatpush2.bf16.msra.mxu0 %v2838
    %3595 = vmatprep.subr.bf16.mxu0 %v2823
    %3596 = vmatpush2.bf16.msra.mxu0 %v2822
    %3597 = vmatprep.subr.bf16.mxu0 %v2807
    %3598 = vmatpush2.bf16.msra.mxu0 %v2806
    %3599 = vmatprep.mubr.bf16.mxu0 %v287
    %3600 = vmatmul.mubr.bf16.gmra.mxu0 %v286
    %v3601 = vpop.f32.mrf.mxu0
    %v3602 = vadd.f32 %v3561, %v3601
    %v3603 = vpop.f32.mrf.mxu0
    %v3604 = vadd.f32 %v3563, %v3603
    %v3605 = vpop.f32.mrf.mxu0
    %v3606 = vpop.f32.mrf.mxu0
    %3607 = vdwg.mxu0
    %3608 = vmatprep.subr.bf16.mxu0 %v2537
    %3609 = vmatpush1.bf16.msra.mxu0 %v2536
    %3610 = vmatprep.subr.bf16.mxu0 %v2521
    %3611 = vmatpush1.bf16.msra.mxu0 %v2520
    %3612 = vmatprep.subr.bf16.mxu0 %v2505
    %3613 = vmatpush1.bf16.msra.mxu0 %v2504
    %3614 = vmatprep.subr.bf16.mxu0 %v2489
    %3615 = vmatpush1.bf16.msra.mxu0 %v2488
    %3616 = vmatprep.subr.bf16.mxu0 %v2473
    %3617 = vmatpush1.bf16.msra.mxu0 %v2472
    %3618 = vmatprep.subr.bf16.mxu0 %v2457
    %3619 = vmatpush1.bf16.msra.mxu0 %v2456
    %3620 = vmatprep.subr.bf16.mxu0 %v2441
    %3621 = vmatpush1.bf16.msra.mxu0 %v2440
    %3622 = vmatprep.subr.bf16.mxu0 %v2425
    %3623 = vmatpush1.bf16.msra.mxu0 %v2424
    %3624 = vmatprep.subr.bf16.mxu0 %v2665
    %3625 = vmatpush2.bf16.msra.mxu0 %v2664
    %3626 = vmatprep.subr.bf16.mxu0 %v2649
    %3627 = vmatpush2.bf16.msra.mxu0 %v2648
    %3628 = vmatprep.subr.bf16.mxu0 %v2633
    %3629 = vmatpush2.bf16.msra.mxu0 %v2632
    %3630 = vmatprep.subr.bf16.mxu0 %v2617
    %3631 = vmatpush2.bf16.msra.mxu0 %v2616
    %3632 = vmatprep.subr.bf16.mxu0 %v2601
    %3633 = vmatpush2.bf16.msra.mxu0 %v2600
    %3634 = vmatprep.subr.bf16.mxu0 %v2585
    %3635 = vmatpush2.bf16.msra.mxu0 %v2584
    %3636 = vmatprep.subr.bf16.mxu0 %v2569
    %3637 = vmatpush2.bf16.msra.mxu0 %v2568
    %3638 = vmatprep.subr.bf16.mxu0 %v2553
    %3639 = vmatpush2.bf16.msra.mxu0 %v2552
    %3640 = vmatprep.mubr.bf16.mxu0 %v285
    %3641 = vmatmul.mubr.bf16.gmra.mxu0 %v284
    %v3642 = vpop.f32.mrf.mxu0
    %v3643 = vadd.f32 %v823, %v3642
    %v3644 = vpop.f32.mrf.mxu0
    %v3645 = vadd.f32 %v827, %v3644
    %v3646 = vpop.f32.mrf.mxu0
    %v3647 = vpop.f32.mrf.mxu0
    %3648 = vdwg.mxu0
    %3649 = vmatprep.subr.bf16.mxu0 %v2793
    %3650 = vmatpush1.bf16.msra.mxu0 %v2792
    %3651 = vmatprep.subr.bf16.mxu0 %v2777
    %3652 = vmatpush1.bf16.msra.mxu0 %v2776
    %3653 = vmatprep.subr.bf16.mxu0 %v2761
    %3654 = vmatpush1.bf16.msra.mxu0 %v2760
    %3655 = vmatprep.subr.bf16.mxu0 %v2745
    %3656 = vmatpush1.bf16.msra.mxu0 %v2744
    %3657 = vmatprep.subr.bf16.mxu0 %v2729
    %3658 = vmatpush1.bf16.msra.mxu0 %v2728
    %3659 = vmatprep.subr.bf16.mxu0 %v2713
    %3660 = vmatpush1.bf16.msra.mxu0 %v2712
    %3661 = vmatprep.subr.bf16.mxu0 %v2697
    %3662 = vmatpush1.bf16.msra.mxu0 %v2696
    %3663 = vmatprep.subr.bf16.mxu0 %v2681
    %3664 = vmatpush1.bf16.msra.mxu0 %v2680
    %3665 = vmatprep.subr.bf16.mxu0 %v2921
    %3666 = vmatpush2.bf16.msra.mxu0 %v2920
    %3667 = vmatprep.subr.bf16.mxu0 %v2905
    %3668 = vmatpush2.bf16.msra.mxu0 %v2904
    %3669 = vmatprep.subr.bf16.mxu0 %v2889
    %3670 = vmatpush2.bf16.msra.mxu0 %v2888
    %3671 = vmatprep.subr.bf16.mxu0 %v2873
    %3672 = vmatpush2.bf16.msra.mxu0 %v2872
    %3673 = vmatprep.subr.bf16.mxu0 %v2857
    %3674 = vmatpush2.bf16.msra.mxu0 %v2856
    %3675 = vmatprep.subr.bf16.mxu0 %v2841
    %3676 = vmatpush2.bf16.msra.mxu0 %v2840
    %3677 = vmatprep.subr.bf16.mxu0 %v2825
    %3678 = vmatpush2.bf16.msra.mxu0 %v2824
    %3679 = vmatprep.subr.bf16.mxu0 %v2809
    %3680 = vmatpush2.bf16.msra.mxu0 %v2808
    %3681 = vmatprep.mubr.bf16.mxu0 %v287
    %3682 = vmatmul.mubr.bf16.gmra.mxu0 %v286
    %v3683 = vpop.f32.mrf.mxu0
    %v3684 = vadd.f32 %v3643, %v3683
    %v3685 = vpop.f32.mrf.mxu0
    %v3686 = vadd.f32 %v3645, %v3685
    %v3687 = vpop.f32.mrf.mxu0
    %v3688 = vpop.f32.mrf.mxu0
    %3689 = vdwg.mxu0
    %3690 = vmatprep.subr.bf16.mxu0 %v2539
    %3691 = vmatpush1.bf16.msra.mxu0 %v2538
    %3692 = vmatprep.subr.bf16.mxu0 %v2523
    %3693 = vmatpush1.bf16.msra.mxu0 %v2522
    %3694 = vmatprep.subr.bf16.mxu0 %v2507
    %3695 = vmatpush1.bf16.msra.mxu0 %v2506
    %3696 = vmatprep.subr.bf16.mxu0 %v2491
    %3697 = vmatpush1.bf16.msra.mxu0 %v2490
    %3698 = vmatprep.subr.bf16.mxu0 %v2475
    %3699 = vmatpush1.bf16.msra.mxu0 %v2474
    %3700 = vmatprep.subr.bf16.mxu0 %v2459
    %3701 = vmatpush1.bf16.msra.mxu0 %v2458
    %3702 = vmatprep.subr.bf16.mxu0 %v2443
    %3703 = vmatpush1.bf16.msra.mxu0 %v2442
    %3704 = vmatprep.subr.bf16.mxu0 %v2427
    %3705 = vmatpush1.bf16.msra.mxu0 %v2426
    %3706 = vmatprep.subr.bf16.mxu0 %v2667
    %3707 = vmatpush2.bf16.msra.mxu0 %v2666
    %3708 = vmatprep.subr.bf16.mxu0 %v2651
    %3709 = vmatpush2.bf16.msra.mxu0 %v2650
    %3710 = vmatprep.subr.bf16.mxu0 %v2635
    %3711 = vmatpush2.bf16.msra.mxu0 %v2634
    %3712 = vmatprep.subr.bf16.mxu0 %v2619
    %3713 = vmatpush2.bf16.msra.mxu0 %v2618
    %3714 = vmatprep.subr.bf16.mxu0 %v2603
    %3715 = vmatpush2.bf16.msra.mxu0 %v2602
    %3716 = vmatprep.subr.bf16.mxu0 %v2587
    %3717 = vmatpush2.bf16.msra.mxu0 %v2586
    %3718 = vmatprep.subr.bf16.mxu0 %v2571
    %3719 = vmatpush2.bf16.msra.mxu0 %v2570
    %3720 = vmatprep.subr.bf16.mxu0 %v2555
    %3721 = vmatpush2.bf16.msra.mxu0 %v2554
    %3722 = vmatprep.mubr.bf16.mxu0 %v285
    %3723 = vmatmul.mubr.bf16.gmra.mxu0 %v284
    %v3724 = vpop.f32.mrf.mxu0
    %v3725 = vadd.f32 %v831, %v3724
    %v3726 = vpop.f32.mrf.mxu0
    %v3727 = vadd.f32 %v835, %v3726
    %v3728 = vpop.f32.mrf.mxu0
    %v3729 = vpop.f32.mrf.mxu0
    %3730 = vdwg.mxu0
    %3731 = vmatprep.subr.bf16.mxu0 %v2795
    %3732 = vmatpush1.bf16.msra.mxu0 %v2794
    %3733 = vmatprep.subr.bf16.mxu0 %v2779
    %3734 = vmatpush1.bf16.msra.mxu0 %v2778
    %3735 = vmatprep.subr.bf16.mxu0 %v2763
    %3736 = vmatpush1.bf16.msra.mxu0 %v2762
    %3737 = vmatprep.subr.bf16.mxu0 %v2747
    %3738 = vmatpush1.bf16.msra.mxu0 %v2746
    %3739 = vmatprep.subr.bf16.mxu0 %v2731
    %3740 = vmatpush1.bf16.msra.mxu0 %v2730
    %3741 = vmatprep.subr.bf16.mxu0 %v2715
    %3742 = vmatpush1.bf16.msra.mxu0 %v2714
    %3743 = vmatprep.subr.bf16.mxu0 %v2699
    %3744 = vmatpush1.bf16.msra.mxu0 %v2698
    %3745 = vmatprep.subr.bf16.mxu0 %v2683
    %3746 = vmatpush1.bf16.msra.mxu0 %v2682
    %3747 = vmatprep.subr.bf16.mxu0 %v2923
    %3748 = vmatpush2.bf16.msra.mxu0 %v2922
    %3749 = vmatprep.subr.bf16.mxu0 %v2907
    %3750 = vmatpush2.bf16.msra.mxu0 %v2906
    %3751 = vmatprep.subr.bf16.mxu0 %v2891
    %3752 = vmatpush2.bf16.msra.mxu0 %v2890
    %3753 = vmatprep.subr.bf16.mxu0 %v2875
    %3754 = vmatpush2.bf16.msra.mxu0 %v2874
    %3755 = vmatprep.subr.bf16.mxu0 %v2859
    %3756 = vmatpush2.bf16.msra.mxu0 %v2858
    %3757 = vmatprep.subr.bf16.mxu0 %v2843
    %3758 = vmatpush2.bf16.msra.mxu0 %v2842
    %3759 = vmatprep.subr.bf16.mxu0 %v2827
    %3760 = vmatpush2.bf16.msra.mxu0 %v2826
    %3761 = vmatprep.subr.bf16.mxu0 %v2811
    %3762 = vmatpush2.bf16.msra.mxu0 %v2810
    %3763 = vmatprep.mubr.bf16.mxu0 %v287
    %3764 = vmatmul.mubr.bf16.gmra.mxu0 %v286
    %v3765 = vpop.f32.mrf.mxu0
    %v3766 = vadd.f32 %v3725, %v3765
    %v3767 = vpop.f32.mrf.mxu0
    %v3768 = vadd.f32 %v3727, %v3767
    %v3769 = vpop.f32.mrf.mxu0
    %v3770 = vpop.f32.mrf.mxu0
    %3771 = vdwg.mxu0
    %3772 = vmatprep.subr.bf16.mxu0 %v2541
    %3773 = vmatpush1.bf16.msra.mxu0 %v2540
    %3774 = vmatprep.subr.bf16.mxu0 %v2525
    %3775 = vmatpush1.bf16.msra.mxu0 %v2524
    %3776 = vmatprep.subr.bf16.mxu0 %v2509
    %3777 = vmatpush1.bf16.msra.mxu0 %v2508
    %3778 = vmatprep.subr.bf16.mxu0 %v2493
    %3779 = vmatpush1.bf16.msra.mxu0 %v2492
    %3780 = vmatprep.subr.bf16.mxu0 %v2477
    %3781 = vmatpush1.bf16.msra.mxu0 %v2476
    %3782 = vmatprep.subr.bf16.mxu0 %v2461
    %3783 = vmatpush1.bf16.msra.mxu0 %v2460
    %3784 = vmatprep.subr.bf16.mxu0 %v2445
    %3785 = vmatpush1.bf16.msra.mxu0 %v2444
    %3786 = vmatprep.subr.bf16.mxu0 %v2429
    %3787 = vmatpush1.bf16.msra.mxu0 %v2428
    %3788 = vmatprep.subr.bf16.mxu0 %v2669
    %3789 = vmatpush2.bf16.msra.mxu0 %v2668
    %3790 = vmatprep.subr.bf16.mxu0 %v2653
    %3791 = vmatpush2.bf16.msra.mxu0 %v2652
    %3792 = vmatprep.subr.bf16.mxu0 %v2637
    %3793 = vmatpush2.bf16.msra.mxu0 %v2636
    %3794 = vmatprep.subr.bf16.mxu0 %v2621
    %3795 = vmatpush2.bf16.msra.mxu0 %v2620
    %3796 = vmatprep.subr.bf16.mxu0 %v2605
    %3797 = vmatpush2.bf16.msra.mxu0 %v2604
    %3798 = vmatprep.subr.bf16.mxu0 %v2589
    %3799 = vmatpush2.bf16.msra.mxu0 %v2588
    %3800 = vmatprep.subr.bf16.mxu0 %v2573
    %3801 = vmatpush2.bf16.msra.mxu0 %v2572
    %3802 = vmatprep.subr.bf16.mxu0 %v2557
    %3803 = vmatpush2.bf16.msra.mxu0 %v2556
    %3804 = vmatprep.mubr.bf16.mxu0 %v285
    %3805 = vmatmul.mubr.bf16.gmra.mxu0 %v284
    %v3806 = vpop.f32.mrf.mxu0
    %v3807 = vadd.f32 %v839, %v3806
    %v3808 = vpop.f32.mrf.mxu0
    %v3809 = vadd.f32 %v843, %v3808
    %v3810 = vpop.f32.mrf.mxu0
    %v3811 = vpop.f32.mrf.mxu0
    %3812 = vdwg.mxu0
    %3813 = vmatprep.subr.bf16.mxu0 %v2797
    %3814 = vmatpush1.bf16.msra.mxu0 %v2796
    %3815 = vmatprep.subr.bf16.mxu0 %v2781
    %3816 = vmatpush1.bf16.msra.mxu0 %v2780
    %3817 = vmatprep.subr.bf16.mxu0 %v2765
    %3818 = vmatpush1.bf16.msra.mxu0 %v2764
    %3819 = vmatprep.subr.bf16.mxu0 %v2749
    %3820 = vmatpush1.bf16.msra.mxu0 %v2748
    %3821 = vmatprep.subr.bf16.mxu0 %v2733
    %3822 = vmatpush1.bf16.msra.mxu0 %v2732
    %3823 = vmatprep.subr.bf16.mxu0 %v2717
    %3824 = vmatpush1.bf16.msra.mxu0 %v2716
    %3825 = vmatprep.subr.bf16.mxu0 %v2701
    %3826 = vmatpush1.bf16.msra.mxu0 %v2700
    %3827 = vmatprep.subr.bf16.mxu0 %v2685
    %3828 = vmatpush1.bf16.msra.mxu0 %v2684
    %3829 = vmatprep.subr.bf16.mxu0 %v2925
    %3830 = vmatpush2.bf16.msra.mxu0 %v2924
    %3831 = vmatprep.subr.bf16.mxu0 %v2909
    %3832 = vmatpush2.bf16.msra.mxu0 %v2908
    %3833 = vmatprep.subr.bf16.mxu0 %v2893
    %3834 = vmatpush2.bf16.msra.mxu0 %v2892
    %3835 = vmatprep.subr.bf16.mxu0 %v2877
    %3836 = vmatpush2.bf16.msra.mxu0 %v2876
    %3837 = vmatprep.subr.bf16.mxu0 %v2861
    %3838 = vmatpush2.bf16.msra.mxu0 %v2860
    %3839 = vmatprep.subr.bf16.mxu0 %v2845
    %3840 = vmatpush2.bf16.msra.mxu0 %v2844
    %3841 = vmatprep.subr.bf16.mxu0 %v2829
    %3842 = vmatpush2.bf16.msra.mxu0 %v2828
    %3843 = vmatprep.subr.bf16.mxu0 %v2813
    %3844 = vmatpush2.bf16.msra.mxu0 %v2812
    %3845 = vmatprep.mubr.bf16.mxu0 %v287
    %3846 = vmatmul.mubr.bf16.gmra.mxu0 %v286
    %v3847 = vpop.f32.mrf.mxu0
    %v3848 = vadd.f32 %v3807, %v3847
    %v3849 = vpop.f32.mrf.mxu0
    %v3850 = vadd.f32 %v3809, %v3849
    %v3851 = vpop.f32.mrf.mxu0
    %v3852 = vpop.f32.mrf.mxu0
    %3853 = vdwg.mxu0
    %3854 = vmatprep.subr.bf16.mxu0 %v2543
    %3855 = vmatpush1.bf16.msra.mxu0 %v2542
    %3856 = vmatprep.subr.bf16.mxu0 %v2527
    %3857 = vmatpush1.bf16.msra.mxu0 %v2526
    %3858 = vmatprep.subr.bf16.mxu0 %v2511
    %3859 = vmatpush1.bf16.msra.mxu0 %v2510
    %3860 = vmatprep.subr.bf16.mxu0 %v2495
    %3861 = vmatpush1.bf16.msra.mxu0 %v2494
    %3862 = vmatprep.subr.bf16.mxu0 %v2479
    %3863 = vmatpush1.bf16.msra.mxu0 %v2478
    %3864 = vmatprep.subr.bf16.mxu0 %v2463
    %3865 = vmatpush1.bf16.msra.mxu0 %v2462
    %3866 = vmatprep.subr.bf16.mxu0 %v2447
    %3867 = vmatpush1.bf16.msra.mxu0 %v2446
    %3868 = vmatprep.subr.bf16.mxu0 %v2431
    %3869 = vmatpush1.bf16.msra.mxu0 %v2430
    %3870 = vmatprep.subr.bf16.mxu0 %v2671
    %3871 = vmatpush2.bf16.msra.mxu0 %v2670
    %3872 = vmatprep.subr.bf16.mxu0 %v2655
    %3873 = vmatpush2.bf16.msra.mxu0 %v2654
    %3874 = vmatprep.subr.bf16.mxu0 %v2639
    %3875 = vmatpush2.bf16.msra.mxu0 %v2638
    %3876 = vmatprep.subr.bf16.mxu0 %v2623
    %3877 = vmatpush2.bf16.msra.mxu0 %v2622
    %3878 = vmatprep.subr.bf16.mxu0 %v2607
    %3879 = vmatpush2.bf16.msra.mxu0 %v2606
    %3880 = vmatprep.subr.bf16.mxu0 %v2591
    %3881 = vmatpush2.bf16.msra.mxu0 %v2590
    %3882 = vmatprep.subr.bf16.mxu0 %v2575
    %3883 = vmatpush2.bf16.msra.mxu0 %v2574
    %3884 = vmatprep.subr.bf16.mxu0 %v2559
    %3885 = vmatpush2.bf16.msra.mxu0 %v2558
    %3886 = vmatprep.mubr.bf16.mxu0 %v285
    %3887 = vmatmul.mubr.bf16.gmra.mxu0 %v284
    %v3888 = vpop.f32.mrf.mxu0
    %v3889 = vadd.f32 %v847, %v3888
    %v3890 = vpop.f32.mrf.mxu0
    %v3891 = vadd.f32 %v851, %v3890
    %v3892 = vpop.f32.mrf.mxu0
    %v3893 = vpop.f32.mrf.mxu0
    %3894 = vdwg.mxu0
    %3895 = vmatprep.subr.bf16.mxu0 %v2799
    %3896 = vmatpush1.bf16.msra.mxu0 %v2798
    %3897 = vmatprep.subr.bf16.mxu0 %v2783
    %3898 = vmatpush1.bf16.msra.mxu0 %v2782
    %3899 = vmatprep.subr.bf16.mxu0 %v2767
    %3900 = vmatpush1.bf16.msra.mxu0 %v2766
    %3901 = vmatprep.subr.bf16.mxu0 %v2751
    %3902 = vmatpush1.bf16.msra.mxu0 %v2750
    %3903 = vmatprep.subr.bf16.mxu0 %v2735
    %3904 = vmatpush1.bf16.msra.mxu0 %v2734
    %3905 = vmatprep.subr.bf16.mxu0 %v2719
    %3906 = vmatpush1.bf16.msra.mxu0 %v2718
    %3907 = vmatprep.subr.bf16.mxu0 %v2703
    %3908 = vmatpush1.bf16.msra.mxu0 %v2702
    %3909 = vmatprep.subr.bf16.mxu0 %v2687
    %3910 = vmatpush1.bf16.msra.mxu0 %v2686
    %3911 = vmatprep.subr.bf16.mxu0 %v2927
    %3912 = vmatpush2.bf16.msra.mxu0 %v2926
    %3913 = vmatprep.subr.bf16.mxu0 %v2911
    %3914 = vmatpush2.bf16.msra.mxu0 %v2910
    %3915 = vmatprep.subr.bf16.mxu0 %v2895
    %3916 = vmatpush2.bf16.msra.mxu0 %v2894
    %3917 = vmatprep.subr.bf16.mxu0 %v2879
    %3918 = vmatpush2.bf16.msra.mxu0 %v2878
    %3919 = vmatprep.subr.bf16.mxu0 %v2863
    %3920 = vmatpush2.bf16.msra.mxu0 %v2862
    %3921 = vmatprep.subr.bf16.mxu0 %v2847
    %3922 = vmatpush2.bf16.msra.mxu0 %v2846
    %3923 = vmatprep.subr.bf16.mxu0 %v2831
    %3924 = vmatpush2.bf16.msra.mxu0 %v2830
    %3925 = vmatprep.subr.bf16.mxu0 %v2815
    %3926 = vmatpush2.bf16.msra.mxu0 %v2814
    %3927 = vmatprep.mubr.bf16.mxu0 %v287
    %3928 = vmatmul.mubr.bf16.gmra.mxu0 %v286
    %v3929 = vpop.f32.mrf.mxu0
    %v3930 = vadd.f32 %v3889, %v3929
    %v3931 = vpop.f32.mrf.mxu0
    %v3932 = vadd.f32 %v3891, %v3931
    %v3933 = vpop.f32.mrf.mxu0
    %v3934 = vpop.f32.mrf.mxu0
    %3935 = vdwg.mxu0
    %3936 = vmatprep.subr.bf16.mxu0 %v2545
    %3937 = vmatpush1.bf16.msra.mxu0 %v2544
    %3938 = vmatprep.subr.bf16.mxu0 %v2529
    %3939 = vmatpush1.bf16.msra.mxu0 %v2528
    %3940 = vmatprep.subr.bf16.mxu0 %v2513
    %3941 = vmatpush1.bf16.msra.mxu0 %v2512
    %3942 = vmatprep.subr.bf16.mxu0 %v2497
    %3943 = vmatpush1.bf16.msra.mxu0 %v2496
    %3944 = vmatprep.subr.bf16.mxu0 %v2481
    %3945 = vmatpush1.bf16.msra.mxu0 %v2480
    %3946 = vmatprep.subr.bf16.mxu0 %v2465
    %3947 = vmatpush1.bf16.msra.mxu0 %v2464
    %3948 = vmatprep.subr.bf16.mxu0 %v2449
    %3949 = vmatpush1.bf16.msra.mxu0 %v2448
    %3950 = vmatprep.subr.bf16.mxu0 %v2433
    %3951 = vmatpush1.bf16.msra.mxu0 %v2432
    %3952 = vmatprep.subr.bf16.mxu0 %v2673
    %3953 = vmatpush2.bf16.msra.mxu0 %v2672
    %3954 = vmatprep.subr.bf16.mxu0 %v2657
    %3955 = vmatpush2.bf16.msra.mxu0 %v2656
    %3956 = vmatprep.subr.bf16.mxu0 %v2641
    %3957 = vmatpush2.bf16.msra.mxu0 %v2640
    %3958 = vmatprep.subr.bf16.mxu0 %v2625
    %3959 = vmatpush2.bf16.msra.mxu0 %v2624
    %3960 = vmatprep.subr.bf16.mxu0 %v2609
    %3961 = vmatpush2.bf16.msra.mxu0 %v2608
    %3962 = vmatprep.subr.bf16.mxu0 %v2593
    %3963 = vmatpush2.bf16.msra.mxu0 %v2592
    %3964 = vmatprep.subr.bf16.mxu0 %v2577
    %3965 = vmatpush2.bf16.msra.mxu0 %v2576
    %3966 = vmatprep.subr.bf16.mxu0 %v2561
    %3967 = vmatpush2.bf16.msra.mxu0 %v2560
    %3968 = vmatprep.mubr.bf16.mxu0 %v285
    %3969 = vmatmul.mubr.bf16.gmra.mxu0 %v284
    %v3970 = vpop.f32.mrf.mxu0
    %v3971 = vadd.f32 %v855, %v3970
    %v3972 = vpop.f32.mrf.mxu0
    %v3973 = vadd.f32 %v859, %v3972
    %v3974 = vpop.f32.mrf.mxu0
    %v3975 = vpop.f32.mrf.mxu0
    %3976 = vdwg.mxu0
    %3977 = vmatprep.subr.bf16.mxu0 %v2801
    %3978 = vmatpush1.bf16.msra.mxu0 %v2800
    %3979 = vmatprep.subr.bf16.mxu0 %v2785
    %3980 = vmatpush1.bf16.msra.mxu0 %v2784
    %3981 = vmatprep.subr.bf16.mxu0 %v2769
    %3982 = vmatpush1.bf16.msra.mxu0 %v2768
    %3983 = vmatprep.subr.bf16.mxu0 %v2753
    %3984 = vmatpush1.bf16.msra.mxu0 %v2752
    %3985 = vmatprep.subr.bf16.mxu0 %v2737
    %3986 = vmatpush1.bf16.msra.mxu0 %v2736
    %3987 = vmatprep.subr.bf16.mxu0 %v2721
    %3988 = vmatpush1.bf16.msra.mxu0 %v2720
    %3989 = vmatprep.subr.bf16.mxu0 %v2705
    %3990 = vmatpush1.bf16.msra.mxu0 %v2704
    %3991 = vmatprep.subr.bf16.mxu0 %v2689
    %3992 = vmatpush1.bf16.msra.mxu0 %v2688
    %3993 = vmatprep.subr.bf16.mxu0 %v2929
    %3994 = vmatpush2.bf16.msra.mxu0 %v2928
    %3995 = vmatprep.subr.bf16.mxu0 %v2913
    %3996 = vmatpush2.bf16.msra.mxu0 %v2912
    %3997 = vmatprep.subr.bf16.mxu0 %v2897
    %3998 = vmatpush2.bf16.msra.mxu0 %v2896
    %3999 = vmatprep.subr.bf16.mxu0 %v2881
    %4000 = vmatpush2.bf16.msra.mxu0 %v2880
    %4001 = vmatprep.subr.bf16.mxu0 %v2865
    %4002 = vmatpush2.bf16.msra.mxu0 %v2864
    %4003 = vmatprep.subr.bf16.mxu0 %v2849
    %4004 = vmatpush2.bf16.msra.mxu0 %v2848
    %4005 = vmatprep.subr.bf16.mxu0 %v2833
    %4006 = vmatpush2.bf16.msra.mxu0 %v2832
    %4007 = vmatprep.subr.bf16.mxu0 %v2817
    %4008 = vmatpush2.bf16.msra.mxu0 %v2816
    %4009 = vmatprep.mubr.bf16.mxu0 %v287
    %4010 = vmatmul.mubr.bf16.gmra.mxu0 %v286
    %v4011 = vpop.f32.mrf.mxu0
    %v4012 = vadd.f32 %v3971, %v4011
    %v4013 = vpop.f32.mrf.mxu0
    %v4014 = vadd.f32 %v3973, %v4013
    %v4015 = vpop.f32.mrf.mxu0
    %v4016 = vpop.f32.mrf.mxu0
    %4017 = vdwg.mxu0
    %4018 = vmatprep.subr.bf16.mxu0 %v2547
    %4019 = vmatpush1.bf16.msra.mxu0 %v2546
    %4020 = vmatprep.subr.bf16.mxu0 %v2531
    %4021 = vmatpush1.bf16.msra.mxu0 %v2530
    %4022 = vmatprep.subr.bf16.mxu0 %v2515
    %4023 = vmatpush1.bf16.msra.mxu0 %v2514
    %4024 = vmatprep.subr.bf16.mxu0 %v2499
    %4025 = vmatpush1.bf16.msra.mxu0 %v2498
    %4026 = vmatprep.subr.bf16.mxu0 %v2483
    %4027 = vmatpush1.bf16.msra.mxu0 %v2482
    %4028 = vmatprep.subr.bf16.mxu0 %v2467
    %4029 = vmatpush1.bf16.msra.mxu0 %v2466
    %4030 = vmatprep.subr.bf16.mxu0 %v2451
    %4031 = vmatpush1.bf16.msra.mxu0 %v2450
    %4032 = vmatprep.subr.bf16.mxu0 %v2435
    %4033 = vmatpush1.bf16.msra.mxu0 %v2434
    %4034 = vmatprep.subr.bf16.mxu0 %v2675
    %4035 = vmatpush2.bf16.msra.mxu0 %v2674
    %4036 = vmatprep.subr.bf16.mxu0 %v2659
    %4037 = vmatpush2.bf16.msra.mxu0 %v2658
    %4038 = vmatprep.subr.bf16.mxu0 %v2643
    %4039 = vmatpush2.bf16.msra.mxu0 %v2642
    %4040 = vmatprep.subr.bf16.mxu0 %v2627
    %4041 = vmatpush2.bf16.msra.mxu0 %v2626
    %4042 = vmatprep.subr.bf16.mxu0 %v2611
    %4043 = vmatpush2.bf16.msra.mxu0 %v2610
    %4044 = vmatprep.subr.bf16.mxu0 %v2595
    %4045 = vmatpush2.bf16.msra.mxu0 %v2594
    %4046 = vmatprep.subr.bf16.mxu0 %v2579
    %4047 = vmatpush2.bf16.msra.mxu0 %v2578
    %4048 = vmatprep.subr.bf16.mxu0 %v2563
    %4049 = vmatpush2.bf16.msra.mxu0 %v2562
    %4050 = vmatprep.mubr.bf16.mxu0 %v285
    %4051 = vmatmul.mubr.bf16.gmra.mxu0 %v284
    %v4052 = vpop.f32.mrf.mxu0
    %v4053 = vadd.f32 %v863, %v4052
    %v4054 = vpop.f32.mrf.mxu0
    %v4055 = vadd.f32 %v867, %v4054
    %v4056 = vpop.f32.mrf.mxu0
    %v4057 = vpop.f32.mrf.mxu0
    %4058 = vdwg.mxu0
    %4059 = vmatprep.subr.bf16.mxu0 %v2803
    %4060 = vmatpush1.bf16.msra.mxu0 %v2802
    %4061 = vmatprep.subr.bf16.mxu0 %v2787
    %4062 = vmatpush1.bf16.msra.mxu0 %v2786
    %4063 = vmatprep.subr.bf16.mxu0 %v2771
    %4064 = vmatpush1.bf16.msra.mxu0 %v2770
    %4065 = vmatprep.subr.bf16.mxu0 %v2755
    %4066 = vmatpush1.bf16.msra.mxu0 %v2754
    %4067 = vmatprep.subr.bf16.mxu0 %v2739
    %4068 = vmatpush1.bf16.msra.mxu0 %v2738
    %4069 = vmatprep.subr.bf16.mxu0 %v2723
    %4070 = vmatpush1.bf16.msra.mxu0 %v2722
    %4071 = vmatprep.subr.bf16.mxu0 %v2707
    %4072 = vmatpush1.bf16.msra.mxu0 %v2706
    %4073 = vmatprep.subr.bf16.mxu0 %v2691
    %4074 = vmatpush1.bf16.msra.mxu0 %v2690
    %4075 = vmatprep.subr.bf16.mxu0 %v2931
    %4076 = vmatpush2.bf16.msra.mxu0 %v2930
    %4077 = vmatprep.subr.bf16.mxu0 %v2915
    %4078 = vmatpush2.bf16.msra.mxu0 %v2914
    %4079 = vmatprep.subr.bf16.mxu0 %v2899
    %4080 = vmatpush2.bf16.msra.mxu0 %v2898
    %4081 = vmatprep.subr.bf16.mxu0 %v2883
    %4082 = vmatpush2.bf16.msra.mxu0 %v2882
    %4083 = vmatprep.subr.bf16.mxu0 %v2867
    %4084 = vmatpush2.bf16.msra.mxu0 %v2866
    %4085 = vmatprep.subr.bf16.mxu0 %v2851
    %4086 = vmatpush2.bf16.msra.mxu0 %v2850
    %4087 = vmatprep.subr.bf16.mxu0 %v2835
    %4088 = vmatpush2.bf16.msra.mxu0 %v2834
    %4089 = vmatprep.subr.bf16.mxu0 %v2819
    %4090 = vmatpush2.bf16.msra.mxu0 %v2818
    %4091 = vmatprep.mubr.bf16.mxu0 %v287
    %4092 = vmatmul.mubr.bf16.gmra.mxu0 %v286
    %v4093 = vpop.f32.mrf.mxu0
    %v4094 = vadd.f32 %v4053, %v4093
    %v4095 = vpop.f32.mrf.mxu0
    %v4096 = vadd.f32 %v4055, %v4095
    %v4097 = vpop.f32.mrf.mxu0
    %v4098 = vpop.f32.mrf.mxu0
    %4099 = vdwg.mxu0
    %v4100 = vmax.f32 %v3520, 0.0
    %v4101 = vmax.f32 %v3522, 0.0
    %v4102 = vmax.f32 %v3602, 0.0
    %v4103 = vmax.f32 %v3604, 0.0
    %v4104 = vmax.f32 %v3684, 0.0
    %v4105 = vmax.f32 %v3686, 0.0
    %v4106 = vmax.f32 %v3766, 0.0
    %v4107 = vmax.f32 %v3768, 0.0
    %v4108 = vmax.f32 %v3848, 0.0
    %v4109 = vmax.f32 %v3850, 0.0
    %v4110 = vmax.f32 %v3930, 0.0
    %v4111 = vmax.f32 %v3932, 0.0
    %v4112 = vmax.f32 %v4012, 0.0
    %v4113 = vmax.f32 %v4014, 0.0
    %v4114 = vmax.f32 %v4094, 0.0
    %v4115 = vmax.f32 %v4096, 0.0
    %v4116 = vpack.c.bf16 %v4100, %v4100
    %v4117 = vpack.c.bf16 %v4101, %v4101
    %v4118 = vpack.c.bf16 %v4102, %v4102
    %v4119 = vpack.c.bf16 %v4103, %v4103
    %v4120 = vpack.c.bf16 %v4104, %v4104
    %v4121 = vpack.c.bf16 %v4105, %v4105
    %v4122 = vpack.c.bf16 %v4106, %v4106
    %v4123 = vpack.c.bf16 %v4107, %v4107
    %v4124 = vpack.c.bf16 %v4108, %v4108
    %v4125 = vpack.c.bf16 %v4109, %v4109
    %v4126 = vpack.c.bf16 %v4110, %v4110
    %v4127 = vpack.c.bf16 %v4111, %v4111
    %v4128 = vpack.c.bf16 %v4112, %v4112
    %v4129 = vpack.c.bf16 %v4113, %v4113
    %v4130 = vpack.c.bf16 %v4114, %v4114
    %v4131 = vpack.c.bf16 %v4115, %v4115
    %v4132 = vld [vmem:[#allocation11] sm:$0xff]
    %v4133 = vld [vmem:[#allocation11 + $0x8] sm:$0xff]
    %v4134 = vld [vmem:[#allocation11 + $0x10] sm:$0xff]
    %v4135 = vld [vmem:[#allocation11 + $0x18] sm:$0xff]
    %v4136 = vld [vmem:[#allocation11 + $0x20] sm:$0xff]
    %v4137 = vld [vmem:[#allocation11 + $0x28] sm:$0xff]
    %v4138 = vld [vmem:[#allocation11 + $0x30] sm:$0xff]
    %v4139 = vld [vmem:[#allocation11 + $0x38] sm:$0xff]
    %v4140 = vld [vmem:[#allocation11 + $0x40] sm:$0xff]
    %v4141 = vld [vmem:[#allocation11 + $0x48] sm:$0xff]
    %v4142 = vld [vmem:[#allocation11 + $0x50] sm:$0xff]
    %v4143 = vld [vmem:[#allocation11 + $0x58] sm:$0xff]
    %v4144 = vld [vmem:[#allocation11 + $0x60] sm:$0xff]
    %v4145 = vld [vmem:[#allocation11 + $0x68] sm:$0xff]
    %v4146 = vld [vmem:[#allocation11 + $0x70] sm:$0xff]
    %v4147 = vld [vmem:[#allocation11 + $0x78] sm:$0xff]
    %v4148 = vld [vmem:[#allocation11 + $0x80] sm:$0xff]
    %v4149 = vld [vmem:[#allocation11 + $0x88] sm:$0xff]
    %v4150 = vld [vmem:[#allocation11 + $0x90] sm:$0xff]
    %v4151 = vld [vmem:[#allocation11 + $0x98] sm:$0xff]
    %v4152 = vld [vmem:[#allocation11 + $0xa0] sm:$0xff]
    %v4153 = vld [vmem:[#allocation11 + $0xa8] sm:$0xff]
    %v4154 = vld [vmem:[#allocation11 + $0xb0] sm:$0xff]
    %v4155 = vld [vmem:[#allocation11 + $0xb8] sm:$0xff]
    %v4156 = vld [vmem:[#allocation11 + $0xc0] sm:$0xff]
    %v4157 = vld [vmem:[#allocation11 + $0xc8] sm:$0xff]
    %v4158 = vld [vmem:[#allocation11 + $0xd0] sm:$0xff]
    %v4159 = vld [vmem:[#allocation11 + $0xd8] sm:$0xff]
    %v4160 = vld [vmem:[#allocation11 + $0xe0] sm:$0xff]
    %v4161 = vld [vmem:[#allocation11 + $0xe8] sm:$0xff]
    %v4162 = vld [vmem:[#allocation11 + $0xf0] sm:$0xff]
    %v4163 = vld [vmem:[#allocation11 + $0xf8] sm:$0xff]
    %v4164 = vld [vmem:[#allocation11 + $0x100] sm:$0xff]
    %v4165 = vld [vmem:[#allocation11 + $0x108] sm:$0xff]
    %v4166 = vld [vmem:[#allocation11 + $0x110] sm:$0xff]
    %v4167 = vld [vmem:[#allocation11 + $0x118] sm:$0xff]
    %v4168 = vld [vmem:[#allocation11 + $0x120] sm:$0xff]
    %v4169 = vld [vmem:[#allocation11 + $0x128] sm:$0xff]
    %v4170 = vld [vmem:[#allocation11 + $0x130] sm:$0xff]
    %v4171 = vld [vmem:[#allocation11 + $0x138] sm:$0xff]
    %v4172 = vld [vmem:[#allocation11 + $0x140] sm:$0xff]
    %v4173 = vld [vmem:[#allocation11 + $0x148] sm:$0xff]
    %v4174 = vld [vmem:[#allocation11 + $0x150] sm:$0xff]
    %v4175 = vld [vmem:[#allocation11 + $0x158] sm:$0xff]
    %v4176 = vld [vmem:[#allocation11 + $0x160] sm:$0xff]
    %v4177 = vld [vmem:[#allocation11 + $0x168] sm:$0xff]
    %v4178 = vld [vmem:[#allocation11 + $0x170] sm:$0xff]
    %v4179 = vld [vmem:[#allocation11 + $0x178] sm:$0xff]
    %v4180 = vld [vmem:[#allocation11 + $0x180] sm:$0xff]
    %v4181 = vld [vmem:[#allocation11 + $0x188] sm:$0xff]
    %v4182 = vld [vmem:[#allocation11 + $0x190] sm:$0xff]
    %v4183 = vld [vmem:[#allocation11 + $0x198] sm:$0xff]
    %v4184 = vld [vmem:[#allocation11 + $0x1a0] sm:$0xff]
    %v4185 = vld [vmem:[#allocation11 + $0x1a8] sm:$0xff]
    %v4186 = vld [vmem:[#allocation11 + $0x1b0] sm:$0xff]
    %v4187 = vld [vmem:[#allocation11 + $0x1b8] sm:$0xff]
    %v4188 = vld [vmem:[#allocation11 + $0x1c0] sm:$0xff]
    %v4189 = vld [vmem:[#allocation11 + $0x1c8] sm:$0xff]
    %v4190 = vld [vmem:[#allocation11 + $0x1d0] sm:$0xff]
    %v4191 = vld [vmem:[#allocation11 + $0x1d8] sm:$0xff]
    %v4192 = vld [vmem:[#allocation11 + $0x1e0] sm:$0xff]
    %v4193 = vld [vmem:[#allocation11 + $0x1e8] sm:$0xff]
    %v4194 = vld [vmem:[#allocation11 + $0x1f0] sm:$0xff]
    %v4195 = vld [vmem:[#allocation11 + $0x1f8] sm:$0xff]
    %v4196 = vld [vmem:[#allocation11 + $0x200] sm:$0xff]
    %v4197 = vld [vmem:[#allocation11 + $0x208] sm:$0xff]
    %v4198 = vld [vmem:[#allocation11 + $0x210] sm:$0xff]
    %v4199 = vld [vmem:[#allocation11 + $0x218] sm:$0xff]
    %v4200 = vld [vmem:[#allocation11 + $0x220] sm:$0xff]
    %v4201 = vld [vmem:[#allocation11 + $0x228] sm:$0xff]
    %v4202 = vld [vmem:[#allocation11 + $0x230] sm:$0xff]
    %v4203 = vld [vmem:[#allocation11 + $0x238] sm:$0xff]
    %v4204 = vld [vmem:[#allocation11 + $0x240] sm:$0xff]
    %v4205 = vld [vmem:[#allocation11 + $0x248] sm:$0xff]
    %v4206 = vld [vmem:[#allocation11 + $0x250] sm:$0xff]
    %v4207 = vld [vmem:[#allocation11 + $0x258] sm:$0xff]
    %v4208 = vld [vmem:[#allocation11 + $0x260] sm:$0xff]
    %v4209 = vld [vmem:[#allocation11 + $0x268] sm:$0xff]
    %v4210 = vld [vmem:[#allocation11 + $0x270] sm:$0xff]
    %v4211 = vld [vmem:[#allocation11 + $0x278] sm:$0xff]
    %v4212 = vld [vmem:[#allocation11 + $0x280] sm:$0xff]
    %v4213 = vld [vmem:[#allocation11 + $0x288] sm:$0xff]
    %v4214 = vld [vmem:[#allocation11 + $0x290] sm:$0xff]
    %v4215 = vld [vmem:[#allocation11 + $0x298] sm:$0xff]
    %v4216 = vld [vmem:[#allocation11 + $0x2a0] sm:$0xff]
    %v4217 = vld [vmem:[#allocation11 + $0x2a8] sm:$0xff]
    %v4218 = vld [vmem:[#allocation11 + $0x2b0] sm:$0xff]
    %v4219 = vld [vmem:[#allocation11 + $0x2b8] sm:$0xff]
    %v4220 = vld [vmem:[#allocation11 + $0x2c0] sm:$0xff]
    %v4221 = vld [vmem:[#allocation11 + $0x2c8] sm:$0xff]
    %v4222 = vld [vmem:[#allocation11 + $0x2d0] sm:$0xff]
    %v4223 = vld [vmem:[#allocation11 + $0x2d8] sm:$0xff]
    %v4224 = vld [vmem:[#allocation11 + $0x2e0] sm:$0xff]
    %v4225 = vld [vmem:[#allocation11 + $0x2e8] sm:$0xff]
    %v4226 = vld [vmem:[#allocation11 + $0x2f0] sm:$0xff]
    %v4227 = vld [vmem:[#allocation11 + $0x2f8] sm:$0xff]
    %v4228 = vld [vmem:[#allocation11 + $0x300] sm:$0xff]
    %v4229 = vld [vmem:[#allocation11 + $0x308] sm:$0xff]
    %v4230 = vld [vmem:[#allocation11 + $0x310] sm:$0xff]
    %v4231 = vld [vmem:[#allocation11 + $0x318] sm:$0xff]
    %v4232 = vld [vmem:[#allocation11 + $0x320] sm:$0xff]
    %v4233 = vld [vmem:[#allocation11 + $0x328] sm:$0xff]
    %v4234 = vld [vmem:[#allocation11 + $0x330] sm:$0xff]
    %v4235 = vld [vmem:[#allocation11 + $0x338] sm:$0xff]
    %v4236 = vld [vmem:[#allocation11 + $0x340] sm:$0xff]
    %v4237 = vld [vmem:[#allocation11 + $0x348] sm:$0xff]
    %v4238 = vld [vmem:[#allocation11 + $0x350] sm:$0xff]
    %v4239 = vld [vmem:[#allocation11 + $0x358] sm:$0xff]
    %v4240 = vld [vmem:[#allocation11 + $0x360] sm:$0xff]
    %v4241 = vld [vmem:[#allocation11 + $0x368] sm:$0xff]
    %v4242 = vld [vmem:[#allocation11 + $0x370] sm:$0xff]
    %v4243 = vld [vmem:[#allocation11 + $0x378] sm:$0xff]
    %v4244 = vld [vmem:[#allocation11 + $0x380] sm:$0xff]
    %v4245 = vld [vmem:[#allocation11 + $0x388] sm:$0xff]
    %v4246 = vld [vmem:[#allocation11 + $0x390] sm:$0xff]
    %v4247 = vld [vmem:[#allocation11 + $0x398] sm:$0xff]
    %v4248 = vld [vmem:[#allocation11 + $0x3a0] sm:$0xff]
    %v4249 = vld [vmem:[#allocation11 + $0x3a8] sm:$0xff]
    %v4250 = vld [vmem:[#allocation11 + $0x3b0] sm:$0xff]
    %v4251 = vld [vmem:[#allocation11 + $0x3b8] sm:$0xff]
    %v4252 = vld [vmem:[#allocation11 + $0x3c0] sm:$0xff]
    %v4253 = vld [vmem:[#allocation11 + $0x3c8] sm:$0xff]
    %v4254 = vld [vmem:[#allocation11 + $0x3d0] sm:$0xff]
    %v4255 = vld [vmem:[#allocation11 + $0x3d8] sm:$0xff]
    %v4256 = vld [vmem:[#allocation11 + $0x3e0] sm:$0xff]
    %v4257 = vld [vmem:[#allocation11 + $0x3e8] sm:$0xff]
    %v4258 = vld [vmem:[#allocation11 + $0x3f0] sm:$0xff]
    %v4259 = vld [vmem:[#allocation11 + $0x3f8] sm:$0xff]
    %v4260 = vld [vmem:[#allocation11 + $0x400] sm:$0xff]
    %v4261 = vld [vmem:[#allocation11 + $0x408] sm:$0xff]
    %v4262 = vld [vmem:[#allocation11 + $0x410] sm:$0xff]
    %v4263 = vld [vmem:[#allocation11 + $0x418] sm:$0xff]
    %v4264 = vld [vmem:[#allocation11 + $0x420] sm:$0xff]
    %v4265 = vld [vmem:[#allocation11 + $0x428] sm:$0xff]
    %v4266 = vld [vmem:[#allocation11 + $0x430] sm:$0xff]
    %v4267 = vld [vmem:[#allocation11 + $0x438] sm:$0xff]
    %v4268 = vld [vmem:[#allocation11 + $0x440] sm:$0xff]
    %v4269 = vld [vmem:[#allocation11 + $0x448] sm:$0xff]
    %v4270 = vld [vmem:[#allocation11 + $0x450] sm:$0xff]
    %v4271 = vld [vmem:[#allocation11 + $0x458] sm:$0xff]
    %v4272 = vld [vmem:[#allocation11 + $0x460] sm:$0xff]
    %v4273 = vld [vmem:[#allocation11 + $0x468] sm:$0xff]
    %v4274 = vld [vmem:[#allocation11 + $0x470] sm:$0xff]
    %v4275 = vld [vmem:[#allocation11 + $0x478] sm:$0xff]
    %v4276 = vld [vmem:[#allocation11 + $0x480] sm:$0xff]
    %v4277 = vld [vmem:[#allocation11 + $0x488] sm:$0xff]
    %v4278 = vld [vmem:[#allocation11 + $0x490] sm:$0xff]
    %v4279 = vld [vmem:[#allocation11 + $0x498] sm:$0xff]
    %v4280 = vld [vmem:[#allocation11 + $0x4a0] sm:$0xff]
    %v4281 = vld [vmem:[#allocation11 + $0x4a8] sm:$0xff]
    %v4282 = vld [vmem:[#allocation11 + $0x4b0] sm:$0xff]
    %v4283 = vld [vmem:[#allocation11 + $0x4b8] sm:$0xff]
    %v4284 = vld [vmem:[#allocation11 + $0x4c0] sm:$0xff]
    %v4285 = vld [vmem:[#allocation11 + $0x4c8] sm:$0xff]
    %v4286 = vld [vmem:[#allocation11 + $0x4d0] sm:$0xff]
    %v4287 = vld [vmem:[#allocation11 + $0x4d8] sm:$0xff]
    %v4288 = vld [vmem:[#allocation11 + $0x4e0] sm:$0xff]
    %v4289 = vld [vmem:[#allocation11 + $0x4e8] sm:$0xff]
    %v4290 = vld [vmem:[#allocation11 + $0x4f0] sm:$0xff]
    %v4291 = vld [vmem:[#allocation11 + $0x4f8] sm:$0xff]
    %v4292 = vld [vmem:[#allocation11 + $0x500] sm:$0xff]
    %v4293 = vld [vmem:[#allocation11 + $0x508] sm:$0xff]
    %v4294 = vld [vmem:[#allocation11 + $0x510] sm:$0xff]
    %v4295 = vld [vmem:[#allocation11 + $0x518] sm:$0xff]
    %v4296 = vld [vmem:[#allocation11 + $0x520] sm:$0xff]
    %v4297 = vld [vmem:[#allocation11 + $0x528] sm:$0xff]
    %v4298 = vld [vmem:[#allocation11 + $0x530] sm:$0xff]
    %v4299 = vld [vmem:[#allocation11 + $0x538] sm:$0xff]
    %v4300 = vld [vmem:[#allocation11 + $0x540] sm:$0xff]
    %v4301 = vld [vmem:[#allocation11 + $0x548] sm:$0xff]
    %v4302 = vld [vmem:[#allocation11 + $0x550] sm:$0xff]
    %v4303 = vld [vmem:[#allocation11 + $0x558] sm:$0xff]
    %v4304 = vld [vmem:[#allocation11 + $0x560] sm:$0xff]
    %v4305 = vld [vmem:[#allocation11 + $0x568] sm:$0xff]
    %v4306 = vld [vmem:[#allocation11 + $0x570] sm:$0xff]
    %v4307 = vld [vmem:[#allocation11 + $0x578] sm:$0xff]
    %v4308 = vld [vmem:[#allocation11 + $0x580] sm:$0xff]
    %v4309 = vld [vmem:[#allocation11 + $0x588] sm:$0xff]
    %v4310 = vld [vmem:[#allocation11 + $0x590] sm:$0xff]
    %v4311 = vld [vmem:[#allocation11 + $0x598] sm:$0xff]
    %v4312 = vld [vmem:[#allocation11 + $0x5a0] sm:$0xff]
    %v4313 = vld [vmem:[#allocation11 + $0x5a8] sm:$0xff]
    %v4314 = vld [vmem:[#allocation11 + $0x5b0] sm:$0xff]
    %v4315 = vld [vmem:[#allocation11 + $0x5b8] sm:$0xff]
    %v4316 = vld [vmem:[#allocation11 + $0x5c0] sm:$0xff]
    %v4317 = vld [vmem:[#allocation11 + $0x5c8] sm:$0xff]
    %v4318 = vld [vmem:[#allocation11 + $0x5d0] sm:$0xff]
    %v4319 = vld [vmem:[#allocation11 + $0x5d8] sm:$0xff]
    %v4320 = vld [vmem:[#allocation11 + $0x5e0] sm:$0xff]
    %v4321 = vld [vmem:[#allocation11 + $0x5e8] sm:$0xff]
    %v4322 = vld [vmem:[#allocation11 + $0x5f0] sm:$0xff]
    %v4323 = vld [vmem:[#allocation11 + $0x5f8] sm:$0xff]
    %v4324 = vld [vmem:[#allocation11 + $0x600] sm:$0xff]
    %v4325 = vld [vmem:[#allocation11 + $0x608] sm:$0xff]
    %v4326 = vld [vmem:[#allocation11 + $0x610] sm:$0xff]
    %v4327 = vld [vmem:[#allocation11 + $0x618] sm:$0xff]
    %v4328 = vld [vmem:[#allocation11 + $0x620] sm:$0xff]
    %v4329 = vld [vmem:[#allocation11 + $0x628] sm:$0xff]
    %v4330 = vld [vmem:[#allocation11 + $0x630] sm:$0xff]
    %v4331 = vld [vmem:[#allocation11 + $0x638] sm:$0xff]
    %v4332 = vld [vmem:[#allocation11 + $0x640] sm:$0xff]
    %v4333 = vld [vmem:[#allocation11 + $0x648] sm:$0xff]
    %v4334 = vld [vmem:[#allocation11 + $0x650] sm:$0xff]
    %v4335 = vld [vmem:[#allocation11 + $0x658] sm:$0xff]
    %v4336 = vld [vmem:[#allocation11 + $0x660] sm:$0xff]
    %v4337 = vld [vmem:[#allocation11 + $0x668] sm:$0xff]
    %v4338 = vld [vmem:[#allocation11 + $0x670] sm:$0xff]
    %v4339 = vld [vmem:[#allocation11 + $0x678] sm:$0xff]
    %v4340 = vld [vmem:[#allocation11 + $0x680] sm:$0xff]
    %v4341 = vld [vmem:[#allocation11 + $0x688] sm:$0xff]
    %v4342 = vld [vmem:[#allocation11 + $0x690] sm:$0xff]
    %v4343 = vld [vmem:[#allocation11 + $0x698] sm:$0xff]
    %v4344 = vld [vmem:[#allocation11 + $0x6a0] sm:$0xff]
    %v4345 = vld [vmem:[#allocation11 + $0x6a8] sm:$0xff]
    %v4346 = vld [vmem:[#allocation11 + $0x6b0] sm:$0xff]
    %v4347 = vld [vmem:[#allocation11 + $0x6b8] sm:$0xff]
    %v4348 = vld [vmem:[#allocation11 + $0x6c0] sm:$0xff]
    %v4349 = vld [vmem:[#allocation11 + $0x6c8] sm:$0xff]
    %v4350 = vld [vmem:[#allocation11 + $0x6d0] sm:$0xff]
    %v4351 = vld [vmem:[#allocation11 + $0x6d8] sm:$0xff]
    %v4352 = vld [vmem:[#allocation11 + $0x6e0] sm:$0xff]
    %v4353 = vld [vmem:[#allocation11 + $0x6e8] sm:$0xff]
    %v4354 = vld [vmem:[#allocation11 + $0x6f0] sm:$0xff]
    %v4355 = vld [vmem:[#allocation11 + $0x6f8] sm:$0xff]
    %v4356 = vld [vmem:[#allocation11 + $0x700] sm:$0xff]
    %v4357 = vld [vmem:[#allocation11 + $0x708] sm:$0xff]
    %v4358 = vld [vmem:[#allocation11 + $0x710] sm:$0xff]
    %v4359 = vld [vmem:[#allocation11 + $0x718] sm:$0xff]
    %v4360 = vld [vmem:[#allocation11 + $0x720] sm:$0xff]
    %v4361 = vld [vmem:[#allocation11 + $0x728] sm:$0xff]
    %v4362 = vld [vmem:[#allocation11 + $0x730] sm:$0xff]
    %v4363 = vld [vmem:[#allocation11 + $0x738] sm:$0xff]
    %v4364 = vld [vmem:[#allocation11 + $0x740] sm:$0xff]
    %v4365 = vld [vmem:[#allocation11 + $0x748] sm:$0xff]
    %v4366 = vld [vmem:[#allocation11 + $0x750] sm:$0xff]
    %v4367 = vld [vmem:[#allocation11 + $0x758] sm:$0xff]
    %v4368 = vld [vmem:[#allocation11 + $0x760] sm:$0xff]
    %v4369 = vld [vmem:[#allocation11 + $0x768] sm:$0xff]
    %v4370 = vld [vmem:[#allocation11 + $0x770] sm:$0xff]
    %v4371 = vld [vmem:[#allocation11 + $0x778] sm:$0xff]
    %v4372 = vld [vmem:[#allocation11 + $0x780] sm:$0xff]
    %v4373 = vld [vmem:[#allocation11 + $0x788] sm:$0xff]
    %v4374 = vld [vmem:[#allocation11 + $0x790] sm:$0xff]
    %v4375 = vld [vmem:[#allocation11 + $0x798] sm:$0xff]
    %v4376 = vld [vmem:[#allocation11 + $0x7a0] sm:$0xff]
    %v4377 = vld [vmem:[#allocation11 + $0x7a8] sm:$0xff]
    %v4378 = vld [vmem:[#allocation11 + $0x7b0] sm:$0xff]
    %v4379 = vld [vmem:[#allocation11 + $0x7b8] sm:$0xff]
    %v4380 = vld [vmem:[#allocation11 + $0x7c0] sm:$0xff]
    %v4381 = vld [vmem:[#allocation11 + $0x7c8] sm:$0xff]
    %v4382 = vld [vmem:[#allocation11 + $0x7d0] sm:$0xff]
    %v4383 = vld [vmem:[#allocation11 + $0x7d8] sm:$0xff]
    %v4384 = vld [vmem:[#allocation11 + $0x7e0] sm:$0xff]
    %v4385 = vld [vmem:[#allocation11 + $0x7e8] sm:$0xff]
    %v4386 = vld [vmem:[#allocation11 + $0x7f0] sm:$0xff]
    %v4387 = vld [vmem:[#allocation11 + $0x7f8] sm:$0xff]
    %v4388 = vld [vmem:[#allocation11 + $0x800] sm:$0xff]
    %v4389 = vld [vmem:[#allocation11 + $0x808] sm:$0xff]
    %v4390 = vld [vmem:[#allocation11 + $0x810] sm:$0xff]
    %v4391 = vld [vmem:[#allocation11 + $0x818] sm:$0xff]
    %v4392 = vld [vmem:[#allocation11 + $0x820] sm:$0xff]
    %v4393 = vld [vmem:[#allocation11 + $0x828] sm:$0xff]
    %v4394 = vld [vmem:[#allocation11 + $0x830] sm:$0xff]
    %v4395 = vld [vmem:[#allocation11 + $0x838] sm:$0xff]
    %v4396 = vld [vmem:[#allocation11 + $0x840] sm:$0xff]
    %v4397 = vld [vmem:[#allocation11 + $0x848] sm:$0xff]
    %v4398 = vld [vmem:[#allocation11 + $0x850] sm:$0xff]
    %v4399 = vld [vmem:[#allocation11 + $0x858] sm:$0xff]
    %v4400 = vld [vmem:[#allocation11 + $0x860] sm:$0xff]
    %v4401 = vld [vmem:[#allocation11 + $0x868] sm:$0xff]
    %v4402 = vld [vmem:[#allocation11 + $0x870] sm:$0xff]
    %v4403 = vld [vmem:[#allocation11 + $0x878] sm:$0xff]
    %v4404 = vld [vmem:[#allocation11 + $0x880] sm:$0xff]
    %v4405 = vld [vmem:[#allocation11 + $0x888] sm:$0xff]
    %v4406 = vld [vmem:[#allocation11 + $0x890] sm:$0xff]
    %v4407 = vld [vmem:[#allocation11 + $0x898] sm:$0xff]
    %v4408 = vld [vmem:[#allocation11 + $0x8a0] sm:$0xff]
    %v4409 = vld [vmem:[#allocation11 + $0x8a8] sm:$0xff]
    %v4410 = vld [vmem:[#allocation11 + $0x8b0] sm:$0xff]
    %v4411 = vld [vmem:[#allocation11 + $0x8b8] sm:$0xff]
    %v4412 = vld [vmem:[#allocation11 + $0x8c0] sm:$0xff]
    %v4413 = vld [vmem:[#allocation11 + $0x8c8] sm:$0xff]
    %v4414 = vld [vmem:[#allocation11 + $0x8d0] sm:$0xff]
    %v4415 = vld [vmem:[#allocation11 + $0x8d8] sm:$0xff]
    %v4416 = vld [vmem:[#allocation11 + $0x8e0] sm:$0xff]
    %v4417 = vld [vmem:[#allocation11 + $0x8e8] sm:$0xff]
    %v4418 = vld [vmem:[#allocation11 + $0x8f0] sm:$0xff]
    %v4419 = vld [vmem:[#allocation11 + $0x8f8] sm:$0xff]
    %v4420 = vld [vmem:[#allocation11 + $0x900] sm:$0xff]
    %v4421 = vld [vmem:[#allocation11 + $0x908] sm:$0xff]
    %v4422 = vld [vmem:[#allocation11 + $0x910] sm:$0xff]
    %v4423 = vld [vmem:[#allocation11 + $0x918] sm:$0xff]
    %v4424 = vld [vmem:[#allocation11 + $0x920] sm:$0xff]
    %v4425 = vld [vmem:[#allocation11 + $0x928] sm:$0xff]
    %v4426 = vld [vmem:[#allocation11 + $0x930] sm:$0xff]
    %v4427 = vld [vmem:[#allocation11 + $0x938] sm:$0xff]
    %v4428 = vld [vmem:[#allocation11 + $0x940] sm:$0xff]
    %v4429 = vld [vmem:[#allocation11 + $0x948] sm:$0xff]
    %v4430 = vld [vmem:[#allocation11 + $0x950] sm:$0xff]
    %v4431 = vld [vmem:[#allocation11 + $0x958] sm:$0xff]
    %v4432 = vld [vmem:[#allocation11 + $0x960] sm:$0xff]
    %v4433 = vld [vmem:[#allocation11 + $0x968] sm:$0xff]
    %v4434 = vld [vmem:[#allocation11 + $0x970] sm:$0xff]
    %v4435 = vld [vmem:[#allocation11 + $0x978] sm:$0xff]
    %v4436 = vld [vmem:[#allocation11 + $0x980] sm:$0xff]
    %v4437 = vld [vmem:[#allocation11 + $0x988] sm:$0xff]
    %v4438 = vld [vmem:[#allocation11 + $0x990] sm:$0xff]
    %v4439 = vld [vmem:[#allocation11 + $0x998] sm:$0xff]
    %v4440 = vld [vmem:[#allocation11 + $0x9a0] sm:$0xff]
    %v4441 = vld [vmem:[#allocation11 + $0x9a8] sm:$0xff]
    %v4442 = vld [vmem:[#allocation11 + $0x9b0] sm:$0xff]
    %v4443 = vld [vmem:[#allocation11 + $0x9b8] sm:$0xff]
    %v4444 = vld [vmem:[#allocation11 + $0x9c0] sm:$0xff]
    %v4445 = vld [vmem:[#allocation11 + $0x9c8] sm:$0xff]
    %v4446 = vld [vmem:[#allocation11 + $0x9d0] sm:$0xff]
    %v4447 = vld [vmem:[#allocation11 + $0x9d8] sm:$0xff]
    %v4448 = vld [vmem:[#allocation11 + $0x9e0] sm:$0xff]
    %v4449 = vld [vmem:[#allocation11 + $0x9e8] sm:$0xff]
    %v4450 = vld [vmem:[#allocation11 + $0x9f0] sm:$0xff]
    %v4451 = vld [vmem:[#allocation11 + $0x9f8] sm:$0xff]
    %v4452 = vld [vmem:[#allocation11 + $0xa00] sm:$0xff]
    %v4453 = vld [vmem:[#allocation11 + $0xa08] sm:$0xff]
    %v4454 = vld [vmem:[#allocation11 + $0xa10] sm:$0xff]
    %v4455 = vld [vmem:[#allocation11 + $0xa18] sm:$0xff]
    %v4456 = vld [vmem:[#allocation11 + $0xa20] sm:$0xff]
    %v4457 = vld [vmem:[#allocation11 + $0xa28] sm:$0xff]
    %v4458 = vld [vmem:[#allocation11 + $0xa30] sm:$0xff]
    %v4459 = vld [vmem:[#allocation11 + $0xa38] sm:$0xff]
    %v4460 = vld [vmem:[#allocation11 + $0xa40] sm:$0xff]
    %v4461 = vld [vmem:[#allocation11 + $0xa48] sm:$0xff]
    %v4462 = vld [vmem:[#allocation11 + $0xa50] sm:$0xff]
    %v4463 = vld [vmem:[#allocation11 + $0xa58] sm:$0xff]
    %v4464 = vld [vmem:[#allocation11 + $0xa60] sm:$0xff]
    %v4465 = vld [vmem:[#allocation11 + $0xa68] sm:$0xff]
    %v4466 = vld [vmem:[#allocation11 + $0xa70] sm:$0xff]
    %v4467 = vld [vmem:[#allocation11 + $0xa78] sm:$0xff]
    %v4468 = vld [vmem:[#allocation11 + $0xa80] sm:$0xff]
    %v4469 = vld [vmem:[#allocation11 + $0xa88] sm:$0xff]
    %v4470 = vld [vmem:[#allocation11 + $0xa90] sm:$0xff]
    %v4471 = vld [vmem:[#allocation11 + $0xa98] sm:$0xff]
    %v4472 = vld [vmem:[#allocation11 + $0xaa0] sm:$0xff]
    %v4473 = vld [vmem:[#allocation11 + $0xaa8] sm:$0xff]
    %v4474 = vld [vmem:[#allocation11 + $0xab0] sm:$0xff]
    %v4475 = vld [vmem:[#allocation11 + $0xab8] sm:$0xff]
    %v4476 = vld [vmem:[#allocation11 + $0xac0] sm:$0xff]
    %v4477 = vld [vmem:[#allocation11 + $0xac8] sm:$0xff]
    %v4478 = vld [vmem:[#allocation11 + $0xad0] sm:$0xff]
    %v4479 = vld [vmem:[#allocation11 + $0xad8] sm:$0xff]
    %v4480 = vld [vmem:[#allocation11 + $0xae0] sm:$0xff]
    %v4481 = vld [vmem:[#allocation11 + $0xae8] sm:$0xff]
    %v4482 = vld [vmem:[#allocation11 + $0xaf0] sm:$0xff]
    %v4483 = vld [vmem:[#allocation11 + $0xaf8] sm:$0xff]
    %v4484 = vld [vmem:[#allocation11 + $0xb00] sm:$0xff]
    %v4485 = vld [vmem:[#allocation11 + $0xb08] sm:$0xff]
    %v4486 = vld [vmem:[#allocation11 + $0xb10] sm:$0xff]
    %v4487 = vld [vmem:[#allocation11 + $0xb18] sm:$0xff]
    %v4488 = vld [vmem:[#allocation11 + $0xb20] sm:$0xff]
    %v4489 = vld [vmem:[#allocation11 + $0xb28] sm:$0xff]
    %v4490 = vld [vmem:[#allocation11 + $0xb30] sm:$0xff]
    %v4491 = vld [vmem:[#allocation11 + $0xb38] sm:$0xff]
    %v4492 = vld [vmem:[#allocation11 + $0xb40] sm:$0xff]
    %v4493 = vld [vmem:[#allocation11 + $0xb48] sm:$0xff]
    %v4494 = vld [vmem:[#allocation11 + $0xb50] sm:$0xff]
    %v4495 = vld [vmem:[#allocation11 + $0xb58] sm:$0xff]
    %v4496 = vld [vmem:[#allocation11 + $0xb60] sm:$0xff]
    %v4497 = vld [vmem:[#allocation11 + $0xb68] sm:$0xff]
    %v4498 = vld [vmem:[#allocation11 + $0xb70] sm:$0xff]
    %v4499 = vld [vmem:[#allocation11 + $0xb78] sm:$0xff]
    %v4500 = vld [vmem:[#allocation11 + $0xb80] sm:$0xff]
    %v4501 = vld [vmem:[#allocation11 + $0xb88] sm:$0xff]
    %v4502 = vld [vmem:[#allocation11 + $0xb90] sm:$0xff]
    %v4503 = vld [vmem:[#allocation11 + $0xb98] sm:$0xff]
    %v4504 = vld [vmem:[#allocation11 + $0xba0] sm:$0xff]
    %v4505 = vld [vmem:[#allocation11 + $0xba8] sm:$0xff]
    %v4506 = vld [vmem:[#allocation11 + $0xbb0] sm:$0xff]
    %v4507 = vld [vmem:[#allocation11 + $0xbb8] sm:$0xff]
    %v4508 = vld [vmem:[#allocation11 + $0xbc0] sm:$0xff]
    %v4509 = vld [vmem:[#allocation11 + $0xbc8] sm:$0xff]
    %v4510 = vld [vmem:[#allocation11 + $0xbd0] sm:$0xff]
    %v4511 = vld [vmem:[#allocation11 + $0xbd8] sm:$0xff]
    %v4512 = vld [vmem:[#allocation11 + $0xbe0] sm:$0xff]
    %v4513 = vld [vmem:[#allocation11 + $0xbe8] sm:$0xff]
    %v4514 = vld [vmem:[#allocation11 + $0xbf0] sm:$0xff]
    %v4515 = vld [vmem:[#allocation11 + $0xbf8] sm:$0xff]
    %v4516 = vld [vmem:[#allocation11 + $0xc00] sm:$0xff]
    %v4517 = vld [vmem:[#allocation11 + $0xc08] sm:$0xff]
    %v4518 = vld [vmem:[#allocation11 + $0xc10] sm:$0xff]
    %v4519 = vld [vmem:[#allocation11 + $0xc18] sm:$0xff]
    %v4520 = vld [vmem:[#allocation11 + $0xc20] sm:$0xff]
    %v4521 = vld [vmem:[#allocation11 + $0xc28] sm:$0xff]
    %v4522 = vld [vmem:[#allocation11 + $0xc30] sm:$0xff]
    %v4523 = vld [vmem:[#allocation11 + $0xc38] sm:$0xff]
    %v4524 = vld [vmem:[#allocation11 + $0xc40] sm:$0xff]
    %v4525 = vld [vmem:[#allocation11 + $0xc48] sm:$0xff]
    %v4526 = vld [vmem:[#allocation11 + $0xc50] sm:$0xff]
    %v4527 = vld [vmem:[#allocation11 + $0xc58] sm:$0xff]
    %v4528 = vld [vmem:[#allocation11 + $0xc60] sm:$0xff]
    %v4529 = vld [vmem:[#allocation11 + $0xc68] sm:$0xff]
    %v4530 = vld [vmem:[#allocation11 + $0xc70] sm:$0xff]
    %v4531 = vld [vmem:[#allocation11 + $0xc78] sm:$0xff]
    %v4532 = vld [vmem:[#allocation11 + $0xc80] sm:$0xff]
    %v4533 = vld [vmem:[#allocation11 + $0xc88] sm:$0xff]
    %v4534 = vld [vmem:[#allocation11 + $0xc90] sm:$0xff]
    %v4535 = vld [vmem:[#allocation11 + $0xc98] sm:$0xff]
    %v4536 = vld [vmem:[#allocation11 + $0xca0] sm:$0xff]
    %v4537 = vld [vmem:[#allocation11 + $0xca8] sm:$0xff]
    %v4538 = vld [vmem:[#allocation11 + $0xcb0] sm:$0xff]
    %v4539 = vld [vmem:[#allocation11 + $0xcb8] sm:$0xff]
    %v4540 = vld [vmem:[#allocation11 + $0xcc0] sm:$0xff]
    %v4541 = vld [vmem:[#allocation11 + $0xcc8] sm:$0xff]
    %v4542 = vld [vmem:[#allocation11 + $0xcd0] sm:$0xff]
    %v4543 = vld [vmem:[#allocation11 + $0xcd8] sm:$0xff]
    %v4544 = vld [vmem:[#allocation11 + $0xce0] sm:$0xff]
    %v4545 = vld [vmem:[#allocation11 + $0xce8] sm:$0xff]
    %v4546 = vld [vmem:[#allocation11 + $0xcf0] sm:$0xff]
    %v4547 = vld [vmem:[#allocation11 + $0xcf8] sm:$0xff]
    %v4548 = vld [vmem:[#allocation11 + $0xd00] sm:$0xff]
    %v4549 = vld [vmem:[#allocation11 + $0xd08] sm:$0xff]
    %v4550 = vld [vmem:[#allocation11 + $0xd10] sm:$0xff]
    %v4551 = vld [vmem:[#allocation11 + $0xd18] sm:$0xff]
    %v4552 = vld [vmem:[#allocation11 + $0xd20] sm:$0xff]
    %v4553 = vld [vmem:[#allocation11 + $0xd28] sm:$0xff]
    %v4554 = vld [vmem:[#allocation11 + $0xd30] sm:$0xff]
    %v4555 = vld [vmem:[#allocation11 + $0xd38] sm:$0xff]
    %v4556 = vld [vmem:[#allocation11 + $0xd40] sm:$0xff]
    %v4557 = vld [vmem:[#allocation11 + $0xd48] sm:$0xff]
    %v4558 = vld [vmem:[#allocation11 + $0xd50] sm:$0xff]
    %v4559 = vld [vmem:[#allocation11 + $0xd58] sm:$0xff]
    %v4560 = vld [vmem:[#allocation11 + $0xd60] sm:$0xff]
    %v4561 = vld [vmem:[#allocation11 + $0xd68] sm:$0xff]
    %v4562 = vld [vmem:[#allocation11 + $0xd70] sm:$0xff]
    %v4563 = vld [vmem:[#allocation11 + $0xd78] sm:$0xff]
    %v4564 = vld [vmem:[#allocation11 + $0xd80] sm:$0xff]
    %v4565 = vld [vmem:[#allocation11 + $0xd88] sm:$0xff]
    %v4566 = vld [vmem:[#allocation11 + $0xd90] sm:$0xff]
    %v4567 = vld [vmem:[#allocation11 + $0xd98] sm:$0xff]
    %v4568 = vld [vmem:[#allocation11 + $0xda0] sm:$0xff]
    %v4569 = vld [vmem:[#allocation11 + $0xda8] sm:$0xff]
    %v4570 = vld [vmem:[#allocation11 + $0xdb0] sm:$0xff]
    %v4571 = vld [vmem:[#allocation11 + $0xdb8] sm:$0xff]
    %v4572 = vld [vmem:[#allocation11 + $0xdc0] sm:$0xff]
    %v4573 = vld [vmem:[#allocation11 + $0xdc8] sm:$0xff]
    %v4574 = vld [vmem:[#allocation11 + $0xdd0] sm:$0xff]
    %v4575 = vld [vmem:[#allocation11 + $0xdd8] sm:$0xff]
    %v4576 = vld [vmem:[#allocation11 + $0xde0] sm:$0xff]
    %v4577 = vld [vmem:[#allocation11 + $0xde8] sm:$0xff]
    %v4578 = vld [vmem:[#allocation11 + $0xdf0] sm:$0xff]
    %v4579 = vld [vmem:[#allocation11 + $0xdf8] sm:$0xff]
    %v4580 = vld [vmem:[#allocation11 + $0xe00] sm:$0xff]
    %v4581 = vld [vmem:[#allocation11 + $0xe08] sm:$0xff]
    %v4582 = vld [vmem:[#allocation11 + $0xe10] sm:$0xff]
    %v4583 = vld [vmem:[#allocation11 + $0xe18] sm:$0xff]
    %v4584 = vld [vmem:[#allocation11 + $0xe20] sm:$0xff]
    %v4585 = vld [vmem:[#allocation11 + $0xe28] sm:$0xff]
    %v4586 = vld [vmem:[#allocation11 + $0xe30] sm:$0xff]
    %v4587 = vld [vmem:[#allocation11 + $0xe38] sm:$0xff]
    %v4588 = vld [vmem:[#allocation11 + $0xe40] sm:$0xff]
    %v4589 = vld [vmem:[#allocation11 + $0xe48] sm:$0xff]
    %v4590 = vld [vmem:[#allocation11 + $0xe50] sm:$0xff]
    %v4591 = vld [vmem:[#allocation11 + $0xe58] sm:$0xff]
    %v4592 = vld [vmem:[#allocation11 + $0xe60] sm:$0xff]
    %v4593 = vld [vmem:[#allocation11 + $0xe68] sm:$0xff]
    %v4594 = vld [vmem:[#allocation11 + $0xe70] sm:$0xff]
    %v4595 = vld [vmem:[#allocation11 + $0xe78] sm:$0xff]
    %v4596 = vld [vmem:[#allocation11 + $0xe80] sm:$0xff]
    %v4597 = vld [vmem:[#allocation11 + $0xe88] sm:$0xff]
    %v4598 = vld [vmem:[#allocation11 + $0xe90] sm:$0xff]
    %v4599 = vld [vmem:[#allocation11 + $0xe98] sm:$0xff]
    %v4600 = vld [vmem:[#allocation11 + $0xea0] sm:$0xff]
    %v4601 = vld [vmem:[#allocation11 + $0xea8] sm:$0xff]
    %v4602 = vld [vmem:[#allocation11 + $0xeb0] sm:$0xff]
    %v4603 = vld [vmem:[#allocation11 + $0xeb8] sm:$0xff]
    %v4604 = vld [vmem:[#allocation11 + $0xec0] sm:$0xff]
    %v4605 = vld [vmem:[#allocation11 + $0xec8] sm:$0xff]
    %v4606 = vld [vmem:[#allocation11 + $0xed0] sm:$0xff]
    %v4607 = vld [vmem:[#allocation11 + $0xed8] sm:$0xff]
    %v4608 = vld [vmem:[#allocation11 + $0xee0] sm:$0xff]
    %v4609 = vld [vmem:[#allocation11 + $0xee8] sm:$0xff]
    %v4610 = vld [vmem:[#allocation11 + $0xef0] sm:$0xff]
    %v4611 = vld [vmem:[#allocation11 + $0xef8] sm:$0xff]
    %v4612 = vld [vmem:[#allocation11 + $0xf00] sm:$0xff]
    %v4613 = vld [vmem:[#allocation11 + $0xf08] sm:$0xff]
    %v4614 = vld [vmem:[#allocation11 + $0xf10] sm:$0xff]
    %v4615 = vld [vmem:[#allocation11 + $0xf18] sm:$0xff]
    %v4616 = vld [vmem:[#allocation11 + $0xf20] sm:$0xff]
    %v4617 = vld [vmem:[#allocation11 + $0xf28] sm:$0xff]
    %v4618 = vld [vmem:[#allocation11 + $0xf30] sm:$0xff]
    %v4619 = vld [vmem:[#allocation11 + $0xf38] sm:$0xff]
    %v4620 = vld [vmem:[#allocation11 + $0xf40] sm:$0xff]
    %v4621 = vld [vmem:[#allocation11 + $0xf48] sm:$0xff]
    %v4622 = vld [vmem:[#allocation11 + $0xf50] sm:$0xff]
    %v4623 = vld [vmem:[#allocation11 + $0xf58] sm:$0xff]
    %v4624 = vld [vmem:[#allocation11 + $0xf60] sm:$0xff]
    %v4625 = vld [vmem:[#allocation11 + $0xf68] sm:$0xff]
    %v4626 = vld [vmem:[#allocation11 + $0xf70] sm:$0xff]
    %v4627 = vld [vmem:[#allocation11 + $0xf78] sm:$0xff]
    %v4628 = vld [vmem:[#allocation11 + $0xf80] sm:$0xff]
    %v4629 = vld [vmem:[#allocation11 + $0xf88] sm:$0xff]
    %v4630 = vld [vmem:[#allocation11 + $0xf90] sm:$0xff]
    %v4631 = vld [vmem:[#allocation11 + $0xf98] sm:$0xff]
    %v4632 = vld [vmem:[#allocation11 + $0xfa0] sm:$0xff]
    %v4633 = vld [vmem:[#allocation11 + $0xfa8] sm:$0xff]
    %v4634 = vld [vmem:[#allocation11 + $0xfb0] sm:$0xff]
    %v4635 = vld [vmem:[#allocation11 + $0xfb8] sm:$0xff]
    %v4636 = vld [vmem:[#allocation11 + $0xfc0] sm:$0xff]
    %v4637 = vld [vmem:[#allocation11 + $0xfc8] sm:$0xff]
    %v4638 = vld [vmem:[#allocation11 + $0xfd0] sm:$0xff]
    %v4639 = vld [vmem:[#allocation11 + $0xfd8] sm:$0xff]
    %v4640 = vld [vmem:[#allocation11 + $0xfe0] sm:$0xff]
    %v4641 = vld [vmem:[#allocation11 + $0xfe8] sm:$0xff]
    %v4642 = vld [vmem:[#allocation11 + $0xff0] sm:$0xff]
    %v4643 = vld [vmem:[#allocation11 + $0xff8] sm:$0xff]
    %v4644 = vld [vmem:[#allocation13] sm:$0xf]
    %v4646 = vlaneseq
    %v4647 = vshrl.u32 %v4646, 7
    %v4648 = vsub.s32 0, %v4647
    %v4649 = vrot.slane %v4644, %v4648
    %v4650 = vlaneseq
    %v4651 = vshrl.u32 %v4650, 7
    %v4652 = vsub.s32 1, %v4651
    %v4653 = vrot.slane %v4644, %v4652
    %v4654 = vlaneseq
    %v4655 = vshrl.u32 %v4654, 7
    %v4656 = vsub.s32 2, %v4655
    %v4657 = vrot.slane %v4644, %v4656
    %v4658 = vlaneseq
    %v4659 = vshrl.u32 %v4658, 7
    %v4660 = vsub.s32 3, %v4659
    %v4661 = vrot.slane %v4644, %v4660
    %v5178 = vunpack.c.l.b16 %v4132
    %v5179 = vunpack.c.h.b16 %v4132
    %v5180 = vunpack.c.l.b16 %v4133
    %v5181 = vunpack.c.h.b16 %v4133
    %v5182 = vunpack.c.l.b16 %v4134
    %v5183 = vunpack.c.h.b16 %v4134
    %v5184 = vunpack.c.l.b16 %v4135
    %v5185 = vunpack.c.h.b16 %v4135
    %v5186 = vunpack.c.l.b16 %v4136
    %v5187 = vunpack.c.h.b16 %v4136
    %v5188 = vunpack.c.l.b16 %v4137
    %v5189 = vunpack.c.h.b16 %v4137
    %v5190 = vunpack.c.l.b16 %v4138
    %v5191 = vunpack.c.h.b16 %v4138
    %v5192 = vunpack.c.l.b16 %v4139
    %v5193 = vunpack.c.h.b16 %v4139
    %v5194 = vunpack.c.l.b16 %v4140
    %v5195 = vunpack.c.h.b16 %v4140
    %v5196 = vunpack.c.l.b16 %v4141
    %v5197 = vunpack.c.h.b16 %v4141
    %v5198 = vunpack.c.l.b16 %v4142
    %v5199 = vunpack.c.h.b16 %v4142
    %v5200 = vunpack.c.l.b16 %v4143
    %v5201 = vunpack.c.h.b16 %v4143
    %v5202 = vunpack.c.l.b16 %v4144
    %v5203 = vunpack.c.h.b16 %v4144
    %v5204 = vunpack.c.l.b16 %v4145
    %v5205 = vunpack.c.h.b16 %v4145
    %v5206 = vunpack.c.l.b16 %v4146
    %v5207 = vunpack.c.h.b16 %v4146
    %v5208 = vunpack.c.l.b16 %v4147
    %v5209 = vunpack.c.h.b16 %v4147
    %v5210 = vunpack.c.l.b16 %v4148
    %v5211 = vunpack.c.h.b16 %v4148
    %v5212 = vunpack.c.l.b16 %v4149
    %v5213 = vunpack.c.h.b16 %v4149
    %v5214 = vunpack.c.l.b16 %v4150
    %v5215 = vunpack.c.h.b16 %v4150
    %v5216 = vunpack.c.l.b16 %v4151
    %v5217 = vunpack.c.h.b16 %v4151
    %v5218 = vunpack.c.l.b16 %v4152
    %v5219 = vunpack.c.h.b16 %v4152
    %v5220 = vunpack.c.l.b16 %v4153
    %v5221 = vunpack.c.h.b16 %v4153
    %v5222 = vunpack.c.l.b16 %v4154
    %v5223 = vunpack.c.h.b16 %v4154
    %v5224 = vunpack.c.l.b16 %v4155
    %v5225 = vunpack.c.h.b16 %v4155
    %v5226 = vunpack.c.l.b16 %v4156
    %v5227 = vunpack.c.h.b16 %v4156
    %v5228 = vunpack.c.l.b16 %v4157
    %v5229 = vunpack.c.h.b16 %v4157
    %v5230 = vunpack.c.l.b16 %v4158
    %v5231 = vunpack.c.h.b16 %v4158
    %v5232 = vunpack.c.l.b16 %v4159
    %v5233 = vunpack.c.h.b16 %v4159
    %v5234 = vunpack.c.l.b16 %v4160
    %v5235 = vunpack.c.h.b16 %v4160
    %v5236 = vunpack.c.l.b16 %v4161
    %v5237 = vunpack.c.h.b16 %v4161
    %v5238 = vunpack.c.l.b16 %v4162
    %v5239 = vunpack.c.h.b16 %v4162
    %v5240 = vunpack.c.l.b16 %v4163
    %v5241 = vunpack.c.h.b16 %v4163
    %v5242 = vunpack.c.l.b16 %v4164
    %v5243 = vunpack.c.h.b16 %v4164
    %v5244 = vunpack.c.l.b16 %v4165
    %v5245 = vunpack.c.h.b16 %v4165
    %v5246 = vunpack.c.l.b16 %v4166
    %v5247 = vunpack.c.h.b16 %v4166
    %v5248 = vunpack.c.l.b16 %v4167
    %v5249 = vunpack.c.h.b16 %v4167
    %v5250 = vunpack.c.l.b16 %v4168
    %v5251 = vunpack.c.h.b16 %v4168
    %v5252 = vunpack.c.l.b16 %v4169
    %v5253 = vunpack.c.h.b16 %v4169
    %v5254 = vunpack.c.l.b16 %v4170
    %v5255 = vunpack.c.h.b16 %v4170
    %v5256 = vunpack.c.l.b16 %v4171
    %v5257 = vunpack.c.h.b16 %v4171
    %v5258 = vunpack.c.l.b16 %v4172
    %v5259 = vunpack.c.h.b16 %v4172
    %v5260 = vunpack.c.l.b16 %v4173
    %v5261 = vunpack.c.h.b16 %v4173
    %v5262 = vunpack.c.l.b16 %v4174
    %v5263 = vunpack.c.h.b16 %v4174
    %v5264 = vunpack.c.l.b16 %v4175
    %v5265 = vunpack.c.h.b16 %v4175
    %v5266 = vunpack.c.l.b16 %v4176
    %v5267 = vunpack.c.h.b16 %v4176
    %v5268 = vunpack.c.l.b16 %v4177
    %v5269 = vunpack.c.h.b16 %v4177
    %v5270 = vunpack.c.l.b16 %v4178
    %v5271 = vunpack.c.h.b16 %v4178
    %v5272 = vunpack.c.l.b16 %v4179
    %v5273 = vunpack.c.h.b16 %v4179
    %v5274 = vunpack.c.l.b16 %v4180
    %v5275 = vunpack.c.h.b16 %v4180
    %v5276 = vunpack.c.l.b16 %v4181
    %v5277 = vunpack.c.h.b16 %v4181
    %v5278 = vunpack.c.l.b16 %v4182
    %v5279 = vunpack.c.h.b16 %v4182
    %v5280 = vunpack.c.l.b16 %v4183
    %v5281 = vunpack.c.h.b16 %v4183
    %v5282 = vunpack.c.l.b16 %v4184
    %v5283 = vunpack.c.h.b16 %v4184
    %v5284 = vunpack.c.l.b16 %v4185
    %v5285 = vunpack.c.h.b16 %v4185
    %v5286 = vunpack.c.l.b16 %v4186
    %v5287 = vunpack.c.h.b16 %v4186
    %v5288 = vunpack.c.l.b16 %v4187
    %v5289 = vunpack.c.h.b16 %v4187
    %v5290 = vunpack.c.l.b16 %v4188
    %v5291 = vunpack.c.h.b16 %v4188
    %v5292 = vunpack.c.l.b16 %v4189
    %v5293 = vunpack.c.h.b16 %v4189
    %v5294 = vunpack.c.l.b16 %v4190
    %v5295 = vunpack.c.h.b16 %v4190
    %v5296 = vunpack.c.l.b16 %v4191
    %v5297 = vunpack.c.h.b16 %v4191
    %v5298 = vunpack.c.l.b16 %v4192
    %v5299 = vunpack.c.h.b16 %v4192
    %v5300 = vunpack.c.l.b16 %v4193
    %v5301 = vunpack.c.h.b16 %v4193
    %v5302 = vunpack.c.l.b16 %v4194
    %v5303 = vunpack.c.h.b16 %v4194
    %v5304 = vunpack.c.l.b16 %v4195
    %v5305 = vunpack.c.h.b16 %v4195
    %v5306 = vunpack.c.l.b16 %v4196
    %v5307 = vunpack.c.h.b16 %v4196
    %v5308 = vunpack.c.l.b16 %v4197
    %v5309 = vunpack.c.h.b16 %v4197
    %v5310 = vunpack.c.l.b16 %v4198
    %v5311 = vunpack.c.h.b16 %v4198
    %v5312 = vunpack.c.l.b16 %v4199
    %v5313 = vunpack.c.h.b16 %v4199
    %v5314 = vunpack.c.l.b16 %v4200
    %v5315 = vunpack.c.h.b16 %v4200
    %v5316 = vunpack.c.l.b16 %v4201
    %v5317 = vunpack.c.h.b16 %v4201
    %v5318 = vunpack.c.l.b16 %v4202
    %v5319 = vunpack.c.h.b16 %v4202
    %v5320 = vunpack.c.l.b16 %v4203
    %v5321 = vunpack.c.h.b16 %v4203
    %v5322 = vunpack.c.l.b16 %v4204
    %v5323 = vunpack.c.h.b16 %v4204
    %v5324 = vunpack.c.l.b16 %v4205
    %v5325 = vunpack.c.h.b16 %v4205
    %v5326 = vunpack.c.l.b16 %v4206
    %v5327 = vunpack.c.h.b16 %v4206
    %v5328 = vunpack.c.l.b16 %v4207
    %v5329 = vunpack.c.h.b16 %v4207
    %v5330 = vunpack.c.l.b16 %v4208
    %v5331 = vunpack.c.h.b16 %v4208
    %v5332 = vunpack.c.l.b16 %v4209
    %v5333 = vunpack.c.h.b16 %v4209
    %v5334 = vunpack.c.l.b16 %v4210
    %v5335 = vunpack.c.h.b16 %v4210
    %v5336 = vunpack.c.l.b16 %v4211
    %v5337 = vunpack.c.h.b16 %v4211
    %v5338 = vunpack.c.l.b16 %v4212
    %v5339 = vunpack.c.h.b16 %v4212
    %v5340 = vunpack.c.l.b16 %v4213
    %v5341 = vunpack.c.h.b16 %v4213
    %v5342 = vunpack.c.l.b16 %v4214
    %v5343 = vunpack.c.h.b16 %v4214
    %v5344 = vunpack.c.l.b16 %v4215
    %v5345 = vunpack.c.h.b16 %v4215
    %v5346 = vunpack.c.l.b16 %v4216
    %v5347 = vunpack.c.h.b16 %v4216
    %v5348 = vunpack.c.l.b16 %v4217
    %v5349 = vunpack.c.h.b16 %v4217
    %v5350 = vunpack.c.l.b16 %v4218
    %v5351 = vunpack.c.h.b16 %v4218
    %v5352 = vunpack.c.l.b16 %v4219
    %v5353 = vunpack.c.h.b16 %v4219
    %v5354 = vunpack.c.l.b16 %v4220
    %v5355 = vunpack.c.h.b16 %v4220
    %v5356 = vunpack.c.l.b16 %v4221
    %v5357 = vunpack.c.h.b16 %v4221
    %v5358 = vunpack.c.l.b16 %v4222
    %v5359 = vunpack.c.h.b16 %v4222
    %v5360 = vunpack.c.l.b16 %v4223
    %v5361 = vunpack.c.h.b16 %v4223
    %v5362 = vunpack.c.l.b16 %v4224
    %v5363 = vunpack.c.h.b16 %v4224
    %v5364 = vunpack.c.l.b16 %v4225
    %v5365 = vunpack.c.h.b16 %v4225
    %v5366 = vunpack.c.l.b16 %v4226
    %v5367 = vunpack.c.h.b16 %v4226
    %v5368 = vunpack.c.l.b16 %v4227
    %v5369 = vunpack.c.h.b16 %v4227
    %v5370 = vunpack.c.l.b16 %v4228
    %v5371 = vunpack.c.h.b16 %v4228
    %v5372 = vunpack.c.l.b16 %v4229
    %v5373 = vunpack.c.h.b16 %v4229
    %v5374 = vunpack.c.l.b16 %v4230
    %v5375 = vunpack.c.h.b16 %v4230
    %v5376 = vunpack.c.l.b16 %v4231
    %v5377 = vunpack.c.h.b16 %v4231
    %v5378 = vunpack.c.l.b16 %v4232
    %v5379 = vunpack.c.h.b16 %v4232
    %v5380 = vunpack.c.l.b16 %v4233
    %v5381 = vunpack.c.h.b16 %v4233
    %v5382 = vunpack.c.l.b16 %v4234
    %v5383 = vunpack.c.h.b16 %v4234
    %v5384 = vunpack.c.l.b16 %v4235
    %v5385 = vunpack.c.h.b16 %v4235
    %v5386 = vunpack.c.l.b16 %v4236
    %v5387 = vunpack.c.h.b16 %v4236
    %v5388 = vunpack.c.l.b16 %v4237
    %v5389 = vunpack.c.h.b16 %v4237
    %v5390 = vunpack.c.l.b16 %v4238
    %v5391 = vunpack.c.h.b16 %v4238
    %v5392 = vunpack.c.l.b16 %v4239
    %v5393 = vunpack.c.h.b16 %v4239
    %v5394 = vunpack.c.l.b16 %v4240
    %v5395 = vunpack.c.h.b16 %v4240
    %v5396 = vunpack.c.l.b16 %v4241
    %v5397 = vunpack.c.h.b16 %v4241
    %v5398 = vunpack.c.l.b16 %v4242
    %v5399 = vunpack.c.h.b16 %v4242
    %v5400 = vunpack.c.l.b16 %v4243
    %v5401 = vunpack.c.h.b16 %v4243
    %v5402 = vunpack.c.l.b16 %v4244
    %v5403 = vunpack.c.h.b16 %v4244
    %v5404 = vunpack.c.l.b16 %v4245
    %v5405 = vunpack.c.h.b16 %v4245
    %v5406 = vunpack.c.l.b16 %v4246
    %v5407 = vunpack.c.h.b16 %v4246
    %v5408 = vunpack.c.l.b16 %v4247
    %v5409 = vunpack.c.h.b16 %v4247
    %v5410 = vunpack.c.l.b16 %v4248
    %v5411 = vunpack.c.h.b16 %v4248
    %v5412 = vunpack.c.l.b16 %v4249
    %v5413 = vunpack.c.h.b16 %v4249
    %v5414 = vunpack.c.l.b16 %v4250
    %v5415 = vunpack.c.h.b16 %v4250
    %v5416 = vunpack.c.l.b16 %v4251
    %v5417 = vunpack.c.h.b16 %v4251
    %v5418 = vunpack.c.l.b16 %v4252
    %v5419 = vunpack.c.h.b16 %v4252
    %v5420 = vunpack.c.l.b16 %v4253
    %v5421 = vunpack.c.h.b16 %v4253
    %v5422 = vunpack.c.l.b16 %v4254
    %v5423 = vunpack.c.h.b16 %v4254
    %v5424 = vunpack.c.l.b16 %v4255
    %v5425 = vunpack.c.h.b16 %v4255
    %v5426 = vunpack.c.l.b16 %v4256
    %v5427 = vunpack.c.h.b16 %v4256
    %v5428 = vunpack.c.l.b16 %v4257
    %v5429 = vunpack.c.h.b16 %v4257
    %v5430 = vunpack.c.l.b16 %v4258
    %v5431 = vunpack.c.h.b16 %v4258
    %v5432 = vunpack.c.l.b16 %v4259
    %v5433 = vunpack.c.h.b16 %v4259
    %v5434 = vunpack.c.l.b16 %v4260
    %v5435 = vunpack.c.h.b16 %v4260
    %v5436 = vunpack.c.l.b16 %v4261
    %v5437 = vunpack.c.h.b16 %v4261
    %v5438 = vunpack.c.l.b16 %v4262
    %v5439 = vunpack.c.h.b16 %v4262
    %v5440 = vunpack.c.l.b16 %v4263
    %v5441 = vunpack.c.h.b16 %v4263
    %v5442 = vunpack.c.l.b16 %v4264
    %v5443 = vunpack.c.h.b16 %v4264
    %v5444 = vunpack.c.l.b16 %v4265
    %v5445 = vunpack.c.h.b16 %v4265
    %v5446 = vunpack.c.l.b16 %v4266
    %v5447 = vunpack.c.h.b16 %v4266
    %v5448 = vunpack.c.l.b16 %v4267
    %v5449 = vunpack.c.h.b16 %v4267
    %v5450 = vunpack.c.l.b16 %v4268
    %v5451 = vunpack.c.h.b16 %v4268
    %v5452 = vunpack.c.l.b16 %v4269
    %v5453 = vunpack.c.h.b16 %v4269
    %v5454 = vunpack.c.l.b16 %v4270
    %v5455 = vunpack.c.h.b16 %v4270
    %v5456 = vunpack.c.l.b16 %v4271
    %v5457 = vunpack.c.h.b16 %v4271
    %v5458 = vunpack.c.l.b16 %v4272
    %v5459 = vunpack.c.h.b16 %v4272
    %v5460 = vunpack.c.l.b16 %v4273
    %v5461 = vunpack.c.h.b16 %v4273
    %v5462 = vunpack.c.l.b16 %v4274
    %v5463 = vunpack.c.h.b16 %v4274
    %v5464 = vunpack.c.l.b16 %v4275
    %v5465 = vunpack.c.h.b16 %v4275
    %v5466 = vunpack.c.l.b16 %v4276
    %v5467 = vunpack.c.h.b16 %v4276
    %v5468 = vunpack.c.l.b16 %v4277
    %v5469 = vunpack.c.h.b16 %v4277
    %v5470 = vunpack.c.l.b16 %v4278
    %v5471 = vunpack.c.h.b16 %v4278
    %v5472 = vunpack.c.l.b16 %v4279
    %v5473 = vunpack.c.h.b16 %v4279
    %v5474 = vunpack.c.l.b16 %v4280
    %v5475 = vunpack.c.h.b16 %v4280
    %v5476 = vunpack.c.l.b16 %v4281
    %v5477 = vunpack.c.h.b16 %v4281
    %v5478 = vunpack.c.l.b16 %v4282
    %v5479 = vunpack.c.h.b16 %v4282
    %v5480 = vunpack.c.l.b16 %v4283
    %v5481 = vunpack.c.h.b16 %v4283
    %v5482 = vunpack.c.l.b16 %v4284
    %v5483 = vunpack.c.h.b16 %v4284
    %v5484 = vunpack.c.l.b16 %v4285
    %v5485 = vunpack.c.h.b16 %v4285
    %v5486 = vunpack.c.l.b16 %v4286
    %v5487 = vunpack.c.h.b16 %v4286
    %v5488 = vunpack.c.l.b16 %v4287
    %v5489 = vunpack.c.h.b16 %v4287
    %v5490 = vunpack.c.l.b16 %v4288
    %v5491 = vunpack.c.h.b16 %v4288
    %v5492 = vunpack.c.l.b16 %v4289
    %v5493 = vunpack.c.h.b16 %v4289
    %v5494 = vunpack.c.l.b16 %v4290
    %v5495 = vunpack.c.h.b16 %v4290
    %v5496 = vunpack.c.l.b16 %v4291
    %v5497 = vunpack.c.h.b16 %v4291
    %v5498 = vunpack.c.l.b16 %v4292
    %v5499 = vunpack.c.h.b16 %v4292
    %v5500 = vunpack.c.l.b16 %v4293
    %v5501 = vunpack.c.h.b16 %v4293
    %v5502 = vunpack.c.l.b16 %v4294
    %v5503 = vunpack.c.h.b16 %v4294
    %v5504 = vunpack.c.l.b16 %v4295
    %v5505 = vunpack.c.h.b16 %v4295
    %v5506 = vunpack.c.l.b16 %v4296
    %v5507 = vunpack.c.h.b16 %v4296
    %v5508 = vunpack.c.l.b16 %v4297
    %v5509 = vunpack.c.h.b16 %v4297
    %v5510 = vunpack.c.l.b16 %v4298
    %v5511 = vunpack.c.h.b16 %v4298
    %v5512 = vunpack.c.l.b16 %v4299
    %v5513 = vunpack.c.h.b16 %v4299
    %v5514 = vunpack.c.l.b16 %v4300
    %v5515 = vunpack.c.h.b16 %v4300
    %v5516 = vunpack.c.l.b16 %v4301
    %v5517 = vunpack.c.h.b16 %v4301
    %v5518 = vunpack.c.l.b16 %v4302
    %v5519 = vunpack.c.h.b16 %v4302
    %v5520 = vunpack.c.l.b16 %v4303
    %v5521 = vunpack.c.h.b16 %v4303
    %v5522 = vunpack.c.l.b16 %v4304
    %v5523 = vunpack.c.h.b16 %v4304
    %v5524 = vunpack.c.l.b16 %v4305
    %v5525 = vunpack.c.h.b16 %v4305
    %v5526 = vunpack.c.l.b16 %v4306
    %v5527 = vunpack.c.h.b16 %v4306
    %v5528 = vunpack.c.l.b16 %v4307
    %v5529 = vunpack.c.h.b16 %v4307
    %v5530 = vunpack.c.l.b16 %v4308
    %v5531 = vunpack.c.h.b16 %v4308
    %v5532 = vunpack.c.l.b16 %v4309
    %v5533 = vunpack.c.h.b16 %v4309
    %v5534 = vunpack.c.l.b16 %v4310
    %v5535 = vunpack.c.h.b16 %v4310
    %v5536 = vunpack.c.l.b16 %v4311
    %v5537 = vunpack.c.h.b16 %v4311
    %v5538 = vunpack.c.l.b16 %v4312
    %v5539 = vunpack.c.h.b16 %v4312
    %v5540 = vunpack.c.l.b16 %v4313
    %v5541 = vunpack.c.h.b16 %v4313
    %v5542 = vunpack.c.l.b16 %v4314
    %v5543 = vunpack.c.h.b16 %v4314
    %v5544 = vunpack.c.l.b16 %v4315
    %v5545 = vunpack.c.h.b16 %v4315
    %v5546 = vunpack.c.l.b16 %v4316
    %v5547 = vunpack.c.h.b16 %v4316
    %v5548 = vunpack.c.l.b16 %v4317
    %v5549 = vunpack.c.h.b16 %v4317
    %v5550 = vunpack.c.l.b16 %v4318
    %v5551 = vunpack.c.h.b16 %v4318
    %v5552 = vunpack.c.l.b16 %v4319
    %v5553 = vunpack.c.h.b16 %v4319
    %v5554 = vunpack.c.l.b16 %v4320
    %v5555 = vunpack.c.h.b16 %v4320
    %v5556 = vunpack.c.l.b16 %v4321
    %v5557 = vunpack.c.h.b16 %v4321
    %v5558 = vunpack.c.l.b16 %v4322
    %v5559 = vunpack.c.h.b16 %v4322
    %v5560 = vunpack.c.l.b16 %v4323
    %v5561 = vunpack.c.h.b16 %v4323
    %v5562 = vunpack.c.l.b16 %v4324
    %v5563 = vunpack.c.h.b16 %v4324
    %v5564 = vunpack.c.l.b16 %v4325
    %v5565 = vunpack.c.h.b16 %v4325
    %v5566 = vunpack.c.l.b16 %v4326
    %v5567 = vunpack.c.h.b16 %v4326
    %v5568 = vunpack.c.l.b16 %v4327
    %v5569 = vunpack.c.h.b16 %v4327
    %v5570 = vunpack.c.l.b16 %v4328
    %v5571 = vunpack.c.h.b16 %v4328
    %v5572 = vunpack.c.l.b16 %v4329
    %v5573 = vunpack.c.h.b16 %v4329
    %v5574 = vunpack.c.l.b16 %v4330
    %v5575 = vunpack.c.h.b16 %v4330
    %v5576 = vunpack.c.l.b16 %v4331
    %v5577 = vunpack.c.h.b16 %v4331
    %v5578 = vunpack.c.l.b16 %v4332
    %v5579 = vunpack.c.h.b16 %v4332
    %v5580 = vunpack.c.l.b16 %v4333
    %v5581 = vunpack.c.h.b16 %v4333
    %v5582 = vunpack.c.l.b16 %v4334
    %v5583 = vunpack.c.h.b16 %v4334
    %v5584 = vunpack.c.l.b16 %v4335
    %v5585 = vunpack.c.h.b16 %v4335
    %v5586 = vunpack.c.l.b16 %v4336
    %v5587 = vunpack.c.h.b16 %v4336
    %v5588 = vunpack.c.l.b16 %v4337
    %v5589 = vunpack.c.h.b16 %v4337
    %v5590 = vunpack.c.l.b16 %v4338
    %v5591 = vunpack.c.h.b16 %v4338
    %v5592 = vunpack.c.l.b16 %v4339
    %v5593 = vunpack.c.h.b16 %v4339
    %v5594 = vunpack.c.l.b16 %v4340
    %v5595 = vunpack.c.h.b16 %v4340
    %v5596 = vunpack.c.l.b16 %v4341
    %v5597 = vunpack.c.h.b16 %v4341
    %v5598 = vunpack.c.l.b16 %v4342
    %v5599 = vunpack.c.h.b16 %v4342
    %v5600 = vunpack.c.l.b16 %v4343
    %v5601 = vunpack.c.h.b16 %v4343
    %v5602 = vunpack.c.l.b16 %v4344
    %v5603 = vunpack.c.h.b16 %v4344
    %v5604 = vunpack.c.l.b16 %v4345
    %v5605 = vunpack.c.h.b16 %v4345
    %v5606 = vunpack.c.l.b16 %v4346
    %v5607 = vunpack.c.h.b16 %v4346
    %v5608 = vunpack.c.l.b16 %v4347
    %v5609 = vunpack.c.h.b16 %v4347
    %v5610 = vunpack.c.l.b16 %v4348
    %v5611 = vunpack.c.h.b16 %v4348
    %v5612 = vunpack.c.l.b16 %v4349
    %v5613 = vunpack.c.h.b16 %v4349
    %v5614 = vunpack.c.l.b16 %v4350
    %v5615 = vunpack.c.h.b16 %v4350
    %v5616 = vunpack.c.l.b16 %v4351
    %v5617 = vunpack.c.h.b16 %v4351
    %v5618 = vunpack.c.l.b16 %v4352
    %v5619 = vunpack.c.h.b16 %v4352
    %v5620 = vunpack.c.l.b16 %v4353
    %v5621 = vunpack.c.h.b16 %v4353
    %v5622 = vunpack.c.l.b16 %v4354
    %v5623 = vunpack.c.h.b16 %v4354
    %v5624 = vunpack.c.l.b16 %v4355
    %v5625 = vunpack.c.h.b16 %v4355
    %v5626 = vunpack.c.l.b16 %v4356
    %v5627 = vunpack.c.h.b16 %v4356
    %v5628 = vunpack.c.l.b16 %v4357
    %v5629 = vunpack.c.h.b16 %v4357
    %v5630 = vunpack.c.l.b16 %v4358
    %v5631 = vunpack.c.h.b16 %v4358
    %v5632 = vunpack.c.l.b16 %v4359
    %v5633 = vunpack.c.h.b16 %v4359
    %v5634 = vunpack.c.l.b16 %v4360
    %v5635 = vunpack.c.h.b16 %v4360
    %v5636 = vunpack.c.l.b16 %v4361
    %v5637 = vunpack.c.h.b16 %v4361
    %v5638 = vunpack.c.l.b16 %v4362
    %v5639 = vunpack.c.h.b16 %v4362
    %v5640 = vunpack.c.l.b16 %v4363
    %v5641 = vunpack.c.h.b16 %v4363
    %v5642 = vunpack.c.l.b16 %v4364
    %v5643 = vunpack.c.h.b16 %v4364
    %v5644 = vunpack.c.l.b16 %v4365
    %v5645 = vunpack.c.h.b16 %v4365
    %v5646 = vunpack.c.l.b16 %v4366
    %v5647 = vunpack.c.h.b16 %v4366
    %v5648 = vunpack.c.l.b16 %v4367
    %v5649 = vunpack.c.h.b16 %v4367
    %v5650 = vunpack.c.l.b16 %v4368
    %v5651 = vunpack.c.h.b16 %v4368
    %v5652 = vunpack.c.l.b16 %v4369
    %v5653 = vunpack.c.h.b16 %v4369
    %v5654 = vunpack.c.l.b16 %v4370
    %v5655 = vunpack.c.h.b16 %v4370
    %v5656 = vunpack.c.l.b16 %v4371
    %v5657 = vunpack.c.h.b16 %v4371
    %v5658 = vunpack.c.l.b16 %v4372
    %v5659 = vunpack.c.h.b16 %v4372
    %v5660 = vunpack.c.l.b16 %v4373
    %v5661 = vunpack.c.h.b16 %v4373
    %v5662 = vunpack.c.l.b16 %v4374
    %v5663 = vunpack.c.h.b16 %v4374
    %v5664 = vunpack.c.l.b16 %v4375
    %v5665 = vunpack.c.h.b16 %v4375
    %v5666 = vunpack.c.l.b16 %v4376
    %v5667 = vunpack.c.h.b16 %v4376
    %v5668 = vunpack.c.l.b16 %v4377
    %v5669 = vunpack.c.h.b16 %v4377
    %v5670 = vunpack.c.l.b16 %v4378
    %v5671 = vunpack.c.h.b16 %v4378
    %v5672 = vunpack.c.l.b16 %v4379
    %v5673 = vunpack.c.h.b16 %v4379
    %v5674 = vunpack.c.l.b16 %v4380
    %v5675 = vunpack.c.h.b16 %v4380
    %v5676 = vunpack.c.l.b16 %v4381
    %v5677 = vunpack.c.h.b16 %v4381
    %v5678 = vunpack.c.l.b16 %v4382
    %v5679 = vunpack.c.h.b16 %v4382
    %v5680 = vunpack.c.l.b16 %v4383
    %v5681 = vunpack.c.h.b16 %v4383
    %v5682 = vunpack.c.l.b16 %v4384
    %v5683 = vunpack.c.h.b16 %v4384
    %v5684 = vunpack.c.l.b16 %v4385
    %v5685 = vunpack.c.h.b16 %v4385
    %v5686 = vunpack.c.l.b16 %v4386
    %v5687 = vunpack.c.h.b16 %v4386
    %v5688 = vunpack.c.l.b16 %v4387
    %v5689 = vunpack.c.h.b16 %v4387
    %v5690 = vunpack.c.l.b16 %v4388
    %v5691 = vunpack.c.h.b16 %v4388
    %v5692 = vunpack.c.l.b16 %v4389
    %v5693 = vunpack.c.h.b16 %v4389
    %v5694 = vunpack.c.l.b16 %v4390
    %v5695 = vunpack.c.h.b16 %v4390
    %v5696 = vunpack.c.l.b16 %v4391
    %v5697 = vunpack.c.h.b16 %v4391
    %v5698 = vunpack.c.l.b16 %v4392
    %v5699 = vunpack.c.h.b16 %v4392
    %v5700 = vunpack.c.l.b16 %v4393
    %v5701 = vunpack.c.h.b16 %v4393
    %v5702 = vunpack.c.l.b16 %v4394
    %v5703 = vunpack.c.h.b16 %v4394
    %v5704 = vunpack.c.l.b16 %v4395
    %v5705 = vunpack.c.h.b16 %v4395
    %v5706 = vunpack.c.l.b16 %v4396
    %v5707 = vunpack.c.h.b16 %v4396
    %v5708 = vunpack.c.l.b16 %v4397
    %v5709 = vunpack.c.h.b16 %v4397
    %v5710 = vunpack.c.l.b16 %v4398
    %v5711 = vunpack.c.h.b16 %v4398
    %v5712 = vunpack.c.l.b16 %v4399
    %v5713 = vunpack.c.h.b16 %v4399
    %v5714 = vunpack.c.l.b16 %v4400
    %v5715 = vunpack.c.h.b16 %v4400
    %v5716 = vunpack.c.l.b16 %v4401
    %v5717 = vunpack.c.h.b16 %v4401
    %v5718 = vunpack.c.l.b16 %v4402
    %v5719 = vunpack.c.h.b16 %v4402
    %v5720 = vunpack.c.l.b16 %v4403
    %v5721 = vunpack.c.h.b16 %v4403
    %v5722 = vunpack.c.l.b16 %v4404
    %v5723 = vunpack.c.h.b16 %v4404
    %v5724 = vunpack.c.l.b16 %v4405
    %v5725 = vunpack.c.h.b16 %v4405
    %v5726 = vunpack.c.l.b16 %v4406
    %v5727 = vunpack.c.h.b16 %v4406
    %v5728 = vunpack.c.l.b16 %v4407
    %v5729 = vunpack.c.h.b16 %v4407
    %v5730 = vunpack.c.l.b16 %v4408
    %v5731 = vunpack.c.h.b16 %v4408
    %v5732 = vunpack.c.l.b16 %v4409
    %v5733 = vunpack.c.h.b16 %v4409
    %v5734 = vunpack.c.l.b16 %v4410
    %v5735 = vunpack.c.h.b16 %v4410
    %v5736 = vunpack.c.l.b16 %v4411
    %v5737 = vunpack.c.h.b16 %v4411
    %v5738 = vunpack.c.l.b16 %v4412
    %v5739 = vunpack.c.h.b16 %v4412
    %v5740 = vunpack.c.l.b16 %v4413
    %v5741 = vunpack.c.h.b16 %v4413
    %v5742 = vunpack.c.l.b16 %v4414
    %v5743 = vunpack.c.h.b16 %v4414
    %v5744 = vunpack.c.l.b16 %v4415
    %v5745 = vunpack.c.h.b16 %v4415
    %v5746 = vunpack.c.l.b16 %v4416
    %v5747 = vunpack.c.h.b16 %v4416
    %v5748 = vunpack.c.l.b16 %v4417
    %v5749 = vunpack.c.h.b16 %v4417
    %v5750 = vunpack.c.l.b16 %v4418
    %v5751 = vunpack.c.h.b16 %v4418
    %v5752 = vunpack.c.l.b16 %v4419
    %v5753 = vunpack.c.h.b16 %v4419
    %v5754 = vunpack.c.l.b16 %v4420
    %v5755 = vunpack.c.h.b16 %v4420
    %v5756 = vunpack.c.l.b16 %v4421
    %v5757 = vunpack.c.h.b16 %v4421
    %v5758 = vunpack.c.l.b16 %v4422
    %v5759 = vunpack.c.h.b16 %v4422
    %v5760 = vunpack.c.l.b16 %v4423
    %v5761 = vunpack.c.h.b16 %v4423
    %v5762 = vunpack.c.l.b16 %v4424
    %v5763 = vunpack.c.h.b16 %v4424
    %v5764 = vunpack.c.l.b16 %v4425
    %v5765 = vunpack.c.h.b16 %v4425
    %v5766 = vunpack.c.l.b16 %v4426
    %v5767 = vunpack.c.h.b16 %v4426
    %v5768 = vunpack.c.l.b16 %v4427
    %v5769 = vunpack.c.h.b16 %v4427
    %v5770 = vunpack.c.l.b16 %v4428
    %v5771 = vunpack.c.h.b16 %v4428
    %v5772 = vunpack.c.l.b16 %v4429
    %v5773 = vunpack.c.h.b16 %v4429
    %v5774 = vunpack.c.l.b16 %v4430
    %v5775 = vunpack.c.h.b16 %v4430
    %v5776 = vunpack.c.l.b16 %v4431
    %v5777 = vunpack.c.h.b16 %v4431
    %v5778 = vunpack.c.l.b16 %v4432
    %v5779 = vunpack.c.h.b16 %v4432
    %v5780 = vunpack.c.l.b16 %v4433
    %v5781 = vunpack.c.h.b16 %v4433
    %v5782 = vunpack.c.l.b16 %v4434
    %v5783 = vunpack.c.h.b16 %v4434
    %v5784 = vunpack.c.l.b16 %v4435
    %v5785 = vunpack.c.h.b16 %v4435
    %v5786 = vunpack.c.l.b16 %v4436
    %v5787 = vunpack.c.h.b16 %v4436
    %v5788 = vunpack.c.l.b16 %v4437
    %v5789 = vunpack.c.h.b16 %v4437
    %v5790 = vunpack.c.l.b16 %v4438
    %v5791 = vunpack.c.h.b16 %v4438
    %v5792 = vunpack.c.l.b16 %v4439
    %v5793 = vunpack.c.h.b16 %v4439
    %v5794 = vunpack.c.l.b16 %v4440
    %v5795 = vunpack.c.h.b16 %v4440
    %v5796 = vunpack.c.l.b16 %v4441
    %v5797 = vunpack.c.h.b16 %v4441
    %v5798 = vunpack.c.l.b16 %v4442
    %v5799 = vunpack.c.h.b16 %v4442
    %v5800 = vunpack.c.l.b16 %v4443
    %v5801 = vunpack.c.h.b16 %v4443
    %v5802 = vunpack.c.l.b16 %v4444
    %v5803 = vunpack.c.h.b16 %v4444
    %v5804 = vunpack.c.l.b16 %v4445
    %v5805 = vunpack.c.h.b16 %v4445
    %v5806 = vunpack.c.l.b16 %v4446
    %v5807 = vunpack.c.h.b16 %v4446
    %v5808 = vunpack.c.l.b16 %v4447
    %v5809 = vunpack.c.h.b16 %v4447
    %v5810 = vunpack.c.l.b16 %v4448
    %v5811 = vunpack.c.h.b16 %v4448
    %v5812 = vunpack.c.l.b16 %v4449
    %v5813 = vunpack.c.h.b16 %v4449
    %v5814 = vunpack.c.l.b16 %v4450
    %v5815 = vunpack.c.h.b16 %v4450
    %v5816 = vunpack.c.l.b16 %v4451
    %v5817 = vunpack.c.h.b16 %v4451
    %v5818 = vunpack.c.l.b16 %v4452
    %v5819 = vunpack.c.h.b16 %v4452
    %v5820 = vunpack.c.l.b16 %v4453
    %v5821 = vunpack.c.h.b16 %v4453
    %v5822 = vunpack.c.l.b16 %v4454
    %v5823 = vunpack.c.h.b16 %v4454
    %v5824 = vunpack.c.l.b16 %v4455
    %v5825 = vunpack.c.h.b16 %v4455
    %v5826 = vunpack.c.l.b16 %v4456
    %v5827 = vunpack.c.h.b16 %v4456
    %v5828 = vunpack.c.l.b16 %v4457
    %v5829 = vunpack.c.h.b16 %v4457
    %v5830 = vunpack.c.l.b16 %v4458
    %v5831 = vunpack.c.h.b16 %v4458
    %v5832 = vunpack.c.l.b16 %v4459
    %v5833 = vunpack.c.h.b16 %v4459
    %v5834 = vunpack.c.l.b16 %v4460
    %v5835 = vunpack.c.h.b16 %v4460
    %v5836 = vunpack.c.l.b16 %v4461
    %v5837 = vunpack.c.h.b16 %v4461
    %v5838 = vunpack.c.l.b16 %v4462
    %v5839 = vunpack.c.h.b16 %v4462
    %v5840 = vunpack.c.l.b16 %v4463
    %v5841 = vunpack.c.h.b16 %v4463
    %v5842 = vunpack.c.l.b16 %v4464
    %v5843 = vunpack.c.h.b16 %v4464
    %v5844 = vunpack.c.l.b16 %v4465
    %v5845 = vunpack.c.h.b16 %v4465
    %v5846 = vunpack.c.l.b16 %v4466
    %v5847 = vunpack.c.h.b16 %v4466
    %v5848 = vunpack.c.l.b16 %v4467
    %v5849 = vunpack.c.h.b16 %v4467
    %v5850 = vunpack.c.l.b16 %v4468
    %v5851 = vunpack.c.h.b16 %v4468
    %v5852 = vunpack.c.l.b16 %v4469
    %v5853 = vunpack.c.h.b16 %v4469
    %v5854 = vunpack.c.l.b16 %v4470
    %v5855 = vunpack.c.h.b16 %v4470
    %v5856 = vunpack.c.l.b16 %v4471
    %v5857 = vunpack.c.h.b16 %v4471
    %v5858 = vunpack.c.l.b16 %v4472
    %v5859 = vunpack.c.h.b16 %v4472
    %v5860 = vunpack.c.l.b16 %v4473
    %v5861 = vunpack.c.h.b16 %v4473
    %v5862 = vunpack.c.l.b16 %v4474
    %v5863 = vunpack.c.h.b16 %v4474
    %v5864 = vunpack.c.l.b16 %v4475
    %v5865 = vunpack.c.h.b16 %v4475
    %v5866 = vunpack.c.l.b16 %v4476
    %v5867 = vunpack.c.h.b16 %v4476
    %v5868 = vunpack.c.l.b16 %v4477
    %v5869 = vunpack.c.h.b16 %v4477
    %v5870 = vunpack.c.l.b16 %v4478
    %v5871 = vunpack.c.h.b16 %v4478
    %v5872 = vunpack.c.l.b16 %v4479
    %v5873 = vunpack.c.h.b16 %v4479
    %v5874 = vunpack.c.l.b16 %v4480
    %v5875 = vunpack.c.h.b16 %v4480
    %v5876 = vunpack.c.l.b16 %v4481
    %v5877 = vunpack.c.h.b16 %v4481
    %v5878 = vunpack.c.l.b16 %v4482
    %v5879 = vunpack.c.h.b16 %v4482
    %v5880 = vunpack.c.l.b16 %v4483
    %v5881 = vunpack.c.h.b16 %v4483
    %v5882 = vunpack.c.l.b16 %v4484
    %v5883 = vunpack.c.h.b16 %v4484
    %v5884 = vunpack.c.l.b16 %v4485
    %v5885 = vunpack.c.h.b16 %v4485
    %v5886 = vunpack.c.l.b16 %v4486
    %v5887 = vunpack.c.h.b16 %v4486
    %v5888 = vunpack.c.l.b16 %v4487
    %v5889 = vunpack.c.h.b16 %v4487
    %v5890 = vunpack.c.l.b16 %v4488
    %v5891 = vunpack.c.h.b16 %v4488
    %v5892 = vunpack.c.l.b16 %v4489
    %v5893 = vunpack.c.h.b16 %v4489
    %v5894 = vunpack.c.l.b16 %v4490
    %v5895 = vunpack.c.h.b16 %v4490
    %v5896 = vunpack.c.l.b16 %v4491
    %v5897 = vunpack.c.h.b16 %v4491
    %v5898 = vunpack.c.l.b16 %v4492
    %v5899 = vunpack.c.h.b16 %v4492
    %v5900 = vunpack.c.l.b16 %v4493
    %v5901 = vunpack.c.h.b16 %v4493
    %v5902 = vunpack.c.l.b16 %v4494
    %v5903 = vunpack.c.h.b16 %v4494
    %v5904 = vunpack.c.l.b16 %v4495
    %v5905 = vunpack.c.h.b16 %v4495
    %v5906 = vunpack.c.l.b16 %v4496
    %v5907 = vunpack.c.h.b16 %v4496
    %v5908 = vunpack.c.l.b16 %v4497
    %v5909 = vunpack.c.h.b16 %v4497
    %v5910 = vunpack.c.l.b16 %v4498
    %v5911 = vunpack.c.h.b16 %v4498
    %v5912 = vunpack.c.l.b16 %v4499
    %v5913 = vunpack.c.h.b16 %v4499
    %v5914 = vunpack.c.l.b16 %v4500
    %v5915 = vunpack.c.h.b16 %v4500
    %v5916 = vunpack.c.l.b16 %v4501
    %v5917 = vunpack.c.h.b16 %v4501
    %v5918 = vunpack.c.l.b16 %v4502
    %v5919 = vunpack.c.h.b16 %v4502
    %v5920 = vunpack.c.l.b16 %v4503
    %v5921 = vunpack.c.h.b16 %v4503
    %v5922 = vunpack.c.l.b16 %v4504
    %v5923 = vunpack.c.h.b16 %v4504
    %v5924 = vunpack.c.l.b16 %v4505
    %v5925 = vunpack.c.h.b16 %v4505
    %v5926 = vunpack.c.l.b16 %v4506
    %v5927 = vunpack.c.h.b16 %v4506
    %v5928 = vunpack.c.l.b16 %v4507
    %v5929 = vunpack.c.h.b16 %v4507
    %v5930 = vunpack.c.l.b16 %v4508
    %v5931 = vunpack.c.h.b16 %v4508
    %v5932 = vunpack.c.l.b16 %v4509
    %v5933 = vunpack.c.h.b16 %v4509
    %v5934 = vunpack.c.l.b16 %v4510
    %v5935 = vunpack.c.h.b16 %v4510
    %v5936 = vunpack.c.l.b16 %v4511
    %v5937 = vunpack.c.h.b16 %v4511
    %v5938 = vunpack.c.l.b16 %v4512
    %v5939 = vunpack.c.h.b16 %v4512
    %v5940 = vunpack.c.l.b16 %v4513
    %v5941 = vunpack.c.h.b16 %v4513
    %v5942 = vunpack.c.l.b16 %v4514
    %v5943 = vunpack.c.h.b16 %v4514
    %v5944 = vunpack.c.l.b16 %v4515
    %v5945 = vunpack.c.h.b16 %v4515
    %v5946 = vunpack.c.l.b16 %v4516
    %v5947 = vunpack.c.h.b16 %v4516
    %v5948 = vunpack.c.l.b16 %v4517
    %v5949 = vunpack.c.h.b16 %v4517
    %v5950 = vunpack.c.l.b16 %v4518
    %v5951 = vunpack.c.h.b16 %v4518
    %v5952 = vunpack.c.l.b16 %v4519
    %v5953 = vunpack.c.h.b16 %v4519
    %v5954 = vunpack.c.l.b16 %v4520
    %v5955 = vunpack.c.h.b16 %v4520
    %v5956 = vunpack.c.l.b16 %v4521
    %v5957 = vunpack.c.h.b16 %v4521
    %v5958 = vunpack.c.l.b16 %v4522
    %v5959 = vunpack.c.h.b16 %v4522
    %v5960 = vunpack.c.l.b16 %v4523
    %v5961 = vunpack.c.h.b16 %v4523
    %v5962 = vunpack.c.l.b16 %v4524
    %v5963 = vunpack.c.h.b16 %v4524
    %v5964 = vunpack.c.l.b16 %v4525
    %v5965 = vunpack.c.h.b16 %v4525
    %v5966 = vunpack.c.l.b16 %v4526
    %v5967 = vunpack.c.h.b16 %v4526
    %v5968 = vunpack.c.l.b16 %v4527
    %v5969 = vunpack.c.h.b16 %v4527
    %v5970 = vunpack.c.l.b16 %v4528
    %v5971 = vunpack.c.h.b16 %v4528
    %v5972 = vunpack.c.l.b16 %v4529
    %v5973 = vunpack.c.h.b16 %v4529
    %v5974 = vunpack.c.l.b16 %v4530
    %v5975 = vunpack.c.h.b16 %v4530
    %v5976 = vunpack.c.l.b16 %v4531
    %v5977 = vunpack.c.h.b16 %v4531
    %v5978 = vunpack.c.l.b16 %v4532
    %v5979 = vunpack.c.h.b16 %v4532
    %v5980 = vunpack.c.l.b16 %v4533
    %v5981 = vunpack.c.h.b16 %v4533
    %v5982 = vunpack.c.l.b16 %v4534
    %v5983 = vunpack.c.h.b16 %v4534
    %v5984 = vunpack.c.l.b16 %v4535
    %v5985 = vunpack.c.h.b16 %v4535
    %v5986 = vunpack.c.l.b16 %v4536
    %v5987 = vunpack.c.h.b16 %v4536
    %v5988 = vunpack.c.l.b16 %v4537
    %v5989 = vunpack.c.h.b16 %v4537
    %v5990 = vunpack.c.l.b16 %v4538
    %v5991 = vunpack.c.h.b16 %v4538
    %v5992 = vunpack.c.l.b16 %v4539
    %v5993 = vunpack.c.h.b16 %v4539
    %v5994 = vunpack.c.l.b16 %v4540
    %v5995 = vunpack.c.h.b16 %v4540
    %v5996 = vunpack.c.l.b16 %v4541
    %v5997 = vunpack.c.h.b16 %v4541
    %v5998 = vunpack.c.l.b16 %v4542
    %v5999 = vunpack.c.h.b16 %v4542
    %v6000 = vunpack.c.l.b16 %v4543
    %v6001 = vunpack.c.h.b16 %v4543
    %v6002 = vunpack.c.l.b16 %v4544
    %v6003 = vunpack.c.h.b16 %v4544
    %v6004 = vunpack.c.l.b16 %v4545
    %v6005 = vunpack.c.h.b16 %v4545
    %v6006 = vunpack.c.l.b16 %v4546
    %v6007 = vunpack.c.h.b16 %v4546
    %v6008 = vunpack.c.l.b16 %v4547
    %v6009 = vunpack.c.h.b16 %v4547
    %v6010 = vunpack.c.l.b16 %v4548
    %v6011 = vunpack.c.h.b16 %v4548
    %v6012 = vunpack.c.l.b16 %v4549
    %v6013 = vunpack.c.h.b16 %v4549
    %v6014 = vunpack.c.l.b16 %v4550
    %v6015 = vunpack.c.h.b16 %v4550
    %v6016 = vunpack.c.l.b16 %v4551
    %v6017 = vunpack.c.h.b16 %v4551
    %v6018 = vunpack.c.l.b16 %v4552
    %v6019 = vunpack.c.h.b16 %v4552
    %v6020 = vunpack.c.l.b16 %v4553
    %v6021 = vunpack.c.h.b16 %v4553
    %v6022 = vunpack.c.l.b16 %v4554
    %v6023 = vunpack.c.h.b16 %v4554
    %v6024 = vunpack.c.l.b16 %v4555
    %v6025 = vunpack.c.h.b16 %v4555
    %v6026 = vunpack.c.l.b16 %v4556
    %v6027 = vunpack.c.h.b16 %v4556
    %v6028 = vunpack.c.l.b16 %v4557
    %v6029 = vunpack.c.h.b16 %v4557
    %v6030 = vunpack.c.l.b16 %v4558
    %v6031 = vunpack.c.h.b16 %v4558
    %v6032 = vunpack.c.l.b16 %v4559
    %v6033 = vunpack.c.h.b16 %v4559
    %v6034 = vunpack.c.l.b16 %v4560
    %v6035 = vunpack.c.h.b16 %v4560
    %v6036 = vunpack.c.l.b16 %v4561
    %v6037 = vunpack.c.h.b16 %v4561
    %v6038 = vunpack.c.l.b16 %v4562
    %v6039 = vunpack.c.h.b16 %v4562
    %v6040 = vunpack.c.l.b16 %v4563
    %v6041 = vunpack.c.h.b16 %v4563
    %v6042 = vunpack.c.l.b16 %v4564
    %v6043 = vunpack.c.h.b16 %v4564
    %v6044 = vunpack.c.l.b16 %v4565
    %v6045 = vunpack.c.h.b16 %v4565
    %v6046 = vunpack.c.l.b16 %v4566
    %v6047 = vunpack.c.h.b16 %v4566
    %v6048 = vunpack.c.l.b16 %v4567
    %v6049 = vunpack.c.h.b16 %v4567
    %v6050 = vunpack.c.l.b16 %v4568
    %v6051 = vunpack.c.h.b16 %v4568
    %v6052 = vunpack.c.l.b16 %v4569
    %v6053 = vunpack.c.h.b16 %v4569
    %v6054 = vunpack.c.l.b16 %v4570
    %v6055 = vunpack.c.h.b16 %v4570
    %v6056 = vunpack.c.l.b16 %v4571
    %v6057 = vunpack.c.h.b16 %v4571
    %v6058 = vunpack.c.l.b16 %v4572
    %v6059 = vunpack.c.h.b16 %v4572
    %v6060 = vunpack.c.l.b16 %v4573
    %v6061 = vunpack.c.h.b16 %v4573
    %v6062 = vunpack.c.l.b16 %v4574
    %v6063 = vunpack.c.h.b16 %v4574
    %v6064 = vunpack.c.l.b16 %v4575
    %v6065 = vunpack.c.h.b16 %v4575
    %v6066 = vunpack.c.l.b16 %v4576
    %v6067 = vunpack.c.h.b16 %v4576
    %v6068 = vunpack.c.l.b16 %v4577
    %v6069 = vunpack.c.h.b16 %v4577
    %v6070 = vunpack.c.l.b16 %v4578
    %v6071 = vunpack.c.h.b16 %v4578
    %v6072 = vunpack.c.l.b16 %v4579
    %v6073 = vunpack.c.h.b16 %v4579
    %v6074 = vunpack.c.l.b16 %v4580
    %v6075 = vunpack.c.h.b16 %v4580
    %v6076 = vunpack.c.l.b16 %v4581
    %v6077 = vunpack.c.h.b16 %v4581
    %v6078 = vunpack.c.l.b16 %v4582
    %v6079 = vunpack.c.h.b16 %v4582
    %v6080 = vunpack.c.l.b16 %v4583
    %v6081 = vunpack.c.h.b16 %v4583
    %v6082 = vunpack.c.l.b16 %v4584
    %v6083 = vunpack.c.h.b16 %v4584
    %v6084 = vunpack.c.l.b16 %v4585
    %v6085 = vunpack.c.h.b16 %v4585
    %v6086 = vunpack.c.l.b16 %v4586
    %v6087 = vunpack.c.h.b16 %v4586
    %v6088 = vunpack.c.l.b16 %v4587
    %v6089 = vunpack.c.h.b16 %v4587
    %v6090 = vunpack.c.l.b16 %v4588
    %v6091 = vunpack.c.h.b16 %v4588
    %v6092 = vunpack.c.l.b16 %v4589
    %v6093 = vunpack.c.h.b16 %v4589
    %v6094 = vunpack.c.l.b16 %v4590
    %v6095 = vunpack.c.h.b16 %v4590
    %v6096 = vunpack.c.l.b16 %v4591
    %v6097 = vunpack.c.h.b16 %v4591
    %v6098 = vunpack.c.l.b16 %v4592
    %v6099 = vunpack.c.h.b16 %v4592
    %v6100 = vunpack.c.l.b16 %v4593
    %v6101 = vunpack.c.h.b16 %v4593
    %v6102 = vunpack.c.l.b16 %v4594
    %v6103 = vunpack.c.h.b16 %v4594
    %v6104 = vunpack.c.l.b16 %v4595
    %v6105 = vunpack.c.h.b16 %v4595
    %v6106 = vunpack.c.l.b16 %v4596
    %v6107 = vunpack.c.h.b16 %v4596
    %v6108 = vunpack.c.l.b16 %v4597
    %v6109 = vunpack.c.h.b16 %v4597
    %v6110 = vunpack.c.l.b16 %v4598
    %v6111 = vunpack.c.h.b16 %v4598
    %v6112 = vunpack.c.l.b16 %v4599
    %v6113 = vunpack.c.h.b16 %v4599
    %v6114 = vunpack.c.l.b16 %v4600
    %v6115 = vunpack.c.h.b16 %v4600
    %v6116 = vunpack.c.l.b16 %v4601
    %v6117 = vunpack.c.h.b16 %v4601
    %v6118 = vunpack.c.l.b16 %v4602
    %v6119 = vunpack.c.h.b16 %v4602
    %v6120 = vunpack.c.l.b16 %v4603
    %v6121 = vunpack.c.h.b16 %v4603
    %v6122 = vunpack.c.l.b16 %v4604
    %v6123 = vunpack.c.h.b16 %v4604
    %v6124 = vunpack.c.l.b16 %v4605
    %v6125 = vunpack.c.h.b16 %v4605
    %v6126 = vunpack.c.l.b16 %v4606
    %v6127 = vunpack.c.h.b16 %v4606
    %v6128 = vunpack.c.l.b16 %v4607
    %v6129 = vunpack.c.h.b16 %v4607
    %v6130 = vunpack.c.l.b16 %v4608
    %v6131 = vunpack.c.h.b16 %v4608
    %v6132 = vunpack.c.l.b16 %v4609
    %v6133 = vunpack.c.h.b16 %v4609
    %v6134 = vunpack.c.l.b16 %v4610
    %v6135 = vunpack.c.h.b16 %v4610
    %v6136 = vunpack.c.l.b16 %v4611
    %v6137 = vunpack.c.h.b16 %v4611
    %v6138 = vunpack.c.l.b16 %v4612
    %v6139 = vunpack.c.h.b16 %v4612
    %v6140 = vunpack.c.l.b16 %v4613
    %v6141 = vunpack.c.h.b16 %v4613
    %v6142 = vunpack.c.l.b16 %v4614
    %v6143 = vunpack.c.h.b16 %v4614
    %v6144 = vunpack.c.l.b16 %v4615
    %v6145 = vunpack.c.h.b16 %v4615
    %v6146 = vunpack.c.l.b16 %v4616
    %v6147 = vunpack.c.h.b16 %v4616
    %v6148 = vunpack.c.l.b16 %v4617
    %v6149 = vunpack.c.h.b16 %v4617
    %v6150 = vunpack.c.l.b16 %v4618
    %v6151 = vunpack.c.h.b16 %v4618
    %v6152 = vunpack.c.l.b16 %v4619
    %v6153 = vunpack.c.h.b16 %v4619
    %v6154 = vunpack.c.l.b16 %v4620
    %v6155 = vunpack.c.h.b16 %v4620
    %v6156 = vunpack.c.l.b16 %v4621
    %v6157 = vunpack.c.h.b16 %v4621
    %v6158 = vunpack.c.l.b16 %v4622
    %v6159 = vunpack.c.h.b16 %v4622
    %v6160 = vunpack.c.l.b16 %v4623
    %v6161 = vunpack.c.h.b16 %v4623
    %v6162 = vunpack.c.l.b16 %v4624
    %v6163 = vunpack.c.h.b16 %v4624
    %v6164 = vunpack.c.l.b16 %v4625
    %v6165 = vunpack.c.h.b16 %v4625
    %v6166 = vunpack.c.l.b16 %v4626
    %v6167 = vunpack.c.h.b16 %v4626
    %v6168 = vunpack.c.l.b16 %v4627
    %v6169 = vunpack.c.h.b16 %v4627
    %v6170 = vunpack.c.l.b16 %v4628
    %v6171 = vunpack.c.h.b16 %v4628
    %v6172 = vunpack.c.l.b16 %v4629
    %v6173 = vunpack.c.h.b16 %v4629
    %v6174 = vunpack.c.l.b16 %v4630
    %v6175 = vunpack.c.h.b16 %v4630
    %v6176 = vunpack.c.l.b16 %v4631
    %v6177 = vunpack.c.h.b16 %v4631
    %v6178 = vunpack.c.l.b16 %v4632
    %v6179 = vunpack.c.h.b16 %v4632
    %v6180 = vunpack.c.l.b16 %v4633
    %v6181 = vunpack.c.h.b16 %v4633
    %v6182 = vunpack.c.l.b16 %v4634
    %v6183 = vunpack.c.h.b16 %v4634
    %v6184 = vunpack.c.l.b16 %v4635
    %v6185 = vunpack.c.h.b16 %v4635
    %v6186 = vunpack.c.l.b16 %v4636
    %v6187 = vunpack.c.h.b16 %v4636
    %v6188 = vunpack.c.l.b16 %v4637
    %v6189 = vunpack.c.h.b16 %v4637
    %v6190 = vunpack.c.l.b16 %v4638
    %v6191 = vunpack.c.h.b16 %v4638
    %v6192 = vunpack.c.l.b16 %v4639
    %v6193 = vunpack.c.h.b16 %v4639
    %v6194 = vunpack.c.l.b16 %v4640
    %v6195 = vunpack.c.h.b16 %v4640
    %v6196 = vunpack.c.l.b16 %v4641
    %v6197 = vunpack.c.h.b16 %v4641
    %v6198 = vunpack.c.l.b16 %v4642
    %v6199 = vunpack.c.h.b16 %v4642
    %v6200 = vunpack.c.l.b16 %v4643
    %v6201 = vunpack.c.h.b16 %v4643
    %v6202 = vpack.c.b16 %v5182, %v5178
    %v6203 = vpack.c.b16 %v5183, %v5179
    %v6204 = vpack.c.b16 %v5184, %v5180
    %v6205 = vpack.c.b16 %v5185, %v5181
    %v6206 = vpack.c.b16 %v5190, %v5186
    %v6207 = vpack.c.b16 %v5191, %v5187
    %v6208 = vpack.c.b16 %v5192, %v5188
    %v6209 = vpack.c.b16 %v5193, %v5189
    %v6210 = vpack.c.b16 %v5198, %v5194
    %v6211 = vpack.c.b16 %v5199, %v5195
    %v6212 = vpack.c.b16 %v5200, %v5196
    %v6213 = vpack.c.b16 %v5201, %v5197
    %v6214 = vpack.c.b16 %v5206, %v5202
    %v6215 = vpack.c.b16 %v5207, %v5203
    %v6216 = vpack.c.b16 %v5208, %v5204
    %v6217 = vpack.c.b16 %v5209, %v5205
    %v6218 = vpack.c.b16 %v5214, %v5210
    %v6219 = vpack.c.b16 %v5215, %v5211
    %v6220 = vpack.c.b16 %v5216, %v5212
    %v6221 = vpack.c.b16 %v5217, %v5213
    %v6222 = vpack.c.b16 %v5222, %v5218
    %v6223 = vpack.c.b16 %v5223, %v5219
    %v6224 = vpack.c.b16 %v5224, %v5220
    %v6225 = vpack.c.b16 %v5225, %v5221
    %v6226 = vpack.c.b16 %v5230, %v5226
    %v6227 = vpack.c.b16 %v5231, %v5227
    %v6228 = vpack.c.b16 %v5232, %v5228
    %v6229 = vpack.c.b16 %v5233, %v5229
    %v6230 = vpack.c.b16 %v5238, %v5234
    %v6231 = vpack.c.b16 %v5239, %v5235
    %v6232 = vpack.c.b16 %v5240, %v5236
    %v6233 = vpack.c.b16 %v5241, %v5237
    %v6234 = vpack.c.b16 %v5246, %v5242
    %v6235 = vpack.c.b16 %v5247, %v5243
    %v6236 = vpack.c.b16 %v5248, %v5244
    %v6237 = vpack.c.b16 %v5249, %v5245
    %v6238 = vpack.c.b16 %v5254, %v5250
    %v6239 = vpack.c.b16 %v5255, %v5251
    %v6240 = vpack.c.b16 %v5256, %v5252
    %v6241 = vpack.c.b16 %v5257, %v5253
    %v6242 = vpack.c.b16 %v5262, %v5258
    %v6243 = vpack.c.b16 %v5263, %v5259
    %v6244 = vpack.c.b16 %v5264, %v5260
    %v6245 = vpack.c.b16 %v5265, %v5261
    %v6246 = vpack.c.b16 %v5270, %v5266
    %v6247 = vpack.c.b16 %v5271, %v5267
    %v6248 = vpack.c.b16 %v5272, %v5268
    %v6249 = vpack.c.b16 %v5273, %v5269
    %v6250 = vpack.c.b16 %v5278, %v5274
    %v6251 = vpack.c.b16 %v5279, %v5275
    %v6252 = vpack.c.b16 %v5280, %v5276
    %v6253 = vpack.c.b16 %v5281, %v5277
    %v6254 = vpack.c.b16 %v5286, %v5282
    %v6255 = vpack.c.b16 %v5287, %v5283
    %v6256 = vpack.c.b16 %v5288, %v5284
    %v6257 = vpack.c.b16 %v5289, %v5285
    %v6258 = vpack.c.b16 %v5294, %v5290
    %v6259 = vpack.c.b16 %v5295, %v5291
    %v6260 = vpack.c.b16 %v5296, %v5292
    %v6261 = vpack.c.b16 %v5297, %v5293
    %v6262 = vpack.c.b16 %v5302, %v5298
    %v6263 = vpack.c.b16 %v5303, %v5299
    %v6264 = vpack.c.b16 %v5304, %v5300
    %v6265 = vpack.c.b16 %v5305, %v5301
    %v6266 = vpack.c.b16 %v5310, %v5306
    %v6267 = vpack.c.b16 %v5311, %v5307
    %v6268 = vpack.c.b16 %v5312, %v5308
    %v6269 = vpack.c.b16 %v5313, %v5309
    %v6270 = vpack.c.b16 %v5318, %v5314
    %v6271 = vpack.c.b16 %v5319, %v5315
    %v6272 = vpack.c.b16 %v5320, %v5316
    %v6273 = vpack.c.b16 %v5321, %v5317
    %v6274 = vpack.c.b16 %v5326, %v5322
    %v6275 = vpack.c.b16 %v5327, %v5323
    %v6276 = vpack.c.b16 %v5328, %v5324
    %v6277 = vpack.c.b16 %v5329, %v5325
    %v6278 = vpack.c.b16 %v5334, %v5330
    %v6279 = vpack.c.b16 %v5335, %v5331
    %v6280 = vpack.c.b16 %v5336, %v5332
    %v6281 = vpack.c.b16 %v5337, %v5333
    %v6282 = vpack.c.b16 %v5342, %v5338
    %v6283 = vpack.c.b16 %v5343, %v5339
    %v6284 = vpack.c.b16 %v5344, %v5340
    %v6285 = vpack.c.b16 %v5345, %v5341
    %v6286 = vpack.c.b16 %v5350, %v5346
    %v6287 = vpack.c.b16 %v5351, %v5347
    %v6288 = vpack.c.b16 %v5352, %v5348
    %v6289 = vpack.c.b16 %v5353, %v5349
    %v6290 = vpack.c.b16 %v5358, %v5354
    %v6291 = vpack.c.b16 %v5359, %v5355
    %v6292 = vpack.c.b16 %v5360, %v5356
    %v6293 = vpack.c.b16 %v5361, %v5357
    %v6294 = vpack.c.b16 %v5366, %v5362
    %v6295 = vpack.c.b16 %v5367, %v5363
    %v6296 = vpack.c.b16 %v5368, %v5364
    %v6297 = vpack.c.b16 %v5369, %v5365
    %v6298 = vpack.c.b16 %v5374, %v5370
    %v6299 = vpack.c.b16 %v5375, %v5371
    %v6300 = vpack.c.b16 %v5376, %v5372
    %v6301 = vpack.c.b16 %v5377, %v5373
    %v6302 = vpack.c.b16 %v5382, %v5378
    %v6303 = vpack.c.b16 %v5383, %v5379
    %v6304 = vpack.c.b16 %v5384, %v5380
    %v6305 = vpack.c.b16 %v5385, %v5381
    %v6306 = vpack.c.b16 %v5390, %v5386
    %v6307 = vpack.c.b16 %v5391, %v5387
    %v6308 = vpack.c.b16 %v5392, %v5388
    %v6309 = vpack.c.b16 %v5393, %v5389
    %v6310 = vpack.c.b16 %v5398, %v5394
    %v6311 = vpack.c.b16 %v5399, %v5395
    %v6312 = vpack.c.b16 %v5400, %v5396
    %v6313 = vpack.c.b16 %v5401, %v5397
    %v6314 = vpack.c.b16 %v5406, %v5402
    %v6315 = vpack.c.b16 %v5407, %v5403
    %v6316 = vpack.c.b16 %v5408, %v5404
    %v6317 = vpack.c.b16 %v5409, %v5405
    %v6318 = vpack.c.b16 %v5414, %v5410
    %v6319 = vpack.c.b16 %v5415, %v5411
    %v6320 = vpack.c.b16 %v5416, %v5412
    %v6321 = vpack.c.b16 %v5417, %v5413
    %v6322 = vpack.c.b16 %v5422, %v5418
    %v6323 = vpack.c.b16 %v5423, %v5419
    %v6324 = vpack.c.b16 %v5424, %v5420
    %v6325 = vpack.c.b16 %v5425, %v5421
    %v6326 = vpack.c.b16 %v5430, %v5426
    %v6327 = vpack.c.b16 %v5431, %v5427
    %v6328 = vpack.c.b16 %v5432, %v5428
    %v6329 = vpack.c.b16 %v5433, %v5429
    %v6330 = vpack.c.b16 %v5438, %v5434
    %v6331 = vpack.c.b16 %v5439, %v5435
    %v6332 = vpack.c.b16 %v5440, %v5436
    %v6333 = vpack.c.b16 %v5441, %v5437
    %v6334 = vpack.c.b16 %v5446, %v5442
    %v6335 = vpack.c.b16 %v5447, %v5443
    %v6336 = vpack.c.b16 %v5448, %v5444
    %v6337 = vpack.c.b16 %v5449, %v5445
    %v6338 = vpack.c.b16 %v5454, %v5450
    %v6339 = vpack.c.b16 %v5455, %v5451
    %v6340 = vpack.c.b16 %v5456, %v5452
    %v6341 = vpack.c.b16 %v5457, %v5453
    %v6342 = vpack.c.b16 %v5462, %v5458
    %v6343 = vpack.c.b16 %v5463, %v5459
    %v6344 = vpack.c.b16 %v5464, %v5460
    %v6345 = vpack.c.b16 %v5465, %v5461
    %v6346 = vpack.c.b16 %v5470, %v5466
    %v6347 = vpack.c.b16 %v5471, %v5467
    %v6348 = vpack.c.b16 %v5472, %v5468
    %v6349 = vpack.c.b16 %v5473, %v5469
    %v6350 = vpack.c.b16 %v5478, %v5474
    %v6351 = vpack.c.b16 %v5479, %v5475
    %v6352 = vpack.c.b16 %v5480, %v5476
    %v6353 = vpack.c.b16 %v5481, %v5477
    %v6354 = vpack.c.b16 %v5486, %v5482
    %v6355 = vpack.c.b16 %v5487, %v5483
    %v6356 = vpack.c.b16 %v5488, %v5484
    %v6357 = vpack.c.b16 %v5489, %v5485
    %v6358 = vpack.c.b16 %v5494, %v5490
    %v6359 = vpack.c.b16 %v5495, %v5491
    %v6360 = vpack.c.b16 %v5496, %v5492
    %v6361 = vpack.c.b16 %v5497, %v5493
    %v6362 = vpack.c.b16 %v5502, %v5498
    %v6363 = vpack.c.b16 %v5503, %v5499
    %v6364 = vpack.c.b16 %v5504, %v5500
    %v6365 = vpack.c.b16 %v5505, %v5501
    %v6366 = vpack.c.b16 %v5510, %v5506
    %v6367 = vpack.c.b16 %v5511, %v5507
    %v6368 = vpack.c.b16 %v5512, %v5508
    %v6369 = vpack.c.b16 %v5513, %v5509
    %v6370 = vpack.c.b16 %v5518, %v5514
    %v6371 = vpack.c.b16 %v5519, %v5515
    %v6372 = vpack.c.b16 %v5520, %v5516
    %v6373 = vpack.c.b16 %v5521, %v5517
    %v6374 = vpack.c.b16 %v5526, %v5522
    %v6375 = vpack.c.b16 %v5527, %v5523
    %v6376 = vpack.c.b16 %v5528, %v5524
    %v6377 = vpack.c.b16 %v5529, %v5525
    %v6378 = vpack.c.b16 %v5534, %v5530
    %v6379 = vpack.c.b16 %v5535, %v5531
    %v6380 = vpack.c.b16 %v5536, %v5532
    %v6381 = vpack.c.b16 %v5537, %v5533
    %v6382 = vpack.c.b16 %v5542, %v5538
    %v6383 = vpack.c.b16 %v5543, %v5539
    %v6384 = vpack.c.b16 %v5544, %v5540
    %v6385 = vpack.c.b16 %v5545, %v5541
    %v6386 = vpack.c.b16 %v5550, %v5546
    %v6387 = vpack.c.b16 %v5551, %v5547
    %v6388 = vpack.c.b16 %v5552, %v5548
    %v6389 = vpack.c.b16 %v5553, %v5549
    %v6390 = vpack.c.b16 %v5558, %v5554
    %v6391 = vpack.c.b16 %v5559, %v5555
    %v6392 = vpack.c.b16 %v5560, %v5556
    %v6393 = vpack.c.b16 %v5561, %v5557
    %v6394 = vpack.c.b16 %v5566, %v5562
    %v6395 = vpack.c.b16 %v5567, %v5563
    %v6396 = vpack.c.b16 %v5568, %v5564
    %v6397 = vpack.c.b16 %v5569, %v5565
    %v6398 = vpack.c.b16 %v5574, %v5570
    %v6399 = vpack.c.b16 %v5575, %v5571
    %v6400 = vpack.c.b16 %v5576, %v5572
    %v6401 = vpack.c.b16 %v5577, %v5573
    %v6402 = vpack.c.b16 %v5582, %v5578
    %v6403 = vpack.c.b16 %v5583, %v5579
    %v6404 = vpack.c.b16 %v5584, %v5580
    %v6405 = vpack.c.b16 %v5585, %v5581
    %v6406 = vpack.c.b16 %v5590, %v5586
    %v6407 = vpack.c.b16 %v5591, %v5587
    %v6408 = vpack.c.b16 %v5592, %v5588
    %v6409 = vpack.c.b16 %v5593, %v5589
    %v6410 = vpack.c.b16 %v5598, %v5594
    %v6411 = vpack.c.b16 %v5599, %v5595
    %v6412 = vpack.c.b16 %v5600, %v5596
    %v6413 = vpack.c.b16 %v5601, %v5597
    %v6414 = vpack.c.b16 %v5606, %v5602
    %v6415 = vpack.c.b16 %v5607, %v5603
    %v6416 = vpack.c.b16 %v5608, %v5604
    %v6417 = vpack.c.b16 %v5609, %v5605
    %v6418 = vpack.c.b16 %v5614, %v5610
    %v6419 = vpack.c.b16 %v5615, %v5611
    %v6420 = vpack.c.b16 %v5616, %v5612
    %v6421 = vpack.c.b16 %v5617, %v5613
    %v6422 = vpack.c.b16 %v5622, %v5618
    %v6423 = vpack.c.b16 %v5623, %v5619
    %v6424 = vpack.c.b16 %v5624, %v5620
    %v6425 = vpack.c.b16 %v5625, %v5621
    %v6426 = vpack.c.b16 %v5630, %v5626
    %v6427 = vpack.c.b16 %v5631, %v5627
    %v6428 = vpack.c.b16 %v5632, %v5628
    %v6429 = vpack.c.b16 %v5633, %v5629
    %v6430 = vpack.c.b16 %v5638, %v5634
    %v6431 = vpack.c.b16 %v5639, %v5635
    %v6432 = vpack.c.b16 %v5640, %v5636
    %v6433 = vpack.c.b16 %v5641, %v5637
    %v6434 = vpack.c.b16 %v5646, %v5642
    %v6435 = vpack.c.b16 %v5647, %v5643
    %v6436 = vpack.c.b16 %v5648, %v5644
    %v6437 = vpack.c.b16 %v5649, %v5645
    %v6438 = vpack.c.b16 %v5654, %v5650
    %v6439 = vpack.c.b16 %v5655, %v5651
    %v6440 = vpack.c.b16 %v5656, %v5652
    %v6441 = vpack.c.b16 %v5657, %v5653
    %v6442 = vpack.c.b16 %v5662, %v5658
    %v6443 = vpack.c.b16 %v5663, %v5659
    %v6444 = vpack.c.b16 %v5664, %v5660
    %v6445 = vpack.c.b16 %v5665, %v5661
    %v6446 = vpack.c.b16 %v5670, %v5666
    %v6447 = vpack.c.b16 %v5671, %v5667
    %v6448 = vpack.c.b16 %v5672, %v5668
    %v6449 = vpack.c.b16 %v5673, %v5669
    %v6450 = vpack.c.b16 %v5678, %v5674
    %v6451 = vpack.c.b16 %v5679, %v5675
    %v6452 = vpack.c.b16 %v5680, %v5676
    %v6453 = vpack.c.b16 %v5681, %v5677
    %v6454 = vpack.c.b16 %v5686, %v5682
    %v6455 = vpack.c.b16 %v5687, %v5683
    %v6456 = vpack.c.b16 %v5688, %v5684
    %v6457 = vpack.c.b16 %v5689, %v5685
    %v6458 = vpack.c.b16 %v5694, %v5690
    %v6459 = vpack.c.b16 %v5695, %v5691
    %v6460 = vpack.c.b16 %v5696, %v5692
    %v6461 = vpack.c.b16 %v5697, %v5693
    %v6462 = vpack.c.b16 %v5702, %v5698
    %v6463 = vpack.c.b16 %v5703, %v5699
    %v6464 = vpack.c.b16 %v5704, %v5700
    %v6465 = vpack.c.b16 %v5705, %v5701
    %v6466 = vpack.c.b16 %v5710, %v5706
    %v6467 = vpack.c.b16 %v5711, %v5707
    %v6468 = vpack.c.b16 %v5712, %v5708
    %v6469 = vpack.c.b16 %v5713, %v5709
    %v6470 = vpack.c.b16 %v5718, %v5714
    %v6471 = vpack.c.b16 %v5719, %v5715
    %v6472 = vpack.c.b16 %v5720, %v5716
    %v6473 = vpack.c.b16 %v5721, %v5717
    %v6474 = vpack.c.b16 %v5726, %v5722
    %v6475 = vpack.c.b16 %v5727, %v5723
    %v6476 = vpack.c.b16 %v5728, %v5724
    %v6477 = vpack.c.b16 %v5729, %v5725
    %v6478 = vpack.c.b16 %v5734, %v5730
    %v6479 = vpack.c.b16 %v5735, %v5731
    %v6480 = vpack.c.b16 %v5736, %v5732
    %v6481 = vpack.c.b16 %v5737, %v5733
    %v6482 = vpack.c.b16 %v5742, %v5738
    %v6483 = vpack.c.b16 %v5743, %v5739
    %v6484 = vpack.c.b16 %v5744, %v5740
    %v6485 = vpack.c.b16 %v5745, %v5741
    %v6486 = vpack.c.b16 %v5750, %v5746
    %v6487 = vpack.c.b16 %v5751, %v5747
    %v6488 = vpack.c.b16 %v5752, %v5748
    %v6489 = vpack.c.b16 %v5753, %v5749
    %v6490 = vpack.c.b16 %v5758, %v5754
    %v6491 = vpack.c.b16 %v5759, %v5755
    %v6492 = vpack.c.b16 %v5760, %v5756
    %v6493 = vpack.c.b16 %v5761, %v5757
    %v6494 = vpack.c.b16 %v5766, %v5762
    %v6495 = vpack.c.b16 %v5767, %v5763
    %v6496 = vpack.c.b16 %v5768, %v5764
    %v6497 = vpack.c.b16 %v5769, %v5765
    %v6498 = vpack.c.b16 %v5774, %v5770
    %v6499 = vpack.c.b16 %v5775, %v5771
    %v6500 = vpack.c.b16 %v5776, %v5772
    %v6501 = vpack.c.b16 %v5777, %v5773
    %v6502 = vpack.c.b16 %v5782, %v5778
    %v6503 = vpack.c.b16 %v5783, %v5779
    %v6504 = vpack.c.b16 %v5784, %v5780
    %v6505 = vpack.c.b16 %v5785, %v5781
    %v6506 = vpack.c.b16 %v5790, %v5786
    %v6507 = vpack.c.b16 %v5791, %v5787
    %v6508 = vpack.c.b16 %v5792, %v5788
    %v6509 = vpack.c.b16 %v5793, %v5789
    %v6510 = vpack.c.b16 %v5798, %v5794
    %v6511 = vpack.c.b16 %v5799, %v5795
    %v6512 = vpack.c.b16 %v5800, %v5796
    %v6513 = vpack.c.b16 %v5801, %v5797
    %v6514 = vpack.c.b16 %v5806, %v5802
    %v6515 = vpack.c.b16 %v5807, %v5803
    %v6516 = vpack.c.b16 %v5808, %v5804
    %v6517 = vpack.c.b16 %v5809, %v5805
    %v6518 = vpack.c.b16 %v5814, %v5810
    %v6519 = vpack.c.b16 %v5815, %v5811
    %v6520 = vpack.c.b16 %v5816, %v5812
    %v6521 = vpack.c.b16 %v5817, %v5813
    %v6522 = vpack.c.b16 %v5822, %v5818
    %v6523 = vpack.c.b16 %v5823, %v5819
    %v6524 = vpack.c.b16 %v5824, %v5820
    %v6525 = vpack.c.b16 %v5825, %v5821
    %v6526 = vpack.c.b16 %v5830, %v5826
    %v6527 = vpack.c.b16 %v5831, %v5827
    %v6528 = vpack.c.b16 %v5832, %v5828
    %v6529 = vpack.c.b16 %v5833, %v5829
    %v6530 = vpack.c.b16 %v5838, %v5834
    %v6531 = vpack.c.b16 %v5839, %v5835
    %v6532 = vpack.c.b16 %v5840, %v5836
    %v6533 = vpack.c.b16 %v5841, %v5837
    %v6534 = vpack.c.b16 %v5846, %v5842
    %v6535 = vpack.c.b16 %v5847, %v5843
    %v6536 = vpack.c.b16 %v5848, %v5844
    %v6537 = vpack.c.b16 %v5849, %v5845
    %v6538 = vpack.c.b16 %v5854, %v5850
    %v6539 = vpack.c.b16 %v5855, %v5851
    %v6540 = vpack.c.b16 %v5856, %v5852
    %v6541 = vpack.c.b16 %v5857, %v5853
    %v6542 = vpack.c.b16 %v5862, %v5858
    %v6543 = vpack.c.b16 %v5863, %v5859
    %v6544 = vpack.c.b16 %v5864, %v5860
    %v6545 = vpack.c.b16 %v5865, %v5861
    %v6546 = vpack.c.b16 %v5870, %v5866
    %v6547 = vpack.c.b16 %v5871, %v5867
    %v6548 = vpack.c.b16 %v5872, %v5868
    %v6549 = vpack.c.b16 %v5873, %v5869
    %v6550 = vpack.c.b16 %v5878, %v5874
    %v6551 = vpack.c.b16 %v5879, %v5875
    %v6552 = vpack.c.b16 %v5880, %v5876
    %v6553 = vpack.c.b16 %v5881, %v5877
    %v6554 = vpack.c.b16 %v5886, %v5882
    %v6555 = vpack.c.b16 %v5887, %v5883
    %v6556 = vpack.c.b16 %v5888, %v5884
    %v6557 = vpack.c.b16 %v5889, %v5885
    %v6558 = vpack.c.b16 %v5894, %v5890
    %v6559 = vpack.c.b16 %v5895, %v5891
    %v6560 = vpack.c.b16 %v5896, %v5892
    %v6561 = vpack.c.b16 %v5897, %v5893
    %v6562 = vpack.c.b16 %v5902, %v5898
    %v6563 = vpack.c.b16 %v5903, %v5899
    %v6564 = vpack.c.b16 %v5904, %v5900
    %v6565 = vpack.c.b16 %v5905, %v5901
    %v6566 = vpack.c.b16 %v5910, %v5906
    %v6567 = vpack.c.b16 %v5911, %v5907
    %v6568 = vpack.c.b16 %v5912, %v5908
    %v6569 = vpack.c.b16 %v5913, %v5909
    %v6570 = vpack.c.b16 %v5918, %v5914
    %v6571 = vpack.c.b16 %v5919, %v5915
    %v6572 = vpack.c.b16 %v5920, %v5916
    %v6573 = vpack.c.b16 %v5921, %v5917
    %v6574 = vpack.c.b16 %v5926, %v5922
    %v6575 = vpack.c.b16 %v5927, %v5923
    %v6576 = vpack.c.b16 %v5928, %v5924
    %v6577 = vpack.c.b16 %v5929, %v5925
    %v6578 = vpack.c.b16 %v5934, %v5930
    %v6579 = vpack.c.b16 %v5935, %v5931
    %v6580 = vpack.c.b16 %v5936, %v5932
    %v6581 = vpack.c.b16 %v5937, %v5933
    %v6582 = vpack.c.b16 %v5942, %v5938
    %v6583 = vpack.c.b16 %v5943, %v5939
    %v6584 = vpack.c.b16 %v5944, %v5940
    %v6585 = vpack.c.b16 %v5945, %v5941
    %v6586 = vpack.c.b16 %v5950, %v5946
    %v6587 = vpack.c.b16 %v5951, %v5947
    %v6588 = vpack.c.b16 %v5952, %v5948
    %v6589 = vpack.c.b16 %v5953, %v5949
    %v6590 = vpack.c.b16 %v5958, %v5954
    %v6591 = vpack.c.b16 %v5959, %v5955
    %v6592 = vpack.c.b16 %v5960, %v5956
    %v6593 = vpack.c.b16 %v5961, %v5957
    %v6594 = vpack.c.b16 %v5966, %v5962
    %v6595 = vpack.c.b16 %v5967, %v5963
    %v6596 = vpack.c.b16 %v5968, %v5964
    %v6597 = vpack.c.b16 %v5969, %v5965
    %v6598 = vpack.c.b16 %v5974, %v5970
    %v6599 = vpack.c.b16 %v5975, %v5971
    %v6600 = vpack.c.b16 %v5976, %v5972
    %v6601 = vpack.c.b16 %v5977, %v5973
    %v6602 = vpack.c.b16 %v5982, %v5978
    %v6603 = vpack.c.b16 %v5983, %v5979
    %v6604 = vpack.c.b16 %v5984, %v5980
    %v6605 = vpack.c.b16 %v5985, %v5981
    %v6606 = vpack.c.b16 %v5990, %v5986
    %v6607 = vpack.c.b16 %v5991, %v5987
    %v6608 = vpack.c.b16 %v5992, %v5988
    %v6609 = vpack.c.b16 %v5993, %v5989
    %v6610 = vpack.c.b16 %v5998, %v5994
    %v6611 = vpack.c.b16 %v5999, %v5995
    %v6612 = vpack.c.b16 %v6000, %v5996
    %v6613 = vpack.c.b16 %v6001, %v5997
    %v6614 = vpack.c.b16 %v6006, %v6002
    %v6615 = vpack.c.b16 %v6007, %v6003
    %v6616 = vpack.c.b16 %v6008, %v6004
    %v6617 = vpack.c.b16 %v6009, %v6005
    %v6618 = vpack.c.b16 %v6014, %v6010
    %v6619 = vpack.c.b16 %v6015, %v6011
    %v6620 = vpack.c.b16 %v6016, %v6012
    %v6621 = vpack.c.b16 %v6017, %v6013
    %v6622 = vpack.c.b16 %v6022, %v6018
    %v6623 = vpack.c.b16 %v6023, %v6019
    %v6624 = vpack.c.b16 %v6024, %v6020
    %v6625 = vpack.c.b16 %v6025, %v6021
    %v6626 = vpack.c.b16 %v6030, %v6026
    %v6627 = vpack.c.b16 %v6031, %v6027
    %v6628 = vpack.c.b16 %v6032, %v6028
    %v6629 = vpack.c.b16 %v6033, %v6029
    %v6630 = vpack.c.b16 %v6038, %v6034
    %v6631 = vpack.c.b16 %v6039, %v6035
    %v6632 = vpack.c.b16 %v6040, %v6036
    %v6633 = vpack.c.b16 %v6041, %v6037
    %v6634 = vpack.c.b16 %v6046, %v6042
    %v6635 = vpack.c.b16 %v6047, %v6043
    %v6636 = vpack.c.b16 %v6048, %v6044
    %v6637 = vpack.c.b16 %v6049, %v6045
    %v6638 = vpack.c.b16 %v6054, %v6050
    %v6639 = vpack.c.b16 %v6055, %v6051
    %v6640 = vpack.c.b16 %v6056, %v6052
    %v6641 = vpack.c.b16 %v6057, %v6053
    %v6642 = vpack.c.b16 %v6062, %v6058
    %v6643 = vpack.c.b16 %v6063, %v6059
    %v6644 = vpack.c.b16 %v6064, %v6060
    %v6645 = vpack.c.b16 %v6065, %v6061
    %v6646 = vpack.c.b16 %v6070, %v6066
    %v6647 = vpack.c.b16 %v6071, %v6067
    %v6648 = vpack.c.b16 %v6072, %v6068
    %v6649 = vpack.c.b16 %v6073, %v6069
    %v6650 = vpack.c.b16 %v6078, %v6074
    %v6651 = vpack.c.b16 %v6079, %v6075
    %v6652 = vpack.c.b16 %v6080, %v6076
    %v6653 = vpack.c.b16 %v6081, %v6077
    %v6654 = vpack.c.b16 %v6086, %v6082
    %v6655 = vpack.c.b16 %v6087, %v6083
    %v6656 = vpack.c.b16 %v6088, %v6084
    %v6657 = vpack.c.b16 %v6089, %v6085
    %v6658 = vpack.c.b16 %v6094, %v6090
    %v6659 = vpack.c.b16 %v6095, %v6091
    %v6660 = vpack.c.b16 %v6096, %v6092
    %v6661 = vpack.c.b16 %v6097, %v6093
    %v6662 = vpack.c.b16 %v6102, %v6098
    %v6663 = vpack.c.b16 %v6103, %v6099
    %v6664 = vpack.c.b16 %v6104, %v6100
    %v6665 = vpack.c.b16 %v6105, %v6101
    %v6666 = vpack.c.b16 %v6110, %v6106
    %v6667 = vpack.c.b16 %v6111, %v6107
    %v6668 = vpack.c.b16 %v6112, %v6108
    %v6669 = vpack.c.b16 %v6113, %v6109
    %v6670 = vpack.c.b16 %v6118, %v6114
    %v6671 = vpack.c.b16 %v6119, %v6115
    %v6672 = vpack.c.b16 %v6120, %v6116
    %v6673 = vpack.c.b16 %v6121, %v6117
    %v6674 = vpack.c.b16 %v6126, %v6122
    %v6675 = vpack.c.b16 %v6127, %v6123
    %v6676 = vpack.c.b16 %v6128, %v6124
    %v6677 = vpack.c.b16 %v6129, %v6125
    %v6678 = vpack.c.b16 %v6134, %v6130
    %v6679 = vpack.c.b16 %v6135, %v6131
    %v6680 = vpack.c.b16 %v6136, %v6132
    %v6681 = vpack.c.b16 %v6137, %v6133
    %v6682 = vpack.c.b16 %v6142, %v6138
    %v6683 = vpack.c.b16 %v6143, %v6139
    %v6684 = vpack.c.b16 %v6144, %v6140
    %v6685 = vpack.c.b16 %v6145, %v6141
    %v6686 = vpack.c.b16 %v6150, %v6146
    %v6687 = vpack.c.b16 %v6151, %v6147
    %v6688 = vpack.c.b16 %v6152, %v6148
    %v6689 = vpack.c.b16 %v6153, %v6149
    %v6690 = vpack.c.b16 %v6158, %v6154
    %v6691 = vpack.c.b16 %v6159, %v6155
    %v6692 = vpack.c.b16 %v6160, %v6156
    %v6693 = vpack.c.b16 %v6161, %v6157
    %v6694 = vpack.c.b16 %v6166, %v6162
    %v6695 = vpack.c.b16 %v6167, %v6163
    %v6696 = vpack.c.b16 %v6168, %v6164
    %v6697 = vpack.c.b16 %v6169, %v6165
    %v6698 = vpack.c.b16 %v6174, %v6170
    %v6699 = vpack.c.b16 %v6175, %v6171
    %v6700 = vpack.c.b16 %v6176, %v6172
    %v6701 = vpack.c.b16 %v6177, %v6173
    %v6702 = vpack.c.b16 %v6182, %v6178
    %v6703 = vpack.c.b16 %v6183, %v6179
    %v6704 = vpack.c.b16 %v6184, %v6180
    %v6705 = vpack.c.b16 %v6185, %v6181
    %v6706 = vpack.c.b16 %v6190, %v6186
    %v6707 = vpack.c.b16 %v6191, %v6187
    %v6708 = vpack.c.b16 %v6192, %v6188
    %v6709 = vpack.c.b16 %v6193, %v6189
    %v6710 = vpack.c.b16 %v6198, %v6194
    %v6711 = vpack.c.b16 %v6199, %v6195
    %v6712 = vpack.c.b16 %v6200, %v6196
    %v6713 = vpack.c.b16 %v6201, %v6197
    %7226 = vmatprep.subr.bf16.mxu0 %v6231
    %7227 = vmatpush1.bf16.msra.mxu0 %v6230
    %7228 = vmatprep.subr.bf16.mxu0 %v6227
    %7229 = vmatpush1.bf16.msra.mxu0 %v6226
    %7230 = vmatprep.subr.bf16.mxu0 %v6223
    %7231 = vmatpush1.bf16.msra.mxu0 %v6222
    %7232 = vmatprep.subr.bf16.mxu0 %v6219
    %7233 = vmatpush1.bf16.msra.mxu0 %v6218
    %7234 = vmatprep.subr.bf16.mxu0 %v6215
    %7235 = vmatpush1.bf16.msra.mxu0 %v6214
    %7236 = vmatprep.subr.bf16.mxu0 %v6211
    %7237 = vmatpush1.bf16.msra.mxu0 %v6210
    %7238 = vmatprep.subr.bf16.mxu0 %v6207
    %7239 = vmatpush1.bf16.msra.mxu0 %v6206
    %7240 = vmatprep.subr.bf16.mxu0 %v6203
    %7241 = vmatpush1.bf16.msra.mxu0 %v6202
    %7242 = vmatprep.subr.bf16.mxu0 %v6263
    %7243 = vmatpush2.bf16.msra.mxu0 %v6262
    %7244 = vmatprep.subr.bf16.mxu0 %v6259
    %7245 = vmatpush2.bf16.msra.mxu0 %v6258
    %7246 = vmatprep.subr.bf16.mxu0 %v6255
    %7247 = vmatpush2.bf16.msra.mxu0 %v6254
    %7248 = vmatprep.subr.bf16.mxu0 %v6251
    %7249 = vmatpush2.bf16.msra.mxu0 %v6250
    %7250 = vmatprep.subr.bf16.mxu0 %v6247
    %7251 = vmatpush2.bf16.msra.mxu0 %v6246
    %7252 = vmatprep.subr.bf16.mxu0 %v6243
    %7253 = vmatpush2.bf16.msra.mxu0 %v6242
    %7254 = vmatprep.subr.bf16.mxu0 %v6239
    %7255 = vmatpush2.bf16.msra.mxu0 %v6238
    %7256 = vmatprep.subr.bf16.mxu0 %v6235
    %7257 = vmatpush2.bf16.msra.mxu0 %v6234
    %7258 = vmatprep.mubr.bf16.mxu0 %v4117
    %7259 = vmatmul.mubr.bf16.gmra.mxu0 %v4116
    %v7260 = vpop.f32.mrf.mxu0
    %v7261 = vadd.f32 %v4649, %v7260
    %v7262 = vpop.f32.mrf.mxu0
    %v7263 = vadd.f32 %v4653, %v7262
    %v7264 = vpop.f32.mrf.mxu0
    %v7265 = vpop.f32.mrf.mxu0
    %7266 = vdwg.mxu0
    %7267 = vmatprep.subr.bf16.mxu0 %v6295
    %7268 = vmatpush1.bf16.msra.mxu0 %v6294
    %7269 = vmatprep.subr.bf16.mxu0 %v6291
    %7270 = vmatpush1.bf16.msra.mxu0 %v6290
    %7271 = vmatprep.subr.bf16.mxu0 %v6287
    %7272 = vmatpush1.bf16.msra.mxu0 %v6286
    %7273 = vmatprep.subr.bf16.mxu0 %v6283
    %7274 = vmatpush1.bf16.msra.mxu0 %v6282
    %7275 = vmatprep.subr.bf16.mxu0 %v6279
    %7276 = vmatpush1.bf16.msra.mxu0 %v6278
    %7277 = vmatprep.subr.bf16.mxu0 %v6275
    %7278 = vmatpush1.bf16.msra.mxu0 %v6274
    %7279 = vmatprep.subr.bf16.mxu0 %v6271
    %7280 = vmatpush1.bf16.msra.mxu0 %v6270
    %7281 = vmatprep.subr.bf16.mxu0 %v6267
    %7282 = vmatpush1.bf16.msra.mxu0 %v6266
    %7283 = vmatprep.subr.bf16.mxu0 %v6327
    %7284 = vmatpush2.bf16.msra.mxu0 %v6326
    %7285 = vmatprep.subr.bf16.mxu0 %v6323
    %7286 = vmatpush2.bf16.msra.mxu0 %v6322
    %7287 = vmatprep.subr.bf16.mxu0 %v6319
    %7288 = vmatpush2.bf16.msra.mxu0 %v6318
    %7289 = vmatprep.subr.bf16.mxu0 %v6315
    %7290 = vmatpush2.bf16.msra.mxu0 %v6314
    %7291 = vmatprep.subr.bf16.mxu0 %v6311
    %7292 = vmatpush2.bf16.msra.mxu0 %v6310
    %7293 = vmatprep.subr.bf16.mxu0 %v6307
    %7294 = vmatpush2.bf16.msra.mxu0 %v6306
    %7295 = vmatprep.subr.bf16.mxu0 %v6303
    %7296 = vmatpush2.bf16.msra.mxu0 %v6302
    %7297 = vmatprep.subr.bf16.mxu0 %v6299
    %7298 = vmatpush2.bf16.msra.mxu0 %v6298
    %7299 = vmatprep.mubr.bf16.mxu0 %v4119
    %7300 = vmatmul.mubr.bf16.gmra.mxu0 %v4118
    %v7301 = vpop.f32.mrf.mxu0
    %v7302 = vadd.f32 %v7261, %v7301
    %v7303 = vpop.f32.mrf.mxu0
    %v7304 = vadd.f32 %v7263, %v7303
    %v7305 = vpop.f32.mrf.mxu0
    %v7306 = vpop.f32.mrf.mxu0
    %7307 = vdwg.mxu0
    %7308 = vmatprep.subr.bf16.mxu0 %v6359
    %7309 = vmatpush1.bf16.msra.mxu0 %v6358
    %7310 = vmatprep.subr.bf16.mxu0 %v6355
    %7311 = vmatpush1.bf16.msra.mxu0 %v6354
    %7312 = vmatprep.subr.bf16.mxu0 %v6351
    %7313 = vmatpush1.bf16.msra.mxu0 %v6350
    %7314 = vmatprep.subr.bf16.mxu0 %v6347
    %7315 = vmatpush1.bf16.msra.mxu0 %v6346
    %7316 = vmatprep.subr.bf16.mxu0 %v6343
    %7317 = vmatpush1.bf16.msra.mxu0 %v6342
    %7318 = vmatprep.subr.bf16.mxu0 %v6339
    %7319 = vmatpush1.bf16.msra.mxu0 %v6338
    %7320 = vmatprep.subr.bf16.mxu0 %v6335
    %7321 = vmatpush1.bf16.msra.mxu0 %v6334
    %7322 = vmatprep.subr.bf16.mxu0 %v6331
    %7323 = vmatpush1.bf16.msra.mxu0 %v6330
    %7324 = vmatprep.subr.bf16.mxu0 %v6391
    %7325 = vmatpush2.bf16.msra.mxu0 %v6390
    %7326 = vmatprep.subr.bf16.mxu0 %v6387
    %7327 = vmatpush2.bf16.msra.mxu0 %v6386
    %7328 = vmatprep.subr.bf16.mxu0 %v6383
    %7329 = vmatpush2.bf16.msra.mxu0 %v6382
    %7330 = vmatprep.subr.bf16.mxu0 %v6379
    %7331 = vmatpush2.bf16.msra.mxu0 %v6378
    %7332 = vmatprep.subr.bf16.mxu0 %v6375
    %7333 = vmatpush2.bf16.msra.mxu0 %v6374
    %7334 = vmatprep.subr.bf16.mxu0 %v6371
    %7335 = vmatpush2.bf16.msra.mxu0 %v6370
    %7336 = vmatprep.subr.bf16.mxu0 %v6367
    %7337 = vmatpush2.bf16.msra.mxu0 %v6366
    %7338 = vmatprep.subr.bf16.mxu0 %v6363
    %7339 = vmatpush2.bf16.msra.mxu0 %v6362
    %7340 = vmatprep.mubr.bf16.mxu0 %v4121
    %7341 = vmatmul.mubr.bf16.gmra.mxu0 %v4120
    %v7342 = vpop.f32.mrf.mxu0
    %v7343 = vadd.f32 %v7302, %v7342
    %v7344 = vpop.f32.mrf.mxu0
    %v7345 = vadd.f32 %v7304, %v7344
    %v7346 = vpop.f32.mrf.mxu0
    %v7347 = vpop.f32.mrf.mxu0
    %7348 = vdwg.mxu0
    %7349 = vmatprep.subr.bf16.mxu0 %v6423
    %7350 = vmatpush1.bf16.msra.mxu0 %v6422
    %7351 = vmatprep.subr.bf16.mxu0 %v6419
    %7352 = vmatpush1.bf16.msra.mxu0 %v6418
    %7353 = vmatprep.subr.bf16.mxu0 %v6415
    %7354 = vmatpush1.bf16.msra.mxu0 %v6414
    %7355 = vmatprep.subr.bf16.mxu0 %v6411
    %7356 = vmatpush1.bf16.msra.mxu0 %v6410
    %7357 = vmatprep.subr.bf16.mxu0 %v6407
    %7358 = vmatpush1.bf16.msra.mxu0 %v6406
    %7359 = vmatprep.subr.bf16.mxu0 %v6403
    %7360 = vmatpush1.bf16.msra.mxu0 %v6402
    %7361 = vmatprep.subr.bf16.mxu0 %v6399
    %7362 = vmatpush1.bf16.msra.mxu0 %v6398
    %7363 = vmatprep.subr.bf16.mxu0 %v6395
    %7364 = vmatpush1.bf16.msra.mxu0 %v6394
    %7365 = vmatprep.subr.bf16.mxu0 %v6455
    %7366 = vmatpush2.bf16.msra.mxu0 %v6454
    %7367 = vmatprep.subr.bf16.mxu0 %v6451
    %7368 = vmatpush2.bf16.msra.mxu0 %v6450
    %7369 = vmatprep.subr.bf16.mxu0 %v6447
    %7370 = vmatpush2.bf16.msra.mxu0 %v6446
    %7371 = vmatprep.subr.bf16.mxu0 %v6443
    %7372 = vmatpush2.bf16.msra.mxu0 %v6442
    %7373 = vmatprep.subr.bf16.mxu0 %v6439
    %7374 = vmatpush2.bf16.msra.mxu0 %v6438
    %7375 = vmatprep.subr.bf16.mxu0 %v6435
    %7376 = vmatpush2.bf16.msra.mxu0 %v6434
    %7377 = vmatprep.subr.bf16.mxu0 %v6431
    %7378 = vmatpush2.bf16.msra.mxu0 %v6430
    %7379 = vmatprep.subr.bf16.mxu0 %v6427
    %7380 = vmatpush2.bf16.msra.mxu0 %v6426
    %7381 = vmatprep.mubr.bf16.mxu0 %v4123
    %7382 = vmatmul.mubr.bf16.gmra.mxu0 %v4122
    %v7383 = vpop.f32.mrf.mxu0
    %v7384 = vadd.f32 %v7343, %v7383
    %v7385 = vpop.f32.mrf.mxu0
    %v7386 = vadd.f32 %v7345, %v7385
    %v7387 = vpop.f32.mrf.mxu0
    %v7388 = vpop.f32.mrf.mxu0
    %7389 = vdwg.mxu0
    %7390 = vmatprep.subr.bf16.mxu0 %v6487
    %7391 = vmatpush1.bf16.msra.mxu0 %v6486
    %7392 = vmatprep.subr.bf16.mxu0 %v6483
    %7393 = vmatpush1.bf16.msra.mxu0 %v6482
    %7394 = vmatprep.subr.bf16.mxu0 %v6479
    %7395 = vmatpush1.bf16.msra.mxu0 %v6478
    %7396 = vmatprep.subr.bf16.mxu0 %v6475
    %7397 = vmatpush1.bf16.msra.mxu0 %v6474
    %7398 = vmatprep.subr.bf16.mxu0 %v6471
    %7399 = vmatpush1.bf16.msra.mxu0 %v6470
    %7400 = vmatprep.subr.bf16.mxu0 %v6467
    %7401 = vmatpush1.bf16.msra.mxu0 %v6466
    %7402 = vmatprep.subr.bf16.mxu0 %v6463
    %7403 = vmatpush1.bf16.msra.mxu0 %v6462
    %7404 = vmatprep.subr.bf16.mxu0 %v6459
    %7405 = vmatpush1.bf16.msra.mxu0 %v6458
    %7406 = vmatprep.subr.bf16.mxu0 %v6519
    %7407 = vmatpush2.bf16.msra.mxu0 %v6518
    %7408 = vmatprep.subr.bf16.mxu0 %v6515
    %7409 = vmatpush2.bf16.msra.mxu0 %v6514
    %7410 = vmatprep.subr.bf16.mxu0 %v6511
    %7411 = vmatpush2.bf16.msra.mxu0 %v6510
    %7412 = vmatprep.subr.bf16.mxu0 %v6507
    %7413 = vmatpush2.bf16.msra.mxu0 %v6506
    %7414 = vmatprep.subr.bf16.mxu0 %v6503
    %7415 = vmatpush2.bf16.msra.mxu0 %v6502
    %7416 = vmatprep.subr.bf16.mxu0 %v6499
    %7417 = vmatpush2.bf16.msra.mxu0 %v6498
    %7418 = vmatprep.subr.bf16.mxu0 %v6495
    %7419 = vmatpush2.bf16.msra.mxu0 %v6494
    %7420 = vmatprep.subr.bf16.mxu0 %v6491
    %7421 = vmatpush2.bf16.msra.mxu0 %v6490
    %7422 = vmatprep.mubr.bf16.mxu0 %v4125
    %7423 = vmatmul.mubr.bf16.gmra.mxu0 %v4124
    %v7424 = vpop.f32.mrf.mxu0
    %v7425 = vadd.f32 %v7384, %v7424
    %v7426 = vpop.f32.mrf.mxu0
    %v7427 = vadd.f32 %v7386, %v7426
    %v7428 = vpop.f32.mrf.mxu0
    %v7429 = vpop.f32.mrf.mxu0
    %7430 = vdwg.mxu0
    %7431 = vmatprep.subr.bf16.mxu0 %v6551
    %7432 = vmatpush1.bf16.msra.mxu0 %v6550
    %7433 = vmatprep.subr.bf16.mxu0 %v6547
    %7434 = vmatpush1.bf16.msra.mxu0 %v6546
    %7435 = vmatprep.subr.bf16.mxu0 %v6543
    %7436 = vmatpush1.bf16.msra.mxu0 %v6542
    %7437 = vmatprep.subr.bf16.mxu0 %v6539
    %7438 = vmatpush1.bf16.msra.mxu0 %v6538
    %7439 = vmatprep.subr.bf16.mxu0 %v6535
    %7440 = vmatpush1.bf16.msra.mxu0 %v6534
    %7441 = vmatprep.subr.bf16.mxu0 %v6531
    %7442 = vmatpush1.bf16.msra.mxu0 %v6530
    %7443 = vmatprep.subr.bf16.mxu0 %v6527
    %7444 = vmatpush1.bf16.msra.mxu0 %v6526
    %7445 = vmatprep.subr.bf16.mxu0 %v6523
    %7446 = vmatpush1.bf16.msra.mxu0 %v6522
    %7447 = vmatprep.subr.bf16.mxu0 %v6583
    %7448 = vmatpush2.bf16.msra.mxu0 %v6582
    %7449 = vmatprep.subr.bf16.mxu0 %v6579
    %7450 = vmatpush2.bf16.msra.mxu0 %v6578
    %7451 = vmatprep.subr.bf16.mxu0 %v6575
    %7452 = vmatpush2.bf16.msra.mxu0 %v6574
    %7453 = vmatprep.subr.bf16.mxu0 %v6571
    %7454 = vmatpush2.bf16.msra.mxu0 %v6570
    %7455 = vmatprep.subr.bf16.mxu0 %v6567
    %7456 = vmatpush2.bf16.msra.mxu0 %v6566
    %7457 = vmatprep.subr.bf16.mxu0 %v6563
    %7458 = vmatpush2.bf16.msra.mxu0 %v6562
    %7459 = vmatprep.subr.bf16.mxu0 %v6559
    %7460 = vmatpush2.bf16.msra.mxu0 %v6558
    %7461 = vmatprep.subr.bf16.mxu0 %v6555
    %7462 = vmatpush2.bf16.msra.mxu0 %v6554
    %7463 = vmatprep.mubr.bf16.mxu0 %v4127
    %7464 = vmatmul.mubr.bf16.gmra.mxu0 %v4126
    %v7465 = vpop.f32.mrf.mxu0
    %v7466 = vadd.f32 %v7425, %v7465
    %v7467 = vpop.f32.mrf.mxu0
    %v7468 = vadd.f32 %v7427, %v7467
    %v7469 = vpop.f32.mrf.mxu0
    %v7470 = vpop.f32.mrf.mxu0
    %7471 = vdwg.mxu0
    %7472 = vmatprep.subr.bf16.mxu0 %v6615
    %7473 = vmatpush1.bf16.msra.mxu0 %v6614
    %7474 = vmatprep.subr.bf16.mxu0 %v6611
    %7475 = vmatpush1.bf16.msra.mxu0 %v6610
    %7476 = vmatprep.subr.bf16.mxu0 %v6607
    %7477 = vmatpush1.bf16.msra.mxu0 %v6606
    %7478 = vmatprep.subr.bf16.mxu0 %v6603
    %7479 = vmatpush1.bf16.msra.mxu0 %v6602
    %7480 = vmatprep.subr.bf16.mxu0 %v6599
    %7481 = vmatpush1.bf16.msra.mxu0 %v6598
    %7482 = vmatprep.subr.bf16.mxu0 %v6595
    %7483 = vmatpush1.bf16.msra.mxu0 %v6594
    %7484 = vmatprep.subr.bf16.mxu0 %v6591
    %7485 = vmatpush1.bf16.msra.mxu0 %v6590
    %7486 = vmatprep.subr.bf16.mxu0 %v6587
    %7487 = vmatpush1.bf16.msra.mxu0 %v6586
    %7488 = vmatprep.subr.bf16.mxu0 %v6647
    %7489 = vmatpush2.bf16.msra.mxu0 %v6646
    %7490 = vmatprep.subr.bf16.mxu0 %v6643
    %7491 = vmatpush2.bf16.msra.mxu0 %v6642
    %7492 = vmatprep.subr.bf16.mxu0 %v6639
    %7493 = vmatpush2.bf16.msra.mxu0 %v6638
    %7494 = vmatprep.subr.bf16.mxu0 %v6635
    %7495 = vmatpush2.bf16.msra.mxu0 %v6634
    %7496 = vmatprep.subr.bf16.mxu0 %v6631
    %7497 = vmatpush2.bf16.msra.mxu0 %v6630
    %7498 = vmatprep.subr.bf16.mxu0 %v6627
    %7499 = vmatpush2.bf16.msra.mxu0 %v6626
    %7500 = vmatprep.subr.bf16.mxu0 %v6623
    %7501 = vmatpush2.bf16.msra.mxu0 %v6622
    %7502 = vmatprep.subr.bf16.mxu0 %v6619
    %7503 = vmatpush2.bf16.msra.mxu0 %v6618
    %7504 = vmatprep.mubr.bf16.mxu0 %v4129
    %7505 = vmatmul.mubr.bf16.gmra.mxu0 %v4128
    %v7506 = vpop.f32.mrf.mxu0
    %v7507 = vadd.f32 %v7466, %v7506
    %v7508 = vpop.f32.mrf.mxu0
    %v7509 = vadd.f32 %v7468, %v7508
    %v7510 = vpop.f32.mrf.mxu0
    %v7511 = vpop.f32.mrf.mxu0
    %7512 = vdwg.mxu0
    %7513 = vmatprep.subr.bf16.mxu0 %v6679
    %7514 = vmatpush1.bf16.msra.mxu0 %v6678
    %7515 = vmatprep.subr.bf16.mxu0 %v6675
    %7516 = vmatpush1.bf16.msra.mxu0 %v6674
    %7517 = vmatprep.subr.bf16.mxu0 %v6671
    %7518 = vmatpush1.bf16.msra.mxu0 %v6670
    %7519 = vmatprep.subr.bf16.mxu0 %v6667
    %7520 = vmatpush1.bf16.msra.mxu0 %v6666
    %7521 = vmatprep.subr.bf16.mxu0 %v6663
    %7522 = vmatpush1.bf16.msra.mxu0 %v6662
    %7523 = vmatprep.subr.bf16.mxu0 %v6659
    %7524 = vmatpush1.bf16.msra.mxu0 %v6658
    %7525 = vmatprep.subr.bf16.mxu0 %v6655
    %7526 = vmatpush1.bf16.msra.mxu0 %v6654
    %7527 = vmatprep.subr.bf16.mxu0 %v6651
    %7528 = vmatpush1.bf16.msra.mxu0 %v6650
    %7529 = vmatprep.subr.bf16.mxu0 %v6711
    %7530 = vmatpush2.bf16.msra.mxu0 %v6710
    %7531 = vmatprep.subr.bf16.mxu0 %v6707
    %7532 = vmatpush2.bf16.msra.mxu0 %v6706
    %7533 = vmatprep.subr.bf16.mxu0 %v6703
    %7534 = vmatpush2.bf16.msra.mxu0 %v6702
    %7535 = vmatprep.subr.bf16.mxu0 %v6699
    %7536 = vmatpush2.bf16.msra.mxu0 %v6698
    %7537 = vmatprep.subr.bf16.mxu0 %v6695
    %7538 = vmatpush2.bf16.msra.mxu0 %v6694
    %7539 = vmatprep.subr.bf16.mxu0 %v6691
    %7540 = vmatpush2.bf16.msra.mxu0 %v6690
    %7541 = vmatprep.subr.bf16.mxu0 %v6687
    %7542 = vmatpush2.bf16.msra.mxu0 %v6686
    %7543 = vmatprep.subr.bf16.mxu0 %v6683
    %7544 = vmatpush2.bf16.msra.mxu0 %v6682
    %7545 = vmatprep.mubr.bf16.mxu0 %v4131
    %7546 = vmatmul.mubr.bf16.gmra.mxu0 %v4130
    %v7547 = vpop.f32.mrf.mxu0
    %v7548 = vadd.f32 %v7507, %v7547
    %v7549 = vpop.f32.mrf.mxu0
    %v7550 = vadd.f32 %v7509, %v7549
    %v7551 = vpop.f32.mrf.mxu0
    %v7552 = vpop.f32.mrf.mxu0
    %7553 = vdwg.mxu0
    %7554 = vmatprep.subr.bf16.mxu0 %v6233
    %7555 = vmatpush1.bf16.msra.mxu0 %v6232
    %7556 = vmatprep.subr.bf16.mxu0 %v6229
    %7557 = vmatpush1.bf16.msra.mxu0 %v6228
    %7558 = vmatprep.subr.bf16.mxu0 %v6225
    %7559 = vmatpush1.bf16.msra.mxu0 %v6224
    %7560 = vmatprep.subr.bf16.mxu0 %v6221
    %7561 = vmatpush1.bf16.msra.mxu0 %v6220
    %7562 = vmatprep.subr.bf16.mxu0 %v6217
    %7563 = vmatpush1.bf16.msra.mxu0 %v6216
    %7564 = vmatprep.subr.bf16.mxu0 %v6213
    %7565 = vmatpush1.bf16.msra.mxu0 %v6212
    %7566 = vmatprep.subr.bf16.mxu0 %v6209
    %7567 = vmatpush1.bf16.msra.mxu0 %v6208
    %7568 = vmatprep.subr.bf16.mxu0 %v6205
    %7569 = vmatpush1.bf16.msra.mxu0 %v6204
    %7570 = vmatprep.subr.bf16.mxu0 %v6265
    %7571 = vmatpush2.bf16.msra.mxu0 %v6264
    %7572 = vmatprep.subr.bf16.mxu0 %v6261
    %7573 = vmatpush2.bf16.msra.mxu0 %v6260
    %7574 = vmatprep.subr.bf16.mxu0 %v6257
    %7575 = vmatpush2.bf16.msra.mxu0 %v6256
    %7576 = vmatprep.subr.bf16.mxu0 %v6253
    %7577 = vmatpush2.bf16.msra.mxu0 %v6252
    %7578 = vmatprep.subr.bf16.mxu0 %v6249
    %7579 = vmatpush2.bf16.msra.mxu0 %v6248
    %7580 = vmatprep.subr.bf16.mxu0 %v6245
    %7581 = vmatpush2.bf16.msra.mxu0 %v6244
    %7582 = vmatprep.subr.bf16.mxu0 %v6241
    %7583 = vmatpush2.bf16.msra.mxu0 %v6240
    %7584 = vmatprep.subr.bf16.mxu0 %v6237
    %7585 = vmatpush2.bf16.msra.mxu0 %v6236
    %7586 = vmatprep.mubr.bf16.mxu0 %v4117
    %7587 = vmatmul.mubr.bf16.gmra.mxu0 %v4116
    %v7588 = vpop.f32.mrf.mxu0
    %v7589 = vadd.f32 %v4657, %v7588
    %v7590 = vpop.f32.mrf.mxu0
    %v7591 = vadd.f32 %v4661, %v7590
    %v7592 = vpop.f32.mrf.mxu0
    %v7593 = vpop.f32.mrf.mxu0
    %7594 = vdwg.mxu0
    %7595 = vmatprep.subr.bf16.mxu0 %v6297
    %7596 = vmatpush1.bf16.msra.mxu0 %v6296
    %7597 = vmatprep.subr.bf16.mxu0 %v6293
    %7598 = vmatpush1.bf16.msra.mxu0 %v6292
    %7599 = vmatprep.subr.bf16.mxu0 %v6289
    %7600 = vmatpush1.bf16.msra.mxu0 %v6288
    %7601 = vmatprep.subr.bf16.mxu0 %v6285
    %7602 = vmatpush1.bf16.msra.mxu0 %v6284
    %7603 = vmatprep.subr.bf16.mxu0 %v6281
    %7604 = vmatpush1.bf16.msra.mxu0 %v6280
    %7605 = vmatprep.subr.bf16.mxu0 %v6277
    %7606 = vmatpush1.bf16.msra.mxu0 %v6276
    %7607 = vmatprep.subr.bf16.mxu0 %v6273
    %7608 = vmatpush1.bf16.msra.mxu0 %v6272
    %7609 = vmatprep.subr.bf16.mxu0 %v6269
    %7610 = vmatpush1.bf16.msra.mxu0 %v6268
    %7611 = vmatprep.subr.bf16.mxu0 %v6329
    %7612 = vmatpush2.bf16.msra.mxu0 %v6328
    %7613 = vmatprep.subr.bf16.mxu0 %v6325
    %7614 = vmatpush2.bf16.msra.mxu0 %v6324
    %7615 = vmatprep.subr.bf16.mxu0 %v6321
    %7616 = vmatpush2.bf16.msra.mxu0 %v6320
    %7617 = vmatprep.subr.bf16.mxu0 %v6317
    %7618 = vmatpush2.bf16.msra.mxu0 %v6316
    %7619 = vmatprep.subr.bf16.mxu0 %v6313
    %7620 = vmatpush2.bf16.msra.mxu0 %v6312
    %7621 = vmatprep.subr.bf16.mxu0 %v6309
    %7622 = vmatpush2.bf16.msra.mxu0 %v6308
    %7623 = vmatprep.subr.bf16.mxu0 %v6305
    %7624 = vmatpush2.bf16.msra.mxu0 %v6304
    %7625 = vmatprep.subr.bf16.mxu0 %v6301
    %7626 = vmatpush2.bf16.msra.mxu0 %v6300
    %7627 = vmatprep.mubr.bf16.mxu0 %v4119
    %7628 = vmatmul.mubr.bf16.gmra.mxu0 %v4118
    %v7629 = vpop.f32.mrf.mxu0
    %v7630 = vadd.f32 %v7589, %v7629
    %v7631 = vpop.f32.mrf.mxu0
    %v7632 = vadd.f32 %v7591, %v7631
    %v7633 = vpop.f32.mrf.mxu0
    %v7634 = vpop.f32.mrf.mxu0
    %7635 = vdwg.mxu0
    %7636 = vmatprep.subr.bf16.mxu0 %v6361
    %7637 = vmatpush1.bf16.msra.mxu0 %v6360
    %7638 = vmatprep.subr.bf16.mxu0 %v6357
    %7639 = vmatpush1.bf16.msra.mxu0 %v6356
    %7640 = vmatprep.subr.bf16.mxu0 %v6353
    %7641 = vmatpush1.bf16.msra.mxu0 %v6352
    %7642 = vmatprep.subr.bf16.mxu0 %v6349
    %7643 = vmatpush1.bf16.msra.mxu0 %v6348
    %7644 = vmatprep.subr.bf16.mxu0 %v6345
    %7645 = vmatpush1.bf16.msra.mxu0 %v6344
    %7646 = vmatprep.subr.bf16.mxu0 %v6341
    %7647 = vmatpush1.bf16.msra.mxu0 %v6340
    %7648 = vmatprep.subr.bf16.mxu0 %v6337
    %7649 = vmatpush1.bf16.msra.mxu0 %v6336
    %7650 = vmatprep.subr.bf16.mxu0 %v6333
    %7651 = vmatpush1.bf16.msra.mxu0 %v6332
    %7652 = vmatprep.subr.bf16.mxu0 %v6393
    %7653 = vmatpush2.bf16.msra.mxu0 %v6392
    %7654 = vmatprep.subr.bf16.mxu0 %v6389
    %7655 = vmatpush2.bf16.msra.mxu0 %v6388
    %7656 = vmatprep.subr.bf16.mxu0 %v6385
    %7657 = vmatpush2.bf16.msra.mxu0 %v6384
    %7658 = vmatprep.subr.bf16.mxu0 %v6381
    %7659 = vmatpush2.bf16.msra.mxu0 %v6380
    %7660 = vmatprep.subr.bf16.mxu0 %v6377
    %7661 = vmatpush2.bf16.msra.mxu0 %v6376
    %7662 = vmatprep.subr.bf16.mxu0 %v6373
    %7663 = vmatpush2.bf16.msra.mxu0 %v6372
    %7664 = vmatprep.subr.bf16.mxu0 %v6369
    %7665 = vmatpush2.bf16.msra.mxu0 %v6368
    %7666 = vmatprep.subr.bf16.mxu0 %v6365
    %7667 = vmatpush2.bf16.msra.mxu0 %v6364
    %7668 = vmatprep.mubr.bf16.mxu0 %v4121
    %7669 = vmatmul.mubr.bf16.gmra.mxu0 %v4120
    %v7670 = vpop.f32.mrf.mxu0
    %v7671 = vadd.f32 %v7630, %v7670
    %v7672 = vpop.f32.mrf.mxu0
    %v7673 = vadd.f32 %v7632, %v7672
    %v7674 = vpop.f32.mrf.mxu0
    %v7675 = vpop.f32.mrf.mxu0
    %7676 = vdwg.mxu0
    %7677 = vmatprep.subr.bf16.mxu0 %v6425
    %7678 = vmatpush1.bf16.msra.mxu0 %v6424
    %7679 = vmatprep.subr.bf16.mxu0 %v6421
    %7680 = vmatpush1.bf16.msra.mxu0 %v6420
    %7681 = vmatprep.subr.bf16.mxu0 %v6417
    %7682 = vmatpush1.bf16.msra.mxu0 %v6416
    %7683 = vmatprep.subr.bf16.mxu0 %v6413
    %7684 = vmatpush1.bf16.msra.mxu0 %v6412
    %7685 = vmatprep.subr.bf16.mxu0 %v6409
    %7686 = vmatpush1.bf16.msra.mxu0 %v6408
    %7687 = vmatprep.subr.bf16.mxu0 %v6405
    %7688 = vmatpush1.bf16.msra.mxu0 %v6404
    %7689 = vmatprep.subr.bf16.mxu0 %v6401
    %7690 = vmatpush1.bf16.msra.mxu0 %v6400
    %7691 = vmatprep.subr.bf16.mxu0 %v6397
    %7692 = vmatpush1.bf16.msra.mxu0 %v6396
    %7693 = vmatprep.subr.bf16.mxu0 %v6457
    %7694 = vmatpush2.bf16.msra.mxu0 %v6456
    %7695 = vmatprep.subr.bf16.mxu0 %v6453
    %7696 = vmatpush2.bf16.msra.mxu0 %v6452
    %7697 = vmatprep.subr.bf16.mxu0 %v6449
    %7698 = vmatpush2.bf16.msra.mxu0 %v6448
    %7699 = vmatprep.subr.bf16.mxu0 %v6445
    %7700 = vmatpush2.bf16.msra.mxu0 %v6444
    %7701 = vmatprep.subr.bf16.mxu0 %v6441
    %7702 = vmatpush2.bf16.msra.mxu0 %v6440
    %7703 = vmatprep.subr.bf16.mxu0 %v6437
    %7704 = vmatpush2.bf16.msra.mxu0 %v6436
    %7705 = vmatprep.subr.bf16.mxu0 %v6433
    %7706 = vmatpush2.bf16.msra.mxu0 %v6432
    %7707 = vmatprep.subr.bf16.mxu0 %v6429
    %7708 = vmatpush2.bf16.msra.mxu0 %v6428
    %7709 = vmatprep.mubr.bf16.mxu0 %v4123
    %7710 = vmatmul.mubr.bf16.gmra.mxu0 %v4122
    %v7711 = vpop.f32.mrf.mxu0
    %v7712 = vadd.f32 %v7671, %v7711
    %v7713 = vpop.f32.mrf.mxu0
    %v7714 = vadd.f32 %v7673, %v7713
    %v7715 = vpop.f32.mrf.mxu0
    %v7716 = vpop.f32.mrf.mxu0
    %7717 = vdwg.mxu0
    %7718 = vmatprep.subr.bf16.mxu0 %v6489
    %7719 = vmatpush1.bf16.msra.mxu0 %v6488
    %7720 = vmatprep.subr.bf16.mxu0 %v6485
    %7721 = vmatpush1.bf16.msra.mxu0 %v6484
    %7722 = vmatprep.subr.bf16.mxu0 %v6481
    %7723 = vmatpush1.bf16.msra.mxu0 %v6480
    %7724 = vmatprep.subr.bf16.mxu0 %v6477
    %7725 = vmatpush1.bf16.msra.mxu0 %v6476
    %7726 = vmatprep.subr.bf16.mxu0 %v6473
    %7727 = vmatpush1.bf16.msra.mxu0 %v6472
    %7728 = vmatprep.subr.bf16.mxu0 %v6469
    %7729 = vmatpush1.bf16.msra.mxu0 %v6468
    %7730 = vmatprep.subr.bf16.mxu0 %v6465
    %7731 = vmatpush1.bf16.msra.mxu0 %v6464
    %7732 = vmatprep.subr.bf16.mxu0 %v6461
    %7733 = vmatpush1.bf16.msra.mxu0 %v6460
    %7734 = vmatprep.subr.bf16.mxu0 %v6521
    %7735 = vmatpush2.bf16.msra.mxu0 %v6520
    %7736 = vmatprep.subr.bf16.mxu0 %v6517
    %7737 = vmatpush2.bf16.msra.mxu0 %v6516
    %7738 = vmatprep.subr.bf16.mxu0 %v6513
    %7739 = vmatpush2.bf16.msra.mxu0 %v6512
    %7740 = vmatprep.subr.bf16.mxu0 %v6509
    %7741 = vmatpush2.bf16.msra.mxu0 %v6508
    %7742 = vmatprep.subr.bf16.mxu0 %v6505
    %7743 = vmatpush2.bf16.msra.mxu0 %v6504
    %7744 = vmatprep.subr.bf16.mxu0 %v6501
    %7745 = vmatpush2.bf16.msra.mxu0 %v6500
    %7746 = vmatprep.subr.bf16.mxu0 %v6497
    %7747 = vmatpush2.bf16.msra.mxu0 %v6496
    %7748 = vmatprep.subr.bf16.mxu0 %v6493
    %7749 = vmatpush2.bf16.msra.mxu0 %v6492
    %7750 = vmatprep.mubr.bf16.mxu0 %v4125
    %7751 = vmatmul.mubr.bf16.gmra.mxu0 %v4124
    %v7752 = vpop.f32.mrf.mxu0
    %v7753 = vadd.f32 %v7712, %v7752
    %v7754 = vpop.f32.mrf.mxu0
    %v7755 = vadd.f32 %v7714, %v7754
    %v7756 = vpop.f32.mrf.mxu0
    %v7757 = vpop.f32.mrf.mxu0
    %7758 = vdwg.mxu0
    %7759 = vmatprep.subr.bf16.mxu0 %v6553
    %7760 = vmatpush1.bf16.msra.mxu0 %v6552
    %7761 = vmatprep.subr.bf16.mxu0 %v6549
    %7762 = vmatpush1.bf16.msra.mxu0 %v6548
    %7763 = vmatprep.subr.bf16.mxu0 %v6545
    %7764 = vmatpush1.bf16.msra.mxu0 %v6544
    %7765 = vmatprep.subr.bf16.mxu0 %v6541
    %7766 = vmatpush1.bf16.msra.mxu0 %v6540
    %7767 = vmatprep.subr.bf16.mxu0 %v6537
    %7768 = vmatpush1.bf16.msra.mxu0 %v6536
    %7769 = vmatprep.subr.bf16.mxu0 %v6533
    %7770 = vmatpush1.bf16.msra.mxu0 %v6532
    %7771 = vmatprep.subr.bf16.mxu0 %v6529
    %7772 = vmatpush1.bf16.msra.mxu0 %v6528
    %7773 = vmatprep.subr.bf16.mxu0 %v6525
    %7774 = vmatpush1.bf16.msra.mxu0 %v6524
    %7775 = vmatprep.subr.bf16.mxu0 %v6585
    %7776 = vmatpush2.bf16.msra.mxu0 %v6584
    %7777 = vmatprep.subr.bf16.mxu0 %v6581
    %7778 = vmatpush2.bf16.msra.mxu0 %v6580
    %7779 = vmatprep.subr.bf16.mxu0 %v6577
    %7780 = vmatpush2.bf16.msra.mxu0 %v6576
    %7781 = vmatprep.subr.bf16.mxu0 %v6573
    %7782 = vmatpush2.bf16.msra.mxu0 %v6572
    %7783 = vmatprep.subr.bf16.mxu0 %v6569
    %7784 = vmatpush2.bf16.msra.mxu0 %v6568
    %7785 = vmatprep.subr.bf16.mxu0 %v6565
    %7786 = vmatpush2.bf16.msra.mxu0 %v6564
    %7787 = vmatprep.subr.bf16.mxu0 %v6561
    %7788 = vmatpush2.bf16.msra.mxu0 %v6560
    %7789 = vmatprep.subr.bf16.mxu0 %v6557
    %7790 = vmatpush2.bf16.msra.mxu0 %v6556
    %7791 = vmatprep.mubr.bf16.mxu0 %v4127
    %7792 = vmatmul.mubr.bf16.gmra.mxu0 %v4126
    %v7793 = vpop.f32.mrf.mxu0
    %v7794 = vadd.f32 %v7753, %v7793
    %v7795 = vpop.f32.mrf.mxu0
    %v7796 = vadd.f32 %v7755, %v7795
    %v7797 = vpop.f32.mrf.mxu0
    %v7798 = vpop.f32.mrf.mxu0
    %7799 = vdwg.mxu0
    %7800 = vmatprep.subr.bf16.mxu0 %v6617
    %7801 = vmatpush1.bf16.msra.mxu0 %v6616
    %7802 = vmatprep.subr.bf16.mxu0 %v6613
    %7803 = vmatpush1.bf16.msra.mxu0 %v6612
    %7804 = vmatprep.subr.bf16.mxu0 %v6609
    %7805 = vmatpush1.bf16.msra.mxu0 %v6608
    %7806 = vmatprep.subr.bf16.mxu0 %v6605
    %7807 = vmatpush1.bf16.msra.mxu0 %v6604
    %7808 = vmatprep.subr.bf16.mxu0 %v6601
    %7809 = vmatpush1.bf16.msra.mxu0 %v6600
    %7810 = vmatprep.subr.bf16.mxu0 %v6597
    %7811 = vmatpush1.bf16.msra.mxu0 %v6596
    %7812 = vmatprep.subr.bf16.mxu0 %v6593
    %7813 = vmatpush1.bf16.msra.mxu0 %v6592
    %7814 = vmatprep.subr.bf16.mxu0 %v6589
    %7815 = vmatpush1.bf16.msra.mxu0 %v6588
    %7816 = vmatprep.subr.bf16.mxu0 %v6649
    %7817 = vmatpush2.bf16.msra.mxu0 %v6648
    %7818 = vmatprep.subr.bf16.mxu0 %v6645
    %7819 = vmatpush2.bf16.msra.mxu0 %v6644
    %7820 = vmatprep.subr.bf16.mxu0 %v6641
    %7821 = vmatpush2.bf16.msra.mxu0 %v6640
    %7822 = vmatprep.subr.bf16.mxu0 %v6637
    %7823 = vmatpush2.bf16.msra.mxu0 %v6636
    %7824 = vmatprep.subr.bf16.mxu0 %v6633
    %7825 = vmatpush2.bf16.msra.mxu0 %v6632
    %7826 = vmatprep.subr.bf16.mxu0 %v6629
    %7827 = vmatpush2.bf16.msra.mxu0 %v6628
    %7828 = vmatprep.subr.bf16.mxu0 %v6625
    %7829 = vmatpush2.bf16.msra.mxu0 %v6624
    %7830 = vmatprep.subr.bf16.mxu0 %v6621
    %7831 = vmatpush2.bf16.msra.mxu0 %v6620
    %7832 = vmatprep.mubr.bf16.mxu0 %v4129
    %7833 = vmatmul.mubr.bf16.gmra.mxu0 %v4128
    %v7834 = vpop.f32.mrf.mxu0
    %v7835 = vadd.f32 %v7794, %v7834
    %v7836 = vpop.f32.mrf.mxu0
    %v7837 = vadd.f32 %v7796, %v7836
    %v7838 = vpop.f32.mrf.mxu0
    %v7839 = vpop.f32.mrf.mxu0
    %7840 = vdwg.mxu0
    %7841 = vmatprep.subr.bf16.mxu0 %v6681
    %7842 = vmatpush1.bf16.msra.mxu0 %v6680
    %7843 = vmatprep.subr.bf16.mxu0 %v6677
    %7844 = vmatpush1.bf16.msra.mxu0 %v6676
    %7845 = vmatprep.subr.bf16.mxu0 %v6673
    %7846 = vmatpush1.bf16.msra.mxu0 %v6672
    %7847 = vmatprep.subr.bf16.mxu0 %v6669
    %7848 = vmatpush1.bf16.msra.mxu0 %v6668
    %7849 = vmatprep.subr.bf16.mxu0 %v6665
    %7850 = vmatpush1.bf16.msra.mxu0 %v6664
    %7851 = vmatprep.subr.bf16.mxu0 %v6661
    %7852 = vmatpush1.bf16.msra.mxu0 %v6660
    %7853 = vmatprep.subr.bf16.mxu0 %v6657
    %7854 = vmatpush1.bf16.msra.mxu0 %v6656
    %7855 = vmatprep.subr.bf16.mxu0 %v6653
    %7856 = vmatpush1.bf16.msra.mxu0 %v6652
    %7857 = vmatprep.subr.bf16.mxu0 %v6713
    %7858 = vmatpush2.bf16.msra.mxu0 %v6712
    %7859 = vmatprep.subr.bf16.mxu0 %v6709
    %7860 = vmatpush2.bf16.msra.mxu0 %v6708
    %7861 = vmatprep.subr.bf16.mxu0 %v6705
    %7862 = vmatpush2.bf16.msra.mxu0 %v6704
    %7863 = vmatprep.subr.bf16.mxu0 %v6701
    %7864 = vmatpush2.bf16.msra.mxu0 %v6700
    %7865 = vmatprep.subr.bf16.mxu0 %v6697
    %7866 = vmatpush2.bf16.msra.mxu0 %v6696
    %7867 = vmatprep.subr.bf16.mxu0 %v6693
    %7868 = vmatpush2.bf16.msra.mxu0 %v6692
    %7869 = vmatprep.subr.bf16.mxu0 %v6689
    %7870 = vmatpush2.bf16.msra.mxu0 %v6688
    %7871 = vmatprep.subr.bf16.mxu0 %v6685
    %7872 = vmatpush2.bf16.msra.mxu0 %v6684
    %7873 = vmatprep.mubr.bf16.mxu0 %v4131
    %7874 = vmatmul.mubr.bf16.gmra.mxu0 %v4130
    %v7875 = vpop.f32.mrf.mxu0
    %v7876 = vadd.f32 %v7835, %v7875
    %v7877 = vpop.f32.mrf.mxu0
    %v7878 = vadd.f32 %v7837, %v7877
    %v7879 = vpop.f32.mrf.mxu0
    %v7880 = vpop.f32.mrf.mxu0
    %7881 = vdwg.mxu0
    %v7882 = vmax.f32 %v7548, 0.0
    %v7883 = vmax.f32 %v7550, 0.0
    %v7884 = vmax.f32 %v7876, 0.0
    %v7885 = vmax.f32 %v7878, 0.0
    %v7886 = vpack.c.bf16 %v7882, %v7882
    %v7887 = vpack.c.bf16 %v7883, %v7883
    %v7888 = vpack.c.bf16 %v7884, %v7884
    %v7889 = vpack.c.bf16 %v7885, %v7885
    %v7890 = vld [vmem:[#allocation14] sm:$0xf]
    %v7891 = vld [vmem:[#allocation14 + $0x4] sm:$0xf]
    %v7892 = vld [vmem:[#allocation14 + $0x8] sm:$0xf]
    %v7893 = vld [vmem:[#allocation14 + $0xc] sm:$0xf]
    %v7894 = vld [vmem:[#allocation14 + $0x10] sm:$0xf]
    %v7895 = vld [vmem:[#allocation14 + $0x14] sm:$0xf]
    %v7896 = vld [vmem:[#allocation14 + $0x18] sm:$0xf]
    %v7897 = vld [vmem:[#allocation14 + $0x1c] sm:$0xf]
    %v7898 = vld [vmem:[#allocation14 + $0x20] sm:$0xf]
    %v7899 = vld [vmem:[#allocation14 + $0x24] sm:$0xf]
    %v7900 = vld [vmem:[#allocation14 + $0x28] sm:$0xf]
    %v7901 = vld [vmem:[#allocation14 + $0x2c] sm:$0xf]
    %v7902 = vld [vmem:[#allocation14 + $0x30] sm:$0xf]
    %v7903 = vld [vmem:[#allocation14 + $0x34] sm:$0xf]
    %v7904 = vld [vmem:[#allocation14 + $0x38] sm:$0xf]
    %v7905 = vld [vmem:[#allocation14 + $0x3c] sm:$0xf]
    %v7906 = vld [vmem:[#allocation14 + $0x40] sm:$0xf]
    %v7907 = vld [vmem:[#allocation14 + $0x44] sm:$0xf]
    %v7908 = vld [vmem:[#allocation14 + $0x48] sm:$0xf]
    %v7909 = vld [vmem:[#allocation14 + $0x4c] sm:$0xf]
    %v7910 = vld [vmem:[#allocation14 + $0x50] sm:$0xf]
    %v7911 = vld [vmem:[#allocation14 + $0x54] sm:$0xf]
    %v7912 = vld [vmem:[#allocation14 + $0x58] sm:$0xf]
    %v7913 = vld [vmem:[#allocation14 + $0x5c] sm:$0xf]
    %v7914 = vld [vmem:[#allocation14 + $0x60] sm:$0xf]
    %v7915 = vld [vmem:[#allocation14 + $0x64] sm:$0xf]
    %v7916 = vld [vmem:[#allocation14 + $0x68] sm:$0xf]
    %v7917 = vld [vmem:[#allocation14 + $0x6c] sm:$0xf]
    %v7918 = vld [vmem:[#allocation14 + $0x70] sm:$0xf]
    %v7919 = vld [vmem:[#allocation14 + $0x74] sm:$0xf]
    %v7920 = vld [vmem:[#allocation14 + $0x78] sm:$0xf]
    %v7921 = vld [vmem:[#allocation14 + $0x7c] sm:$0xf]
    %v7922 = vld [vmem:[#allocation14 + $0x80] sm:$0xf]
    %v7923 = vld [vmem:[#allocation14 + $0x84] sm:$0xf]
    %v7924 = vld [vmem:[#allocation14 + $0x88] sm:$0xf]
    %v7925 = vld [vmem:[#allocation14 + $0x8c] sm:$0xf]
    %v7926 = vld [vmem:[#allocation14 + $0x90] sm:$0xf]
    %v7927 = vld [vmem:[#allocation14 + $0x94] sm:$0xf]
    %v7928 = vld [vmem:[#allocation14 + $0x98] sm:$0xf]
    %v7929 = vld [vmem:[#allocation14 + $0x9c] sm:$0xf]
    %v7930 = vld [vmem:[#allocation14 + $0xa0] sm:$0xf]
    %v7931 = vld [vmem:[#allocation14 + $0xa4] sm:$0xf]
    %v7932 = vld [vmem:[#allocation14 + $0xa8] sm:$0xf]
    %v7933 = vld [vmem:[#allocation14 + $0xac] sm:$0xf]
    %v7934 = vld [vmem:[#allocation14 + $0xb0] sm:$0xf]
    %v7935 = vld [vmem:[#allocation14 + $0xb4] sm:$0xf]
    %v7936 = vld [vmem:[#allocation14 + $0xb8] sm:$0xf]
    %v7937 = vld [vmem:[#allocation14 + $0xbc] sm:$0xf]
    %v7938 = vld [vmem:[#allocation14 + $0xc0] sm:$0xf]
    %v7939 = vld [vmem:[#allocation14 + $0xc4] sm:$0xf]
    %v7940 = vld [vmem:[#allocation14 + $0xc8] sm:$0xf]
    %v7941 = vld [vmem:[#allocation14 + $0xcc] sm:$0xf]
    %v7942 = vld [vmem:[#allocation14 + $0xd0] sm:$0xf]
    %v7943 = vld [vmem:[#allocation14 + $0xd4] sm:$0xf]
    %v7944 = vld [vmem:[#allocation14 + $0xd8] sm:$0xf]
    %v7945 = vld [vmem:[#allocation14 + $0xdc] sm:$0xf]
    %v7946 = vld [vmem:[#allocation14 + $0xe0] sm:$0xf]
    %v7947 = vld [vmem:[#allocation14 + $0xe4] sm:$0xf]
    %v7948 = vld [vmem:[#allocation14 + $0xe8] sm:$0xf]
    %v7949 = vld [vmem:[#allocation14 + $0xec] sm:$0xf]
    %v7950 = vld [vmem:[#allocation14 + $0xf0] sm:$0xf]
    %v7951 = vld [vmem:[#allocation14 + $0xf4] sm:$0xf]
    %v7952 = vld [vmem:[#allocation14 + $0xf8] sm:$0xf]
    %v7953 = vld [vmem:[#allocation14 + $0xfc] sm:$0xf]
    %v7954 = vld [vmem:[#allocation16] sm:$0x1]
    %v7956 = vlaneseq
    %v7957 = vshrl.u32 %v7956, 7
    %v7958 = vsub.s32 0, %v7957
    %v7959 = vrot.slane %v7954, %v7958
    %v8025 = vunpack.c.l.b16 %v7890
    %v8026 = vunpack.c.l.b16 %v7891
    %v8027 = vunpack.c.l.b16 %v7892
    %v8028 = vunpack.c.l.b16 %v7893
    %v8029 = vunpack.c.l.b16 %v7894
    %v8030 = vunpack.c.l.b16 %v7895
    %v8031 = vunpack.c.l.b16 %v7896
    %v8032 = vunpack.c.l.b16 %v7897
    %v8033 = vunpack.c.l.b16 %v7898
    %v8034 = vunpack.c.l.b16 %v7899
    %v8035 = vunpack.c.l.b16 %v7900
    %v8036 = vunpack.c.l.b16 %v7901
    %v8037 = vunpack.c.l.b16 %v7902
    %v8038 = vunpack.c.l.b16 %v7903
    %v8039 = vunpack.c.l.b16 %v7904
    %v8040 = vunpack.c.l.b16 %v7905
    %v8041 = vunpack.c.l.b16 %v7906
    %v8042 = vunpack.c.l.b16 %v7907
    %v8043 = vunpack.c.l.b16 %v7908
    %v8044 = vunpack.c.l.b16 %v7909
    %v8045 = vunpack.c.l.b16 %v7910
    %v8046 = vunpack.c.l.b16 %v7911
    %v8047 = vunpack.c.l.b16 %v7912
    %v8048 = vunpack.c.l.b16 %v7913
    %v8049 = vunpack.c.l.b16 %v7914
    %v8050 = vunpack.c.l.b16 %v7915
    %v8051 = vunpack.c.l.b16 %v7916
    %v8052 = vunpack.c.l.b16 %v7917
    %v8053 = vunpack.c.l.b16 %v7918
    %v8054 = vunpack.c.l.b16 %v7919
    %v8055 = vunpack.c.l.b16 %v7920
    %v8056 = vunpack.c.l.b16 %v7921
    %v8057 = vunpack.c.l.b16 %v7922
    %v8058 = vunpack.c.l.b16 %v7923
    %v8059 = vunpack.c.l.b16 %v7924
    %v8060 = vunpack.c.l.b16 %v7925
    %v8061 = vunpack.c.l.b16 %v7926
    %v8062 = vunpack.c.l.b16 %v7927
    %v8063 = vunpack.c.l.b16 %v7928
    %v8064 = vunpack.c.l.b16 %v7929
    %v8065 = vunpack.c.l.b16 %v7930
    %v8066 = vunpack.c.l.b16 %v7931
    %v8067 = vunpack.c.l.b16 %v7932
    %v8068 = vunpack.c.l.b16 %v7933
    %v8069 = vunpack.c.l.b16 %v7934
    %v8070 = vunpack.c.l.b16 %v7935
    %v8071 = vunpack.c.l.b16 %v7936
    %v8072 = vunpack.c.l.b16 %v7937
    %v8073 = vunpack.c.l.b16 %v7938
    %v8074 = vunpack.c.l.b16 %v7939
    %v8075 = vunpack.c.l.b16 %v7940
    %v8076 = vunpack.c.l.b16 %v7941
    %v8077 = vunpack.c.l.b16 %v7942
    %v8078 = vunpack.c.l.b16 %v7943
    %v8079 = vunpack.c.l.b16 %v7944
    %v8080 = vunpack.c.l.b16 %v7945
    %v8081 = vunpack.c.l.b16 %v7946
    %v8082 = vunpack.c.l.b16 %v7947
    %v8083 = vunpack.c.l.b16 %v7948
    %v8084 = vunpack.c.l.b16 %v7949
    %v8085 = vunpack.c.l.b16 %v7950
    %v8086 = vunpack.c.l.b16 %v7951
    %v8087 = vunpack.c.l.b16 %v7952
    %v8088 = vunpack.c.l.b16 %v7953
    %v8089 = vpack.c.b16 %v8026, %v8025
    %v8090 = vpack.c.b16 %v8028, %v8027
    %v8091 = vpack.c.b16 %v8030, %v8029
    %v8092 = vpack.c.b16 %v8032, %v8031
    %v8093 = vpack.c.b16 %v8034, %v8033
    %v8094 = vpack.c.b16 %v8036, %v8035
    %v8095 = vpack.c.b16 %v8038, %v8037
    %v8096 = vpack.c.b16 %v8040, %v8039
    %v8097 = vpack.c.b16 %v8042, %v8041
    %v8098 = vpack.c.b16 %v8044, %v8043
    %v8099 = vpack.c.b16 %v8046, %v8045
    %v8100 = vpack.c.b16 %v8048, %v8047
    %v8101 = vpack.c.b16 %v8050, %v8049
    %v8102 = vpack.c.b16 %v8052, %v8051
    %v8103 = vpack.c.b16 %v8054, %v8053
    %v8104 = vpack.c.b16 %v8056, %v8055
    %v8105 = vpack.c.b16 %v8058, %v8057
    %v8106 = vpack.c.b16 %v8060, %v8059
    %v8107 = vpack.c.b16 %v8062, %v8061
    %v8108 = vpack.c.b16 %v8064, %v8063
    %v8109 = vpack.c.b16 %v8066, %v8065
    %v8110 = vpack.c.b16 %v8068, %v8067
    %v8111 = vpack.c.b16 %v8070, %v8069
    %v8112 = vpack.c.b16 %v8072, %v8071
    %v8113 = vpack.c.b16 %v8074, %v8073
    %v8114 = vpack.c.b16 %v8076, %v8075
    %v8115 = vpack.c.b16 %v8078, %v8077
    %v8116 = vpack.c.b16 %v8080, %v8079
    %v8117 = vpack.c.b16 %v8082, %v8081
    %v8118 = vpack.c.b16 %v8084, %v8083
    %v8119 = vpack.c.b16 %v8086, %v8085
    %v8120 = vpack.c.b16 %v8088, %v8087
    %8153 = vmatprep.subr.bf16.mxu0 0
    %8154 = vmatpush1.bf16.msra.mxu0 %v8096
    %8155 = vmatprep.subr.bf16.mxu0 0
    %8156 = vmatpush1.bf16.msra.mxu0 %v8095
    %8157 = vmatprep.subr.bf16.mxu0 0
    %8158 = vmatpush1.bf16.msra.mxu0 %v8094
    %8159 = vmatprep.subr.bf16.mxu0 0
    %8160 = vmatpush1.bf16.msra.mxu0 %v8093
    %8161 = vmatprep.subr.bf16.mxu0 0
    %8162 = vmatpush1.bf16.msra.mxu0 %v8092
    %8163 = vmatprep.subr.bf16.mxu0 0
    %8164 = vmatpush1.bf16.msra.mxu0 %v8091
    %8165 = vmatprep.subr.bf16.mxu0 0
    %8166 = vmatpush1.bf16.msra.mxu0 %v8090
    %8167 = vmatprep.subr.bf16.mxu0 0
    %8168 = vmatpush1.bf16.msra.mxu0 %v8089
    %8169 = vmatprep.subr.bf16.mxu0 0
    %8170 = vmatpush2.bf16.msra.mxu0 %v8104
    %8171 = vmatprep.subr.bf16.mxu0 0
    %8172 = vmatpush2.bf16.msra.mxu0 %v8103
    %8173 = vmatprep.subr.bf16.mxu0 0
    %8174 = vmatpush2.bf16.msra.mxu0 %v8102
    %8175 = vmatprep.subr.bf16.mxu0 0
    %8176 = vmatpush2.bf16.msra.mxu0 %v8101
    %8177 = vmatprep.subr.bf16.mxu0 0
    %8178 = vmatpush2.bf16.msra.mxu0 %v8100
    %8179 = vmatprep.subr.bf16.mxu0 0
    %8180 = vmatpush2.bf16.msra.mxu0 %v8099
    %8181 = vmatprep.subr.bf16.mxu0 0
    %8182 = vmatpush2.bf16.msra.mxu0 %v8098
    %8183 = vmatprep.subr.bf16.mxu0 0
    %8184 = vmatpush2.bf16.msra.mxu0 %v8097
    %8185 = vmatprep.mubr.bf16.mxu0 %v7887
    %8186 = vmatmul.mubr.bf16.gmra.mxu0 %v7886
    %v8187 = vpop.f32.mrf.mxu0
    %v8188 = vadd.f32 %v7959, %v8187
    %v8189 = vpop.f32.mrf.mxu0
    %v8190 = vpop.f32.mrf.mxu0
    %v8191 = vpop.f32.mrf.mxu0
    %8192 = vdwg.mxu0
    %8193 = vmatprep.subr.bf16.mxu0 0
    %8194 = vmatpush1.bf16.msra.mxu0 %v8112
    %8195 = vmatprep.subr.bf16.mxu0 0
    %8196 = vmatpush1.bf16.msra.mxu0 %v8111
    %8197 = vmatprep.subr.bf16.mxu0 0
    %8198 = vmatpush1.bf16.msra.mxu0 %v8110
    %8199 = vmatprep.subr.bf16.mxu0 0
    %8200 = vmatpush1.bf16.msra.mxu0 %v8109
    %8201 = vmatprep.subr.bf16.mxu0 0
    %8202 = vmatpush1.bf16.msra.mxu0 %v8108
    %8203 = vmatprep.subr.bf16.mxu0 0
    %8204 = vmatpush1.bf16.msra.mxu0 %v8107
    %8205 = vmatprep.subr.bf16.mxu0 0
    %8206 = vmatpush1.bf16.msra.mxu0 %v8106
    %8207 = vmatprep.subr.bf16.mxu0 0
    %8208 = vmatpush1.bf16.msra.mxu0 %v8105
    %8209 = vmatprep.subr.bf16.mxu0 0
    %8210 = vmatpush2.bf16.msra.mxu0 %v8120
    %8211 = vmatprep.subr.bf16.mxu0 0
    %8212 = vmatpush2.bf16.msra.mxu0 %v8119
    %8213 = vmatprep.subr.bf16.mxu0 0
    %8214 = vmatpush2.bf16.msra.mxu0 %v8118
    %8215 = vmatprep.subr.bf16.mxu0 0
    %8216 = vmatpush2.bf16.msra.mxu0 %v8117
    %8217 = vmatprep.subr.bf16.mxu0 0
    %8218 = vmatpush2.bf16.msra.mxu0 %v8116
    %8219 = vmatprep.subr.bf16.mxu0 0
    %8220 = vmatpush2.bf16.msra.mxu0 %v8115
    %8221 = vmatprep.subr.bf16.mxu0 0
    %8222 = vmatpush2.bf16.msra.mxu0 %v8114
    %8223 = vmatprep.subr.bf16.mxu0 0
    %8224 = vmatpush2.bf16.msra.mxu0 %v8113
    %8225 = vmatprep.mubr.bf16.mxu0 %v7889
    %8226 = vmatmul.mubr.bf16.gmra.mxu0 %v7888
    %v8227 = vpop.f32.mrf.mxu0
    %v8228 = vadd.f32 %v8188, %v8227
    %v8229 = vpop.f32.mrf.mxu0
    %v8230 = vpop.f32.mrf.mxu0
    %v8231 = vpop.f32.mrf.mxu0
    %8232 = vdwg.mxu0
    %8233 = vmax.xlane.f32.xlu0 %v8228
    %v8234 = vpop.xlane.xlu0 %8233
    %v8235 = vsub.f32 %v8228, %v8234
    %v8236 = vmul.f32 %v8235, 1.442695
    %v8237 = vpow.pop %v8236
    %8238 = vadd.xlane.f32.xlu0 %v8237
    %v8239 = vpop.xlane.xlu0 %8238
    %v8240 = vrcp.pop %v8239
    %v8241 = vmul.f32 %v8237, %v8240
    %8242 = vst [vmem:[#allocation17] sm:$0xff] %v8241
    // Predicated region
    $region74: #{tpu_custom_call.1} parent=1 // pred_check
      _
    $region75: #{tpu_custom_call.1} parent=1 // pred_check_branch
      %8244 = sbr.rel (0) target = $region77
    $region76: #{tpu_custom_call.1} parent=1 // pred_region
      %s8246 = ssub.s32 128, 128
      %8247 = vsyncadd [#allocation4], %s8246
      %s8249 = sshll.u32 [#allocation17], 4
      %s8250 = int_to_ptr.vmem [resolvable:$true] %s8249
      %8252 = dma.vmem_to_hbm [thread:$0]  %s8250, 128, %s9, [#allocation4]
    $region77: #{tpu_custom_call.1} parent=1 // pred_fallthru
      _
    // Predicated region
    $region78: #{tpu_custom_call.1} parent=1 // pred_check
      _
    $region79: #{tpu_custom_call.1} parent=1 // pred_check_branch
      %8254 = sbr.rel (0) target = $region81
    $region80: #{tpu_custom_call.1} parent=1 // pred_region
      %8255 = dma.done [#allocation4], 128
    $region81: #{tpu_custom_call.1} parent=1 // pred_fallthru
      _
    %8256 = vsyncpa [#allocation3], 1
    %8257 = vsyncpa [#allocation6], 1
    %8258 = vsyncpa [#allocation9], 1
    %8259 = vsyncpa [#allocation12], 1
    %8260 = vsyncpa [#allocation15], 1
    %8261 = vsyncpa [#allocation4], 1

</llo_original>
